<compile_context>
chip_gen: v7x
topology: tpu7x:2x2x1
jax: 0.10.0
libtpu: 0.0.40
codegen_flags: <defaults>
</compile_context>

<pallas_src>
import math

import jax
import jax.numpy as jnp
from jax.experimental import pallas as pl
from jax.experimental.pallas import tpu as pltpu


# ----------------------------------------------------------------------------
# Fused SE kernel: squeeze -> fc1 -> ReLU -> fc2 -> sigmoid -> rescale
# ----------------------------------------------------------------------------
def _make_se_kernel(bt, hw_true):
    inv_hw = 1.0 / float(hw_true)

    def kernel(x_ref, w1_ref, b1_ref, w2_ref, b2_ref, o_ref):
        # Static unroll over the Bt images in this block: the Bt gate chains
        # are independent, so their MXU/XLU/EUP latency overlaps.
        for i in range(bt):
            # Squeeze: spatial mean over the (zero-padded) lane axis -> (C,1).
            m = jnp.sum(x_ref[i], axis=-1, keepdims=True) * inv_hw
            # Excite: fc1 -> ReLU -> fc2 with column vectors.  PyTorch Linear
            # weights are (out_features, in_features), used directly (no
            # transposes / relayouts in-kernel).
            h = jnp.dot(w1_ref[...], m,
                        preferred_element_type=jnp.float32,
                        precision=jax.lax.Precision.HIGHEST) + b1_ref[...]
            h = jnp.maximum(h, 0.0)
            z = jnp.dot(w2_ref[...], h,
                        preferred_element_type=jnp.float32,
                        precision=jax.lax.Precision.HIGHEST) + b2_ref[...]
            # sigmoid(z) == 0.5 * tanh(0.5 * z) + 0.5  -- EUP tanh, no VPU
            # divide on the serial gate chain.
            s = 0.5 * jnp.tanh(0.5 * z) + 0.5                     # (C, 1)
            # Rescale: re-read x from VMEM (bounds vreg pressure) and
            # broadcast the (C,1) gate across the lane (H*W) axis.
            o_ref[i] = (x_ref[i] * s).astype(o_ref.dtype)

    return kernel


def _pick_bt(batch, per_image_bytes, budget_bytes, max_bt=8):
    """Largest divisor of `batch` (<= max_bt) whose block fits the VMEM budget,
    preferring >= 4 (then >= 2) grid steps for pipelining / v7x megacore."""
    divisors = [d for d in range(1, batch + 1)
                if batch % d == 0 and d <= max_bt
                and d * per_image_bytes <= budget_bytes]
    if not divisors:
        return 1
    for min_steps in (4, 2, 1):
        cands = [d for d in divisors if batch // d >= min_steps]
        if cands:
            return max(cands)
    return max(divisors)


def se_block(x, w1, b1, w2, b2, *, block_budget_bytes=2 << 20):
    """SEBlock forward.  x: (B, C, H, W); w1: (hidden, C); w2: (C, hidden)."""
    B, C, H, W = x.shape
    hidden = w1.shape[0]
    hw = H * W
    # Lane-dense last dim: pad HW up to a multiple of 128 (zero pad -> the
    # spatial sum is unchanged; padded lanes are sliced off afterwards).
    hw_pad = ((hw + 127) // 128) * 128
    x_flat = x.reshape(B, C, hw)
    if hw_pad != hw:
        x_flat = jnp.pad(x_flat, ((0, 0), (0, 0), (0, hw_pad - hw)))

    # VMEM budget: in + out blocks are double-buffered -> ~4 * block bytes
    # (+ ~0.3 MiB weights).  block_budget_bytes=2 MiB keeps the total well
    # under the 16 MiB (v5e) / 32 MiB (v6e, v7x) scoped-VMEM defaults.
    per_image_bytes = C * hw_pad * x.dtype.itemsize
    bt = _pick_bt(B, per_image_bytes, block_budget_bytes)
    grid = (B // bt,)

    out = pl.pallas_call(
        _make_se_kernel(bt, hw),
        out_shape=jax.ShapeDtypeStruct((B, C, hw_pad), x.dtype),
        grid_spec=pltpu.PrefetchScalarGridSpec(
            num_scalar_prefetch=0,
            grid=grid,
            in_specs=[
                pl.BlockSpec((bt, C, hw_pad), lambda b: (b, 0, 0)),
                # Constant index_maps: weights/biases are DMA'd once, reused.
                pl.BlockSpec((hidden, C), lambda b: (0, 0)),
                pl.BlockSpec((hidden, 1), lambda b: (0, 0)),
                pl.BlockSpec((C, hidden), lambda b: (0, 0)),
                pl.BlockSpec((C, 1), lambda b: (0, 0)),
            ],
            out_specs=pl.BlockSpec((bt, C, hw_pad), lambda b: (b, 0, 0)),
        ),
        compiler_params=pltpu.CompilerParams(
            dimension_semantics=("parallel",),
        ),
    )(x_flat, w1, b1.reshape(hidden, 1), w2, b2.reshape(C, 1))

    if hw_pad != hw:
        out = out[:, :, :hw]
    return out.reshape(B, C, H, W)


# ----------------------------------------------------------------------------
# Deterministic parameter construction (PyTorch nn.Linear default init layout)
# ----------------------------------------------------------------------------
def init_params(key, in_channels, reduction=16):
    hidden = in_channels // reduction
    assert hidden >= 1, "in_channels must be >= reduction"
    k1, k2, k3, k4 = jax.random.split(key, 4)
    bound1 = 1.0 / math.sqrt(in_channels)
    bound2 = 1.0 / math.sqrt(hidden)
    return {
        "w1": jax.random.uniform(k1, (hidden, in_channels), jnp.float32, -bound1, bound1),
        "b1": jax.random.uniform(k2, (hidden,), jnp.float32, -bound1, bound1),
        "w2": jax.random.uniform(k3, (in_channels, hidden), jnp.float32, -bound2, bound2),
        "b2": jax.random.uniform(k4, (in_channels,), jnp.float32, -bound2, bound2),
    }


if __name__ == "__main__":
    def reference(x, p):
        # Pure-JAX high-precision reference.
        m = x.mean(axis=(2, 3))
        h = jnp.maximum(
            jnp.einsum("bc,hc->bh", m, p["w1"], precision="highest") + p["b1"], 0.0)
        s = jax.nn.sigmoid(
            jnp.einsum("bh,ch->bc", h, p["w2"], precision="highest") + p["b2"])
        return x * s[:, :, None, None]

    fwd = jax.jit(lambda x, p: se_block(x, p["w1"], p["b1"], p["w2"], p["b2"]))

    key = jax.random.PRNGKey(0)
    configs = [
        # (B, C, H, W, reduction)
        (8, 256, 16, 16, 16),   # lane-dense HW=256; Bt=2 -> 4 pipelined steps
        (4, 64, 7, 7, 16),      # HW=49 -> padded to 128 lanes in the wrapper
    ]
    for (B, C, H, W, red) in configs:
        key, kx, kp = jax.random.split(key, 3)
        x = jax.random.normal(kx, (B, C, H, W), jnp.float32)
        params = init_params(kp, C, red)

        out = jax.block_until_ready(fwd(x, params))
        ref = reference(x, params)

        assert out.shape == (B, C, H, W), out.shape
        assert bool(jnp.all(jnp.isfinite(out)))
        assert bool(jnp.allclose(out, ref, atol=1e-4, rtol=1e-4)), float(
            jnp.max(jnp.abs(out - ref)))

    print("KERNEL_OK")
</pallas_src>

<mosaic_0001>
module attributes {stable_mosaic.version = 11 : i64} {
  func.func @kernel(%arg0: i32, %arg1: memref<2x256x256xf32, #tpu.memory_space<vmem>>, %arg2: memref<16x256xf32, #tpu.memory_space<vmem>>, %arg3: memref<16x1xf32, #tpu.memory_space<vmem>>, %arg4: memref<256x16xf32, #tpu.memory_space<vmem>>, %arg5: memref<256x1xf32, #tpu.memory_space<vmem>>, %arg6: memref<2x256x256xf32, #tpu.memory_space<vmem>>) attributes {dimension_semantics = [#tpu.dimension_semantics<parallel>], iteration_bounds = array<i64: 4>, scalar_prefetch = 0 : i64, scratch_operands = 0 : i64, tpu.core_type = #tpu.core_type<tc>, window_params = [{transform_indices = @transform_0, window_bounds = array<i64: 2, 256, 256>}, {pipeline_mode = #tpu.pipeline_mode<synchronous>, transform_indices = @transform_1, window_bounds = array<i64: 16, 256>}, {pipeline_mode = #tpu.pipeline_mode<synchronous>, transform_indices = @transform_2, window_bounds = array<i64: 16, 1>}, {pipeline_mode = #tpu.pipeline_mode<synchronous>, transform_indices = @transform_3, window_bounds = array<i64: 256, 16>}, {pipeline_mode = #tpu.pipeline_mode<synchronous>, transform_indices = @transform_4, window_bounds = array<i64: 256, 1>}, {transform_indices = @transform_5, window_bounds = array<i64: 2, 256, 256>}]} {
    %c0 = arith.constant 0 : index
    %c0_0 = arith.constant 0 : index
    %c0_1 = arith.constant 0 : index
    %0 = vector.load %arg1[%c0, %c0_0, %c0_1] : memref<2x256x256xf32, #tpu.memory_space<vmem>>, vector<1x256x256xf32>
    %1 = vector.shape_cast %0 : vector<1x256x256xf32> to vector<256x256xf32>
    %cst = arith.constant dense<0.000000e+00> : vector<256xf32>
    %2 = vector.multi_reduction <add>, %1, %cst [1] : vector<256x256xf32> to vector<256xf32>
    %3 = vector.shape_cast %2 : vector<256xf32> to vector<256x1xf32>
    %cst_2 = arith.constant 3.906250e-03 : f32
    %4 = vector.broadcast %cst_2 : f32 to vector<256x1xf32>
    %5 = arith.mulf %3, %4 : vector<256x1xf32>
    %c0_3 = arith.constant 0 : index
    %c0_4 = arith.constant 0 : index
    %6 = vector.load %arg2[%c0_3, %c0_4] : memref<16x256xf32, #tpu.memory_space<vmem>>, vector<16x256xf32>
    %cst_5 = arith.constant dense<0.000000e+00> : vector<16x1xf32>
    %7 = tpu.matmul %6, %5, %cst_5 {dimension_numbers = #tpu.dot_dimension_numbers<[1], [0], [0], [1], [0, 0, 1, 1], [], []>, precision = #tpu.contract_precision<fp32>} : vector<16x256xf32>, vector<256x1xf32>, vector<16x1xf32> -> vector<16x1xf32>
    %c0_6 = arith.constant 0 : index
    %c0_7 = arith.constant 0 : index
    %8 = vector.load %arg3[%c0_6, %c0_7] : memref<16x1xf32, #tpu.memory_space<vmem>>, vector<16x1xf32>
    %9 = arith.addf %7, %8 : vector<16x1xf32>
    %cst_8 = arith.constant 0.000000e+00 : f32
    %10 = vector.broadcast %cst_8 : f32 to vector<16x1xf32>
    %11 = arith.maximumf %9, %10 : vector<16x1xf32>
    %c0_9 = arith.constant 0 : index
    %c0_10 = arith.constant 0 : index
    %12 = vector.load %arg4[%c0_9, %c0_10] : memref<256x16xf32, #tpu.memory_space<vmem>>, vector<256x16xf32>
    %cst_11 = arith.constant dense<0.000000e+00> : vector<256x1xf32>
    %13 = tpu.matmul %12, %11, %cst_11 {dimension_numbers = #tpu.dot_dimension_numbers<[1], [0], [0], [1], [0, 0, 1, 1], [], []>, precision = #tpu.contract_precision<fp32>} : vector<256x16xf32>, vector<16x1xf32>, vector<256x1xf32> -> vector<256x1xf32>
    %c0_12 = arith.constant 0 : index
    %c0_13 = arith.constant 0 : index
    %14 = vector.load %arg5[%c0_12, %c0_13] : memref<256x1xf32, #tpu.memory_space<vmem>>, vector<256x1xf32>
    %15 = arith.addf %13, %14 : vector<256x1xf32>
    %cst_14 = arith.constant 5.000000e-01 : f32
    %16 = vector.broadcast %cst_14 : f32 to vector<256x1xf32>
    %17 = arith.mulf %16, %15 : vector<256x1xf32>
    %18 = math.tanh %17 : vector<256x1xf32>
    %cst_15 = arith.constant 5.000000e-01 : f32
    %19 = vector.broadcast %cst_15 : f32 to vector<256x1xf32>
    %20 = arith.mulf %19, %18 : vector<256x1xf32>
    %cst_16 = arith.constant 5.000000e-01 : f32
    %21 = vector.broadcast %cst_16 : f32 to vector<256x1xf32>
    %22 = arith.addf %20, %21 : vector<256x1xf32>
    %c0_17 = arith.constant 0 : index
    %c0_18 = arith.constant 0 : index
    %c0_19 = arith.constant 0 : index
    %23 = vector.load %arg1[%c0_17, %c0_18, %c0_19] : memref<2x256x256xf32, #tpu.memory_space<vmem>>, vector<1x256x256xf32>
    %24 = vector.shape_cast %23 : vector<1x256x256xf32> to vector<256x256xf32>
    %25 = vector.broadcast %22 : vector<256x1xf32> to vector<256x256xf32>
    %26 = arith.mulf %24, %25 : vector<256x256xf32>
    %c0_20 = arith.constant 0 : index
    %c0_21 = arith.constant 0 : index
    %c0_22 = arith.constant 0 : index
    %27 = vector.load %arg6[%c0_20, %c0_21, %c0_22] : memref<2x256x256xf32, #tpu.memory_space<vmem>>, vector<1x256x256xf32>
    %28 = vector.shape_cast %27 : vector<1x256x256xf32> to vector<256x256xf32>
    %29 = vector.shape_cast %26 : vector<256x256xf32> to vector<1x256x256xf32>
    tpu.vector_store %arg6[%c0_20, %c0_21, %c0_22], %29 {strides = array<i32>} : memref<2x256x256xf32, #tpu.memory_space<vmem>>, vector<1x256x256xf32>,
    %c1 = arith.constant 1 : index
    %c0_23 = arith.constant 0 : index
    %c0_24 = arith.constant 0 : index
    %30 = vector.load %arg1[%c1, %c0_23, %c0_24] : memref<2x256x256xf32, #tpu.memory_space<vmem>>, vector<1x256x256xf32>
    %31 = vector.shape_cast %30 : vector<1x256x256xf32> to vector<256x256xf32>
    %cst_25 = arith.constant dense<0.000000e+00> : vector<256xf32>
    %32 = vector.multi_reduction <add>, %31, %cst_25 [1] : vector<256x256xf32> to vector<256xf32>
    %33 = vector.shape_cast %32 : vector<256xf32> to vector<256x1xf32>
    %cst_26 = arith.constant 3.906250e-03 : f32
    %34 = vector.broadcast %cst_26 : f32 to vector<256x1xf32>
    %35 = arith.mulf %33, %34 : vector<256x1xf32>
    %c0_27 = arith.constant 0 : index
    %c0_28 = arith.constant 0 : index
    %36 = vector.load %arg2[%c0_27, %c0_28] : memref<16x256xf32, #tpu.memory_space<vmem>>, vector<16x256xf32>
    %cst_29 = arith.constant dense<0.000000e+00> : vector<16x1xf32>
    %37 = tpu.matmul %36, %35, %cst_29 {dimension_numbers = #tpu.dot_dimension_numbers<[1], [0], [0], [1], [0, 0, 1, 1], [], []>, precision = #tpu.contract_precision<fp32>} : vector<16x256xf32>, vector<256x1xf32>, vector<16x1xf32> -> vector<16x1xf32>
    %c0_30 = arith.constant 0 : index
    %c0_31 = arith.constant 0 : index
    %38 = vector.load %arg3[%c0_30, %c0_31] : memref<16x1xf32, #tpu.memory_space<vmem>>, vector<16x1xf32>
    %39 = arith.addf %37, %38 : vector<16x1xf32>
    %cst_32 = arith.constant 0.000000e+00 : f32
    %40 = vector.broadcast %cst_32 : f32 to vector<16x1xf32>
    %41 = arith.maximumf %39, %40 : vector<16x1xf32>
    %c0_33 = arith.constant 0 : index
    %c0_34 = arith.constant 0 : index
    %42 = vector.load %arg4[%c0_33, %c0_34] : memref<256x16xf32, #tpu.memory_space<vmem>>, vector<256x16xf32>
    %cst_35 = arith.constant dense<0.000000e+00> : vector<256x1xf32>
    %43 = tpu.matmul %42, %41, %cst_35 {dimension_numbers = #tpu.dot_dimension_numbers<[1], [0], [0], [1], [0, 0, 1, 1], [], []>, precision = #tpu.contract_precision<fp32>} : vector<256x16xf32>, vector<16x1xf32>, vector<256x1xf32> -> vector<256x1xf32>
    %c0_36 = arith.constant 0 : index
    %c0_37 = arith.constant 0 : index
    %44 = vector.load %arg5[%c0_36, %c0_37] : memref<256x1xf32, #tpu.memory_space<vmem>>, vector<256x1xf32>
    %45 = arith.addf %43, %44 : vector<256x1xf32>
    %cst_38 = arith.constant 5.000000e-01 : f32
    %46 = vector.broadcast %cst_38 : f32 to vector<256x1xf32>
    %47 = arith.mulf %46, %45 : vector<256x1xf32>
    %48 = math.tanh %47 : vector<256x1xf32>
    %cst_39 = arith.constant 5.000000e-01 : f32
    %49 = vector.broadcast %cst_39 : f32 to vector<256x1xf32>
    %50 = arith.mulf %49, %48 : vector<256x1xf32>
    %cst_40 = arith.constant 5.000000e-01 : f32
    %51 = vector.broadcast %cst_40 : f32 to vector<256x1xf32>
    %52 = arith.addf %50, %51 : vector<256x1xf32>
    %c1_41 = arith.constant 1 : index
    %c0_42 = arith.constant 0 : index
    %c0_43 = arith.constant 0 : index
    %53 = vector.load %arg1[%c1_41, %c0_42, %c0_43] : memref<2x256x256xf32, #tpu.memory_space<vmem>>, vector<1x256x256xf32>
    %54 = vector.shape_cast %53 : vector<1x256x256xf32> to vector<256x256xf32>
    %55 = vector.broadcast %52 : vector<256x1xf32> to vector<256x256xf32>
    %56 = arith.mulf %54, %55 : vector<256x256xf32>
    %c1_44 = arith.constant 1 : index
    %c0_45 = arith.constant 0 : index
    %c0_46 = arith.constant 0 : index
    %57 = vector.load %arg6[%c1_44, %c0_45, %c0_46] : memref<2x256x256xf32, #tpu.memory_space<vmem>>, vector<1x256x256xf32>
    %58 = vector.shape_cast %57 : vector<1x256x256xf32> to vector<256x256xf32>
    %59 = vector.shape_cast %56 : vector<256x256xf32> to vector<1x256x256xf32>
    tpu.vector_store %arg6[%c1_44, %c0_45, %c0_46], %59 {strides = array<i32>} : memref<2x256x256xf32, #tpu.memory_space<vmem>>, vector<1x256x256xf32>,
    return
  }
  func.func @transform_0(%arg0: i32) -> (i32, i32, i32) {
    %c0_i32 = arith.constant 0 : i32
    %c0_i32_0 = arith.constant 0 : i32
    %c0_i32_1 = arith.constant 0 : i32
    return %arg0, %c0_i32, %c0_i32_0 : i32, i32, i32
  }
  func.func @transform_1(%arg0: i32) -> (i32, i32) {
    %c0_i32 = arith.constant 0 : i32
    %c0_i32_0 = arith.constant 0 : i32
    %c0_i32_1 = arith.constant 0 : i32
    return %c0_i32, %c0_i32_0 : i32, i32
  }
  func.func @transform_2(%arg0: i32) -> (i32, i32) {
    %c0_i32 = arith.constant 0 : i32
    %c0_i32_0 = arith.constant 0 : i32
    %c0_i32_1 = arith.constant 0 : i32
    return %c0_i32, %c0_i32_0 : i32, i32
  }
  func.func @transform_3(%arg0: i32) -> (i32, i32) {
    %c0_i32 = arith.constant 0 : i32
    %c0_i32_0 = arith.constant 0 : i32
    %c0_i32_1 = arith.constant 0 : i32
    return %c0_i32, %c0_i32_0 : i32, i32
  }
  func.func @transform_4(%arg0: i32) -> (i32, i32) {
    %c0_i32 = arith.constant 0 : i32
    %c0_i32_0 = arith.constant 0 : i32
    %c0_i32_1 = arith.constant 0 : i32
    return %c0_i32, %c0_i32_0 : i32, i32
  }
  func.func @transform_5(%arg0: i32) -> (i32, i32, i32) {
    %c0_i32 = arith.constant 0 : i32
    %c0_i32_0 = arith.constant 0 : i32
    %c0_i32_1 = arith.constant 0 : i32
    return %arg0, %c0_i32, %c0_i32_0 : i32, i32, i32
  }
}

</mosaic_0001>

<llo_original>
// kernel: _lambda_.1
$region0: #{_lambda_.1}
  #allocation0 [shape = 'u32[]', space=smem, size = 0x4, offset = 0x4, fixed_abs, tag = 'smem constant byte address 0x4 - core index']
  #allocation1 [shape = 'u32[144,128]{1,0:T(1,128)}', space=vmem, size = 0x12000, scoped, tag = 'internal scratch']
  %s0 = inlined_call_operand.vmem [shape: f32[8,256,256], index: 0, kind: input, shape index: {}]
  %s1 = inlined_call_operand.vmem [shape: f32[16,256], index: 1, kind: input, shape index: {}]
  %s2 = inlined_call_operand.vmem [shape: f32[16,1], index: 2, kind: input, shape index: {}]
  %s3 = inlined_call_operand.vmem [shape: f32[256,16], index: 3, kind: input, shape index: {}]
  %s4 = inlined_call_operand.vmem [shape: f32[256,1], index: 4, kind: input, shape index: {}]
  %s5 = inlined_call_operand.vmem [shape: f32[8,256,256], index: 5, kind: output, shape index: {}]
  %s6 = sld [smem:[#allocation0]]
  $region53: #{_lambda_.1} parent=0
    _
  %s8 = ssub.s32 1, %s6
  %s9 = scalar_select 0, %s8, %s6
  loop: start=0, step=1, limit=6
  $region2: #{_lambda_.1} parent=0 // loop_pre_header
    _
  $region3: #{_lambda_.1} parent=0 // loop_header
    %s11 = sphi 0, %s15
    %p12 = scmp.ge.s32.totalorder %s11, 6
    %s21 = sphi 0, %s23
    %s24 = sphi 0, %s21
    %s25 = sphi 0, %s24
    %s41 = sphi 0, %s25
    %s45 = sphi 0, %s45
    %s47 = sphi 0, %s45
    %s48 = sphi 0, %s47
    %s62 = sphi 0, %s48
    %s66 = sphi 0, %s66
    %s68 = sphi 0, %s66
    %s69 = sphi 0, %s68
    %s83 = sphi 0, %s69
    %s87 = sphi 0, %s87
    %s89 = sphi 0, %s87
    %s90 = sphi 0, %s89
    %s104 = sphi 0, %s90
    %s108 = sphi 0, %s108
    %s110 = sphi 0, %s108
    %s111 = sphi 0, %s110
    %s125 = sphi 0, %s111
    %s131 = sphi 0, %s133
    %s134 = sphi 0, %s131
    %s135 = sphi 0, %s134
    %s151 = sphi 0, %s135
  $region4: #{_lambda_.1} parent=0 // loop_header_branch
    %14 = sbr.rel (%p12) target = $region8
  $region5: #{_lambda_.1} parent=0 // loop_body
    %s16 = ssub.s32 %s11, 1
    %s17 = ssub.s32 %s11, 2
    %s18 = sadd.s32 %s11, 1
    %s19 = ssub.s32 %s11, %s18
    %p20 = scmp.eq.s32.totalorder %s19, 0
    %s22 = sadd.s32 %s21, 1
    %s23 = scalar_select %p20, %s21, %s22
    %p26 = pneg %p20
    %p27 = scmp.eq.s32.totalorder %s11, 3
    %p28 = por %p26, %p27
    %p29 = scmp.ne.s32.totalorder %s21, %s24
    %p30 = scmp.eq.s32.totalorder %s11, 0
    %p31 = por %p29, %p30
    %p32 = scmp.ne.s32.totalorder %s21, %s24
    %p33 = scmp.eq.s32.totalorder %s16, 3
    %p34 = por %p32, %p33
    %p35 = scmp.ne.s32.totalorder %s24, %s25
    %p36 = scmp.eq.s32.totalorder %s16, 0
    %p37 = por %p35, %p36
    %p38 = scmp.ne.s32.totalorder %s24, %s25
    %p39 = scmp.eq.s32.totalorder %s17, 3
    %p40 = por %p38, %p39
    %p42 = scmp.ne.s32.totalorder %s25, %s41
    %p43 = scmp.eq.s32.totalorder %s17, 0
    %p44 = por %p42, %p43
    %s46 = sadd.s32 %s45, 1
    %p49 = scmp.eq.s32.totalorder %s11, 3
    %p50 = scmp.ne.s32.totalorder %s45, %s47
    %p51 = scmp.eq.s32.totalorder %s11, 0
    %p52 = por %p50, %p51
    %p53 = scmp.ne.s32.totalorder %s45, %s47
    %p54 = scmp.eq.s32.totalorder %s16, 3
    %p55 = por %p53, %p54
    %p56 = scmp.ne.s32.totalorder %s47, %s48
    %p57 = scmp.eq.s32.totalorder %s16, 0
    %p58 = por %p56, %p57
    %p59 = scmp.ne.s32.totalorder %s47, %s48
    %p60 = scmp.eq.s32.totalorder %s17, 3
    %p61 = por %p59, %p60
    %p63 = scmp.ne.s32.totalorder %s48, %s62
    %p64 = scmp.eq.s32.totalorder %s17, 0
    %p65 = por %p63, %p64
    %s67 = sadd.s32 %s66, 1
    %p70 = scmp.eq.s32.totalorder %s11, 3
    %p71 = scmp.ne.s32.totalorder %s66, %s68
    %p72 = scmp.eq.s32.totalorder %s11, 0
    %p73 = por %p71, %p72
    %p74 = scmp.ne.s32.totalorder %s66, %s68
    %p75 = scmp.eq.s32.totalorder %s16, 3
    %p76 = por %p74, %p75
    %p77 = scmp.ne.s32.totalorder %s68, %s69
    %p78 = scmp.eq.s32.totalorder %s16, 0
    %p79 = por %p77, %p78
    %p80 = scmp.ne.s32.totalorder %s68, %s69
    %p81 = scmp.eq.s32.totalorder %s17, 3
    %p82 = por %p80, %p81
    %p84 = scmp.ne.s32.totalorder %s69, %s83
    %p85 = scmp.eq.s32.totalorder %s17, 0
    %p86 = por %p84, %p85
    %s88 = sadd.s32 %s87, 1
    %p91 = scmp.eq.s32.totalorder %s11, 3
    %p92 = scmp.ne.s32.totalorder %s87, %s89
    %p93 = scmp.eq.s32.totalorder %s11, 0
    %p94 = por %p92, %p93
    %p95 = scmp.ne.s32.totalorder %s87, %s89
    %p96 = scmp.eq.s32.totalorder %s16, 3
    %p97 = por %p95, %p96
    %p98 = scmp.ne.s32.totalorder %s89, %s90
    %p99 = scmp.eq.s32.totalorder %s16, 0
    %p100 = por %p98, %p99
    %p101 = scmp.ne.s32.totalorder %s89, %s90
    %p102 = scmp.eq.s32.totalorder %s17, 3
    %p103 = por %p101, %p102
    %p105 = scmp.ne.s32.totalorder %s90, %s104
    %p106 = scmp.eq.s32.totalorder %s17, 0
    %p107 = por %p105, %p106
    %s109 = sadd.s32 %s108, 1
    %p112 = scmp.eq.s32.totalorder %s11, 3
    %p113 = scmp.ne.s32.totalorder %s108, %s110
    %p114 = scmp.eq.s32.totalorder %s11, 0
    %p115 = por %p113, %p114
    %p116 = scmp.ne.s32.totalorder %s108, %s110
    %p117 = scmp.eq.s32.totalorder %s16, 3
    %p118 = por %p116, %p117
    %p119 = scmp.ne.s32.totalorder %s110, %s111
    %p120 = scmp.eq.s32.totalorder %s16, 0
    %p121 = por %p119, %p120
    %p122 = scmp.ne.s32.totalorder %s110, %s111
    %p123 = scmp.eq.s32.totalorder %s17, 3
    %p124 = por %p122, %p123
    %p126 = scmp.ne.s32.totalorder %s111, %s125
    %p127 = scmp.eq.s32.totalorder %s17, 0
    %p128 = por %p126, %p127
    %s129 = ssub.s32 %s11, %s18
    %p130 = scmp.eq.s32.totalorder %s129, 0
    %s132 = sadd.s32 %s131, 1
    %s133 = scalar_select %p130, %s131, %s132
    %p136 = pneg %p130
    %p137 = scmp.eq.s32.totalorder %s11, 3
    %p138 = por %p136, %p137
    %p139 = scmp.ne.s32.totalorder %s131, %s134
    %p140 = scmp.eq.s32.totalorder %s11, 0
    %p141 = por %p139, %p140
    %p142 = scmp.ne.s32.totalorder %s131, %s134
    %p143 = scmp.eq.s32.totalorder %s16, 3
    %p144 = por %p142, %p143
    %p145 = scmp.ne.s32.totalorder %s134, %s135
    %p146 = scmp.eq.s32.totalorder %s16, 0
    %p147 = por %p145, %p146
    %p148 = scmp.ne.s32.totalorder %s134, %s135
    %p149 = scmp.eq.s32.totalorder %s17, 3
    %p150 = por %p148, %p149
    %p152 = scmp.ne.s32.totalorder %s135, %s151
    %p153 = scmp.eq.s32.totalorder %s17, 0
    %p154 = por %p152, %p153
    %p155 = scmp.le.s32.totalorder 1, %s11
    %p156 = scmp.lt.s32.totalorder %s11, 5
    %p157 = pnand %p155, %p156
    %p158 = pneg %p157
    // Predicated region
    $region9: #{_lambda_.1} parent=5 // pred_check
      _
    $region10: #{_lambda_.1} parent=5 // pred_check_branch
      %160 = sbr.rel (%p157) target = $region12
    $region11: #{_lambda_.1} parent=5 // pred_region
      %s161 = ssub.s32 %s11, 1
      // Predicated region
      $region13: #{_lambda_.1} parent=11 // pred_check
        %p162 = pneg %p58
      $region14: #{_lambda_.1} parent=11 // pred_check_branch
        %164 = sbr.rel (%p162) target = $region16
      $region15: #{_lambda_.1} parent=11 // pred_region
        _
      $region16: #{_lambda_.1} parent=11 // pred_fallthru
        _
      // Predicated region
      $region17: #{_lambda_.1} parent=11 // pred_check
        %p165 = pneg %p79
      $region18: #{_lambda_.1} parent=11 // pred_check_branch
        %167 = sbr.rel (%p165) target = $region20
      $region19: #{_lambda_.1} parent=11 // pred_region
        _
      $region20: #{_lambda_.1} parent=11 // pred_fallthru
        _
      // Predicated region
      $region21: #{_lambda_.1} parent=11 // pred_check
        %p168 = pneg %p100
      $region22: #{_lambda_.1} parent=11 // pred_check_branch
        %170 = sbr.rel (%p168) target = $region24
      $region23: #{_lambda_.1} parent=11 // pred_region
        _
      $region24: #{_lambda_.1} parent=11 // pred_fallthru
        _
      // Predicated region
      $region25: #{_lambda_.1} parent=11 // pred_check
        %p171 = pneg %p121
      $region26: #{_lambda_.1} parent=11 // pred_check_branch
        %173 = sbr.rel (%p171) target = $region28
      $region27: #{_lambda_.1} parent=11 // pred_region
        _
      $region28: #{_lambda_.1} parent=11 // pred_fallthru
        _
    $region12: #{_lambda_.1} parent=5 // pred_fallthru
      _
    %p174 = scmp.lt.s32.totalorder %s11, 4
    // Predicated region
    $region29: #{_lambda_.1} parent=5 // pred_check
      %p175 = pneg %p174
    $region30: #{_lambda_.1} parent=5 // pred_check_branch
      %177 = sbr.rel (%p175) target = $region32
    $region31: #{_lambda_.1} parent=5 // pred_region
      // Predicated region
      $region33: #{_lambda_.1} parent=31 // pred_check
        %p178 = pneg %p31
      $region34: #{_lambda_.1} parent=31 // pred_check_branch
        %180 = sbr.rel (%p178) target = $region36
      $region35: #{_lambda_.1} parent=31 // pred_region
        %s181 = smul.u32 2, %s11
        %p182 = scmp.lt.s32.totalorder %s181, 7
        %s183 = scalar_select %p182, %s181, 7
        %s184 = smul.addr %s183, 64
        %s185 = smul.addr %s184, 8
        %s186 = scalar_lea.vmem %s0, %s185
        %s187 = smul.u32 2, %s11
      $region36: #{_lambda_.1} parent=31 // pred_fallthru
        _
    $region32: #{_lambda_.1} parent=5 // pred_fallthru
      _
    %p188 = scmp.le.s32.totalorder 1, %s11
    %p189 = scmp.lt.s32.totalorder %s11, 5
    %p190 = pnand %p188, %p189
    %p191 = pneg %p190
    // Predicated region
    $region37: #{_lambda_.1} parent=5 // pred_check
      _
    $region38: #{_lambda_.1} parent=5 // pred_check_branch
      %193 = sbr.rel (%p190) target = $region40
    $region39: #{_lambda_.1} parent=5 // pred_region
      %s194 = ssub.s32 %s11, 1
      %s195 = smul.u32 2, %s16
      %p196 = scmp.lt.s32.totalorder %s195, 7
      %s197 = scalar_select %p196, %s195, 7
      %s198 = smul.addr %s197, 64
      %s199 = smul.addr %s198, 8
      %s200 = scalar_lea.vmem %s0, %s199
      %p201 = pneg %p37
      %p202 = pneg %p34
      %p203 = pneg %p58
      %p204 = pneg %p55
      %p205 = pneg %p79
      %p206 = pneg %p76
      %p207 = pneg %p100
      %p208 = pneg %p97
      %p209 = pneg %p121
      %p210 = pneg %p118
      %p211 = pneg %p147
      %p212 = pneg %p144
      %s213 = smul.u32 2, %s16
      %p214 = scmp.lt.s32.totalorder %s213, 7
      %s215 = scalar_select %p214, %s213, 7
      %s216 = smul.addr %s215, 64
      %s217 = smul.addr %s216, 8
      %s218 = scalar_lea.vmem %s5, %s217
      %s219 = smul.u32 2, %s16
      %p220 = scmp.lt.s32.totalorder %s219, 7
      %s221 = scalar_select %p220, %s219, 7
      %s222 = smul.addr %s221, 64
      %s223 = smul.addr %s222, 8
      %s224 = scalar_lea.vmem %s0, %s223
      %s225 = smul.u32 2, %s16
      %s226 = smul.u32 2, %s16
      %p227 = scmp.lt.s32.totalorder %s226, 7
      %s228 = scalar_select %p227, %s226, 7
      %s229 = smul.addr %s228, 64
      %s230 = smul.addr %s229, 8
      %s231 = scalar_lea.vmem %s5, %s230
      %s232 = smul.u32 2, %s16
      %v233 = vld [vmem:[%s224] sm:$0xff]
      %v234 = vld [vmem:[%s224 + $0x8] sm:$0xff]
      %v235 = vld [vmem:[%s224 + $0x10] sm:$0xff]
      %v236 = vld [vmem:[%s224 + $0x18] sm:$0xff]
      %v237 = vld [vmem:[%s224 + $0x20] sm:$0xff]
      %v238 = vld [vmem:[%s224 + $0x28] sm:$0xff]
      %v239 = vld [vmem:[%s224 + $0x30] sm:$0xff]
      %v240 = vld [vmem:[%s224 + $0x38] sm:$0xff]
      %v241 = vld [vmem:[%s224 + $0x40] sm:$0xff]
      %v242 = vld [vmem:[%s224 + $0x48] sm:$0xff]
      %v243 = vld [vmem:[%s224 + $0x50] sm:$0xff]
      %v244 = vld [vmem:[%s224 + $0x58] sm:$0xff]
      %v245 = vld [vmem:[%s224 + $0x60] sm:$0xff]
      %v246 = vld [vmem:[%s224 + $0x68] sm:$0xff]
      %v247 = vld [vmem:[%s224 + $0x70] sm:$0xff]
      %v248 = vld [vmem:[%s224 + $0x78] sm:$0xff]
      %v249 = vld [vmem:[%s224 + $0x80] sm:$0xff]
      %v250 = vld [vmem:[%s224 + $0x88] sm:$0xff]
      %v251 = vld [vmem:[%s224 + $0x90] sm:$0xff]
      %v252 = vld [vmem:[%s224 + $0x98] sm:$0xff]
      %v253 = vld [vmem:[%s224 + $0xa0] sm:$0xff]
      %v254 = vld [vmem:[%s224 + $0xa8] sm:$0xff]
      %v255 = vld [vmem:[%s224 + $0xb0] sm:$0xff]
      %v256 = vld [vmem:[%s224 + $0xb8] sm:$0xff]
      %v257 = vld [vmem:[%s224 + $0xc0] sm:$0xff]
      %v258 = vld [vmem:[%s224 + $0xc8] sm:$0xff]
      %v259 = vld [vmem:[%s224 + $0xd0] sm:$0xff]
      %v260 = vld [vmem:[%s224 + $0xd8] sm:$0xff]
      %v261 = vld [vmem:[%s224 + $0xe0] sm:$0xff]
      %v262 = vld [vmem:[%s224 + $0xe8] sm:$0xff]
      %v263 = vld [vmem:[%s224 + $0xf0] sm:$0xff]
      %v264 = vld [vmem:[%s224 + $0xf8] sm:$0xff]
      %v265 = vld [vmem:[%s224 + $0x100] sm:$0xff]
      %v266 = vld [vmem:[%s224 + $0x108] sm:$0xff]
      %v267 = vld [vmem:[%s224 + $0x110] sm:$0xff]
      %v268 = vld [vmem:[%s224 + $0x118] sm:$0xff]
      %v269 = vld [vmem:[%s224 + $0x120] sm:$0xff]
      %v270 = vld [vmem:[%s224 + $0x128] sm:$0xff]
      %v271 = vld [vmem:[%s224 + $0x130] sm:$0xff]
      %v272 = vld [vmem:[%s224 + $0x138] sm:$0xff]
      %v273 = vld [vmem:[%s224 + $0x140] sm:$0xff]
      %v274 = vld [vmem:[%s224 + $0x148] sm:$0xff]
      %v275 = vld [vmem:[%s224 + $0x150] sm:$0xff]
      %v276 = vld [vmem:[%s224 + $0x158] sm:$0xff]
      %v277 = vld [vmem:[%s224 + $0x160] sm:$0xff]
      %v278 = vld [vmem:[%s224 + $0x168] sm:$0xff]
      %v279 = vld [vmem:[%s224 + $0x170] sm:$0xff]
      %v280 = vld [vmem:[%s224 + $0x178] sm:$0xff]
      %v281 = vld [vmem:[%s224 + $0x180] sm:$0xff]
      %v282 = vld [vmem:[%s224 + $0x188] sm:$0xff]
      %v283 = vld [vmem:[%s224 + $0x190] sm:$0xff]
      %v284 = vld [vmem:[%s224 + $0x198] sm:$0xff]
      %v285 = vld [vmem:[%s224 + $0x1a0] sm:$0xff]
      %v286 = vld [vmem:[%s224 + $0x1a8] sm:$0xff]
      %v287 = vld [vmem:[%s224 + $0x1b0] sm:$0xff]
      %v288 = vld [vmem:[%s224 + $0x1b8] sm:$0xff]
      %v289 = vld [vmem:[%s224 + $0x1c0] sm:$0xff]
      %v290 = vld [vmem:[%s224 + $0x1c8] sm:$0xff]
      %v291 = vld [vmem:[%s224 + $0x1d0] sm:$0xff]
      %v292 = vld [vmem:[%s224 + $0x1d8] sm:$0xff]
      %v293 = vld [vmem:[%s224 + $0x1e0] sm:$0xff]
      %v294 = vld [vmem:[%s224 + $0x1e8] sm:$0xff]
      %v295 = vld [vmem:[%s224 + $0x1f0] sm:$0xff]
      %v296 = vld [vmem:[%s224 + $0x1f8] sm:$0xff]
      %v297 = vadd.f32 %v233, %v234
      %298 = vadd.xlane.f32.xlu0 %v297
      %v299 = vpop.xlane.xlu0 %298
      %v300 = vadd.f32 %v235, %v236
      %301 = vadd.xlane.f32.xlu0 %v300
      %v302 = vpop.xlane.xlu0 %301
      %v303 = vadd.f32 %v237, %v238
      %304 = vadd.xlane.f32.xlu0 %v303
      %v305 = vpop.xlane.xlu0 %304
      %v306 = vadd.f32 %v239, %v240
      %307 = vadd.xlane.f32.xlu0 %v306
      %v308 = vpop.xlane.xlu0 %307
      %v309 = vadd.f32 %v241, %v242
      %310 = vadd.xlane.f32.xlu0 %v309
      %v311 = vpop.xlane.xlu0 %310
      %v312 = vadd.f32 %v243, %v244
      %313 = vadd.xlane.f32.xlu0 %v312
      %v314 = vpop.xlane.xlu0 %313
      %v315 = vadd.f32 %v245, %v246
      %316 = vadd.xlane.f32.xlu0 %v315
      %v317 = vpop.xlane.xlu0 %316
      %v318 = vadd.f32 %v247, %v248
      %319 = vadd.xlane.f32.xlu0 %v318
      %v320 = vpop.xlane.xlu0 %319
      %v321 = vadd.f32 %v249, %v250
      %322 = vadd.xlane.f32.xlu0 %v321
      %v323 = vpop.xlane.xlu0 %322
      %v324 = vadd.f32 %v251, %v252
      %325 = vadd.xlane.f32.xlu0 %v324
      %v326 = vpop.xlane.xlu0 %325
      %v327 = vadd.f32 %v253, %v254
      %328 = vadd.xlane.f32.xlu0 %v327
      %v329 = vpop.xlane.xlu0 %328
      %v330 = vadd.f32 %v255, %v256
      %331 = vadd.xlane.f32.xlu0 %v330
      %v332 = vpop.xlane.xlu0 %331
      %v333 = vadd.f32 %v257, %v258
      %334 = vadd.xlane.f32.xlu0 %v333
      %v335 = vpop.xlane.xlu0 %334
      %v336 = vadd.f32 %v259, %v260
      %337 = vadd.xlane.f32.xlu0 %v336
      %v338 = vpop.xlane.xlu0 %337
      %v339 = vadd.f32 %v261, %v262
      %340 = vadd.xlane.f32.xlu0 %v339
      %v341 = vpop.xlane.xlu0 %340
      %v342 = vadd.f32 %v263, %v264
      %343 = vadd.xlane.f32.xlu0 %v342
      %v344 = vpop.xlane.xlu0 %343
      %v345 = vadd.f32 %v265, %v266
      %346 = vadd.xlane.f32.xlu0 %v345
      %v347 = vpop.xlane.xlu0 %346
      %v348 = vadd.f32 %v267, %v268
      %349 = vadd.xlane.f32.xlu0 %v348
      %v350 = vpop.xlane.xlu0 %349
      %v351 = vadd.f32 %v269, %v270
      %352 = vadd.xlane.f32.xlu0 %v351
      %v353 = vpop.xlane.xlu0 %352
      %v354 = vadd.f32 %v271, %v272
      %355 = vadd.xlane.f32.xlu0 %v354
      %v356 = vpop.xlane.xlu0 %355
      %v357 = vadd.f32 %v273, %v274
      %358 = vadd.xlane.f32.xlu0 %v357
      %v359 = vpop.xlane.xlu0 %358
      %v360 = vadd.f32 %v275, %v276
      %361 = vadd.xlane.f32.xlu0 %v360
      %v362 = vpop.xlane.xlu0 %361
      %v363 = vadd.f32 %v277, %v278
      %364 = vadd.xlane.f32.xlu0 %v363
      %v365 = vpop.xlane.xlu0 %364
      %v366 = vadd.f32 %v279, %v280
      %367 = vadd.xlane.f32.xlu0 %v366
      %v368 = vpop.xlane.xlu0 %367
      %v369 = vadd.f32 %v281, %v282
      %370 = vadd.xlane.f32.xlu0 %v369
      %v371 = vpop.xlane.xlu0 %370
      %v372 = vadd.f32 %v283, %v284
      %373 = vadd.xlane.f32.xlu0 %v372
      %v374 = vpop.xlane.xlu0 %373
      %v375 = vadd.f32 %v285, %v286
      %376 = vadd.xlane.f32.xlu0 %v375
      %v377 = vpop.xlane.xlu0 %376
      %v378 = vadd.f32 %v287, %v288
      %379 = vadd.xlane.f32.xlu0 %v378
      %v380 = vpop.xlane.xlu0 %379
      %v381 = vadd.f32 %v289, %v290
      %382 = vadd.xlane.f32.xlu0 %v381
      %v383 = vpop.xlane.xlu0 %382
      %v384 = vadd.f32 %v291, %v292
      %385 = vadd.xlane.f32.xlu0 %v384
      %v386 = vpop.xlane.xlu0 %385
      %v387 = vadd.f32 %v293, %v294
      %388 = vadd.xlane.f32.xlu0 %v387
      %v389 = vpop.xlane.xlu0 %388
      %v390 = vadd.f32 %v295, %v296
      %391 = vadd.xlane.f32.xlu0 %v390
      %v392 = vpop.xlane.xlu0 %391
      %v393 = vmul.f32 %v299, 0.00390625
      %v394 = vmul.f32 %v302, 0.00390625
      %v395 = vmul.f32 %v305, 0.00390625
      %v396 = vmul.f32 %v308, 0.00390625
      %v397 = vmul.f32 %v311, 0.00390625
      %v398 = vmul.f32 %v314, 0.00390625
      %v399 = vmul.f32 %v317, 0.00390625
      %v400 = vmul.f32 %v320, 0.00390625
      %v401 = vmul.f32 %v323, 0.00390625
      %v402 = vmul.f32 %v326, 0.00390625
      %v403 = vmul.f32 %v329, 0.00390625
      %v404 = vmul.f32 %v332, 0.00390625
      %v405 = vmul.f32 %v335, 0.00390625
      %v406 = vmul.f32 %v338, 0.00390625
      %v407 = vmul.f32 %v341, 0.00390625
      %v408 = vmul.f32 %v344, 0.00390625
      %v409 = vmul.f32 %v347, 0.00390625
      %v410 = vmul.f32 %v350, 0.00390625
      %v411 = vmul.f32 %v353, 0.00390625
      %v412 = vmul.f32 %v356, 0.00390625
      %v413 = vmul.f32 %v359, 0.00390625
      %v414 = vmul.f32 %v362, 0.00390625
      %v415 = vmul.f32 %v365, 0.00390625
      %v416 = vmul.f32 %v368, 0.00390625
      %v417 = vmul.f32 %v371, 0.00390625
      %v418 = vmul.f32 %v374, 0.00390625
      %v419 = vmul.f32 %v377, 0.00390625
      %v420 = vmul.f32 %v380, 0.00390625
      %v421 = vmul.f32 %v383, 0.00390625
      %v422 = vmul.f32 %v386, 0.00390625
      %v423 = vmul.f32 %v389, 0.00390625
      %v424 = vmul.f32 %v392, 0.00390625
      %v425 = vld [vmem:[%s1] sm:$0xff]
      %v426 = vld [vmem:[%s1 + $0x8] sm:$0xff]
      %v427 = vld [vmem:[%s1 + $0x10] sm:$0xff]
      %v428 = vld [vmem:[%s1 + $0x18] sm:$0xff]
      %v429 = vld [vmem:[%s2] sm:$0xff]
      %v430 = vld [vmem:[%s2 + $0x8] sm:$0xff]
      %431 = vmatprep.subr.mxu0 0.0
      %v432 = vand.u32 %v393, 4294901760
      %433 = vmatpush1.msra.mxu0 %v432
      %434 = vmatprep.subr.mxu0 0.0
      %v435 = vand.u32 %v394, 4294901760
      %436 = vmatpush1.msra.mxu0 %v435
      %437 = vmatprep.subr.mxu0 0.0
      %v438 = vand.u32 %v395, 4294901760
      %439 = vmatpush1.msra.mxu0 %v438
      %440 = vmatprep.subr.mxu0 0.0
      %v441 = vand.u32 %v396, 4294901760
      %442 = vmatpush1.msra.mxu0 %v441
      %443 = vmatprep.subr.mxu0 0.0
      %v444 = vand.u32 %v397, 4294901760
      %445 = vmatpush1.msra.mxu0 %v444
      %446 = vmatprep.subr.mxu0 0.0
      %v447 = vand.u32 %v398, 4294901760
      %448 = vmatpush1.msra.mxu0 %v447
      %449 = vmatprep.subr.mxu0 0.0
      %v450 = vand.u32 %v399, 4294901760
      %451 = vmatpush1.msra.mxu0 %v450
      %452 = vmatprep.subr.mxu0 0.0
      %v453 = vand.u32 %v400, 4294901760
      %454 = vmatpush1.msra.mxu0 %v453
      %455 = vmatprep.subr.mxu0 0.0
      %v456 = vand.u32 %v401, 4294901760
      %457 = vmatpush1.msra.mxu0 %v456
      %458 = vmatprep.subr.mxu0 0.0
      %v459 = vand.u32 %v402, 4294901760
      %460 = vmatpush1.msra.mxu0 %v459
      %461 = vmatprep.subr.mxu0 0.0
      %v462 = vand.u32 %v403, 4294901760
      %463 = vmatpush1.msra.mxu0 %v462
      %464 = vmatprep.subr.mxu0 0.0
      %v465 = vand.u32 %v404, 4294901760
      %466 = vmatpush1.msra.mxu0 %v465
      %467 = vmatprep.subr.mxu0 0.0
      %v468 = vand.u32 %v405, 4294901760
      %469 = vmatpush1.msra.mxu0 %v468
      %470 = vmatprep.subr.mxu0 0.0
      %v471 = vand.u32 %v406, 4294901760
      %472 = vmatpush1.msra.mxu0 %v471
      %473 = vmatprep.subr.mxu0 0.0
      %v474 = vand.u32 %v407, 4294901760
      %475 = vmatpush1.msra.mxu0 %v474
      %476 = vmatprep.subr.mxu0 0.0
      %v477 = vand.u32 %v408, 4294901760
      %478 = vmatpush1.msra.mxu0 %v477
      %479 = vmatprep.subr.mxu0 0.0
      %v480 = vand.u32 %v409, 4294901760
      %481 = vmatpush1.msra.mxu0 %v480
      %482 = vmatprep.subr.mxu0 0.0
      %v483 = vand.u32 %v410, 4294901760
      %484 = vmatpush1.msra.mxu0 %v483
      %485 = vmatprep.subr.mxu0 0.0
      %v486 = vand.u32 %v411, 4294901760
      %487 = vmatpush1.msra.mxu0 %v486
      %488 = vmatprep.subr.mxu0 0.0
      %v489 = vand.u32 %v412, 4294901760
      %490 = vmatpush1.msra.mxu0 %v489
      %491 = vmatprep.subr.mxu0 0.0
      %v492 = vand.u32 %v413, 4294901760
      %493 = vmatpush1.msra.mxu0 %v492
      %494 = vmatprep.subr.mxu0 0.0
      %v495 = vand.u32 %v414, 4294901760
      %496 = vmatpush1.msra.mxu0 %v495
      %497 = vmatprep.subr.mxu0 0.0
      %v498 = vand.u32 %v415, 4294901760
      %499 = vmatpush1.msra.mxu0 %v498
      %500 = vmatprep.subr.mxu0 0.0
      %v501 = vand.u32 %v416, 4294901760
      %502 = vmatpush1.msra.mxu0 %v501
      %503 = vmatprep.subr.mxu0 0.0
      %v504 = vand.u32 %v417, 4294901760
      %505 = vmatpush1.msra.mxu0 %v504
      %506 = vmatprep.subr.mxu0 0.0
      %v507 = vand.u32 %v418, 4294901760
      %508 = vmatpush1.msra.mxu0 %v507
      %509 = vmatprep.subr.mxu0 0.0
      %v510 = vand.u32 %v419, 4294901760
      %511 = vmatpush1.msra.mxu0 %v510
      %512 = vmatprep.subr.mxu0 0.0
      %v513 = vand.u32 %v420, 4294901760
      %514 = vmatpush1.msra.mxu0 %v513
      %515 = vmatprep.subr.mxu0 0.0
      %v516 = vand.u32 %v421, 4294901760
      %517 = vmatpush1.msra.mxu0 %v516
      %518 = vmatprep.subr.mxu0 0.0
      %v519 = vand.u32 %v422, 4294901760
      %520 = vmatpush1.msra.mxu0 %v519
      %521 = vmatprep.subr.mxu0 0.0
      %v522 = vand.u32 %v423, 4294901760
      %523 = vmatpush1.msra.mxu0 %v522
      %524 = vmatprep.subr.mxu0 0.0
      %v525 = vand.u32 %v424, 4294901760
      %526 = vmatpush1.msra.mxu0 %v525
      %v527 = vand.u32 %v426, 4294901760
      %v528 = vsub.f32 %v426, %v527
      %v529 = vand.u32 %v528, 4294901760
      %v530 = vsub.f32 %v528, %v529
      %v531 = vand.u32 %v530, 4294901760
      %532 = vmatprep.mubr.f32.mxu0 %v531
      %v533 = vand.u32 %v425, 4294901760
      %v534 = vsub.f32 %v425, %v533
      %v535 = vand.u32 %v534, 4294901760
      %v536 = vsub.f32 %v534, %v535
      %v537 = vand.u32 %v536, 4294901760
      %538 = vmatmul.mubr.f32.gmra.mrb[0].mxu0 %v537
      %v539 = vpop.f32.mrb[0].mxu0
      %v540 = vadd.f32 %v429, %v539
      %v541 = vpop.f32.mrb[0].mxu0
      %v542 = vand.u32 %v428, 4294901760
      %v543 = vsub.f32 %v428, %v542
      %v544 = vand.u32 %v543, 4294901760
      %v545 = vsub.f32 %v543, %v544
      %v546 = vand.u32 %v545, 4294901760
      %547 = vmatprep.mubr.f32.mxu0 %v546
      %v548 = vand.u32 %v427, 4294901760
      %v549 = vsub.f32 %v427, %v548
      %v550 = vand.u32 %v549, 4294901760
      %v551 = vsub.f32 %v549, %v550
      %v552 = vand.u32 %v551, 4294901760
      %553 = vmatmul.mubr.f32.gmra.mrb[0].mxu0 %v552
      %v554 = vpop.f32.mrb[0].mxu0
      %v555 = vadd.f32 %v430, %v554
      %v556 = vpop.f32.mrb[0].mxu0
      %557 = vdwg.mxu0
      %558 = vmatprep.subr.mxu0 0.0
      %v559 = vand.u32 %v393, 4294901760
      %v560 = vsub.f32 %v393, %v559
      %v561 = vand.u32 %v560, 4294901760
      %v562 = vsub.f32 %v560, %v561
      %v563 = vand.u32 %v562, 4294901760
      %564 = vmatpush1.msra.mxu0 %v563
      %565 = vmatprep.subr.mxu0 0.0
      %v566 = vand.u32 %v394, 4294901760
      %v567 = vsub.f32 %v394, %v566
      %v568 = vand.u32 %v567, 4294901760
      %v569 = vsub.f32 %v567, %v568
      %v570 = vand.u32 %v569, 4294901760
      %571 = vmatpush1.msra.mxu0 %v570
      %572 = vmatprep.subr.mxu0 0.0
      %v573 = vand.u32 %v395, 4294901760
      %v574 = vsub.f32 %v395, %v573
      %v575 = vand.u32 %v574, 4294901760
      %v576 = vsub.f32 %v574, %v575
      %v577 = vand.u32 %v576, 4294901760
      %578 = vmatpush1.msra.mxu0 %v577
      %579 = vmatprep.subr.mxu0 0.0
      %v580 = vand.u32 %v396, 4294901760
      %v581 = vsub.f32 %v396, %v580
      %v582 = vand.u32 %v581, 4294901760
      %v583 = vsub.f32 %v581, %v582
      %v584 = vand.u32 %v583, 4294901760
      %585 = vmatpush1.msra.mxu0 %v584
      %586 = vmatprep.subr.mxu0 0.0
      %v587 = vand.u32 %v397, 4294901760
      %v588 = vsub.f32 %v397, %v587
      %v589 = vand.u32 %v588, 4294901760
      %v590 = vsub.f32 %v588, %v589
      %v591 = vand.u32 %v590, 4294901760
      %592 = vmatpush1.msra.mxu0 %v591
      %593 = vmatprep.subr.mxu0 0.0
      %v594 = vand.u32 %v398, 4294901760
      %v595 = vsub.f32 %v398, %v594
      %v596 = vand.u32 %v595, 4294901760
      %v597 = vsub.f32 %v595, %v596
      %v598 = vand.u32 %v597, 4294901760
      %599 = vmatpush1.msra.mxu0 %v598
      %600 = vmatprep.subr.mxu0 0.0
      %v601 = vand.u32 %v399, 4294901760
      %v602 = vsub.f32 %v399, %v601
      %v603 = vand.u32 %v602, 4294901760
      %v604 = vsub.f32 %v602, %v603
      %v605 = vand.u32 %v604, 4294901760
      %606 = vmatpush1.msra.mxu0 %v605
      %607 = vmatprep.subr.mxu0 0.0
      %v608 = vand.u32 %v400, 4294901760
      %v609 = vsub.f32 %v400, %v608
      %v610 = vand.u32 %v609, 4294901760
      %v611 = vsub.f32 %v609, %v610
      %v612 = vand.u32 %v611, 4294901760
      %613 = vmatpush1.msra.mxu0 %v612
      %614 = vmatprep.subr.mxu0 0.0
      %v615 = vand.u32 %v401, 4294901760
      %v616 = vsub.f32 %v401, %v615
      %v617 = vand.u32 %v616, 4294901760
      %v618 = vsub.f32 %v616, %v617
      %v619 = vand.u32 %v618, 4294901760
      %620 = vmatpush1.msra.mxu0 %v619
      %621 = vmatprep.subr.mxu0 0.0
      %v622 = vand.u32 %v402, 4294901760
      %v623 = vsub.f32 %v402, %v622
      %v624 = vand.u32 %v623, 4294901760
      %v625 = vsub.f32 %v623, %v624
      %v626 = vand.u32 %v625, 4294901760
      %627 = vmatpush1.msra.mxu0 %v626
      %628 = vmatprep.subr.mxu0 0.0
      %v629 = vand.u32 %v403, 4294901760
      %v630 = vsub.f32 %v403, %v629
      %v631 = vand.u32 %v630, 4294901760
      %v632 = vsub.f32 %v630, %v631
      %v633 = vand.u32 %v632, 4294901760
      %634 = vmatpush1.msra.mxu0 %v633
      %635 = vmatprep.subr.mxu0 0.0
      %v636 = vand.u32 %v404, 4294901760
      %v637 = vsub.f32 %v404, %v636
      %v638 = vand.u32 %v637, 4294901760
      %v639 = vsub.f32 %v637, %v638
      %v640 = vand.u32 %v639, 4294901760
      %641 = vmatpush1.msra.mxu0 %v640
      %642 = vmatprep.subr.mxu0 0.0
      %v643 = vand.u32 %v405, 4294901760
      %v644 = vsub.f32 %v405, %v643
      %v645 = vand.u32 %v644, 4294901760
      %v646 = vsub.f32 %v644, %v645
      %v647 = vand.u32 %v646, 4294901760
      %648 = vmatpush1.msra.mxu0 %v647
      %649 = vmatprep.subr.mxu0 0.0
      %v650 = vand.u32 %v406, 4294901760
      %v651 = vsub.f32 %v406, %v650
      %v652 = vand.u32 %v651, 4294901760
      %v653 = vsub.f32 %v651, %v652
      %v654 = vand.u32 %v653, 4294901760
      %655 = vmatpush1.msra.mxu0 %v654
      %656 = vmatprep.subr.mxu0 0.0
      %v657 = vand.u32 %v407, 4294901760
      %v658 = vsub.f32 %v407, %v657
      %v659 = vand.u32 %v658, 4294901760
      %v660 = vsub.f32 %v658, %v659
      %v661 = vand.u32 %v660, 4294901760
      %662 = vmatpush1.msra.mxu0 %v661
      %663 = vmatprep.subr.mxu0 0.0
      %v664 = vand.u32 %v408, 4294901760
      %v665 = vsub.f32 %v408, %v664
      %v666 = vand.u32 %v665, 4294901760
      %v667 = vsub.f32 %v665, %v666
      %v668 = vand.u32 %v667, 4294901760
      %669 = vmatpush1.msra.mxu0 %v668
      %670 = vmatprep.subr.mxu0 0.0
      %v671 = vand.u32 %v409, 4294901760
      %v672 = vsub.f32 %v409, %v671
      %v673 = vand.u32 %v672, 4294901760
      %v674 = vsub.f32 %v672, %v673
      %v675 = vand.u32 %v674, 4294901760
      %676 = vmatpush1.msra.mxu0 %v675
      %677 = vmatprep.subr.mxu0 0.0
      %v678 = vand.u32 %v410, 4294901760
      %v679 = vsub.f32 %v410, %v678
      %v680 = vand.u32 %v679, 4294901760
      %v681 = vsub.f32 %v679, %v680
      %v682 = vand.u32 %v681, 4294901760
      %683 = vmatpush1.msra.mxu0 %v682
      %684 = vmatprep.subr.mxu0 0.0
      %v685 = vand.u32 %v411, 4294901760
      %v686 = vsub.f32 %v411, %v685
      %v687 = vand.u32 %v686, 4294901760
      %v688 = vsub.f32 %v686, %v687
      %v689 = vand.u32 %v688, 4294901760
      %690 = vmatpush1.msra.mxu0 %v689
      %691 = vmatprep.subr.mxu0 0.0
      %v692 = vand.u32 %v412, 4294901760
      %v693 = vsub.f32 %v412, %v692
      %v694 = vand.u32 %v693, 4294901760
      %v695 = vsub.f32 %v693, %v694
      %v696 = vand.u32 %v695, 4294901760
      %697 = vmatpush1.msra.mxu0 %v696
      %698 = vmatprep.subr.mxu0 0.0
      %v699 = vand.u32 %v413, 4294901760
      %v700 = vsub.f32 %v413, %v699
      %v701 = vand.u32 %v700, 4294901760
      %v702 = vsub.f32 %v700, %v701
      %v703 = vand.u32 %v702, 4294901760
      %704 = vmatpush1.msra.mxu0 %v703
      %705 = vmatprep.subr.mxu0 0.0
      %v706 = vand.u32 %v414, 4294901760
      %v707 = vsub.f32 %v414, %v706
      %v708 = vand.u32 %v707, 4294901760
      %v709 = vsub.f32 %v707, %v708
      %v710 = vand.u32 %v709, 4294901760
      %711 = vmatpush1.msra.mxu0 %v710
      %712 = vmatprep.subr.mxu0 0.0
      %v713 = vand.u32 %v415, 4294901760
      %v714 = vsub.f32 %v415, %v713
      %v715 = vand.u32 %v714, 4294901760
      %v716 = vsub.f32 %v714, %v715
      %v717 = vand.u32 %v716, 4294901760
      %718 = vmatpush1.msra.mxu0 %v717
      %719 = vmatprep.subr.mxu0 0.0
      %v720 = vand.u32 %v416, 4294901760
      %v721 = vsub.f32 %v416, %v720
      %v722 = vand.u32 %v721, 4294901760
      %v723 = vsub.f32 %v721, %v722
      %v724 = vand.u32 %v723, 4294901760
      %725 = vmatpush1.msra.mxu0 %v724
      %726 = vmatprep.subr.mxu0 0.0
      %v727 = vand.u32 %v417, 4294901760
      %v728 = vsub.f32 %v417, %v727
      %v729 = vand.u32 %v728, 4294901760
      %v730 = vsub.f32 %v728, %v729
      %v731 = vand.u32 %v730, 4294901760
      %732 = vmatpush1.msra.mxu0 %v731
      %733 = vmatprep.subr.mxu0 0.0
      %v734 = vand.u32 %v418, 4294901760
      %v735 = vsub.f32 %v418, %v734
      %v736 = vand.u32 %v735, 4294901760
      %v737 = vsub.f32 %v735, %v736
      %v738 = vand.u32 %v737, 4294901760
      %739 = vmatpush1.msra.mxu0 %v738
      %740 = vmatprep.subr.mxu0 0.0
      %v741 = vand.u32 %v419, 4294901760
      %v742 = vsub.f32 %v419, %v741
      %v743 = vand.u32 %v742, 4294901760
      %v744 = vsub.f32 %v742, %v743
      %v745 = vand.u32 %v744, 4294901760
      %746 = vmatpush1.msra.mxu0 %v745
      %747 = vmatprep.subr.mxu0 0.0
      %v748 = vand.u32 %v420, 4294901760
      %v749 = vsub.f32 %v420, %v748
      %v750 = vand.u32 %v749, 4294901760
      %v751 = vsub.f32 %v749, %v750
      %v752 = vand.u32 %v751, 4294901760
      %753 = vmatpush1.msra.mxu0 %v752
      %754 = vmatprep.subr.mxu0 0.0
      %v755 = vand.u32 %v421, 4294901760
      %v756 = vsub.f32 %v421, %v755
      %v757 = vand.u32 %v756, 4294901760
      %v758 = vsub.f32 %v756, %v757
      %v759 = vand.u32 %v758, 4294901760
      %760 = vmatpush1.msra.mxu0 %v759
      %761 = vmatprep.subr.mxu0 0.0
      %v762 = vand.u32 %v422, 4294901760
      %v763 = vsub.f32 %v422, %v762
      %v764 = vand.u32 %v763, 4294901760
      %v765 = vsub.f32 %v763, %v764
      %v766 = vand.u32 %v765, 4294901760
      %767 = vmatpush1.msra.mxu0 %v766
      %768 = vmatprep.subr.mxu0 0.0
      %v769 = vand.u32 %v423, 4294901760
      %v770 = vsub.f32 %v423, %v769
      %v771 = vand.u32 %v770, 4294901760
      %v772 = vsub.f32 %v770, %v771
      %v773 = vand.u32 %v772, 4294901760
      %774 = vmatpush1.msra.mxu0 %v773
      %775 = vmatprep.subr.mxu0 0.0
      %v776 = vand.u32 %v424, 4294901760
      %v777 = vsub.f32 %v424, %v776
      %v778 = vand.u32 %v777, 4294901760
      %v779 = vsub.f32 %v777, %v778
      %v780 = vand.u32 %v779, 4294901760
      %781 = vmatpush1.msra.mxu0 %v780
      %v782 = vand.u32 %v426, 4294901760
      %783 = vmatprep.mubr.f32.mxu0 %v782
      %v784 = vand.u32 %v425, 4294901760
      %785 = vmatmul.mubr.f32.gmra.mrb[0].mxu0 %v784
      %v786 = vpop.f32.mrb[0].mxu0
      %v787 = vadd.f32 %v540, %v786
      %v788 = vpop.f32.mrb[0].mxu0
      %v789 = vand.u32 %v428, 4294901760
      %790 = vmatprep.mubr.f32.mxu0 %v789
      %v791 = vand.u32 %v427, 4294901760
      %792 = vmatmul.mubr.f32.gmra.mrb[0].mxu0 %v791
      %v793 = vpop.f32.mrb[0].mxu0
      %v794 = vadd.f32 %v555, %v793
      %v795 = vpop.f32.mrb[0].mxu0
      %796 = vdwg.mxu0
      %797 = vmatprep.subr.mxu0 0.0
      %v798 = vand.u32 %v393, 4294901760
      %v799 = vsub.f32 %v393, %v798
      %800 = vmatpush1.msra.mxu0 %v799
      %801 = vmatprep.subr.mxu0 0.0
      %v802 = vand.u32 %v394, 4294901760
      %v803 = vsub.f32 %v394, %v802
      %804 = vmatpush1.msra.mxu0 %v803
      %805 = vmatprep.subr.mxu0 0.0
      %v806 = vand.u32 %v395, 4294901760
      %v807 = vsub.f32 %v395, %v806
      %808 = vmatpush1.msra.mxu0 %v807
      %809 = vmatprep.subr.mxu0 0.0
      %v810 = vand.u32 %v396, 4294901760
      %v811 = vsub.f32 %v396, %v810
      %812 = vmatpush1.msra.mxu0 %v811
      %813 = vmatprep.subr.mxu0 0.0
      %v814 = vand.u32 %v397, 4294901760
      %v815 = vsub.f32 %v397, %v814
      %816 = vmatpush1.msra.mxu0 %v815
      %817 = vmatprep.subr.mxu0 0.0
      %v818 = vand.u32 %v398, 4294901760
      %v819 = vsub.f32 %v398, %v818
      %820 = vmatpush1.msra.mxu0 %v819
      %821 = vmatprep.subr.mxu0 0.0
      %v822 = vand.u32 %v399, 4294901760
      %v823 = vsub.f32 %v399, %v822
      %824 = vmatpush1.msra.mxu0 %v823
      %825 = vmatprep.subr.mxu0 0.0
      %v826 = vand.u32 %v400, 4294901760
      %v827 = vsub.f32 %v400, %v826
      %828 = vmatpush1.msra.mxu0 %v827
      %829 = vmatprep.subr.mxu0 0.0
      %v830 = vand.u32 %v401, 4294901760
      %v831 = vsub.f32 %v401, %v830
      %832 = vmatpush1.msra.mxu0 %v831
      %833 = vmatprep.subr.mxu0 0.0
      %v834 = vand.u32 %v402, 4294901760
      %v835 = vsub.f32 %v402, %v834
      %836 = vmatpush1.msra.mxu0 %v835
      %837 = vmatprep.subr.mxu0 0.0
      %v838 = vand.u32 %v403, 4294901760
      %v839 = vsub.f32 %v403, %v838
      %840 = vmatpush1.msra.mxu0 %v839
      %841 = vmatprep.subr.mxu0 0.0
      %v842 = vand.u32 %v404, 4294901760
      %v843 = vsub.f32 %v404, %v842
      %844 = vmatpush1.msra.mxu0 %v843
      %845 = vmatprep.subr.mxu0 0.0
      %v846 = vand.u32 %v405, 4294901760
      %v847 = vsub.f32 %v405, %v846
      %848 = vmatpush1.msra.mxu0 %v847
      %849 = vmatprep.subr.mxu0 0.0
      %v850 = vand.u32 %v406, 4294901760
      %v851 = vsub.f32 %v406, %v850
      %852 = vmatpush1.msra.mxu0 %v851
      %853 = vmatprep.subr.mxu0 0.0
      %v854 = vand.u32 %v407, 4294901760
      %v855 = vsub.f32 %v407, %v854
      %856 = vmatpush1.msra.mxu0 %v855
      %857 = vmatprep.subr.mxu0 0.0
      %v858 = vand.u32 %v408, 4294901760
      %v859 = vsub.f32 %v408, %v858
      %860 = vmatpush1.msra.mxu0 %v859
      %861 = vmatprep.subr.mxu0 0.0
      %v862 = vand.u32 %v409, 4294901760
      %v863 = vsub.f32 %v409, %v862
      %864 = vmatpush1.msra.mxu0 %v863
      %865 = vmatprep.subr.mxu0 0.0
      %v866 = vand.u32 %v410, 4294901760
      %v867 = vsub.f32 %v410, %v866
      %868 = vmatpush1.msra.mxu0 %v867
      %869 = vmatprep.subr.mxu0 0.0
      %v870 = vand.u32 %v411, 4294901760
      %v871 = vsub.f32 %v411, %v870
      %872 = vmatpush1.msra.mxu0 %v871
      %873 = vmatprep.subr.mxu0 0.0
      %v874 = vand.u32 %v412, 4294901760
      %v875 = vsub.f32 %v412, %v874
      %876 = vmatpush1.msra.mxu0 %v875
      %877 = vmatprep.subr.mxu0 0.0
      %v878 = vand.u32 %v413, 4294901760
      %v879 = vsub.f32 %v413, %v878
      %880 = vmatpush1.msra.mxu0 %v879
      %881 = vmatprep.subr.mxu0 0.0
      %v882 = vand.u32 %v414, 4294901760
      %v883 = vsub.f32 %v414, %v882
      %884 = vmatpush1.msra.mxu0 %v883
      %885 = vmatprep.subr.mxu0 0.0
      %v886 = vand.u32 %v415, 4294901760
      %v887 = vsub.f32 %v415, %v886
      %888 = vmatpush1.msra.mxu0 %v887
      %889 = vmatprep.subr.mxu0 0.0
      %v890 = vand.u32 %v416, 4294901760
      %v891 = vsub.f32 %v416, %v890
      %892 = vmatpush1.msra.mxu0 %v891
      %893 = vmatprep.subr.mxu0 0.0
      %v894 = vand.u32 %v417, 4294901760
      %v895 = vsub.f32 %v417, %v894
      %896 = vmatpush1.msra.mxu0 %v895
      %897 = vmatprep.subr.mxu0 0.0
      %v898 = vand.u32 %v418, 4294901760
      %v899 = vsub.f32 %v418, %v898
      %900 = vmatpush1.msra.mxu0 %v899
      %901 = vmatprep.subr.mxu0 0.0
      %v902 = vand.u32 %v419, 4294901760
      %v903 = vsub.f32 %v419, %v902
      %904 = vmatpush1.msra.mxu0 %v903
      %905 = vmatprep.subr.mxu0 0.0
      %v906 = vand.u32 %v420, 4294901760
      %v907 = vsub.f32 %v420, %v906
      %908 = vmatpush1.msra.mxu0 %v907
      %909 = vmatprep.subr.mxu0 0.0
      %v910 = vand.u32 %v421, 4294901760
      %v911 = vsub.f32 %v421, %v910
      %912 = vmatpush1.msra.mxu0 %v911
      %913 = vmatprep.subr.mxu0 0.0
      %v914 = vand.u32 %v422, 4294901760
      %v915 = vsub.f32 %v422, %v914
      %916 = vmatpush1.msra.mxu0 %v915
      %917 = vmatprep.subr.mxu0 0.0
      %v918 = vand.u32 %v423, 4294901760
      %v919 = vsub.f32 %v423, %v918
      %920 = vmatpush1.msra.mxu0 %v919
      %921 = vmatprep.subr.mxu0 0.0
      %v922 = vand.u32 %v424, 4294901760
      %v923 = vsub.f32 %v424, %v922
      %924 = vmatpush1.msra.mxu0 %v923
      %v925 = vand.u32 %v426, 4294901760
      %v926 = vsub.f32 %v426, %v925
      %927 = vmatprep.mubr.f32.mxu0 %v926
      %v928 = vand.u32 %v425, 4294901760
      %v929 = vsub.f32 %v425, %v928
      %930 = vmatmul.mubr.f32.gmra.mrb[0].mxu0 %v929
      %v931 = vpop.f32.mrb[0].mxu0
      %v932 = vadd.f32 %v787, %v931
      %v933 = vpop.f32.mrb[0].mxu0
      %v934 = vand.u32 %v428, 4294901760
      %v935 = vsub.f32 %v428, %v934
      %936 = vmatprep.mubr.f32.mxu0 %v935
      %v937 = vand.u32 %v427, 4294901760
      %v938 = vsub.f32 %v427, %v937
      %939 = vmatmul.mubr.f32.gmra.mrb[0].mxu0 %v938
      %v940 = vpop.f32.mrb[0].mxu0
      %v941 = vadd.f32 %v794, %v940
      %v942 = vpop.f32.mrb[0].mxu0
      %943 = vdwg.mxu0
      %944 = vmatprep.subr.mxu0 0.0
      %v945 = vand.u32 %v393, 4294901760
      %946 = vmatpush1.msra.mxu0 %v945
      %947 = vmatprep.subr.mxu0 0.0
      %v948 = vand.u32 %v394, 4294901760
      %949 = vmatpush1.msra.mxu0 %v948
      %950 = vmatprep.subr.mxu0 0.0
      %v951 = vand.u32 %v395, 4294901760
      %952 = vmatpush1.msra.mxu0 %v951
      %953 = vmatprep.subr.mxu0 0.0
      %v954 = vand.u32 %v396, 4294901760
      %955 = vmatpush1.msra.mxu0 %v954
      %956 = vmatprep.subr.mxu0 0.0
      %v957 = vand.u32 %v397, 4294901760
      %958 = vmatpush1.msra.mxu0 %v957
      %959 = vmatprep.subr.mxu0 0.0
      %v960 = vand.u32 %v398, 4294901760
      %961 = vmatpush1.msra.mxu0 %v960
      %962 = vmatprep.subr.mxu0 0.0
      %v963 = vand.u32 %v399, 4294901760
      %964 = vmatpush1.msra.mxu0 %v963
      %965 = vmatprep.subr.mxu0 0.0
      %v966 = vand.u32 %v400, 4294901760
      %967 = vmatpush1.msra.mxu0 %v966
      %968 = vmatprep.subr.mxu0 0.0
      %v969 = vand.u32 %v401, 4294901760
      %970 = vmatpush1.msra.mxu0 %v969
      %971 = vmatprep.subr.mxu0 0.0
      %v972 = vand.u32 %v402, 4294901760
      %973 = vmatpush1.msra.mxu0 %v972
      %974 = vmatprep.subr.mxu0 0.0
      %v975 = vand.u32 %v403, 4294901760
      %976 = vmatpush1.msra.mxu0 %v975
      %977 = vmatprep.subr.mxu0 0.0
      %v978 = vand.u32 %v404, 4294901760
      %979 = vmatpush1.msra.mxu0 %v978
      %980 = vmatprep.subr.mxu0 0.0
      %v981 = vand.u32 %v405, 4294901760
      %982 = vmatpush1.msra.mxu0 %v981
      %983 = vmatprep.subr.mxu0 0.0
      %v984 = vand.u32 %v406, 4294901760
      %985 = vmatpush1.msra.mxu0 %v984
      %986 = vmatprep.subr.mxu0 0.0
      %v987 = vand.u32 %v407, 4294901760
      %988 = vmatpush1.msra.mxu0 %v987
      %989 = vmatprep.subr.mxu0 0.0
      %v990 = vand.u32 %v408, 4294901760
      %991 = vmatpush1.msra.mxu0 %v990
      %992 = vmatprep.subr.mxu0 0.0
      %v993 = vand.u32 %v409, 4294901760
      %994 = vmatpush1.msra.mxu0 %v993
      %995 = vmatprep.subr.mxu0 0.0
      %v996 = vand.u32 %v410, 4294901760
      %997 = vmatpush1.msra.mxu0 %v996
      %998 = vmatprep.subr.mxu0 0.0
      %v999 = vand.u32 %v411, 4294901760
      %1000 = vmatpush1.msra.mxu0 %v999
      %1001 = vmatprep.subr.mxu0 0.0
      %v1002 = vand.u32 %v412, 4294901760
      %1003 = vmatpush1.msra.mxu0 %v1002
      %1004 = vmatprep.subr.mxu0 0.0
      %v1005 = vand.u32 %v413, 4294901760
      %1006 = vmatpush1.msra.mxu0 %v1005
      %1007 = vmatprep.subr.mxu0 0.0
      %v1008 = vand.u32 %v414, 4294901760
      %1009 = vmatpush1.msra.mxu0 %v1008
      %1010 = vmatprep.subr.mxu0 0.0
      %v1011 = vand.u32 %v415, 4294901760
      %1012 = vmatpush1.msra.mxu0 %v1011
      %1013 = vmatprep.subr.mxu0 0.0
      %v1014 = vand.u32 %v416, 4294901760
      %1015 = vmatpush1.msra.mxu0 %v1014
      %1016 = vmatprep.subr.mxu0 0.0
      %v1017 = vand.u32 %v417, 4294901760
      %1018 = vmatpush1.msra.mxu0 %v1017
      %1019 = vmatprep.subr.mxu0 0.0
      %v1020 = vand.u32 %v418, 4294901760
      %1021 = vmatpush1.msra.mxu0 %v1020
      %1022 = vmatprep.subr.mxu0 0.0
      %v1023 = vand.u32 %v419, 4294901760
      %1024 = vmatpush1.msra.mxu0 %v1023
      %1025 = vmatprep.subr.mxu0 0.0
      %v1026 = vand.u32 %v420, 4294901760
      %1027 = vmatpush1.msra.mxu0 %v1026
      %1028 = vmatprep.subr.mxu0 0.0
      %v1029 = vand.u32 %v421, 4294901760
      %1030 = vmatpush1.msra.mxu0 %v1029
      %1031 = vmatprep.subr.mxu0 0.0
      %v1032 = vand.u32 %v422, 4294901760
      %1033 = vmatpush1.msra.mxu0 %v1032
      %1034 = vmatprep.subr.mxu0 0.0
      %v1035 = vand.u32 %v423, 4294901760
      %1036 = vmatpush1.msra.mxu0 %v1035
      %1037 = vmatprep.subr.mxu0 0.0
      %v1038 = vand.u32 %v424, 4294901760
      %1039 = vmatpush1.msra.mxu0 %v1038
      %v1040 = vand.u32 %v426, 4294901760
      %v1041 = vsub.f32 %v426, %v1040
      %v1042 = vand.u32 %v1041, 4294901760
      %1043 = vmatprep.mubr.f32.mxu0 %v1042
      %v1044 = vand.u32 %v425, 4294901760
      %v1045 = vsub.f32 %v425, %v1044
      %v1046 = vand.u32 %v1045, 4294901760
      %1047 = vmatmul.mubr.f32.gmra.mrb[0].mxu0 %v1046
      %v1048 = vpop.f32.mrb[0].mxu0
      %v1049 = vadd.f32 %v932, %v1048
      %v1050 = vpop.f32.mrb[0].mxu0
      %v1051 = vand.u32 %v428, 4294901760
      %v1052 = vsub.f32 %v428, %v1051
      %v1053 = vand.u32 %v1052, 4294901760
      %1054 = vmatprep.mubr.f32.mxu0 %v1053
      %v1055 = vand.u32 %v427, 4294901760
      %v1056 = vsub.f32 %v427, %v1055
      %v1057 = vand.u32 %v1056, 4294901760
      %1058 = vmatmul.mubr.f32.gmra.mrb[0].mxu0 %v1057
      %v1059 = vpop.f32.mrb[0].mxu0
      %v1060 = vadd.f32 %v941, %v1059
      %v1061 = vpop.f32.mrb[0].mxu0
      %1062 = vdwg.mxu0
      %1063 = vmatprep.subr.mxu0 0.0
      %v1064 = vand.u32 %v393, 4294901760
      %v1065 = vsub.f32 %v393, %v1064
      %v1066 = vand.u32 %v1065, 4294901760
      %1067 = vmatpush1.msra.mxu0 %v1066
      %1068 = vmatprep.subr.mxu0 0.0
      %v1069 = vand.u32 %v394, 4294901760
      %v1070 = vsub.f32 %v394, %v1069
      %v1071 = vand.u32 %v1070, 4294901760
      %1072 = vmatpush1.msra.mxu0 %v1071
      %1073 = vmatprep.subr.mxu0 0.0
      %v1074 = vand.u32 %v395, 4294901760
      %v1075 = vsub.f32 %v395, %v1074
      %v1076 = vand.u32 %v1075, 4294901760
      %1077 = vmatpush1.msra.mxu0 %v1076
      %1078 = vmatprep.subr.mxu0 0.0
      %v1079 = vand.u32 %v396, 4294901760
      %v1080 = vsub.f32 %v396, %v1079
      %v1081 = vand.u32 %v1080, 4294901760
      %1082 = vmatpush1.msra.mxu0 %v1081
      %1083 = vmatprep.subr.mxu0 0.0
      %v1084 = vand.u32 %v397, 4294901760
      %v1085 = vsub.f32 %v397, %v1084
      %v1086 = vand.u32 %v1085, 4294901760
      %1087 = vmatpush1.msra.mxu0 %v1086
      %1088 = vmatprep.subr.mxu0 0.0
      %v1089 = vand.u32 %v398, 4294901760
      %v1090 = vsub.f32 %v398, %v1089
      %v1091 = vand.u32 %v1090, 4294901760
      %1092 = vmatpush1.msra.mxu0 %v1091
      %1093 = vmatprep.subr.mxu0 0.0
      %v1094 = vand.u32 %v399, 4294901760
      %v1095 = vsub.f32 %v399, %v1094
      %v1096 = vand.u32 %v1095, 4294901760
      %1097 = vmatpush1.msra.mxu0 %v1096
      %1098 = vmatprep.subr.mxu0 0.0
      %v1099 = vand.u32 %v400, 4294901760
      %v1100 = vsub.f32 %v400, %v1099
      %v1101 = vand.u32 %v1100, 4294901760
      %1102 = vmatpush1.msra.mxu0 %v1101
      %1103 = vmatprep.subr.mxu0 0.0
      %v1104 = vand.u32 %v401, 4294901760
      %v1105 = vsub.f32 %v401, %v1104
      %v1106 = vand.u32 %v1105, 4294901760
      %1107 = vmatpush1.msra.mxu0 %v1106
      %1108 = vmatprep.subr.mxu0 0.0
      %v1109 = vand.u32 %v402, 4294901760
      %v1110 = vsub.f32 %v402, %v1109
      %v1111 = vand.u32 %v1110, 4294901760
      %1112 = vmatpush1.msra.mxu0 %v1111
      %1113 = vmatprep.subr.mxu0 0.0
      %v1114 = vand.u32 %v403, 4294901760
      %v1115 = vsub.f32 %v403, %v1114
      %v1116 = vand.u32 %v1115, 4294901760
      %1117 = vmatpush1.msra.mxu0 %v1116
      %1118 = vmatprep.subr.mxu0 0.0
      %v1119 = vand.u32 %v404, 4294901760
      %v1120 = vsub.f32 %v404, %v1119
      %v1121 = vand.u32 %v1120, 4294901760
      %1122 = vmatpush1.msra.mxu0 %v1121
      %1123 = vmatprep.subr.mxu0 0.0
      %v1124 = vand.u32 %v405, 4294901760
      %v1125 = vsub.f32 %v405, %v1124
      %v1126 = vand.u32 %v1125, 4294901760
      %1127 = vmatpush1.msra.mxu0 %v1126
      %1128 = vmatprep.subr.mxu0 0.0
      %v1129 = vand.u32 %v406, 4294901760
      %v1130 = vsub.f32 %v406, %v1129
      %v1131 = vand.u32 %v1130, 4294901760
      %1132 = vmatpush1.msra.mxu0 %v1131
      %1133 = vmatprep.subr.mxu0 0.0
      %v1134 = vand.u32 %v407, 4294901760
      %v1135 = vsub.f32 %v407, %v1134
      %v1136 = vand.u32 %v1135, 4294901760
      %1137 = vmatpush1.msra.mxu0 %v1136
      %1138 = vmatprep.subr.mxu0 0.0
      %v1139 = vand.u32 %v408, 4294901760
      %v1140 = vsub.f32 %v408, %v1139
      %v1141 = vand.u32 %v1140, 4294901760
      %1142 = vmatpush1.msra.mxu0 %v1141
      %1143 = vmatprep.subr.mxu0 0.0
      %v1144 = vand.u32 %v409, 4294901760
      %v1145 = vsub.f32 %v409, %v1144
      %v1146 = vand.u32 %v1145, 4294901760
      %1147 = vmatpush1.msra.mxu0 %v1146
      %1148 = vmatprep.subr.mxu0 0.0
      %v1149 = vand.u32 %v410, 4294901760
      %v1150 = vsub.f32 %v410, %v1149
      %v1151 = vand.u32 %v1150, 4294901760
      %1152 = vmatpush1.msra.mxu0 %v1151
      %1153 = vmatprep.subr.mxu0 0.0
      %v1154 = vand.u32 %v411, 4294901760
      %v1155 = vsub.f32 %v411, %v1154
      %v1156 = vand.u32 %v1155, 4294901760
      %1157 = vmatpush1.msra.mxu0 %v1156
      %1158 = vmatprep.subr.mxu0 0.0
      %v1159 = vand.u32 %v412, 4294901760
      %v1160 = vsub.f32 %v412, %v1159
      %v1161 = vand.u32 %v1160, 4294901760
      %1162 = vmatpush1.msra.mxu0 %v1161
      %1163 = vmatprep.subr.mxu0 0.0
      %v1164 = vand.u32 %v413, 4294901760
      %v1165 = vsub.f32 %v413, %v1164
      %v1166 = vand.u32 %v1165, 4294901760
      %1167 = vmatpush1.msra.mxu0 %v1166
      %1168 = vmatprep.subr.mxu0 0.0
      %v1169 = vand.u32 %v414, 4294901760
      %v1170 = vsub.f32 %v414, %v1169
      %v1171 = vand.u32 %v1170, 4294901760
      %1172 = vmatpush1.msra.mxu0 %v1171
      %1173 = vmatprep.subr.mxu0 0.0
      %v1174 = vand.u32 %v415, 4294901760
      %v1175 = vsub.f32 %v415, %v1174
      %v1176 = vand.u32 %v1175, 4294901760
      %1177 = vmatpush1.msra.mxu0 %v1176
      %1178 = vmatprep.subr.mxu0 0.0
      %v1179 = vand.u32 %v416, 4294901760
      %v1180 = vsub.f32 %v416, %v1179
      %v1181 = vand.u32 %v1180, 4294901760
      %1182 = vmatpush1.msra.mxu0 %v1181
      %1183 = vmatprep.subr.mxu0 0.0
      %v1184 = vand.u32 %v417, 4294901760
      %v1185 = vsub.f32 %v417, %v1184
      %v1186 = vand.u32 %v1185, 4294901760
      %1187 = vmatpush1.msra.mxu0 %v1186
      %1188 = vmatprep.subr.mxu0 0.0
      %v1189 = vand.u32 %v418, 4294901760
      %v1190 = vsub.f32 %v418, %v1189
      %v1191 = vand.u32 %v1190, 4294901760
      %1192 = vmatpush1.msra.mxu0 %v1191
      %1193 = vmatprep.subr.mxu0 0.0
      %v1194 = vand.u32 %v419, 4294901760
      %v1195 = vsub.f32 %v419, %v1194
      %v1196 = vand.u32 %v1195, 4294901760
      %1197 = vmatpush1.msra.mxu0 %v1196
      %1198 = vmatprep.subr.mxu0 0.0
      %v1199 = vand.u32 %v420, 4294901760
      %v1200 = vsub.f32 %v420, %v1199
      %v1201 = vand.u32 %v1200, 4294901760
      %1202 = vmatpush1.msra.mxu0 %v1201
      %1203 = vmatprep.subr.mxu0 0.0
      %v1204 = vand.u32 %v421, 4294901760
      %v1205 = vsub.f32 %v421, %v1204
      %v1206 = vand.u32 %v1205, 4294901760
      %1207 = vmatpush1.msra.mxu0 %v1206
      %1208 = vmatprep.subr.mxu0 0.0
      %v1209 = vand.u32 %v422, 4294901760
      %v1210 = vsub.f32 %v422, %v1209
      %v1211 = vand.u32 %v1210, 4294901760
      %1212 = vmatpush1.msra.mxu0 %v1211
      %1213 = vmatprep.subr.mxu0 0.0
      %v1214 = vand.u32 %v423, 4294901760
      %v1215 = vsub.f32 %v423, %v1214
      %v1216 = vand.u32 %v1215, 4294901760
      %1217 = vmatpush1.msra.mxu0 %v1216
      %1218 = vmatprep.subr.mxu0 0.0
      %v1219 = vand.u32 %v424, 4294901760
      %v1220 = vsub.f32 %v424, %v1219
      %v1221 = vand.u32 %v1220, 4294901760
      %1222 = vmatpush1.msra.mxu0 %v1221
      %v1223 = vand.u32 %v426, 4294901760
      %1224 = vmatprep.mubr.f32.mxu0 %v1223
      %v1225 = vand.u32 %v425, 4294901760
      %1226 = vmatmul.mubr.f32.gmra.mrb[0].mxu0 %v1225
      %v1227 = vpop.f32.mrb[0].mxu0
      %v1228 = vadd.f32 %v1049, %v1227
      %v1229 = vpop.f32.mrb[0].mxu0
      %v1230 = vand.u32 %v428, 4294901760
      %1231 = vmatprep.mubr.f32.mxu0 %v1230
      %v1232 = vand.u32 %v427, 4294901760
      %1233 = vmatmul.mubr.f32.gmra.mrb[0].mxu0 %v1232
      %v1234 = vpop.f32.mrb[0].mxu0
      %v1235 = vadd.f32 %v1060, %v1234
      %v1236 = vpop.f32.mrb[0].mxu0
      %1237 = vdwg.mxu0
      %1238 = vmatprep.subr.mxu0 0.0
      %v1239 = vand.u32 %v393, 4294901760
      %1240 = vmatpush1.msra.mxu0 %v1239
      %1241 = vmatprep.subr.mxu0 0.0
      %v1242 = vand.u32 %v394, 4294901760
      %1243 = vmatpush1.msra.mxu0 %v1242
      %1244 = vmatprep.subr.mxu0 0.0
      %v1245 = vand.u32 %v395, 4294901760
      %1246 = vmatpush1.msra.mxu0 %v1245
      %1247 = vmatprep.subr.mxu0 0.0
      %v1248 = vand.u32 %v396, 4294901760
      %1249 = vmatpush1.msra.mxu0 %v1248
      %1250 = vmatprep.subr.mxu0 0.0
      %v1251 = vand.u32 %v397, 4294901760
      %1252 = vmatpush1.msra.mxu0 %v1251
      %1253 = vmatprep.subr.mxu0 0.0
      %v1254 = vand.u32 %v398, 4294901760
      %1255 = vmatpush1.msra.mxu0 %v1254
      %1256 = vmatprep.subr.mxu0 0.0
      %v1257 = vand.u32 %v399, 4294901760
      %1258 = vmatpush1.msra.mxu0 %v1257
      %1259 = vmatprep.subr.mxu0 0.0
      %v1260 = vand.u32 %v400, 4294901760
      %1261 = vmatpush1.msra.mxu0 %v1260
      %1262 = vmatprep.subr.mxu0 0.0
      %v1263 = vand.u32 %v401, 4294901760
      %1264 = vmatpush1.msra.mxu0 %v1263
      %1265 = vmatprep.subr.mxu0 0.0
      %v1266 = vand.u32 %v402, 4294901760
      %1267 = vmatpush1.msra.mxu0 %v1266
      %1268 = vmatprep.subr.mxu0 0.0
      %v1269 = vand.u32 %v403, 4294901760
      %1270 = vmatpush1.msra.mxu0 %v1269
      %1271 = vmatprep.subr.mxu0 0.0
      %v1272 = vand.u32 %v404, 4294901760
      %1273 = vmatpush1.msra.mxu0 %v1272
      %1274 = vmatprep.subr.mxu0 0.0
      %v1275 = vand.u32 %v405, 4294901760
      %1276 = vmatpush1.msra.mxu0 %v1275
      %1277 = vmatprep.subr.mxu0 0.0
      %v1278 = vand.u32 %v406, 4294901760
      %1279 = vmatpush1.msra.mxu0 %v1278
      %1280 = vmatprep.subr.mxu0 0.0
      %v1281 = vand.u32 %v407, 4294901760
      %1282 = vmatpush1.msra.mxu0 %v1281
      %1283 = vmatprep.subr.mxu0 0.0
      %v1284 = vand.u32 %v408, 4294901760
      %1285 = vmatpush1.msra.mxu0 %v1284
      %1286 = vmatprep.subr.mxu0 0.0
      %v1287 = vand.u32 %v409, 4294901760
      %1288 = vmatpush1.msra.mxu0 %v1287
      %1289 = vmatprep.subr.mxu0 0.0
      %v1290 = vand.u32 %v410, 4294901760
      %1291 = vmatpush1.msra.mxu0 %v1290
      %1292 = vmatprep.subr.mxu0 0.0
      %v1293 = vand.u32 %v411, 4294901760
      %1294 = vmatpush1.msra.mxu0 %v1293
      %1295 = vmatprep.subr.mxu0 0.0
      %v1296 = vand.u32 %v412, 4294901760
      %1297 = vmatpush1.msra.mxu0 %v1296
      %1298 = vmatprep.subr.mxu0 0.0
      %v1299 = vand.u32 %v413, 4294901760
      %1300 = vmatpush1.msra.mxu0 %v1299
      %1301 = vmatprep.subr.mxu0 0.0
      %v1302 = vand.u32 %v414, 4294901760
      %1303 = vmatpush1.msra.mxu0 %v1302
      %1304 = vmatprep.subr.mxu0 0.0
      %v1305 = vand.u32 %v415, 4294901760
      %1306 = vmatpush1.msra.mxu0 %v1305
      %1307 = vmatprep.subr.mxu0 0.0
      %v1308 = vand.u32 %v416, 4294901760
      %1309 = vmatpush1.msra.mxu0 %v1308
      %1310 = vmatprep.subr.mxu0 0.0
      %v1311 = vand.u32 %v417, 4294901760
      %1312 = vmatpush1.msra.mxu0 %v1311
      %1313 = vmatprep.subr.mxu0 0.0
      %v1314 = vand.u32 %v418, 4294901760
      %1315 = vmatpush1.msra.mxu0 %v1314
      %1316 = vmatprep.subr.mxu0 0.0
      %v1317 = vand.u32 %v419, 4294901760
      %1318 = vmatpush1.msra.mxu0 %v1317
      %1319 = vmatprep.subr.mxu0 0.0
      %v1320 = vand.u32 %v420, 4294901760
      %1321 = vmatpush1.msra.mxu0 %v1320
      %1322 = vmatprep.subr.mxu0 0.0
      %v1323 = vand.u32 %v421, 4294901760
      %1324 = vmatpush1.msra.mxu0 %v1323
      %1325 = vmatprep.subr.mxu0 0.0
      %v1326 = vand.u32 %v422, 4294901760
      %1327 = vmatpush1.msra.mxu0 %v1326
      %1328 = vmatprep.subr.mxu0 0.0
      %v1329 = vand.u32 %v423, 4294901760
      %1330 = vmatpush1.msra.mxu0 %v1329
      %1331 = vmatprep.subr.mxu0 0.0
      %v1332 = vand.u32 %v424, 4294901760
      %1333 = vmatpush1.msra.mxu0 %v1332
      %v1334 = vand.u32 %v426, 4294901760
      %1335 = vmatprep.mubr.f32.mxu0 %v1334
      %v1336 = vand.u32 %v425, 4294901760
      %1337 = vmatmul.mubr.f32.gmra.mrb[0].mxu0 %v1336
      %v1338 = vpop.f32.mrb[0].mxu0
      %v1339 = vadd.f32 %v1228, %v1338
      %v1340 = vpop.f32.mrb[0].mxu0
      %v1341 = vand.u32 %v428, 4294901760
      %1342 = vmatprep.mubr.f32.mxu0 %v1341
      %v1343 = vand.u32 %v427, 4294901760
      %1344 = vmatmul.mubr.f32.gmra.mrb[0].mxu0 %v1343
      %v1345 = vpop.f32.mrb[0].mxu0
      %v1346 = vadd.f32 %v1235, %v1345
      %v1347 = vpop.f32.mrb[0].mxu0
      %1348 = vdwg.mxu0
      %v1349 = vmax.f32 %v1339, 0.0
      %v1350 = vmax.f32 %v1346, 0.0
      %v1351 = vld [vmem:[%s3] sm:$0xff]
      %v1352 = vld [vmem:[%s3 + $0x8] sm:$0xff]
      %v1353 = vld [vmem:[%s3 + $0x10] sm:$0xff]
      %v1354 = vld [vmem:[%s3 + $0x18] sm:$0xff]
      %v1355 = vld [vmem:[%s3 + $0x20] sm:$0xff]
      %v1356 = vld [vmem:[%s3 + $0x28] sm:$0xff]
      %v1357 = vld [vmem:[%s3 + $0x30] sm:$0xff]
      %v1358 = vld [vmem:[%s3 + $0x38] sm:$0xff]
      %v1359 = vld [vmem:[%s3 + $0x40] sm:$0xff]
      %v1360 = vld [vmem:[%s3 + $0x48] sm:$0xff]
      %v1361 = vld [vmem:[%s3 + $0x50] sm:$0xff]
      %v1362 = vld [vmem:[%s3 + $0x58] sm:$0xff]
      %v1363 = vld [vmem:[%s3 + $0x60] sm:$0xff]
      %v1364 = vld [vmem:[%s3 + $0x68] sm:$0xff]
      %v1365 = vld [vmem:[%s3 + $0x70] sm:$0xff]
      %v1366 = vld [vmem:[%s3 + $0x78] sm:$0xff]
      %v1367 = vld [vmem:[%s3 + $0x80] sm:$0xff]
      %v1368 = vld [vmem:[%s3 + $0x88] sm:$0xff]
      %v1369 = vld [vmem:[%s3 + $0x90] sm:$0xff]
      %v1370 = vld [vmem:[%s3 + $0x98] sm:$0xff]
      %v1371 = vld [vmem:[%s3 + $0xa0] sm:$0xff]
      %v1372 = vld [vmem:[%s3 + $0xa8] sm:$0xff]
      %v1373 = vld [vmem:[%s3 + $0xb0] sm:$0xff]
      %v1374 = vld [vmem:[%s3 + $0xb8] sm:$0xff]
      %v1375 = vld [vmem:[%s3 + $0xc0] sm:$0xff]
      %v1376 = vld [vmem:[%s3 + $0xc8] sm:$0xff]
      %v1377 = vld [vmem:[%s3 + $0xd0] sm:$0xff]
      %v1378 = vld [vmem:[%s3 + $0xd8] sm:$0xff]
      %v1379 = vld [vmem:[%s3 + $0xe0] sm:$0xff]
      %v1380 = vld [vmem:[%s3 + $0xe8] sm:$0xff]
      %v1381 = vld [vmem:[%s3 + $0xf0] sm:$0xff]
      %v1382 = vld [vmem:[%s3 + $0xf8] sm:$0xff]
      %v1383 = vld [vmem:[%s4] sm:$0xff]
      %v1384 = vld [vmem:[%s4 + $0x8] sm:$0xff]
      %v1385 = vld [vmem:[%s4 + $0x10] sm:$0xff]
      %v1386 = vld [vmem:[%s4 + $0x18] sm:$0xff]
      %v1387 = vld [vmem:[%s4 + $0x20] sm:$0xff]
      %v1388 = vld [vmem:[%s4 + $0x28] sm:$0xff]
      %v1389 = vld [vmem:[%s4 + $0x30] sm:$0xff]
      %v1390 = vld [vmem:[%s4 + $0x38] sm:$0xff]
      %v1391 = vld [vmem:[%s4 + $0x40] sm:$0xff]
      %v1392 = vld [vmem:[%s4 + $0x48] sm:$0xff]
      %v1393 = vld [vmem:[%s4 + $0x50] sm:$0xff]
      %v1394 = vld [vmem:[%s4 + $0x58] sm:$0xff]
      %v1395 = vld [vmem:[%s4 + $0x60] sm:$0xff]
      %v1396 = vld [vmem:[%s4 + $0x68] sm:$0xff]
      %v1397 = vld [vmem:[%s4 + $0x70] sm:$0xff]
      %v1398 = vld [vmem:[%s4 + $0x78] sm:$0xff]
      %v1399 = vld [vmem:[%s4 + $0x80] sm:$0xff]
      %v1400 = vld [vmem:[%s4 + $0x88] sm:$0xff]
      %v1401 = vld [vmem:[%s4 + $0x90] sm:$0xff]
      %v1402 = vld [vmem:[%s4 + $0x98] sm:$0xff]
      %v1403 = vld [vmem:[%s4 + $0xa0] sm:$0xff]
      %v1404 = vld [vmem:[%s4 + $0xa8] sm:$0xff]
      %v1405 = vld [vmem:[%s4 + $0xb0] sm:$0xff]
      %v1406 = vld [vmem:[%s4 + $0xb8] sm:$0xff]
      %v1407 = vld [vmem:[%s4 + $0xc0] sm:$0xff]
      %v1408 = vld [vmem:[%s4 + $0xc8] sm:$0xff]
      %v1409 = vld [vmem:[%s4 + $0xd0] sm:$0xff]
      %v1410 = vld [vmem:[%s4 + $0xd8] sm:$0xff]
      %v1411 = vld [vmem:[%s4 + $0xe0] sm:$0xff]
      %v1412 = vld [vmem:[%s4 + $0xe8] sm:$0xff]
      %v1413 = vld [vmem:[%s4 + $0xf0] sm:$0xff]
      %v1414 = vld [vmem:[%s4 + $0xf8] sm:$0xff]
      %vm1415 = vcmask 130048
      %v1417 = vsel %vm1415, %v1351, 0
      %v1420 = vsel %vm1415, %v1352, 0
      %v1423 = vsel %vm1415, %v1353, 0
      %v1426 = vsel %vm1415, %v1354, 0
      %v1429 = vsel %vm1415, %v1355, 0
      %v1432 = vsel %vm1415, %v1356, 0
      %v1435 = vsel %vm1415, %v1357, 0
      %v1438 = vsel %vm1415, %v1358, 0
      %v1441 = vsel %vm1415, %v1359, 0
      %v1444 = vsel %vm1415, %v1360, 0
      %v1447 = vsel %vm1415, %v1361, 0
      %v1450 = vsel %vm1415, %v1362, 0
      %v1453 = vsel %vm1415, %v1363, 0
      %v1456 = vsel %vm1415, %v1364, 0
      %v1459 = vsel %vm1415, %v1365, 0
      %v1462 = vsel %vm1415, %v1366, 0
      %v1465 = vsel %vm1415, %v1367, 0
      %v1468 = vsel %vm1415, %v1368, 0
      %v1471 = vsel %vm1415, %v1369, 0
      %v1474 = vsel %vm1415, %v1370, 0
      %v1477 = vsel %vm1415, %v1371, 0
      %v1480 = vsel %vm1415, %v1372, 0
      %v1483 = vsel %vm1415, %v1373, 0
      %v1486 = vsel %vm1415, %v1374, 0
      %v1489 = vsel %vm1415, %v1375, 0
      %v1492 = vsel %vm1415, %v1376, 0
      %v1495 = vsel %vm1415, %v1377, 0
      %v1498 = vsel %vm1415, %v1378, 0
      %v1501 = vsel %vm1415, %v1379, 0
      %v1504 = vsel %vm1415, %v1380, 0
      %v1507 = vsel %vm1415, %v1381, 0
      %v1510 = vsel %vm1415, %v1382, 0
      %1512 = vmatprep.subr.mxu0 0.0
      %v1513 = vand.u32 %v1349, 4294901760
      %1514 = vmatpush1.msra.mxu0 %v1513
      %1515 = vmatprep.subr.mxu0 0.0
      %v1516 = vand.u32 %v1350, 4294901760
      %1517 = vmatpush1.msra.mxu0 %v1516
      %1518 = vmatprep.subr.mxu0 0.0
      %1519 = vmatpush1.msra.mxu0 0.0
      %1520 = vmatprep.subr.mxu0 0.0
      %1521 = vmatpush1.msra.mxu0 0.0
      %1522 = vmatprep.subr.mxu0 0.0
      %1523 = vmatpush1.msra.mxu0 0.0
      %1524 = vmatprep.subr.mxu0 0.0
      %1525 = vmatpush1.msra.mxu0 0.0
      %1526 = vmatprep.subr.mxu0 0.0
      %1527 = vmatpush1.msra.mxu0 0.0
      %1528 = vmatprep.subr.mxu0 0.0
      %1529 = vmatpush1.msra.mxu0 0.0
      %1530 = vmatprep.subr.mxu0 0.0
      %1531 = vmatpush1.msra.mxu0 0.0
      %1532 = vmatprep.subr.mxu0 0.0
      %1533 = vmatpush1.msra.mxu0 0.0
      %1534 = vmatprep.subr.mxu0 0.0
      %1535 = vmatpush1.msra.mxu0 0.0
      %1536 = vmatprep.subr.mxu0 0.0
      %1537 = vmatpush1.msra.mxu0 0.0
      %1538 = vmatprep.subr.mxu0 0.0
      %1539 = vmatpush1.msra.mxu0 0.0
      %1540 = vmatprep.subr.mxu0 0.0
      %1541 = vmatpush1.msra.mxu0 0.0
      %1542 = vmatprep.subr.mxu0 0.0
      %1543 = vmatpush1.msra.mxu0 0.0
      %1544 = vmatprep.subr.mxu0 0.0
      %1545 = vmatpush1.msra.mxu0 0.0
      %1546 = vmatprep.subr.mxu0 0.0
      %1547 = vmatpush1.msra.mxu0 0.0
      %1548 = vmatprep.subr.mxu0 0.0
      %1549 = vmatpush1.msra.mxu0 0.0
      %1550 = vmatprep.subr.mxu0 0.0
      %1551 = vmatpush1.msra.mxu0 0.0
      %1552 = vmatprep.subr.mxu0 0.0
      %1553 = vmatpush1.msra.mxu0 0.0
      %1554 = vmatprep.subr.mxu0 0.0
      %1555 = vmatpush1.msra.mxu0 0.0
      %1556 = vmatprep.subr.mxu0 0.0
      %1557 = vmatpush1.msra.mxu0 0.0
      %1558 = vmatprep.subr.mxu0 0.0
      %1559 = vmatpush1.msra.mxu0 0.0
      %1560 = vmatprep.subr.mxu0 0.0
      %1561 = vmatpush1.msra.mxu0 0.0
      %1562 = vmatprep.subr.mxu0 0.0
      %1563 = vmatpush1.msra.mxu0 0.0
      %1564 = vmatprep.subr.mxu0 0.0
      %1565 = vmatpush1.msra.mxu0 0.0
      %1566 = vmatprep.subr.mxu0 0.0
      %1567 = vmatpush1.msra.mxu0 0.0
      %1568 = vmatprep.subr.mxu0 0.0
      %1569 = vmatpush1.msra.mxu0 0.0
      %1570 = vmatprep.subr.mxu0 0.0
      %1571 = vmatpush1.msra.mxu0 0.0
      %1572 = vmatprep.subr.mxu0 0.0
      %1573 = vmatpush1.msra.mxu0 0.0
      %1574 = vmatprep.subr.mxu0 0.0
      %1575 = vmatpush1.msra.mxu0 0.0
      %1576 = vmatprep.subr.mxu0 0.0
      %1577 = vmatpush1.msra.mxu0 0.0
      %1578 = vmatprep.mubr.f32.mxu0 0.0
      %v1579 = vand.u32 %v1417, 4294901760
      %v1580 = vsub.f32 %v1417, %v1579
      %v1581 = vand.u32 %v1580, 4294901760
      %v1582 = vsub.f32 %v1580, %v1581
      %v1583 = vand.u32 %v1582, 4294901760
      %1584 = vmatmul.mubr.f32.gmra.mrb[0].mxu0 %v1583
      %v1585 = vpop.f32.mrb[0].mxu0
      %v1586 = vadd.f32 %v1383, %v1585
      %v1587 = vpop.f32.mrb[0].mxu0
      %1588 = vmatprep.mubr.f32.mxu0 0.0
      %v1589 = vand.u32 %v1420, 4294901760
      %v1590 = vsub.f32 %v1420, %v1589
      %v1591 = vand.u32 %v1590, 4294901760
      %v1592 = vsub.f32 %v1590, %v1591
      %v1593 = vand.u32 %v1592, 4294901760
      %1594 = vmatmul.mubr.f32.gmra.mrb[0].mxu0 %v1593
      %v1595 = vpop.f32.mrb[0].mxu0
      %v1596 = vadd.f32 %v1384, %v1595
      %v1597 = vpop.f32.mrb[0].mxu0
      %1598 = vmatprep.mubr.f32.mxu0 0.0
      %v1599 = vand.u32 %v1423, 4294901760
      %v1600 = vsub.f32 %v1423, %v1599
      %v1601 = vand.u32 %v1600, 4294901760
      %v1602 = vsub.f32 %v1600, %v1601
      %v1603 = vand.u32 %v1602, 4294901760
      %1604 = vmatmul.mubr.f32.gmra.mrb[0].mxu0 %v1603
      %v1605 = vpop.f32.mrb[0].mxu0
      %v1606 = vadd.f32 %v1385, %v1605
      %v1607 = vpop.f32.mrb[0].mxu0
      %1608 = vmatprep.mubr.f32.mxu0 0.0
      %v1609 = vand.u32 %v1426, 4294901760
      %v1610 = vsub.f32 %v1426, %v1609
      %v1611 = vand.u32 %v1610, 4294901760
      %v1612 = vsub.f32 %v1610, %v1611
      %v1613 = vand.u32 %v1612, 4294901760
      %1614 = vmatmul.mubr.f32.gmra.mrb[0].mxu0 %v1613
      %v1615 = vpop.f32.mrb[0].mxu0
      %v1616 = vadd.f32 %v1386, %v1615
      %v1617 = vpop.f32.mrb[0].mxu0
      %1618 = vmatprep.mubr.f32.mxu0 0.0
      %v1619 = vand.u32 %v1429, 4294901760
      %v1620 = vsub.f32 %v1429, %v1619
      %v1621 = vand.u32 %v1620, 4294901760
      %v1622 = vsub.f32 %v1620, %v1621
      %v1623 = vand.u32 %v1622, 4294901760
      %1624 = vmatmul.mubr.f32.gmra.mrb[0].mxu0 %v1623
      %v1625 = vpop.f32.mrb[0].mxu0
      %v1626 = vadd.f32 %v1387, %v1625
      %v1627 = vpop.f32.mrb[0].mxu0
      %1628 = vmatprep.mubr.f32.mxu0 0.0
      %v1629 = vand.u32 %v1432, 4294901760
      %v1630 = vsub.f32 %v1432, %v1629
      %v1631 = vand.u32 %v1630, 4294901760
      %v1632 = vsub.f32 %v1630, %v1631
      %v1633 = vand.u32 %v1632, 4294901760
      %1634 = vmatmul.mubr.f32.gmra.mrb[0].mxu0 %v1633
      %v1635 = vpop.f32.mrb[0].mxu0
      %v1636 = vadd.f32 %v1388, %v1635
      %v1637 = vpop.f32.mrb[0].mxu0
      %1638 = vmatprep.mubr.f32.mxu0 0.0
      %v1639 = vand.u32 %v1435, 4294901760
      %v1640 = vsub.f32 %v1435, %v1639
      %v1641 = vand.u32 %v1640, 4294901760
      %v1642 = vsub.f32 %v1640, %v1641
      %v1643 = vand.u32 %v1642, 4294901760
      %1644 = vmatmul.mubr.f32.gmra.mrb[0].mxu0 %v1643
      %v1645 = vpop.f32.mrb[0].mxu0
      %v1646 = vadd.f32 %v1389, %v1645
      %v1647 = vpop.f32.mrb[0].mxu0
      %1648 = vmatprep.mubr.f32.mxu0 0.0
      %v1649 = vand.u32 %v1438, 4294901760
      %v1650 = vsub.f32 %v1438, %v1649
      %v1651 = vand.u32 %v1650, 4294901760
      %v1652 = vsub.f32 %v1650, %v1651
      %v1653 = vand.u32 %v1652, 4294901760
      %1654 = vmatmul.mubr.f32.gmra.mrb[0].mxu0 %v1653
      %v1655 = vpop.f32.mrb[0].mxu0
      %v1656 = vadd.f32 %v1390, %v1655
      %v1657 = vpop.f32.mrb[0].mxu0
      %1658 = vmatprep.mubr.f32.mxu0 0.0
      %v1659 = vand.u32 %v1441, 4294901760
      %v1660 = vsub.f32 %v1441, %v1659
      %v1661 = vand.u32 %v1660, 4294901760
      %v1662 = vsub.f32 %v1660, %v1661
      %v1663 = vand.u32 %v1662, 4294901760
      %1664 = vmatmul.mubr.f32.gmra.mrb[0].mxu0 %v1663
      %v1665 = vpop.f32.mrb[0].mxu0
      %v1666 = vadd.f32 %v1391, %v1665
      %v1667 = vpop.f32.mrb[0].mxu0
      %1668 = vmatprep.mubr.f32.mxu0 0.0
      %v1669 = vand.u32 %v1444, 4294901760
      %v1670 = vsub.f32 %v1444, %v1669
      %v1671 = vand.u32 %v1670, 4294901760
      %v1672 = vsub.f32 %v1670, %v1671
      %v1673 = vand.u32 %v1672, 4294901760
      %1674 = vmatmul.mubr.f32.gmra.mrb[0].mxu0 %v1673
      %v1675 = vpop.f32.mrb[0].mxu0
      %v1676 = vadd.f32 %v1392, %v1675
      %v1677 = vpop.f32.mrb[0].mxu0
      %1678 = vmatprep.mubr.f32.mxu0 0.0
      %v1679 = vand.u32 %v1447, 4294901760
      %v1680 = vsub.f32 %v1447, %v1679
      %v1681 = vand.u32 %v1680, 4294901760
      %v1682 = vsub.f32 %v1680, %v1681
      %v1683 = vand.u32 %v1682, 4294901760
      %1684 = vmatmul.mubr.f32.gmra.mrb[0].mxu0 %v1683
      %v1685 = vpop.f32.mrb[0].mxu0
      %v1686 = vadd.f32 %v1393, %v1685
      %v1687 = vpop.f32.mrb[0].mxu0
      %1688 = vmatprep.mubr.f32.mxu0 0.0
      %v1689 = vand.u32 %v1450, 4294901760
      %v1690 = vsub.f32 %v1450, %v1689
      %v1691 = vand.u32 %v1690, 4294901760
      %v1692 = vsub.f32 %v1690, %v1691
      %v1693 = vand.u32 %v1692, 4294901760
      %1694 = vmatmul.mubr.f32.gmra.mrb[0].mxu0 %v1693
      %v1695 = vpop.f32.mrb[0].mxu0
      %v1696 = vadd.f32 %v1394, %v1695
      %v1697 = vpop.f32.mrb[0].mxu0
      %1698 = vmatprep.mubr.f32.mxu0 0.0
      %v1699 = vand.u32 %v1453, 4294901760
      %v1700 = vsub.f32 %v1453, %v1699
      %v1701 = vand.u32 %v1700, 4294901760
      %v1702 = vsub.f32 %v1700, %v1701
      %v1703 = vand.u32 %v1702, 4294901760
      %1704 = vmatmul.mubr.f32.gmra.mrb[0].mxu0 %v1703
      %v1705 = vpop.f32.mrb[0].mxu0
      %v1706 = vadd.f32 %v1395, %v1705
      %v1707 = vpop.f32.mrb[0].mxu0
      %1708 = vmatprep.mubr.f32.mxu0 0.0
      %v1709 = vand.u32 %v1456, 4294901760
      %v1710 = vsub.f32 %v1456, %v1709
      %v1711 = vand.u32 %v1710, 4294901760
      %v1712 = vsub.f32 %v1710, %v1711
      %v1713 = vand.u32 %v1712, 4294901760
      %1714 = vmatmul.mubr.f32.gmra.mrb[0].mxu0 %v1713
      %v1715 = vpop.f32.mrb[0].mxu0
      %v1716 = vadd.f32 %v1396, %v1715
      %v1717 = vpop.f32.mrb[0].mxu0
      %1718 = vmatprep.mubr.f32.mxu0 0.0
      %v1719 = vand.u32 %v1459, 4294901760
      %v1720 = vsub.f32 %v1459, %v1719
      %v1721 = vand.u32 %v1720, 4294901760
      %v1722 = vsub.f32 %v1720, %v1721
      %v1723 = vand.u32 %v1722, 4294901760
      %1724 = vmatmul.mubr.f32.gmra.mrb[0].mxu0 %v1723
      %v1725 = vpop.f32.mrb[0].mxu0
      %v1726 = vadd.f32 %v1397, %v1725
      %v1727 = vpop.f32.mrb[0].mxu0
      %1728 = vmatprep.mubr.f32.mxu0 0.0
      %v1729 = vand.u32 %v1462, 4294901760
      %v1730 = vsub.f32 %v1462, %v1729
      %v1731 = vand.u32 %v1730, 4294901760
      %v1732 = vsub.f32 %v1730, %v1731
      %v1733 = vand.u32 %v1732, 4294901760
      %1734 = vmatmul.mubr.f32.gmra.mrb[0].mxu0 %v1733
      %v1735 = vpop.f32.mrb[0].mxu0
      %v1736 = vadd.f32 %v1398, %v1735
      %v1737 = vpop.f32.mrb[0].mxu0
      %1738 = vmatprep.mubr.f32.mxu0 0.0
      %v1739 = vand.u32 %v1465, 4294901760
      %v1740 = vsub.f32 %v1465, %v1739
      %v1741 = vand.u32 %v1740, 4294901760
      %v1742 = vsub.f32 %v1740, %v1741
      %v1743 = vand.u32 %v1742, 4294901760
      %1744 = vmatmul.mubr.f32.gmra.mrb[0].mxu0 %v1743
      %v1745 = vpop.f32.mrb[0].mxu0
      %v1746 = vadd.f32 %v1399, %v1745
      %v1747 = vpop.f32.mrb[0].mxu0
      %1748 = vmatprep.mubr.f32.mxu0 0.0
      %v1749 = vand.u32 %v1468, 4294901760
      %v1750 = vsub.f32 %v1468, %v1749
      %v1751 = vand.u32 %v1750, 4294901760
      %v1752 = vsub.f32 %v1750, %v1751
      %v1753 = vand.u32 %v1752, 4294901760
      %1754 = vmatmul.mubr.f32.gmra.mrb[0].mxu0 %v1753
      %v1755 = vpop.f32.mrb[0].mxu0
      %v1756 = vadd.f32 %v1400, %v1755
      %v1757 = vpop.f32.mrb[0].mxu0
      %1758 = vmatprep.mubr.f32.mxu0 0.0
      %v1759 = vand.u32 %v1471, 4294901760
      %v1760 = vsub.f32 %v1471, %v1759
      %v1761 = vand.u32 %v1760, 4294901760
      %v1762 = vsub.f32 %v1760, %v1761
      %v1763 = vand.u32 %v1762, 4294901760
      %1764 = vmatmul.mubr.f32.gmra.mrb[0].mxu0 %v1763
      %v1765 = vpop.f32.mrb[0].mxu0
      %v1766 = vadd.f32 %v1401, %v1765
      %v1767 = vpop.f32.mrb[0].mxu0
      %1768 = vmatprep.mubr.f32.mxu0 0.0
      %v1769 = vand.u32 %v1474, 4294901760
      %v1770 = vsub.f32 %v1474, %v1769
      %v1771 = vand.u32 %v1770, 4294901760
      %v1772 = vsub.f32 %v1770, %v1771
      %v1773 = vand.u32 %v1772, 4294901760
      %1774 = vmatmul.mubr.f32.gmra.mrb[0].mxu0 %v1773
      %v1775 = vpop.f32.mrb[0].mxu0
      %v1776 = vadd.f32 %v1402, %v1775
      %v1777 = vpop.f32.mrb[0].mxu0
      %1778 = vmatprep.mubr.f32.mxu0 0.0
      %v1779 = vand.u32 %v1477, 4294901760
      %v1780 = vsub.f32 %v1477, %v1779
      %v1781 = vand.u32 %v1780, 4294901760
      %v1782 = vsub.f32 %v1780, %v1781
      %v1783 = vand.u32 %v1782, 4294901760
      %1784 = vmatmul.mubr.f32.gmra.mrb[0].mxu0 %v1783
      %v1785 = vpop.f32.mrb[0].mxu0
      %v1786 = vadd.f32 %v1403, %v1785
      %v1787 = vpop.f32.mrb[0].mxu0
      %1788 = vmatprep.mubr.f32.mxu0 0.0
      %v1789 = vand.u32 %v1480, 4294901760
      %v1790 = vsub.f32 %v1480, %v1789
      %v1791 = vand.u32 %v1790, 4294901760
      %v1792 = vsub.f32 %v1790, %v1791
      %v1793 = vand.u32 %v1792, 4294901760
      %1794 = vmatmul.mubr.f32.gmra.mrb[0].mxu0 %v1793
      %v1795 = vpop.f32.mrb[0].mxu0
      %v1796 = vadd.f32 %v1404, %v1795
      %v1797 = vpop.f32.mrb[0].mxu0
      %1798 = vmatprep.mubr.f32.mxu0 0.0
      %v1799 = vand.u32 %v1483, 4294901760
      %v1800 = vsub.f32 %v1483, %v1799
      %v1801 = vand.u32 %v1800, 4294901760
      %v1802 = vsub.f32 %v1800, %v1801
      %v1803 = vand.u32 %v1802, 4294901760
      %1804 = vmatmul.mubr.f32.gmra.mrb[0].mxu0 %v1803
      %v1805 = vpop.f32.mrb[0].mxu0
      %v1806 = vadd.f32 %v1405, %v1805
      %v1807 = vpop.f32.mrb[0].mxu0
      %1808 = vmatprep.mubr.f32.mxu0 0.0
      %v1809 = vand.u32 %v1486, 4294901760
      %v1810 = vsub.f32 %v1486, %v1809
      %v1811 = vand.u32 %v1810, 4294901760
      %v1812 = vsub.f32 %v1810, %v1811
      %v1813 = vand.u32 %v1812, 4294901760
      %1814 = vmatmul.mubr.f32.gmra.mrb[0].mxu0 %v1813
      %v1815 = vpop.f32.mrb[0].mxu0
      %v1816 = vadd.f32 %v1406, %v1815
      %v1817 = vpop.f32.mrb[0].mxu0
      %1818 = vmatprep.mubr.f32.mxu0 0.0
      %v1819 = vand.u32 %v1489, 4294901760
      %v1820 = vsub.f32 %v1489, %v1819
      %v1821 = vand.u32 %v1820, 4294901760
      %v1822 = vsub.f32 %v1820, %v1821
      %v1823 = vand.u32 %v1822, 4294901760
      %1824 = vmatmul.mubr.f32.gmra.mrb[0].mxu0 %v1823
      %v1825 = vpop.f32.mrb[0].mxu0
      %v1826 = vadd.f32 %v1407, %v1825
      %v1827 = vpop.f32.mrb[0].mxu0
      %1828 = vmatprep.mubr.f32.mxu0 0.0
      %v1829 = vand.u32 %v1492, 4294901760
      %v1830 = vsub.f32 %v1492, %v1829
      %v1831 = vand.u32 %v1830, 4294901760
      %v1832 = vsub.f32 %v1830, %v1831
      %v1833 = vand.u32 %v1832, 4294901760
      %1834 = vmatmul.mubr.f32.gmra.mrb[0].mxu0 %v1833
      %v1835 = vpop.f32.mrb[0].mxu0
      %v1836 = vadd.f32 %v1408, %v1835
      %v1837 = vpop.f32.mrb[0].mxu0
      %1838 = vmatprep.mubr.f32.mxu0 0.0
      %v1839 = vand.u32 %v1495, 4294901760
      %v1840 = vsub.f32 %v1495, %v1839
      %v1841 = vand.u32 %v1840, 4294901760
      %v1842 = vsub.f32 %v1840, %v1841
      %v1843 = vand.u32 %v1842, 4294901760
      %1844 = vmatmul.mubr.f32.gmra.mrb[0].mxu0 %v1843
      %v1845 = vpop.f32.mrb[0].mxu0
      %v1846 = vadd.f32 %v1409, %v1845
      %v1847 = vpop.f32.mrb[0].mxu0
      %1848 = vmatprep.mubr.f32.mxu0 0.0
      %v1849 = vand.u32 %v1498, 4294901760
      %v1850 = vsub.f32 %v1498, %v1849
      %v1851 = vand.u32 %v1850, 4294901760
      %v1852 = vsub.f32 %v1850, %v1851
      %v1853 = vand.u32 %v1852, 4294901760
      %1854 = vmatmul.mubr.f32.gmra.mrb[0].mxu0 %v1853
      %v1855 = vpop.f32.mrb[0].mxu0
      %v1856 = vadd.f32 %v1410, %v1855
      %v1857 = vpop.f32.mrb[0].mxu0
      %1858 = vmatprep.mubr.f32.mxu0 0.0
      %v1859 = vand.u32 %v1501, 4294901760
      %v1860 = vsub.f32 %v1501, %v1859
      %v1861 = vand.u32 %v1860, 4294901760
      %v1862 = vsub.f32 %v1860, %v1861
      %v1863 = vand.u32 %v1862, 4294901760
      %1864 = vmatmul.mubr.f32.gmra.mrb[0].mxu0 %v1863
      %v1865 = vpop.f32.mrb[0].mxu0
      %v1866 = vadd.f32 %v1411, %v1865
      %v1867 = vpop.f32.mrb[0].mxu0
      %1868 = vmatprep.mubr.f32.mxu0 0.0
      %v1869 = vand.u32 %v1504, 4294901760
      %v1870 = vsub.f32 %v1504, %v1869
      %v1871 = vand.u32 %v1870, 4294901760
      %v1872 = vsub.f32 %v1870, %v1871
      %v1873 = vand.u32 %v1872, 4294901760
      %1874 = vmatmul.mubr.f32.gmra.mrb[0].mxu0 %v1873
      %v1875 = vpop.f32.mrb[0].mxu0
      %v1876 = vadd.f32 %v1412, %v1875
      %v1877 = vpop.f32.mrb[0].mxu0
      %1878 = vmatprep.mubr.f32.mxu0 0.0
      %v1879 = vand.u32 %v1507, 4294901760
      %v1880 = vsub.f32 %v1507, %v1879
      %v1881 = vand.u32 %v1880, 4294901760
      %v1882 = vsub.f32 %v1880, %v1881
      %v1883 = vand.u32 %v1882, 4294901760
      %1884 = vmatmul.mubr.f32.gmra.mrb[0].mxu0 %v1883
      %v1885 = vpop.f32.mrb[0].mxu0
      %v1886 = vadd.f32 %v1413, %v1885
      %v1887 = vpop.f32.mrb[0].mxu0
      %1888 = vmatprep.mubr.f32.mxu0 0.0
      %v1889 = vand.u32 %v1510, 4294901760
      %v1890 = vsub.f32 %v1510, %v1889
      %v1891 = vand.u32 %v1890, 4294901760
      %v1892 = vsub.f32 %v1890, %v1891
      %v1893 = vand.u32 %v1892, 4294901760
      %1894 = vmatmul.mubr.f32.gmra.mrb[0].mxu0 %v1893
      %v1895 = vpop.f32.mrb[0].mxu0
      %v1896 = vadd.f32 %v1414, %v1895
      %v1897 = vpop.f32.mrb[0].mxu0
      %1898 = vdwg.mxu0
      %1899 = vmatprep.subr.mxu0 0.0
      %v1900 = vand.u32 %v1349, 4294901760
      %v1901 = vsub.f32 %v1349, %v1900
      %v1902 = vand.u32 %v1901, 4294901760
      %v1903 = vsub.f32 %v1901, %v1902
      %v1904 = vand.u32 %v1903, 4294901760
      %1905 = vmatpush1.msra.mxu0 %v1904
      %1906 = vmatprep.subr.mxu0 0.0
      %v1907 = vand.u32 %v1350, 4294901760
      %v1908 = vsub.f32 %v1350, %v1907
      %v1909 = vand.u32 %v1908, 4294901760
      %v1910 = vsub.f32 %v1908, %v1909
      %v1911 = vand.u32 %v1910, 4294901760
      %1912 = vmatpush1.msra.mxu0 %v1911
      %1913 = vmatprep.subr.mxu0 0.0
      %1914 = vmatpush1.msra.mxu0 0.0
      %1915 = vmatprep.subr.mxu0 0.0
      %1916 = vmatpush1.msra.mxu0 0.0
      %1917 = vmatprep.subr.mxu0 0.0
      %1918 = vmatpush1.msra.mxu0 0.0
      %1919 = vmatprep.subr.mxu0 0.0
      %1920 = vmatpush1.msra.mxu0 0.0
      %1921 = vmatprep.subr.mxu0 0.0
      %1922 = vmatpush1.msra.mxu0 0.0
      %1923 = vmatprep.subr.mxu0 0.0
      %1924 = vmatpush1.msra.mxu0 0.0
      %1925 = vmatprep.subr.mxu0 0.0
      %1926 = vmatpush1.msra.mxu0 0.0
      %1927 = vmatprep.subr.mxu0 0.0
      %1928 = vmatpush1.msra.mxu0 0.0
      %1929 = vmatprep.subr.mxu0 0.0
      %1930 = vmatpush1.msra.mxu0 0.0
      %1931 = vmatprep.subr.mxu0 0.0
      %1932 = vmatpush1.msra.mxu0 0.0
      %1933 = vmatprep.subr.mxu0 0.0
      %1934 = vmatpush1.msra.mxu0 0.0
      %1935 = vmatprep.subr.mxu0 0.0
      %1936 = vmatpush1.msra.mxu0 0.0
      %1937 = vmatprep.subr.mxu0 0.0
      %1938 = vmatpush1.msra.mxu0 0.0
      %1939 = vmatprep.subr.mxu0 0.0
      %1940 = vmatpush1.msra.mxu0 0.0
      %1941 = vmatprep.subr.mxu0 0.0
      %1942 = vmatpush1.msra.mxu0 0.0
      %1943 = vmatprep.subr.mxu0 0.0
      %1944 = vmatpush1.msra.mxu0 0.0
      %1945 = vmatprep.subr.mxu0 0.0
      %1946 = vmatpush1.msra.mxu0 0.0
      %1947 = vmatprep.subr.mxu0 0.0
      %1948 = vmatpush1.msra.mxu0 0.0
      %1949 = vmatprep.subr.mxu0 0.0
      %1950 = vmatpush1.msra.mxu0 0.0
      %1951 = vmatprep.subr.mxu0 0.0
      %1952 = vmatpush1.msra.mxu0 0.0
      %1953 = vmatprep.subr.mxu0 0.0
      %1954 = vmatpush1.msra.mxu0 0.0
      %1955 = vmatprep.subr.mxu0 0.0
      %1956 = vmatpush1.msra.mxu0 0.0
      %1957 = vmatprep.subr.mxu0 0.0
      %1958 = vmatpush1.msra.mxu0 0.0
      %1959 = vmatprep.subr.mxu0 0.0
      %1960 = vmatpush1.msra.mxu0 0.0
      %1961 = vmatprep.subr.mxu0 0.0
      %1962 = vmatpush1.msra.mxu0 0.0
      %1963 = vmatprep.subr.mxu0 0.0
      %1964 = vmatpush1.msra.mxu0 0.0
      %1965 = vmatprep.subr.mxu0 0.0
      %1966 = vmatpush1.msra.mxu0 0.0
      %1967 = vmatprep.subr.mxu0 0.0
      %1968 = vmatpush1.msra.mxu0 0.0
      %1969 = vmatprep.subr.mxu0 0.0
      %1970 = vmatpush1.msra.mxu0 0.0
      %1971 = vmatprep.subr.mxu0 0.0
      %1972 = vmatpush1.msra.mxu0 0.0
      %1973 = vmatprep.mubr.f32.mxu0 0.0
      %v1974 = vand.u32 %v1417, 4294901760
      %1975 = vmatmul.mubr.f32.gmra.mrb[0].mxu0 %v1974
      %v1976 = vpop.f32.mrb[0].mxu0
      %v1977 = vadd.f32 %v1586, %v1976
      %v1978 = vpop.f32.mrb[0].mxu0
      %1979 = vmatprep.mubr.f32.mxu0 0.0
      %v1980 = vand.u32 %v1420, 4294901760
      %1981 = vmatmul.mubr.f32.gmra.mrb[0].mxu0 %v1980
      %v1982 = vpop.f32.mrb[0].mxu0
      %v1983 = vadd.f32 %v1596, %v1982
      %v1984 = vpop.f32.mrb[0].mxu0
      %1985 = vmatprep.mubr.f32.mxu0 0.0
      %v1986 = vand.u32 %v1423, 4294901760
      %1987 = vmatmul.mubr.f32.gmra.mrb[0].mxu0 %v1986
      %v1988 = vpop.f32.mrb[0].mxu0
      %v1989 = vadd.f32 %v1606, %v1988
      %v1990 = vpop.f32.mrb[0].mxu0
      %1991 = vmatprep.mubr.f32.mxu0 0.0
      %v1992 = vand.u32 %v1426, 4294901760
      %1993 = vmatmul.mubr.f32.gmra.mrb[0].mxu0 %v1992
      %v1994 = vpop.f32.mrb[0].mxu0
      %v1995 = vadd.f32 %v1616, %v1994
      %v1996 = vpop.f32.mrb[0].mxu0
      %1997 = vmatprep.mubr.f32.mxu0 0.0
      %v1998 = vand.u32 %v1429, 4294901760
      %1999 = vmatmul.mubr.f32.gmra.mrb[0].mxu0 %v1998
      %v2000 = vpop.f32.mrb[0].mxu0
      %v2001 = vadd.f32 %v1626, %v2000
      %v2002 = vpop.f32.mrb[0].mxu0
      %2003 = vmatprep.mubr.f32.mxu0 0.0
      %v2004 = vand.u32 %v1432, 4294901760
      %2005 = vmatmul.mubr.f32.gmra.mrb[0].mxu0 %v2004
      %v2006 = vpop.f32.mrb[0].mxu0
      %v2007 = vadd.f32 %v1636, %v2006
      %v2008 = vpop.f32.mrb[0].mxu0
      %2009 = vmatprep.mubr.f32.mxu0 0.0
      %v2010 = vand.u32 %v1435, 4294901760
      %2011 = vmatmul.mubr.f32.gmra.mrb[0].mxu0 %v2010
      %v2012 = vpop.f32.mrb[0].mxu0
      %v2013 = vadd.f32 %v1646, %v2012
      %v2014 = vpop.f32.mrb[0].mxu0
      %2015 = vmatprep.mubr.f32.mxu0 0.0
      %v2016 = vand.u32 %v1438, 4294901760
      %2017 = vmatmul.mubr.f32.gmra.mrb[0].mxu0 %v2016
      %v2018 = vpop.f32.mrb[0].mxu0
      %v2019 = vadd.f32 %v1656, %v2018
      %v2020 = vpop.f32.mrb[0].mxu0
      %2021 = vmatprep.mubr.f32.mxu0 0.0
      %v2022 = vand.u32 %v1441, 4294901760
      %2023 = vmatmul.mubr.f32.gmra.mrb[0].mxu0 %v2022
      %v2024 = vpop.f32.mrb[0].mxu0
      %v2025 = vadd.f32 %v1666, %v2024
      %v2026 = vpop.f32.mrb[0].mxu0
      %2027 = vmatprep.mubr.f32.mxu0 0.0
      %v2028 = vand.u32 %v1444, 4294901760
      %2029 = vmatmul.mubr.f32.gmra.mrb[0].mxu0 %v2028
      %v2030 = vpop.f32.mrb[0].mxu0
      %v2031 = vadd.f32 %v1676, %v2030
      %v2032 = vpop.f32.mrb[0].mxu0
      %2033 = vmatprep.mubr.f32.mxu0 0.0
      %v2034 = vand.u32 %v1447, 4294901760
      %2035 = vmatmul.mubr.f32.gmra.mrb[0].mxu0 %v2034
      %v2036 = vpop.f32.mrb[0].mxu0
      %v2037 = vadd.f32 %v1686, %v2036
      %v2038 = vpop.f32.mrb[0].mxu0
      %2039 = vmatprep.mubr.f32.mxu0 0.0
      %v2040 = vand.u32 %v1450, 4294901760
      %2041 = vmatmul.mubr.f32.gmra.mrb[0].mxu0 %v2040
      %v2042 = vpop.f32.mrb[0].mxu0
      %v2043 = vadd.f32 %v1696, %v2042
      %v2044 = vpop.f32.mrb[0].mxu0
      %2045 = vmatprep.mubr.f32.mxu0 0.0
      %v2046 = vand.u32 %v1453, 4294901760
      %2047 = vmatmul.mubr.f32.gmra.mrb[0].mxu0 %v2046
      %v2048 = vpop.f32.mrb[0].mxu0
      %v2049 = vadd.f32 %v1706, %v2048
      %v2050 = vpop.f32.mrb[0].mxu0
      %2051 = vmatprep.mubr.f32.mxu0 0.0
      %v2052 = vand.u32 %v1456, 4294901760
      %2053 = vmatmul.mubr.f32.gmra.mrb[0].mxu0 %v2052
      %v2054 = vpop.f32.mrb[0].mxu0
      %v2055 = vadd.f32 %v1716, %v2054
      %v2056 = vpop.f32.mrb[0].mxu0
      %2057 = vmatprep.mubr.f32.mxu0 0.0
      %v2058 = vand.u32 %v1459, 4294901760
      %2059 = vmatmul.mubr.f32.gmra.mrb[0].mxu0 %v2058
      %v2060 = vpop.f32.mrb[0].mxu0
      %v2061 = vadd.f32 %v1726, %v2060
      %v2062 = vpop.f32.mrb[0].mxu0
      %2063 = vmatprep.mubr.f32.mxu0 0.0
      %v2064 = vand.u32 %v1462, 4294901760
      %2065 = vmatmul.mubr.f32.gmra.mrb[0].mxu0 %v2064
      %v2066 = vpop.f32.mrb[0].mxu0
      %v2067 = vadd.f32 %v1736, %v2066
      %v2068 = vpop.f32.mrb[0].mxu0
      %2069 = vmatprep.mubr.f32.mxu0 0.0
      %v2070 = vand.u32 %v1465, 4294901760
      %2071 = vmatmul.mubr.f32.gmra.mrb[0].mxu0 %v2070
      %v2072 = vpop.f32.mrb[0].mxu0
      %v2073 = vadd.f32 %v1746, %v2072
      %v2074 = vpop.f32.mrb[0].mxu0
      %2075 = vmatprep.mubr.f32.mxu0 0.0
      %v2076 = vand.u32 %v1468, 4294901760
      %2077 = vmatmul.mubr.f32.gmra.mrb[0].mxu0 %v2076
      %v2078 = vpop.f32.mrb[0].mxu0
      %v2079 = vadd.f32 %v1756, %v2078
      %v2080 = vpop.f32.mrb[0].mxu0
      %2081 = vmatprep.mubr.f32.mxu0 0.0
      %v2082 = vand.u32 %v1471, 4294901760
      %2083 = vmatmul.mubr.f32.gmra.mrb[0].mxu0 %v2082
      %v2084 = vpop.f32.mrb[0].mxu0
      %v2085 = vadd.f32 %v1766, %v2084
      %v2086 = vpop.f32.mrb[0].mxu0
      %2087 = vmatprep.mubr.f32.mxu0 0.0
      %v2088 = vand.u32 %v1474, 4294901760
      %2089 = vmatmul.mubr.f32.gmra.mrb[0].mxu0 %v2088
      %v2090 = vpop.f32.mrb[0].mxu0
      %v2091 = vadd.f32 %v1776, %v2090
      %v2092 = vpop.f32.mrb[0].mxu0
      %2093 = vmatprep.mubr.f32.mxu0 0.0
      %v2094 = vand.u32 %v1477, 4294901760
      %2095 = vmatmul.mubr.f32.gmra.mrb[0].mxu0 %v2094
      %v2096 = vpop.f32.mrb[0].mxu0
      %v2097 = vadd.f32 %v1786, %v2096
      %v2098 = vpop.f32.mrb[0].mxu0
      %2099 = vmatprep.mubr.f32.mxu0 0.0
      %v2100 = vand.u32 %v1480, 4294901760
      %2101 = vmatmul.mubr.f32.gmra.mrb[0].mxu0 %v2100
      %v2102 = vpop.f32.mrb[0].mxu0
      %v2103 = vadd.f32 %v1796, %v2102
      %v2104 = vpop.f32.mrb[0].mxu0
      %2105 = vmatprep.mubr.f32.mxu0 0.0
      %v2106 = vand.u32 %v1483, 4294901760
      %2107 = vmatmul.mubr.f32.gmra.mrb[0].mxu0 %v2106
      %v2108 = vpop.f32.mrb[0].mxu0
      %v2109 = vadd.f32 %v1806, %v2108
      %v2110 = vpop.f32.mrb[0].mxu0
      %2111 = vmatprep.mubr.f32.mxu0 0.0
      %v2112 = vand.u32 %v1486, 4294901760
      %2113 = vmatmul.mubr.f32.gmra.mrb[0].mxu0 %v2112
      %v2114 = vpop.f32.mrb[0].mxu0
      %v2115 = vadd.f32 %v1816, %v2114
      %v2116 = vpop.f32.mrb[0].mxu0
      %2117 = vmatprep.mubr.f32.mxu0 0.0
      %v2118 = vand.u32 %v1489, 4294901760
      %2119 = vmatmul.mubr.f32.gmra.mrb[0].mxu0 %v2118
      %v2120 = vpop.f32.mrb[0].mxu0
      %v2121 = vadd.f32 %v1826, %v2120
      %v2122 = vpop.f32.mrb[0].mxu0
      %2123 = vmatprep.mubr.f32.mxu0 0.0
      %v2124 = vand.u32 %v1492, 4294901760
      %2125 = vmatmul.mubr.f32.gmra.mrb[0].mxu0 %v2124
      %v2126 = vpop.f32.mrb[0].mxu0
      %v2127 = vadd.f32 %v1836, %v2126
      %v2128 = vpop.f32.mrb[0].mxu0
      %2129 = vmatprep.mubr.f32.mxu0 0.0
      %v2130 = vand.u32 %v1495, 4294901760
      %2131 = vmatmul.mubr.f32.gmra.mrb[0].mxu0 %v2130
      %v2132 = vpop.f32.mrb[0].mxu0
      %v2133 = vadd.f32 %v1846, %v2132
      %v2134 = vpop.f32.mrb[0].mxu0
      %2135 = vmatprep.mubr.f32.mxu0 0.0
      %v2136 = vand.u32 %v1498, 4294901760
      %2137 = vmatmul.mubr.f32.gmra.mrb[0].mxu0 %v2136
      %v2138 = vpop.f32.mrb[0].mxu0
      %v2139 = vadd.f32 %v1856, %v2138
      %v2140 = vpop.f32.mrb[0].mxu0
      %2141 = vmatprep.mubr.f32.mxu0 0.0
      %v2142 = vand.u32 %v1501, 4294901760
      %2143 = vmatmul.mubr.f32.gmra.mrb[0].mxu0 %v2142
      %v2144 = vpop.f32.mrb[0].mxu0
      %v2145 = vadd.f32 %v1866, %v2144
      %v2146 = vpop.f32.mrb[0].mxu0
      %2147 = vmatprep.mubr.f32.mxu0 0.0
      %v2148 = vand.u32 %v1504, 4294901760
      %2149 = vmatmul.mubr.f32.gmra.mrb[0].mxu0 %v2148
      %v2150 = vpop.f32.mrb[0].mxu0
      %v2151 = vadd.f32 %v1876, %v2150
      %v2152 = vpop.f32.mrb[0].mxu0
      %2153 = vmatprep.mubr.f32.mxu0 0.0
      %v2154 = vand.u32 %v1507, 4294901760
      %2155 = vmatmul.mubr.f32.gmra.mrb[0].mxu0 %v2154
      %v2156 = vpop.f32.mrb[0].mxu0
      %v2157 = vadd.f32 %v1886, %v2156
      %v2158 = vpop.f32.mrb[0].mxu0
      %2159 = vmatprep.mubr.f32.mxu0 0.0
      %v2160 = vand.u32 %v1510, 4294901760
      %2161 = vmatmul.mubr.f32.gmra.mrb[0].mxu0 %v2160
      %v2162 = vpop.f32.mrb[0].mxu0
      %v2163 = vadd.f32 %v1896, %v2162
      %v2164 = vpop.f32.mrb[0].mxu0
      %2165 = vdwg.mxu0
      %2166 = vmatprep.subr.mxu0 0.0
      %v2167 = vand.u32 %v1349, 4294901760
      %v2168 = vsub.f32 %v1349, %v2167
      %2169 = vmatpush1.msra.mxu0 %v2168
      %2170 = vmatprep.subr.mxu0 0.0
      %v2171 = vand.u32 %v1350, 4294901760
      %v2172 = vsub.f32 %v1350, %v2171
      %2173 = vmatpush1.msra.mxu0 %v2172
      %2174 = vmatprep.subr.mxu0 0.0
      %2175 = vmatpush1.msra.mxu0 0.0
      %2176 = vmatprep.subr.mxu0 0.0
      %2177 = vmatpush1.msra.mxu0 0.0
      %2178 = vmatprep.subr.mxu0 0.0
      %2179 = vmatpush1.msra.mxu0 0.0
      %2180 = vmatprep.subr.mxu0 0.0
      %2181 = vmatpush1.msra.mxu0 0.0
      %2182 = vmatprep.subr.mxu0 0.0
      %2183 = vmatpush1.msra.mxu0 0.0
      %2184 = vmatprep.subr.mxu0 0.0
      %2185 = vmatpush1.msra.mxu0 0.0
      %2186 = vmatprep.subr.mxu0 0.0
      %2187 = vmatpush1.msra.mxu0 0.0
      %2188 = vmatprep.subr.mxu0 0.0
      %2189 = vmatpush1.msra.mxu0 0.0
      %2190 = vmatprep.subr.mxu0 0.0
      %2191 = vmatpush1.msra.mxu0 0.0
      %2192 = vmatprep.subr.mxu0 0.0
      %2193 = vmatpush1.msra.mxu0 0.0
      %2194 = vmatprep.subr.mxu0 0.0
      %2195 = vmatpush1.msra.mxu0 0.0
      %2196 = vmatprep.subr.mxu0 0.0
      %2197 = vmatpush1.msra.mxu0 0.0
      %2198 = vmatprep.subr.mxu0 0.0
      %2199 = vmatpush1.msra.mxu0 0.0
      %2200 = vmatprep.subr.mxu0 0.0
      %2201 = vmatpush1.msra.mxu0 0.0
      %2202 = vmatprep.subr.mxu0 0.0
      %2203 = vmatpush1.msra.mxu0 0.0
      %2204 = vmatprep.subr.mxu0 0.0
      %2205 = vmatpush1.msra.mxu0 0.0
      %2206 = vmatprep.subr.mxu0 0.0
      %2207 = vmatpush1.msra.mxu0 0.0
      %2208 = vmatprep.subr.mxu0 0.0
      %2209 = vmatpush1.msra.mxu0 0.0
      %2210 = vmatprep.subr.mxu0 0.0
      %2211 = vmatpush1.msra.mxu0 0.0
      %2212 = vmatprep.subr.mxu0 0.0
      %2213 = vmatpush1.msra.mxu0 0.0
      %2214 = vmatprep.subr.mxu0 0.0
      %2215 = vmatpush1.msra.mxu0 0.0
      %2216 = vmatprep.subr.mxu0 0.0
      %2217 = vmatpush1.msra.mxu0 0.0
      %2218 = vmatprep.subr.mxu0 0.0
      %2219 = vmatpush1.msra.mxu0 0.0
      %2220 = vmatprep.subr.mxu0 0.0
      %2221 = vmatpush1.msra.mxu0 0.0
      %2222 = vmatprep.subr.mxu0 0.0
      %2223 = vmatpush1.msra.mxu0 0.0
      %2224 = vmatprep.subr.mxu0 0.0
      %2225 = vmatpush1.msra.mxu0 0.0
      %2226 = vmatprep.subr.mxu0 0.0
      %2227 = vmatpush1.msra.mxu0 0.0
      %2228 = vmatprep.subr.mxu0 0.0
      %2229 = vmatpush1.msra.mxu0 0.0
      %2230 = vmatprep.subr.mxu0 0.0
      %2231 = vmatpush1.msra.mxu0 0.0
      %2232 = vmatprep.subr.mxu0 0.0
      %2233 = vmatpush1.msra.mxu0 0.0
      %2234 = vmatprep.mubr.f32.mxu0 0.0
      %v2235 = vand.u32 %v1417, 4294901760
      %v2236 = vsub.f32 %v1417, %v2235
      %2237 = vmatmul.mubr.f32.gmra.mrb[0].mxu0 %v2236
      %v2238 = vpop.f32.mrb[0].mxu0
      %v2239 = vadd.f32 %v1977, %v2238
      %v2240 = vpop.f32.mrb[0].mxu0
      %2241 = vmatprep.mubr.f32.mxu0 0.0
      %v2242 = vand.u32 %v1420, 4294901760
      %v2243 = vsub.f32 %v1420, %v2242
      %2244 = vmatmul.mubr.f32.gmra.mrb[0].mxu0 %v2243
      %v2245 = vpop.f32.mrb[0].mxu0
      %v2246 = vadd.f32 %v1983, %v2245
      %v2247 = vpop.f32.mrb[0].mxu0
      %2248 = vmatprep.mubr.f32.mxu0 0.0
      %v2249 = vand.u32 %v1423, 4294901760
      %v2250 = vsub.f32 %v1423, %v2249
      %2251 = vmatmul.mubr.f32.gmra.mrb[0].mxu0 %v2250
      %v2252 = vpop.f32.mrb[0].mxu0
      %v2253 = vadd.f32 %v1989, %v2252
      %v2254 = vpop.f32.mrb[0].mxu0
      %2255 = vmatprep.mubr.f32.mxu0 0.0
      %v2256 = vand.u32 %v1426, 4294901760
      %v2257 = vsub.f32 %v1426, %v2256
      %2258 = vmatmul.mubr.f32.gmra.mrb[0].mxu0 %v2257
      %v2259 = vpop.f32.mrb[0].mxu0
      %v2260 = vadd.f32 %v1995, %v2259
      %v2261 = vpop.f32.mrb[0].mxu0
      %2262 = vmatprep.mubr.f32.mxu0 0.0
      %v2263 = vand.u32 %v1429, 4294901760
      %v2264 = vsub.f32 %v1429, %v2263
      %2265 = vmatmul.mubr.f32.gmra.mrb[0].mxu0 %v2264
      %v2266 = vpop.f32.mrb[0].mxu0
      %v2267 = vadd.f32 %v2001, %v2266
      %v2268 = vpop.f32.mrb[0].mxu0
      %2269 = vmatprep.mubr.f32.mxu0 0.0
      %v2270 = vand.u32 %v1432, 4294901760
      %v2271 = vsub.f32 %v1432, %v2270
      %2272 = vmatmul.mubr.f32.gmra.mrb[0].mxu0 %v2271
      %v2273 = vpop.f32.mrb[0].mxu0
      %v2274 = vadd.f32 %v2007, %v2273
      %v2275 = vpop.f32.mrb[0].mxu0
      %2276 = vmatprep.mubr.f32.mxu0 0.0
      %v2277 = vand.u32 %v1435, 4294901760
      %v2278 = vsub.f32 %v1435, %v2277
      %2279 = vmatmul.mubr.f32.gmra.mrb[0].mxu0 %v2278
      %v2280 = vpop.f32.mrb[0].mxu0
      %v2281 = vadd.f32 %v2013, %v2280
      %v2282 = vpop.f32.mrb[0].mxu0
      %2283 = vmatprep.mubr.f32.mxu0 0.0
      %v2284 = vand.u32 %v1438, 4294901760
      %v2285 = vsub.f32 %v1438, %v2284
      %2286 = vmatmul.mubr.f32.gmra.mrb[0].mxu0 %v2285
      %v2287 = vpop.f32.mrb[0].mxu0
      %v2288 = vadd.f32 %v2019, %v2287
      %v2289 = vpop.f32.mrb[0].mxu0
      %2290 = vmatprep.mubr.f32.mxu0 0.0
      %v2291 = vand.u32 %v1441, 4294901760
      %v2292 = vsub.f32 %v1441, %v2291
      %2293 = vmatmul.mubr.f32.gmra.mrb[0].mxu0 %v2292
      %v2294 = vpop.f32.mrb[0].mxu0
      %v2295 = vadd.f32 %v2025, %v2294
      %v2296 = vpop.f32.mrb[0].mxu0
      %2297 = vmatprep.mubr.f32.mxu0 0.0
      %v2298 = vand.u32 %v1444, 4294901760
      %v2299 = vsub.f32 %v1444, %v2298
      %2300 = vmatmul.mubr.f32.gmra.mrb[0].mxu0 %v2299
      %v2301 = vpop.f32.mrb[0].mxu0
      %v2302 = vadd.f32 %v2031, %v2301
      %v2303 = vpop.f32.mrb[0].mxu0
      %2304 = vmatprep.mubr.f32.mxu0 0.0
      %v2305 = vand.u32 %v1447, 4294901760
      %v2306 = vsub.f32 %v1447, %v2305
      %2307 = vmatmul.mubr.f32.gmra.mrb[0].mxu0 %v2306
      %v2308 = vpop.f32.mrb[0].mxu0
      %v2309 = vadd.f32 %v2037, %v2308
      %v2310 = vpop.f32.mrb[0].mxu0
      %2311 = vmatprep.mubr.f32.mxu0 0.0
      %v2312 = vand.u32 %v1450, 4294901760
      %v2313 = vsub.f32 %v1450, %v2312
      %2314 = vmatmul.mubr.f32.gmra.mrb[0].mxu0 %v2313
      %v2315 = vpop.f32.mrb[0].mxu0
      %v2316 = vadd.f32 %v2043, %v2315
      %v2317 = vpop.f32.mrb[0].mxu0
      %2318 = vmatprep.mubr.f32.mxu0 0.0
      %v2319 = vand.u32 %v1453, 4294901760
      %v2320 = vsub.f32 %v1453, %v2319
      %2321 = vmatmul.mubr.f32.gmra.mrb[0].mxu0 %v2320
      %v2322 = vpop.f32.mrb[0].mxu0
      %v2323 = vadd.f32 %v2049, %v2322
      %v2324 = vpop.f32.mrb[0].mxu0
      %2325 = vmatprep.mubr.f32.mxu0 0.0
      %v2326 = vand.u32 %v1456, 4294901760
      %v2327 = vsub.f32 %v1456, %v2326
      %2328 = vmatmul.mubr.f32.gmra.mrb[0].mxu0 %v2327
      %v2329 = vpop.f32.mrb[0].mxu0
      %v2330 = vadd.f32 %v2055, %v2329
      %v2331 = vpop.f32.mrb[0].mxu0
      %2332 = vmatprep.mubr.f32.mxu0 0.0
      %v2333 = vand.u32 %v1459, 4294901760
      %v2334 = vsub.f32 %v1459, %v2333
      %2335 = vmatmul.mubr.f32.gmra.mrb[0].mxu0 %v2334
      %v2336 = vpop.f32.mrb[0].mxu0
      %v2337 = vadd.f32 %v2061, %v2336
      %v2338 = vpop.f32.mrb[0].mxu0
      %2339 = vmatprep.mubr.f32.mxu0 0.0
      %v2340 = vand.u32 %v1462, 4294901760
      %v2341 = vsub.f32 %v1462, %v2340
      %2342 = vmatmul.mubr.f32.gmra.mrb[0].mxu0 %v2341
      %v2343 = vpop.f32.mrb[0].mxu0
      %v2344 = vadd.f32 %v2067, %v2343
      %v2345 = vpop.f32.mrb[0].mxu0
      %2346 = vmatprep.mubr.f32.mxu0 0.0
      %v2347 = vand.u32 %v1465, 4294901760
      %v2348 = vsub.f32 %v1465, %v2347
      %2349 = vmatmul.mubr.f32.gmra.mrb[0].mxu0 %v2348
      %v2350 = vpop.f32.mrb[0].mxu0
      %v2351 = vadd.f32 %v2073, %v2350
      %v2352 = vpop.f32.mrb[0].mxu0
      %2353 = vmatprep.mubr.f32.mxu0 0.0
      %v2354 = vand.u32 %v1468, 4294901760
      %v2355 = vsub.f32 %v1468, %v2354
      %2356 = vmatmul.mubr.f32.gmra.mrb[0].mxu0 %v2355
      %v2357 = vpop.f32.mrb[0].mxu0
      %v2358 = vadd.f32 %v2079, %v2357
      %v2359 = vpop.f32.mrb[0].mxu0
      %2360 = vmatprep.mubr.f32.mxu0 0.0
      %v2361 = vand.u32 %v1471, 4294901760
      %v2362 = vsub.f32 %v1471, %v2361
      %2363 = vmatmul.mubr.f32.gmra.mrb[0].mxu0 %v2362
      %v2364 = vpop.f32.mrb[0].mxu0
      %v2365 = vadd.f32 %v2085, %v2364
      %v2366 = vpop.f32.mrb[0].mxu0
      %2367 = vmatprep.mubr.f32.mxu0 0.0
      %v2368 = vand.u32 %v1474, 4294901760
      %v2369 = vsub.f32 %v1474, %v2368
      %2370 = vmatmul.mubr.f32.gmra.mrb[0].mxu0 %v2369
      %v2371 = vpop.f32.mrb[0].mxu0
      %v2372 = vadd.f32 %v2091, %v2371
      %v2373 = vpop.f32.mrb[0].mxu0
      %2374 = vmatprep.mubr.f32.mxu0 0.0
      %v2375 = vand.u32 %v1477, 4294901760
      %v2376 = vsub.f32 %v1477, %v2375
      %2377 = vmatmul.mubr.f32.gmra.mrb[0].mxu0 %v2376
      %v2378 = vpop.f32.mrb[0].mxu0
      %v2379 = vadd.f32 %v2097, %v2378
      %v2380 = vpop.f32.mrb[0].mxu0
      %2381 = vmatprep.mubr.f32.mxu0 0.0
      %v2382 = vand.u32 %v1480, 4294901760
      %v2383 = vsub.f32 %v1480, %v2382
      %2384 = vmatmul.mubr.f32.gmra.mrb[0].mxu0 %v2383
      %v2385 = vpop.f32.mrb[0].mxu0
      %v2386 = vadd.f32 %v2103, %v2385
      %v2387 = vpop.f32.mrb[0].mxu0
      %2388 = vmatprep.mubr.f32.mxu0 0.0
      %v2389 = vand.u32 %v1483, 4294901760
      %v2390 = vsub.f32 %v1483, %v2389
      %2391 = vmatmul.mubr.f32.gmra.mrb[0].mxu0 %v2390
      %v2392 = vpop.f32.mrb[0].mxu0
      %v2393 = vadd.f32 %v2109, %v2392
      %v2394 = vpop.f32.mrb[0].mxu0
      %2395 = vmatprep.mubr.f32.mxu0 0.0
      %v2396 = vand.u32 %v1486, 4294901760
      %v2397 = vsub.f32 %v1486, %v2396
      %2398 = vmatmul.mubr.f32.gmra.mrb[0].mxu0 %v2397
      %v2399 = vpop.f32.mrb[0].mxu0
      %v2400 = vadd.f32 %v2115, %v2399
      %v2401 = vpop.f32.mrb[0].mxu0
      %2402 = vmatprep.mubr.f32.mxu0 0.0
      %v2403 = vand.u32 %v1489, 4294901760
      %v2404 = vsub.f32 %v1489, %v2403
      %2405 = vmatmul.mubr.f32.gmra.mrb[0].mxu0 %v2404
      %v2406 = vpop.f32.mrb[0].mxu0
      %v2407 = vadd.f32 %v2121, %v2406
      %v2408 = vpop.f32.mrb[0].mxu0
      %2409 = vmatprep.mubr.f32.mxu0 0.0
      %v2410 = vand.u32 %v1492, 4294901760
      %v2411 = vsub.f32 %v1492, %v2410
      %2412 = vmatmul.mubr.f32.gmra.mrb[0].mxu0 %v2411
      %v2413 = vpop.f32.mrb[0].mxu0
      %v2414 = vadd.f32 %v2127, %v2413
      %v2415 = vpop.f32.mrb[0].mxu0
      %2416 = vmatprep.mubr.f32.mxu0 0.0
      %v2417 = vand.u32 %v1495, 4294901760
      %v2418 = vsub.f32 %v1495, %v2417
      %2419 = vmatmul.mubr.f32.gmra.mrb[0].mxu0 %v2418
      %v2420 = vpop.f32.mrb[0].mxu0
      %v2421 = vadd.f32 %v2133, %v2420
      %v2422 = vpop.f32.mrb[0].mxu0
      %2423 = vmatprep.mubr.f32.mxu0 0.0
      %v2424 = vand.u32 %v1498, 4294901760
      %v2425 = vsub.f32 %v1498, %v2424
      %2426 = vmatmul.mubr.f32.gmra.mrb[0].mxu0 %v2425
      %v2427 = vpop.f32.mrb[0].mxu0
      %v2428 = vadd.f32 %v2139, %v2427
      %v2429 = vpop.f32.mrb[0].mxu0
      %2430 = vmatprep.mubr.f32.mxu0 0.0
      %v2431 = vand.u32 %v1501, 4294901760
      %v2432 = vsub.f32 %v1501, %v2431
      %2433 = vmatmul.mubr.f32.gmra.mrb[0].mxu0 %v2432
      %v2434 = vpop.f32.mrb[0].mxu0
      %v2435 = vadd.f32 %v2145, %v2434
      %v2436 = vpop.f32.mrb[0].mxu0
      %2437 = vmatprep.mubr.f32.mxu0 0.0
      %v2438 = vand.u32 %v1504, 4294901760
      %v2439 = vsub.f32 %v1504, %v2438
      %2440 = vmatmul.mubr.f32.gmra.mrb[0].mxu0 %v2439
      %v2441 = vpop.f32.mrb[0].mxu0
      %v2442 = vadd.f32 %v2151, %v2441
      %v2443 = vpop.f32.mrb[0].mxu0
      %2444 = vmatprep.mubr.f32.mxu0 0.0
      %v2445 = vand.u32 %v1507, 4294901760
      %v2446 = vsub.f32 %v1507, %v2445
      %2447 = vmatmul.mubr.f32.gmra.mrb[0].mxu0 %v2446
      %v2448 = vpop.f32.mrb[0].mxu0
      %v2449 = vadd.f32 %v2157, %v2448
      %v2450 = vpop.f32.mrb[0].mxu0
      %2451 = vmatprep.mubr.f32.mxu0 0.0
      %v2452 = vand.u32 %v1510, 4294901760
      %v2453 = vsub.f32 %v1510, %v2452
      %2454 = vmatmul.mubr.f32.gmra.mrb[0].mxu0 %v2453
      %v2455 = vpop.f32.mrb[0].mxu0
      %v2456 = vadd.f32 %v2163, %v2455
      %v2457 = vpop.f32.mrb[0].mxu0
      %2458 = vdwg.mxu0
      %2459 = vmatprep.subr.mxu0 0.0
      %v2460 = vand.u32 %v1349, 4294901760
      %2461 = vmatpush1.msra.mxu0 %v2460
      %2462 = vmatprep.subr.mxu0 0.0
      %v2463 = vand.u32 %v1350, 4294901760
      %2464 = vmatpush1.msra.mxu0 %v2463
      %2465 = vmatprep.subr.mxu0 0.0
      %2466 = vmatpush1.msra.mxu0 0.0
      %2467 = vmatprep.subr.mxu0 0.0
      %2468 = vmatpush1.msra.mxu0 0.0
      %2469 = vmatprep.subr.mxu0 0.0
      %2470 = vmatpush1.msra.mxu0 0.0
      %2471 = vmatprep.subr.mxu0 0.0
      %2472 = vmatpush1.msra.mxu0 0.0
      %2473 = vmatprep.subr.mxu0 0.0
      %2474 = vmatpush1.msra.mxu0 0.0
      %2475 = vmatprep.subr.mxu0 0.0
      %2476 = vmatpush1.msra.mxu0 0.0
      %2477 = vmatprep.subr.mxu0 0.0
      %2478 = vmatpush1.msra.mxu0 0.0
      %2479 = vmatprep.subr.mxu0 0.0
      %2480 = vmatpush1.msra.mxu0 0.0
      %2481 = vmatprep.subr.mxu0 0.0
      %2482 = vmatpush1.msra.mxu0 0.0
      %2483 = vmatprep.subr.mxu0 0.0
      %2484 = vmatpush1.msra.mxu0 0.0
      %2485 = vmatprep.subr.mxu0 0.0
      %2486 = vmatpush1.msra.mxu0 0.0
      %2487 = vmatprep.subr.mxu0 0.0
      %2488 = vmatpush1.msra.mxu0 0.0
      %2489 = vmatprep.subr.mxu0 0.0
      %2490 = vmatpush1.msra.mxu0 0.0
      %2491 = vmatprep.subr.mxu0 0.0
      %2492 = vmatpush1.msra.mxu0 0.0
      %2493 = vmatprep.subr.mxu0 0.0
      %2494 = vmatpush1.msra.mxu0 0.0
      %2495 = vmatprep.subr.mxu0 0.0
      %2496 = vmatpush1.msra.mxu0 0.0
      %2497 = vmatprep.subr.mxu0 0.0
      %2498 = vmatpush1.msra.mxu0 0.0
      %2499 = vmatprep.subr.mxu0 0.0
      %2500 = vmatpush1.msra.mxu0 0.0
      %2501 = vmatprep.subr.mxu0 0.0
      %2502 = vmatpush1.msra.mxu0 0.0
      %2503 = vmatprep.subr.mxu0 0.0
      %2504 = vmatpush1.msra.mxu0 0.0
      %2505 = vmatprep.subr.mxu0 0.0
      %2506 = vmatpush1.msra.mxu0 0.0
      %2507 = vmatprep.subr.mxu0 0.0
      %2508 = vmatpush1.msra.mxu0 0.0
      %2509 = vmatprep.subr.mxu0 0.0
      %2510 = vmatpush1.msra.mxu0 0.0
      %2511 = vmatprep.subr.mxu0 0.0
      %2512 = vmatpush1.msra.mxu0 0.0
      %2513 = vmatprep.subr.mxu0 0.0
      %2514 = vmatpush1.msra.mxu0 0.0
      %2515 = vmatprep.subr.mxu0 0.0
      %2516 = vmatpush1.msra.mxu0 0.0
      %2517 = vmatprep.subr.mxu0 0.0
      %2518 = vmatpush1.msra.mxu0 0.0
      %2519 = vmatprep.subr.mxu0 0.0
      %2520 = vmatpush1.msra.mxu0 0.0
      %2521 = vmatprep.subr.mxu0 0.0
      %2522 = vmatpush1.msra.mxu0 0.0
      %2523 = vmatprep.subr.mxu0 0.0
      %2524 = vmatpush1.msra.mxu0 0.0
      %2525 = vmatprep.mubr.f32.mxu0 0.0
      %v2526 = vand.u32 %v1417, 4294901760
      %v2527 = vsub.f32 %v1417, %v2526
      %v2528 = vand.u32 %v2527, 4294901760
      %2529 = vmatmul.mubr.f32.gmra.mrb[0].mxu0 %v2528
      %v2530 = vpop.f32.mrb[0].mxu0
      %v2531 = vadd.f32 %v2239, %v2530
      %v2532 = vpop.f32.mrb[0].mxu0
      %2533 = vmatprep.mubr.f32.mxu0 0.0
      %v2534 = vand.u32 %v1420, 4294901760
      %v2535 = vsub.f32 %v1420, %v2534
      %v2536 = vand.u32 %v2535, 4294901760
      %2537 = vmatmul.mubr.f32.gmra.mrb[0].mxu0 %v2536
      %v2538 = vpop.f32.mrb[0].mxu0
      %v2539 = vadd.f32 %v2246, %v2538
      %v2540 = vpop.f32.mrb[0].mxu0
      %2541 = vmatprep.mubr.f32.mxu0 0.0
      %v2542 = vand.u32 %v1423, 4294901760
      %v2543 = vsub.f32 %v1423, %v2542
      %v2544 = vand.u32 %v2543, 4294901760
      %2545 = vmatmul.mubr.f32.gmra.mrb[0].mxu0 %v2544
      %v2546 = vpop.f32.mrb[0].mxu0
      %v2547 = vadd.f32 %v2253, %v2546
      %v2548 = vpop.f32.mrb[0].mxu0
      %2549 = vmatprep.mubr.f32.mxu0 0.0
      %v2550 = vand.u32 %v1426, 4294901760
      %v2551 = vsub.f32 %v1426, %v2550
      %v2552 = vand.u32 %v2551, 4294901760
      %2553 = vmatmul.mubr.f32.gmra.mrb[0].mxu0 %v2552
      %v2554 = vpop.f32.mrb[0].mxu0
      %v2555 = vadd.f32 %v2260, %v2554
      %v2556 = vpop.f32.mrb[0].mxu0
      %2557 = vmatprep.mubr.f32.mxu0 0.0
      %v2558 = vand.u32 %v1429, 4294901760
      %v2559 = vsub.f32 %v1429, %v2558
      %v2560 = vand.u32 %v2559, 4294901760
      %2561 = vmatmul.mubr.f32.gmra.mrb[0].mxu0 %v2560
      %v2562 = vpop.f32.mrb[0].mxu0
      %v2563 = vadd.f32 %v2267, %v2562
      %v2564 = vpop.f32.mrb[0].mxu0
      %2565 = vmatprep.mubr.f32.mxu0 0.0
      %v2566 = vand.u32 %v1432, 4294901760
      %v2567 = vsub.f32 %v1432, %v2566
      %v2568 = vand.u32 %v2567, 4294901760
      %2569 = vmatmul.mubr.f32.gmra.mrb[0].mxu0 %v2568
      %v2570 = vpop.f32.mrb[0].mxu0
      %v2571 = vadd.f32 %v2274, %v2570
      %v2572 = vpop.f32.mrb[0].mxu0
      %2573 = vmatprep.mubr.f32.mxu0 0.0
      %v2574 = vand.u32 %v1435, 4294901760
      %v2575 = vsub.f32 %v1435, %v2574
      %v2576 = vand.u32 %v2575, 4294901760
      %2577 = vmatmul.mubr.f32.gmra.mrb[0].mxu0 %v2576
      %v2578 = vpop.f32.mrb[0].mxu0
      %v2579 = vadd.f32 %v2281, %v2578
      %v2580 = vpop.f32.mrb[0].mxu0
      %2581 = vmatprep.mubr.f32.mxu0 0.0
      %v2582 = vand.u32 %v1438, 4294901760
      %v2583 = vsub.f32 %v1438, %v2582
      %v2584 = vand.u32 %v2583, 4294901760
      %2585 = vmatmul.mubr.f32.gmra.mrb[0].mxu0 %v2584
      %v2586 = vpop.f32.mrb[0].mxu0
      %v2587 = vadd.f32 %v2288, %v2586
      %v2588 = vpop.f32.mrb[0].mxu0
      %2589 = vmatprep.mubr.f32.mxu0 0.0
      %v2590 = vand.u32 %v1441, 4294901760
      %v2591 = vsub.f32 %v1441, %v2590
      %v2592 = vand.u32 %v2591, 4294901760
      %2593 = vmatmul.mubr.f32.gmra.mrb[0].mxu0 %v2592
      %v2594 = vpop.f32.mrb[0].mxu0
      %v2595 = vadd.f32 %v2295, %v2594
      %v2596 = vpop.f32.mrb[0].mxu0
      %2597 = vmatprep.mubr.f32.mxu0 0.0
      %v2598 = vand.u32 %v1444, 4294901760
      %v2599 = vsub.f32 %v1444, %v2598
      %v2600 = vand.u32 %v2599, 4294901760
      %2601 = vmatmul.mubr.f32.gmra.mrb[0].mxu0 %v2600
      %v2602 = vpop.f32.mrb[0].mxu0
      %v2603 = vadd.f32 %v2302, %v2602
      %v2604 = vpop.f32.mrb[0].mxu0
      %2605 = vmatprep.mubr.f32.mxu0 0.0
      %v2606 = vand.u32 %v1447, 4294901760
      %v2607 = vsub.f32 %v1447, %v2606
      %v2608 = vand.u32 %v2607, 4294901760
      %2609 = vmatmul.mubr.f32.gmra.mrb[0].mxu0 %v2608
      %v2610 = vpop.f32.mrb[0].mxu0
      %v2611 = vadd.f32 %v2309, %v2610
      %v2612 = vpop.f32.mrb[0].mxu0
      %2613 = vmatprep.mubr.f32.mxu0 0.0
      %v2614 = vand.u32 %v1450, 4294901760
      %v2615 = vsub.f32 %v1450, %v2614
      %v2616 = vand.u32 %v2615, 4294901760
      %2617 = vmatmul.mubr.f32.gmra.mrb[0].mxu0 %v2616
      %v2618 = vpop.f32.mrb[0].mxu0
      %v2619 = vadd.f32 %v2316, %v2618
      %v2620 = vpop.f32.mrb[0].mxu0
      %2621 = vmatprep.mubr.f32.mxu0 0.0
      %v2622 = vand.u32 %v1453, 4294901760
      %v2623 = vsub.f32 %v1453, %v2622
      %v2624 = vand.u32 %v2623, 4294901760
      %2625 = vmatmul.mubr.f32.gmra.mrb[0].mxu0 %v2624
      %v2626 = vpop.f32.mrb[0].mxu0
      %v2627 = vadd.f32 %v2323, %v2626
      %v2628 = vpop.f32.mrb[0].mxu0
      %2629 = vmatprep.mubr.f32.mxu0 0.0
      %v2630 = vand.u32 %v1456, 4294901760
      %v2631 = vsub.f32 %v1456, %v2630
      %v2632 = vand.u32 %v2631, 4294901760
      %2633 = vmatmul.mubr.f32.gmra.mrb[0].mxu0 %v2632
      %v2634 = vpop.f32.mrb[0].mxu0
      %v2635 = vadd.f32 %v2330, %v2634
      %v2636 = vpop.f32.mrb[0].mxu0
      %2637 = vmatprep.mubr.f32.mxu0 0.0
      %v2638 = vand.u32 %v1459, 4294901760
      %v2639 = vsub.f32 %v1459, %v2638
      %v2640 = vand.u32 %v2639, 4294901760
      %2641 = vmatmul.mubr.f32.gmra.mrb[0].mxu0 %v2640
      %v2642 = vpop.f32.mrb[0].mxu0
      %v2643 = vadd.f32 %v2337, %v2642
      %v2644 = vpop.f32.mrb[0].mxu0
      %2645 = vmatprep.mubr.f32.mxu0 0.0
      %v2646 = vand.u32 %v1462, 4294901760
      %v2647 = vsub.f32 %v1462, %v2646
      %v2648 = vand.u32 %v2647, 4294901760
      %2649 = vmatmul.mubr.f32.gmra.mrb[0].mxu0 %v2648
      %v2650 = vpop.f32.mrb[0].mxu0
      %v2651 = vadd.f32 %v2344, %v2650
      %v2652 = vpop.f32.mrb[0].mxu0
      %2653 = vmatprep.mubr.f32.mxu0 0.0
      %v2654 = vand.u32 %v1465, 4294901760
      %v2655 = vsub.f32 %v1465, %v2654
      %v2656 = vand.u32 %v2655, 4294901760
      %2657 = vmatmul.mubr.f32.gmra.mrb[0].mxu0 %v2656
      %v2658 = vpop.f32.mrb[0].mxu0
      %v2659 = vadd.f32 %v2351, %v2658
      %v2660 = vpop.f32.mrb[0].mxu0
      %2661 = vmatprep.mubr.f32.mxu0 0.0
      %v2662 = vand.u32 %v1468, 4294901760
      %v2663 = vsub.f32 %v1468, %v2662
      %v2664 = vand.u32 %v2663, 4294901760
      %2665 = vmatmul.mubr.f32.gmra.mrb[0].mxu0 %v2664
      %v2666 = vpop.f32.mrb[0].mxu0
      %v2667 = vadd.f32 %v2358, %v2666
      %v2668 = vpop.f32.mrb[0].mxu0
      %2669 = vmatprep.mubr.f32.mxu0 0.0
      %v2670 = vand.u32 %v1471, 4294901760
      %v2671 = vsub.f32 %v1471, %v2670
      %v2672 = vand.u32 %v2671, 4294901760
      %2673 = vmatmul.mubr.f32.gmra.mrb[0].mxu0 %v2672
      %v2674 = vpop.f32.mrb[0].mxu0
      %v2675 = vadd.f32 %v2365, %v2674
      %v2676 = vpop.f32.mrb[0].mxu0
      %2677 = vmatprep.mubr.f32.mxu0 0.0
      %v2678 = vand.u32 %v1474, 4294901760
      %v2679 = vsub.f32 %v1474, %v2678
      %v2680 = vand.u32 %v2679, 4294901760
      %2681 = vmatmul.mubr.f32.gmra.mrb[0].mxu0 %v2680
      %v2682 = vpop.f32.mrb[0].mxu0
      %v2683 = vadd.f32 %v2372, %v2682
      %v2684 = vpop.f32.mrb[0].mxu0
      %2685 = vmatprep.mubr.f32.mxu0 0.0
      %v2686 = vand.u32 %v1477, 4294901760
      %v2687 = vsub.f32 %v1477, %v2686
      %v2688 = vand.u32 %v2687, 4294901760
      %2689 = vmatmul.mubr.f32.gmra.mrb[0].mxu0 %v2688
      %v2690 = vpop.f32.mrb[0].mxu0
      %v2691 = vadd.f32 %v2379, %v2690
      %v2692 = vpop.f32.mrb[0].mxu0
      %2693 = vmatprep.mubr.f32.mxu0 0.0
      %v2694 = vand.u32 %v1480, 4294901760
      %v2695 = vsub.f32 %v1480, %v2694
      %v2696 = vand.u32 %v2695, 4294901760
      %2697 = vmatmul.mubr.f32.gmra.mrb[0].mxu0 %v2696
      %v2698 = vpop.f32.mrb[0].mxu0
      %v2699 = vadd.f32 %v2386, %v2698
      %v2700 = vpop.f32.mrb[0].mxu0
      %2701 = vmatprep.mubr.f32.mxu0 0.0
      %v2702 = vand.u32 %v1483, 4294901760
      %v2703 = vsub.f32 %v1483, %v2702
      %v2704 = vand.u32 %v2703, 4294901760
      %2705 = vmatmul.mubr.f32.gmra.mrb[0].mxu0 %v2704
      %v2706 = vpop.f32.mrb[0].mxu0
      %v2707 = vadd.f32 %v2393, %v2706
      %v2708 = vpop.f32.mrb[0].mxu0
      %2709 = vmatprep.mubr.f32.mxu0 0.0
      %v2710 = vand.u32 %v1486, 4294901760
      %v2711 = vsub.f32 %v1486, %v2710
      %v2712 = vand.u32 %v2711, 4294901760
      %2713 = vmatmul.mubr.f32.gmra.mrb[0].mxu0 %v2712
      %v2714 = vpop.f32.mrb[0].mxu0
      %v2715 = vadd.f32 %v2400, %v2714
      %v2716 = vpop.f32.mrb[0].mxu0
      %2717 = vmatprep.mubr.f32.mxu0 0.0
      %v2718 = vand.u32 %v1489, 4294901760
      %v2719 = vsub.f32 %v1489, %v2718
      %v2720 = vand.u32 %v2719, 4294901760
      %2721 = vmatmul.mubr.f32.gmra.mrb[0].mxu0 %v2720
      %v2722 = vpop.f32.mrb[0].mxu0
      %v2723 = vadd.f32 %v2407, %v2722
      %v2724 = vpop.f32.mrb[0].mxu0
      %2725 = vmatprep.mubr.f32.mxu0 0.0
      %v2726 = vand.u32 %v1492, 4294901760
      %v2727 = vsub.f32 %v1492, %v2726
      %v2728 = vand.u32 %v2727, 4294901760
      %2729 = vmatmul.mubr.f32.gmra.mrb[0].mxu0 %v2728
      %v2730 = vpop.f32.mrb[0].mxu0
      %v2731 = vadd.f32 %v2414, %v2730
      %v2732 = vpop.f32.mrb[0].mxu0
      %2733 = vmatprep.mubr.f32.mxu0 0.0
      %v2734 = vand.u32 %v1495, 4294901760
      %v2735 = vsub.f32 %v1495, %v2734
      %v2736 = vand.u32 %v2735, 4294901760
      %2737 = vmatmul.mubr.f32.gmra.mrb[0].mxu0 %v2736
      %v2738 = vpop.f32.mrb[0].mxu0
      %v2739 = vadd.f32 %v2421, %v2738
      %v2740 = vpop.f32.mrb[0].mxu0
      %2741 = vmatprep.mubr.f32.mxu0 0.0
      %v2742 = vand.u32 %v1498, 4294901760
      %v2743 = vsub.f32 %v1498, %v2742
      %v2744 = vand.u32 %v2743, 4294901760
      %2745 = vmatmul.mubr.f32.gmra.mrb[0].mxu0 %v2744
      %v2746 = vpop.f32.mrb[0].mxu0
      %v2747 = vadd.f32 %v2428, %v2746
      %v2748 = vpop.f32.mrb[0].mxu0
      %2749 = vmatprep.mubr.f32.mxu0 0.0
      %v2750 = vand.u32 %v1501, 4294901760
      %v2751 = vsub.f32 %v1501, %v2750
      %v2752 = vand.u32 %v2751, 4294901760
      %2753 = vmatmul.mubr.f32.gmra.mrb[0].mxu0 %v2752
      %v2754 = vpop.f32.mrb[0].mxu0
      %v2755 = vadd.f32 %v2435, %v2754
      %v2756 = vpop.f32.mrb[0].mxu0
      %2757 = vmatprep.mubr.f32.mxu0 0.0
      %v2758 = vand.u32 %v1504, 4294901760
      %v2759 = vsub.f32 %v1504, %v2758
      %v2760 = vand.u32 %v2759, 4294901760
      %2761 = vmatmul.mubr.f32.gmra.mrb[0].mxu0 %v2760
      %v2762 = vpop.f32.mrb[0].mxu0
      %v2763 = vadd.f32 %v2442, %v2762
      %v2764 = vpop.f32.mrb[0].mxu0
      %2765 = vmatprep.mubr.f32.mxu0 0.0
      %v2766 = vand.u32 %v1507, 4294901760
      %v2767 = vsub.f32 %v1507, %v2766
      %v2768 = vand.u32 %v2767, 4294901760
      %2769 = vmatmul.mubr.f32.gmra.mrb[0].mxu0 %v2768
      %v2770 = vpop.f32.mrb[0].mxu0
      %v2771 = vadd.f32 %v2449, %v2770
      %v2772 = vpop.f32.mrb[0].mxu0
      %2773 = vmatprep.mubr.f32.mxu0 0.0
      %v2774 = vand.u32 %v1510, 4294901760
      %v2775 = vsub.f32 %v1510, %v2774
      %v2776 = vand.u32 %v2775, 4294901760
      %2777 = vmatmul.mubr.f32.gmra.mrb[0].mxu0 %v2776
      %v2778 = vpop.f32.mrb[0].mxu0
      %v2779 = vadd.f32 %v2456, %v2778
      %v2780 = vpop.f32.mrb[0].mxu0
      %2781 = vdwg.mxu0
      %2782 = vmatprep.subr.mxu0 0.0
      %v2783 = vand.u32 %v1349, 4294901760
      %v2784 = vsub.f32 %v1349, %v2783
      %v2785 = vand.u32 %v2784, 4294901760
      %2786 = vmatpush1.msra.mxu0 %v2785
      %2787 = vmatprep.subr.mxu0 0.0
      %v2788 = vand.u32 %v1350, 4294901760
      %v2789 = vsub.f32 %v1350, %v2788
      %v2790 = vand.u32 %v2789, 4294901760
      %2791 = vmatpush1.msra.mxu0 %v2790
      %2792 = vmatprep.subr.mxu0 0.0
      %2793 = vmatpush1.msra.mxu0 0.0
      %2794 = vmatprep.subr.mxu0 0.0
      %2795 = vmatpush1.msra.mxu0 0.0
      %2796 = vmatprep.subr.mxu0 0.0
      %2797 = vmatpush1.msra.mxu0 0.0
      %2798 = vmatprep.subr.mxu0 0.0
      %2799 = vmatpush1.msra.mxu0 0.0
      %2800 = vmatprep.subr.mxu0 0.0
      %2801 = vmatpush1.msra.mxu0 0.0
      %2802 = vmatprep.subr.mxu0 0.0
      %2803 = vmatpush1.msra.mxu0 0.0
      %2804 = vmatprep.subr.mxu0 0.0
      %2805 = vmatpush1.msra.mxu0 0.0
      %2806 = vmatprep.subr.mxu0 0.0
      %2807 = vmatpush1.msra.mxu0 0.0
      %2808 = vmatprep.subr.mxu0 0.0
      %2809 = vmatpush1.msra.mxu0 0.0
      %2810 = vmatprep.subr.mxu0 0.0
      %2811 = vmatpush1.msra.mxu0 0.0
      %2812 = vmatprep.subr.mxu0 0.0
      %2813 = vmatpush1.msra.mxu0 0.0
      %2814 = vmatprep.subr.mxu0 0.0
      %2815 = vmatpush1.msra.mxu0 0.0
      %2816 = vmatprep.subr.mxu0 0.0
      %2817 = vmatpush1.msra.mxu0 0.0
      %2818 = vmatprep.subr.mxu0 0.0
      %2819 = vmatpush1.msra.mxu0 0.0
      %2820 = vmatprep.subr.mxu0 0.0
      %2821 = vmatpush1.msra.mxu0 0.0
      %2822 = vmatprep.subr.mxu0 0.0
      %2823 = vmatpush1.msra.mxu0 0.0
      %2824 = vmatprep.subr.mxu0 0.0
      %2825 = vmatpush1.msra.mxu0 0.0
      %2826 = vmatprep.subr.mxu0 0.0
      %2827 = vmatpush1.msra.mxu0 0.0
      %2828 = vmatprep.subr.mxu0 0.0
      %2829 = vmatpush1.msra.mxu0 0.0
      %2830 = vmatprep.subr.mxu0 0.0
      %2831 = vmatpush1.msra.mxu0 0.0
      %2832 = vmatprep.subr.mxu0 0.0
      %2833 = vmatpush1.msra.mxu0 0.0
      %2834 = vmatprep.subr.mxu0 0.0
      %2835 = vmatpush1.msra.mxu0 0.0
      %2836 = vmatprep.subr.mxu0 0.0
      %2837 = vmatpush1.msra.mxu0 0.0
      %2838 = vmatprep.subr.mxu0 0.0
      %2839 = vmatpush1.msra.mxu0 0.0
      %2840 = vmatprep.subr.mxu0 0.0
      %2841 = vmatpush1.msra.mxu0 0.0
      %2842 = vmatprep.subr.mxu0 0.0
      %2843 = vmatpush1.msra.mxu0 0.0
      %2844 = vmatprep.subr.mxu0 0.0
      %2845 = vmatpush1.msra.mxu0 0.0
      %2846 = vmatprep.subr.mxu0 0.0
      %2847 = vmatpush1.msra.mxu0 0.0
      %2848 = vmatprep.subr.mxu0 0.0
      %2849 = vmatpush1.msra.mxu0 0.0
      %2850 = vmatprep.subr.mxu0 0.0
      %2851 = vmatpush1.msra.mxu0 0.0
      %2852 = vmatprep.mubr.f32.mxu0 0.0
      %v2853 = vand.u32 %v1417, 4294901760
      %2854 = vmatmul.mubr.f32.gmra.mrb[0].mxu0 %v2853
      %v2855 = vpop.f32.mrb[0].mxu0
      %v2856 = vadd.f32 %v2531, %v2855
      %v2857 = vpop.f32.mrb[0].mxu0
      %2858 = vmatprep.mubr.f32.mxu0 0.0
      %v2859 = vand.u32 %v1420, 4294901760
      %2860 = vmatmul.mubr.f32.gmra.mrb[0].mxu0 %v2859
      %v2861 = vpop.f32.mrb[0].mxu0
      %v2862 = vadd.f32 %v2539, %v2861
      %v2863 = vpop.f32.mrb[0].mxu0
      %2864 = vmatprep.mubr.f32.mxu0 0.0
      %v2865 = vand.u32 %v1423, 4294901760
      %2866 = vmatmul.mubr.f32.gmra.mrb[0].mxu0 %v2865
      %v2867 = vpop.f32.mrb[0].mxu0
      %v2868 = vadd.f32 %v2547, %v2867
      %v2869 = vpop.f32.mrb[0].mxu0
      %2870 = vmatprep.mubr.f32.mxu0 0.0
      %v2871 = vand.u32 %v1426, 4294901760
      %2872 = vmatmul.mubr.f32.gmra.mrb[0].mxu0 %v2871
      %v2873 = vpop.f32.mrb[0].mxu0
      %v2874 = vadd.f32 %v2555, %v2873
      %v2875 = vpop.f32.mrb[0].mxu0
      %2876 = vmatprep.mubr.f32.mxu0 0.0
      %v2877 = vand.u32 %v1429, 4294901760
      %2878 = vmatmul.mubr.f32.gmra.mrb[0].mxu0 %v2877
      %v2879 = vpop.f32.mrb[0].mxu0
      %v2880 = vadd.f32 %v2563, %v2879
      %v2881 = vpop.f32.mrb[0].mxu0
      %2882 = vmatprep.mubr.f32.mxu0 0.0
      %v2883 = vand.u32 %v1432, 4294901760
      %2884 = vmatmul.mubr.f32.gmra.mrb[0].mxu0 %v2883
      %v2885 = vpop.f32.mrb[0].mxu0
      %v2886 = vadd.f32 %v2571, %v2885
      %v2887 = vpop.f32.mrb[0].mxu0
      %2888 = vmatprep.mubr.f32.mxu0 0.0
      %v2889 = vand.u32 %v1435, 4294901760
      %2890 = vmatmul.mubr.f32.gmra.mrb[0].mxu0 %v2889
      %v2891 = vpop.f32.mrb[0].mxu0
      %v2892 = vadd.f32 %v2579, %v2891
      %v2893 = vpop.f32.mrb[0].mxu0
      %2894 = vmatprep.mubr.f32.mxu0 0.0
      %v2895 = vand.u32 %v1438, 4294901760
      %2896 = vmatmul.mubr.f32.gmra.mrb[0].mxu0 %v2895
      %v2897 = vpop.f32.mrb[0].mxu0
      %v2898 = vadd.f32 %v2587, %v2897
      %v2899 = vpop.f32.mrb[0].mxu0
      %2900 = vmatprep.mubr.f32.mxu0 0.0
      %v2901 = vand.u32 %v1441, 4294901760
      %2902 = vmatmul.mubr.f32.gmra.mrb[0].mxu0 %v2901
      %v2903 = vpop.f32.mrb[0].mxu0
      %v2904 = vadd.f32 %v2595, %v2903
      %v2905 = vpop.f32.mrb[0].mxu0
      %2906 = vmatprep.mubr.f32.mxu0 0.0
      %v2907 = vand.u32 %v1444, 4294901760
      %2908 = vmatmul.mubr.f32.gmra.mrb[0].mxu0 %v2907
      %v2909 = vpop.f32.mrb[0].mxu0
      %v2910 = vadd.f32 %v2603, %v2909
      %v2911 = vpop.f32.mrb[0].mxu0
      %2912 = vmatprep.mubr.f32.mxu0 0.0
      %v2913 = vand.u32 %v1447, 4294901760
      %2914 = vmatmul.mubr.f32.gmra.mrb[0].mxu0 %v2913
      %v2915 = vpop.f32.mrb[0].mxu0
      %v2916 = vadd.f32 %v2611, %v2915
      %v2917 = vpop.f32.mrb[0].mxu0
      %2918 = vmatprep.mubr.f32.mxu0 0.0
      %v2919 = vand.u32 %v1450, 4294901760
      %2920 = vmatmul.mubr.f32.gmra.mrb[0].mxu0 %v2919
      %v2921 = vpop.f32.mrb[0].mxu0
      %v2922 = vadd.f32 %v2619, %v2921
      %v2923 = vpop.f32.mrb[0].mxu0
      %2924 = vmatprep.mubr.f32.mxu0 0.0
      %v2925 = vand.u32 %v1453, 4294901760
      %2926 = vmatmul.mubr.f32.gmra.mrb[0].mxu0 %v2925
      %v2927 = vpop.f32.mrb[0].mxu0
      %v2928 = vadd.f32 %v2627, %v2927
      %v2929 = vpop.f32.mrb[0].mxu0
      %2930 = vmatprep.mubr.f32.mxu0 0.0
      %v2931 = vand.u32 %v1456, 4294901760
      %2932 = vmatmul.mubr.f32.gmra.mrb[0].mxu0 %v2931
      %v2933 = vpop.f32.mrb[0].mxu0
      %v2934 = vadd.f32 %v2635, %v2933
      %v2935 = vpop.f32.mrb[0].mxu0
      %2936 = vmatprep.mubr.f32.mxu0 0.0
      %v2937 = vand.u32 %v1459, 4294901760
      %2938 = vmatmul.mubr.f32.gmra.mrb[0].mxu0 %v2937
      %v2939 = vpop.f32.mrb[0].mxu0
      %v2940 = vadd.f32 %v2643, %v2939
      %v2941 = vpop.f32.mrb[0].mxu0
      %2942 = vmatprep.mubr.f32.mxu0 0.0
      %v2943 = vand.u32 %v1462, 4294901760
      %2944 = vmatmul.mubr.f32.gmra.mrb[0].mxu0 %v2943
      %v2945 = vpop.f32.mrb[0].mxu0
      %v2946 = vadd.f32 %v2651, %v2945
      %v2947 = vpop.f32.mrb[0].mxu0
      %2948 = vmatprep.mubr.f32.mxu0 0.0
      %v2949 = vand.u32 %v1465, 4294901760
      %2950 = vmatmul.mubr.f32.gmra.mrb[0].mxu0 %v2949
      %v2951 = vpop.f32.mrb[0].mxu0
      %v2952 = vadd.f32 %v2659, %v2951
      %v2953 = vpop.f32.mrb[0].mxu0
      %2954 = vmatprep.mubr.f32.mxu0 0.0
      %v2955 = vand.u32 %v1468, 4294901760
      %2956 = vmatmul.mubr.f32.gmra.mrb[0].mxu0 %v2955
      %v2957 = vpop.f32.mrb[0].mxu0
      %v2958 = vadd.f32 %v2667, %v2957
      %v2959 = vpop.f32.mrb[0].mxu0
      %2960 = vmatprep.mubr.f32.mxu0 0.0
      %v2961 = vand.u32 %v1471, 4294901760
      %2962 = vmatmul.mubr.f32.gmra.mrb[0].mxu0 %v2961
      %v2963 = vpop.f32.mrb[0].mxu0
      %v2964 = vadd.f32 %v2675, %v2963
      %v2965 = vpop.f32.mrb[0].mxu0
      %2966 = vmatprep.mubr.f32.mxu0 0.0
      %v2967 = vand.u32 %v1474, 4294901760
      %2968 = vmatmul.mubr.f32.gmra.mrb[0].mxu0 %v2967
      %v2969 = vpop.f32.mrb[0].mxu0
      %v2970 = vadd.f32 %v2683, %v2969
      %v2971 = vpop.f32.mrb[0].mxu0
      %2972 = vmatprep.mubr.f32.mxu0 0.0
      %v2973 = vand.u32 %v1477, 4294901760
      %2974 = vmatmul.mubr.f32.gmra.mrb[0].mxu0 %v2973
      %v2975 = vpop.f32.mrb[0].mxu0
      %v2976 = vadd.f32 %v2691, %v2975
      %v2977 = vpop.f32.mrb[0].mxu0
      %2978 = vmatprep.mubr.f32.mxu0 0.0
      %v2979 = vand.u32 %v1480, 4294901760
      %2980 = vmatmul.mubr.f32.gmra.mrb[0].mxu0 %v2979
      %v2981 = vpop.f32.mrb[0].mxu0
      %v2982 = vadd.f32 %v2699, %v2981
      %v2983 = vpop.f32.mrb[0].mxu0
      %2984 = vmatprep.mubr.f32.mxu0 0.0
      %v2985 = vand.u32 %v1483, 4294901760
      %2986 = vmatmul.mubr.f32.gmra.mrb[0].mxu0 %v2985
      %v2987 = vpop.f32.mrb[0].mxu0
      %v2988 = vadd.f32 %v2707, %v2987
      %v2989 = vpop.f32.mrb[0].mxu0
      %2990 = vmatprep.mubr.f32.mxu0 0.0
      %v2991 = vand.u32 %v1486, 4294901760
      %2992 = vmatmul.mubr.f32.gmra.mrb[0].mxu0 %v2991
      %v2993 = vpop.f32.mrb[0].mxu0
      %v2994 = vadd.f32 %v2715, %v2993
      %v2995 = vpop.f32.mrb[0].mxu0
      %2996 = vmatprep.mubr.f32.mxu0 0.0
      %v2997 = vand.u32 %v1489, 4294901760
      %2998 = vmatmul.mubr.f32.gmra.mrb[0].mxu0 %v2997
      %v2999 = vpop.f32.mrb[0].mxu0
      %v3000 = vadd.f32 %v2723, %v2999
      %v3001 = vpop.f32.mrb[0].mxu0
      %3002 = vmatprep.mubr.f32.mxu0 0.0
      %v3003 = vand.u32 %v1492, 4294901760
      %3004 = vmatmul.mubr.f32.gmra.mrb[0].mxu0 %v3003
      %v3005 = vpop.f32.mrb[0].mxu0
      %v3006 = vadd.f32 %v2731, %v3005
      %v3007 = vpop.f32.mrb[0].mxu0
      %3008 = vmatprep.mubr.f32.mxu0 0.0
      %v3009 = vand.u32 %v1495, 4294901760
      %3010 = vmatmul.mubr.f32.gmra.mrb[0].mxu0 %v3009
      %v3011 = vpop.f32.mrb[0].mxu0
      %v3012 = vadd.f32 %v2739, %v3011
      %v3013 = vpop.f32.mrb[0].mxu0
      %3014 = vmatprep.mubr.f32.mxu0 0.0
      %v3015 = vand.u32 %v1498, 4294901760
      %3016 = vmatmul.mubr.f32.gmra.mrb[0].mxu0 %v3015
      %v3017 = vpop.f32.mrb[0].mxu0
      %v3018 = vadd.f32 %v2747, %v3017
      %v3019 = vpop.f32.mrb[0].mxu0
      %3020 = vmatprep.mubr.f32.mxu0 0.0
      %v3021 = vand.u32 %v1501, 4294901760
      %3022 = vmatmul.mubr.f32.gmra.mrb[0].mxu0 %v3021
      %v3023 = vpop.f32.mrb[0].mxu0
      %v3024 = vadd.f32 %v2755, %v3023
      %v3025 = vpop.f32.mrb[0].mxu0
      %3026 = vmatprep.mubr.f32.mxu0 0.0
      %v3027 = vand.u32 %v1504, 4294901760
      %3028 = vmatmul.mubr.f32.gmra.mrb[0].mxu0 %v3027
      %v3029 = vpop.f32.mrb[0].mxu0
      %v3030 = vadd.f32 %v2763, %v3029
      %v3031 = vpop.f32.mrb[0].mxu0
      %3032 = vmatprep.mubr.f32.mxu0 0.0
      %v3033 = vand.u32 %v1507, 4294901760
      %3034 = vmatmul.mubr.f32.gmra.mrb[0].mxu0 %v3033
      %v3035 = vpop.f32.mrb[0].mxu0
      %v3036 = vadd.f32 %v2771, %v3035
      %v3037 = vpop.f32.mrb[0].mxu0
      %3038 = vmatprep.mubr.f32.mxu0 0.0
      %v3039 = vand.u32 %v1510, 4294901760
      %3040 = vmatmul.mubr.f32.gmra.mrb[0].mxu0 %v3039
      %v3041 = vpop.f32.mrb[0].mxu0
      %v3042 = vadd.f32 %v2779, %v3041
      %v3043 = vpop.f32.mrb[0].mxu0
      %3044 = vdwg.mxu0
      %3045 = vmatprep.subr.mxu0 0.0
      %v3046 = vand.u32 %v1349, 4294901760
      %3047 = vmatpush1.msra.mxu0 %v3046
      %3048 = vmatprep.subr.mxu0 0.0
      %v3049 = vand.u32 %v1350, 4294901760
      %3050 = vmatpush1.msra.mxu0 %v3049
      %3051 = vmatprep.subr.mxu0 0.0
      %3052 = vmatpush1.msra.mxu0 0.0
      %3053 = vmatprep.subr.mxu0 0.0
      %3054 = vmatpush1.msra.mxu0 0.0
      %3055 = vmatprep.subr.mxu0 0.0
      %3056 = vmatpush1.msra.mxu0 0.0
      %3057 = vmatprep.subr.mxu0 0.0
      %3058 = vmatpush1.msra.mxu0 0.0
      %3059 = vmatprep.subr.mxu0 0.0
      %3060 = vmatpush1.msra.mxu0 0.0
      %3061 = vmatprep.subr.mxu0 0.0
      %3062 = vmatpush1.msra.mxu0 0.0
      %3063 = vmatprep.subr.mxu0 0.0
      %3064 = vmatpush1.msra.mxu0 0.0
      %3065 = vmatprep.subr.mxu0 0.0
      %3066 = vmatpush1.msra.mxu0 0.0
      %3067 = vmatprep.subr.mxu0 0.0
      %3068 = vmatpush1.msra.mxu0 0.0
      %3069 = vmatprep.subr.mxu0 0.0
      %3070 = vmatpush1.msra.mxu0 0.0
      %3071 = vmatprep.subr.mxu0 0.0
      %3072 = vmatpush1.msra.mxu0 0.0
      %3073 = vmatprep.subr.mxu0 0.0
      %3074 = vmatpush1.msra.mxu0 0.0
      %3075 = vmatprep.subr.mxu0 0.0
      %3076 = vmatpush1.msra.mxu0 0.0
      %3077 = vmatprep.subr.mxu0 0.0
      %3078 = vmatpush1.msra.mxu0 0.0
      %3079 = vmatprep.subr.mxu0 0.0
      %3080 = vmatpush1.msra.mxu0 0.0
      %3081 = vmatprep.subr.mxu0 0.0
      %3082 = vmatpush1.msra.mxu0 0.0
      %3083 = vmatprep.subr.mxu0 0.0
      %3084 = vmatpush1.msra.mxu0 0.0
      %3085 = vmatprep.subr.mxu0 0.0
      %3086 = vmatpush1.msra.mxu0 0.0
      %3087 = vmatprep.subr.mxu0 0.0
      %3088 = vmatpush1.msra.mxu0 0.0
      %3089 = vmatprep.subr.mxu0 0.0
      %3090 = vmatpush1.msra.mxu0 0.0
      %3091 = vmatprep.subr.mxu0 0.0
      %3092 = vmatpush1.msra.mxu0 0.0
      %3093 = vmatprep.subr.mxu0 0.0
      %3094 = vmatpush1.msra.mxu0 0.0
      %3095 = vmatprep.subr.mxu0 0.0
      %3096 = vmatpush1.msra.mxu0 0.0
      %3097 = vmatprep.subr.mxu0 0.0
      %3098 = vmatpush1.msra.mxu0 0.0
      %3099 = vmatprep.subr.mxu0 0.0
      %3100 = vmatpush1.msra.mxu0 0.0
      %3101 = vmatprep.subr.mxu0 0.0
      %3102 = vmatpush1.msra.mxu0 0.0
      %3103 = vmatprep.subr.mxu0 0.0
      %3104 = vmatpush1.msra.mxu0 0.0
      %3105 = vmatprep.subr.mxu0 0.0
      %3106 = vmatpush1.msra.mxu0 0.0
      %3107 = vmatprep.subr.mxu0 0.0
      %3108 = vmatpush1.msra.mxu0 0.0
      %3109 = vmatprep.subr.mxu0 0.0
      %3110 = vmatpush1.msra.mxu0 0.0
      %3111 = vmatprep.mubr.f32.mxu0 0.0
      %v3112 = vand.u32 %v1417, 4294901760
      %3113 = vmatmul.mubr.f32.gmra.mrb[0].mxu0 %v3112
      %v3114 = vpop.f32.mrb[0].mxu0
      %v3115 = vadd.f32 %v2856, %v3114
      %v3116 = vpop.f32.mrb[0].mxu0
      %3117 = vmatprep.mubr.f32.mxu0 0.0
      %v3118 = vand.u32 %v1420, 4294901760
      %3119 = vmatmul.mubr.f32.gmra.mrb[0].mxu0 %v3118
      %v3120 = vpop.f32.mrb[0].mxu0
      %v3121 = vadd.f32 %v2862, %v3120
      %v3122 = vpop.f32.mrb[0].mxu0
      %3123 = vmatprep.mubr.f32.mxu0 0.0
      %v3124 = vand.u32 %v1423, 4294901760
      %3125 = vmatmul.mubr.f32.gmra.mrb[0].mxu0 %v3124
      %v3126 = vpop.f32.mrb[0].mxu0
      %v3127 = vadd.f32 %v2868, %v3126
      %v3128 = vpop.f32.mrb[0].mxu0
      %3129 = vmatprep.mubr.f32.mxu0 0.0
      %v3130 = vand.u32 %v1426, 4294901760
      %3131 = vmatmul.mubr.f32.gmra.mrb[0].mxu0 %v3130
      %v3132 = vpop.f32.mrb[0].mxu0
      %v3133 = vadd.f32 %v2874, %v3132
      %v3134 = vpop.f32.mrb[0].mxu0
      %3135 = vmatprep.mubr.f32.mxu0 0.0
      %v3136 = vand.u32 %v1429, 4294901760
      %3137 = vmatmul.mubr.f32.gmra.mrb[0].mxu0 %v3136
      %v3138 = vpop.f32.mrb[0].mxu0
      %v3139 = vadd.f32 %v2880, %v3138
      %v3140 = vpop.f32.mrb[0].mxu0
      %3141 = vmatprep.mubr.f32.mxu0 0.0
      %v3142 = vand.u32 %v1432, 4294901760
      %3143 = vmatmul.mubr.f32.gmra.mrb[0].mxu0 %v3142
      %v3144 = vpop.f32.mrb[0].mxu0
      %v3145 = vadd.f32 %v2886, %v3144
      %v3146 = vpop.f32.mrb[0].mxu0
      %3147 = vmatprep.mubr.f32.mxu0 0.0
      %v3148 = vand.u32 %v1435, 4294901760
      %3149 = vmatmul.mubr.f32.gmra.mrb[0].mxu0 %v3148
      %v3150 = vpop.f32.mrb[0].mxu0
      %v3151 = vadd.f32 %v2892, %v3150
      %v3152 = vpop.f32.mrb[0].mxu0
      %3153 = vmatprep.mubr.f32.mxu0 0.0
      %v3154 = vand.u32 %v1438, 4294901760
      %3155 = vmatmul.mubr.f32.gmra.mrb[0].mxu0 %v3154
      %v3156 = vpop.f32.mrb[0].mxu0
      %v3157 = vadd.f32 %v2898, %v3156
      %v3158 = vpop.f32.mrb[0].mxu0
      %3159 = vmatprep.mubr.f32.mxu0 0.0
      %v3160 = vand.u32 %v1441, 4294901760
      %3161 = vmatmul.mubr.f32.gmra.mrb[0].mxu0 %v3160
      %v3162 = vpop.f32.mrb[0].mxu0
      %v3163 = vadd.f32 %v2904, %v3162
      %v3164 = vpop.f32.mrb[0].mxu0
      %3165 = vmatprep.mubr.f32.mxu0 0.0
      %v3166 = vand.u32 %v1444, 4294901760
      %3167 = vmatmul.mubr.f32.gmra.mrb[0].mxu0 %v3166
      %v3168 = vpop.f32.mrb[0].mxu0
      %v3169 = vadd.f32 %v2910, %v3168
      %v3170 = vpop.f32.mrb[0].mxu0
      %3171 = vmatprep.mubr.f32.mxu0 0.0
      %v3172 = vand.u32 %v1447, 4294901760
      %3173 = vmatmul.mubr.f32.gmra.mrb[0].mxu0 %v3172
      %v3174 = vpop.f32.mrb[0].mxu0
      %v3175 = vadd.f32 %v2916, %v3174
      %v3176 = vpop.f32.mrb[0].mxu0
      %3177 = vmatprep.mubr.f32.mxu0 0.0
      %v3178 = vand.u32 %v1450, 4294901760
      %3179 = vmatmul.mubr.f32.gmra.mrb[0].mxu0 %v3178
      %v3180 = vpop.f32.mrb[0].mxu0
      %v3181 = vadd.f32 %v2922, %v3180
      %v3182 = vpop.f32.mrb[0].mxu0
      %3183 = vmatprep.mubr.f32.mxu0 0.0
      %v3184 = vand.u32 %v1453, 4294901760
      %3185 = vmatmul.mubr.f32.gmra.mrb[0].mxu0 %v3184
      %v3186 = vpop.f32.mrb[0].mxu0
      %v3187 = vadd.f32 %v2928, %v3186
      %v3188 = vpop.f32.mrb[0].mxu0
      %3189 = vmatprep.mubr.f32.mxu0 0.0
      %v3190 = vand.u32 %v1456, 4294901760
      %3191 = vmatmul.mubr.f32.gmra.mrb[0].mxu0 %v3190
      %v3192 = vpop.f32.mrb[0].mxu0
      %v3193 = vadd.f32 %v2934, %v3192
      %v3194 = vpop.f32.mrb[0].mxu0
      %3195 = vmatprep.mubr.f32.mxu0 0.0
      %v3196 = vand.u32 %v1459, 4294901760
      %3197 = vmatmul.mubr.f32.gmra.mrb[0].mxu0 %v3196
      %v3198 = vpop.f32.mrb[0].mxu0
      %v3199 = vadd.f32 %v2940, %v3198
      %v3200 = vpop.f32.mrb[0].mxu0
      %3201 = vmatprep.mubr.f32.mxu0 0.0
      %v3202 = vand.u32 %v1462, 4294901760
      %3203 = vmatmul.mubr.f32.gmra.mrb[0].mxu0 %v3202
      %v3204 = vpop.f32.mrb[0].mxu0
      %v3205 = vadd.f32 %v2946, %v3204
      %v3206 = vpop.f32.mrb[0].mxu0
      %3207 = vmatprep.mubr.f32.mxu0 0.0
      %v3208 = vand.u32 %v1465, 4294901760
      %3209 = vmatmul.mubr.f32.gmra.mrb[0].mxu0 %v3208
      %v3210 = vpop.f32.mrb[0].mxu0
      %v3211 = vadd.f32 %v2952, %v3210
      %v3212 = vpop.f32.mrb[0].mxu0
      %3213 = vmatprep.mubr.f32.mxu0 0.0
      %v3214 = vand.u32 %v1468, 4294901760
      %3215 = vmatmul.mubr.f32.gmra.mrb[0].mxu0 %v3214
      %v3216 = vpop.f32.mrb[0].mxu0
      %v3217 = vadd.f32 %v2958, %v3216
      %v3218 = vpop.f32.mrb[0].mxu0
      %3219 = vmatprep.mubr.f32.mxu0 0.0
      %v3220 = vand.u32 %v1471, 4294901760
      %3221 = vmatmul.mubr.f32.gmra.mrb[0].mxu0 %v3220
      %v3222 = vpop.f32.mrb[0].mxu0
      %v3223 = vadd.f32 %v2964, %v3222
      %v3224 = vpop.f32.mrb[0].mxu0
      %3225 = vmatprep.mubr.f32.mxu0 0.0
      %v3226 = vand.u32 %v1474, 4294901760
      %3227 = vmatmul.mubr.f32.gmra.mrb[0].mxu0 %v3226
      %v3228 = vpop.f32.mrb[0].mxu0
      %v3229 = vadd.f32 %v2970, %v3228
      %v3230 = vpop.f32.mrb[0].mxu0
      %3231 = vmatprep.mubr.f32.mxu0 0.0
      %v3232 = vand.u32 %v1477, 4294901760
      %3233 = vmatmul.mubr.f32.gmra.mrb[0].mxu0 %v3232
      %v3234 = vpop.f32.mrb[0].mxu0
      %v3235 = vadd.f32 %v2976, %v3234
      %v3236 = vpop.f32.mrb[0].mxu0
      %3237 = vmatprep.mubr.f32.mxu0 0.0
      %v3238 = vand.u32 %v1480, 4294901760
      %3239 = vmatmul.mubr.f32.gmra.mrb[0].mxu0 %v3238
      %v3240 = vpop.f32.mrb[0].mxu0
      %v3241 = vadd.f32 %v2982, %v3240
      %v3242 = vpop.f32.mrb[0].mxu0
      %3243 = vmatprep.mubr.f32.mxu0 0.0
      %v3244 = vand.u32 %v1483, 4294901760
      %3245 = vmatmul.mubr.f32.gmra.mrb[0].mxu0 %v3244
      %v3246 = vpop.f32.mrb[0].mxu0
      %v3247 = vadd.f32 %v2988, %v3246
      %v3248 = vpop.f32.mrb[0].mxu0
      %3249 = vmatprep.mubr.f32.mxu0 0.0
      %v3250 = vand.u32 %v1486, 4294901760
      %3251 = vmatmul.mubr.f32.gmra.mrb[0].mxu0 %v3250
      %v3252 = vpop.f32.mrb[0].mxu0
      %v3253 = vadd.f32 %v2994, %v3252
      %v3254 = vpop.f32.mrb[0].mxu0
      %3255 = vmatprep.mubr.f32.mxu0 0.0
      %v3256 = vand.u32 %v1489, 4294901760
      %3257 = vmatmul.mubr.f32.gmra.mrb[0].mxu0 %v3256
      %v3258 = vpop.f32.mrb[0].mxu0
      %v3259 = vadd.f32 %v3000, %v3258
      %v3260 = vpop.f32.mrb[0].mxu0
      %3261 = vmatprep.mubr.f32.mxu0 0.0
      %v3262 = vand.u32 %v1492, 4294901760
      %3263 = vmatmul.mubr.f32.gmra.mrb[0].mxu0 %v3262
      %v3264 = vpop.f32.mrb[0].mxu0
      %v3265 = vadd.f32 %v3006, %v3264
      %v3266 = vpop.f32.mrb[0].mxu0
      %3267 = vmatprep.mubr.f32.mxu0 0.0
      %v3268 = vand.u32 %v1495, 4294901760
      %3269 = vmatmul.mubr.f32.gmra.mrb[0].mxu0 %v3268
      %v3270 = vpop.f32.mrb[0].mxu0
      %v3271 = vadd.f32 %v3012, %v3270
      %v3272 = vpop.f32.mrb[0].mxu0
      %3273 = vmatprep.mubr.f32.mxu0 0.0
      %v3274 = vand.u32 %v1498, 4294901760
      %3275 = vmatmul.mubr.f32.gmra.mrb[0].mxu0 %v3274
      %v3276 = vpop.f32.mrb[0].mxu0
      %v3277 = vadd.f32 %v3018, %v3276
      %v3278 = vpop.f32.mrb[0].mxu0
      %3279 = vmatprep.mubr.f32.mxu0 0.0
      %v3280 = vand.u32 %v1501, 4294901760
      %3281 = vmatmul.mubr.f32.gmra.mrb[0].mxu0 %v3280
      %v3282 = vpop.f32.mrb[0].mxu0
      %v3283 = vadd.f32 %v3024, %v3282
      %v3284 = vpop.f32.mrb[0].mxu0
      %3285 = vmatprep.mubr.f32.mxu0 0.0
      %v3286 = vand.u32 %v1504, 4294901760
      %3287 = vmatmul.mubr.f32.gmra.mrb[0].mxu0 %v3286
      %v3288 = vpop.f32.mrb[0].mxu0
      %v3289 = vadd.f32 %v3030, %v3288
      %v3290 = vpop.f32.mrb[0].mxu0
      %3291 = vmatprep.mubr.f32.mxu0 0.0
      %v3292 = vand.u32 %v1507, 4294901760
      %3293 = vmatmul.mubr.f32.gmra.mrb[0].mxu0 %v3292
      %v3294 = vpop.f32.mrb[0].mxu0
      %v3295 = vadd.f32 %v3036, %v3294
      %v3296 = vpop.f32.mrb[0].mxu0
      %3297 = vmatprep.mubr.f32.mxu0 0.0
      %v3298 = vand.u32 %v1510, 4294901760
      %3299 = vmatmul.mubr.f32.gmra.mrb[0].mxu0 %v3298
      %v3300 = vpop.f32.mrb[0].mxu0
      %v3301 = vadd.f32 %v3042, %v3300
      %v3302 = vpop.f32.mrb[0].mxu0
      %3303 = vdwg.mxu0
      %v3304 = vmul.f32 %v3115, 0.5
      %v3305 = vmul.f32 %v3121, 0.5
      %v3306 = vmul.f32 %v3127, 0.5
      %v3307 = vmul.f32 %v3133, 0.5
      %v3308 = vmul.f32 %v3139, 0.5
      %v3309 = vmul.f32 %v3145, 0.5
      %v3310 = vmul.f32 %v3151, 0.5
      %v3311 = vmul.f32 %v3157, 0.5
      %v3312 = vmul.f32 %v3163, 0.5
      %v3313 = vmul.f32 %v3169, 0.5
      %v3314 = vmul.f32 %v3175, 0.5
      %v3315 = vmul.f32 %v3181, 0.5
      %v3316 = vmul.f32 %v3187, 0.5
      %v3317 = vmul.f32 %v3193, 0.5
      %v3318 = vmul.f32 %v3199, 0.5
      %v3319 = vmul.f32 %v3205, 0.5
      %v3320 = vmul.f32 %v3211, 0.5
      %v3321 = vmul.f32 %v3217, 0.5
      %v3322 = vmul.f32 %v3223, 0.5
      %v3323 = vmul.f32 %v3229, 0.5
      %v3324 = vmul.f32 %v3235, 0.5
      %v3325 = vmul.f32 %v3241, 0.5
      %v3326 = vmul.f32 %v3247, 0.5
      %v3327 = vmul.f32 %v3253, 0.5
      %v3328 = vmul.f32 %v3259, 0.5
      %v3329 = vmul.f32 %v3265, 0.5
      %v3330 = vmul.f32 %v3271, 0.5
      %v3331 = vmul.f32 %v3277, 0.5
      %v3332 = vmul.f32 %v3283, 0.5
      %v3333 = vmul.f32 %v3289, 0.5
      %v3334 = vmul.f32 %v3295, 0.5
      %v3335 = vmul.f32 %v3301, 0.5
      %v3336 = vtanh.pop %v3304
      %v3337 = vtanh.pop %v3305
      %v3338 = vtanh.pop %v3306
      %v3339 = vtanh.pop %v3307
      %v3340 = vtanh.pop %v3308
      %v3341 = vtanh.pop %v3309
      %v3342 = vtanh.pop %v3310
      %v3343 = vtanh.pop %v3311
      %v3344 = vtanh.pop %v3312
      %v3345 = vtanh.pop %v3313
      %v3346 = vtanh.pop %v3314
      %v3347 = vtanh.pop %v3315
      %v3348 = vtanh.pop %v3316
      %v3349 = vtanh.pop %v3317
      %v3350 = vtanh.pop %v3318
      %v3351 = vtanh.pop %v3319
      %v3352 = vtanh.pop %v3320
      %v3353 = vtanh.pop %v3321
      %v3354 = vtanh.pop %v3322
      %v3355 = vtanh.pop %v3323
      %v3356 = vtanh.pop %v3324
      %v3357 = vtanh.pop %v3325
      %v3358 = vtanh.pop %v3326
      %v3359 = vtanh.pop %v3327
      %v3360 = vtanh.pop %v3328
      %v3361 = vtanh.pop %v3329
      %v3362 = vtanh.pop %v3330
      %v3363 = vtanh.pop %v3331
      %v3364 = vtanh.pop %v3332
      %v3365 = vtanh.pop %v3333
      %v3366 = vtanh.pop %v3334
      %v3367 = vtanh.pop %v3335
      %v3368 = vmul.f32 %v3336, 0.5
      %v3369 = vmul.f32 %v3337, 0.5
      %v3370 = vmul.f32 %v3338, 0.5
      %v3371 = vmul.f32 %v3339, 0.5
      %v3372 = vmul.f32 %v3340, 0.5
      %v3373 = vmul.f32 %v3341, 0.5
      %v3374 = vmul.f32 %v3342, 0.5
      %v3375 = vmul.f32 %v3343, 0.5
      %v3376 = vmul.f32 %v3344, 0.5
      %v3377 = vmul.f32 %v3345, 0.5
      %v3378 = vmul.f32 %v3346, 0.5
      %v3379 = vmul.f32 %v3347, 0.5
      %v3380 = vmul.f32 %v3348, 0.5
      %v3381 = vmul.f32 %v3349, 0.5
      %v3382 = vmul.f32 %v3350, 0.5
      %v3383 = vmul.f32 %v3351, 0.5
      %v3384 = vmul.f32 %v3352, 0.5
      %v3385 = vmul.f32 %v3353, 0.5
      %v3386 = vmul.f32 %v3354, 0.5
      %v3387 = vmul.f32 %v3355, 0.5
      %v3388 = vmul.f32 %v3356, 0.5
      %v3389 = vmul.f32 %v3357, 0.5
      %v3390 = vmul.f32 %v3358, 0.5
      %v3391 = vmul.f32 %v3359, 0.5
      %v3392 = vmul.f32 %v3360, 0.5
      %v3393 = vmul.f32 %v3361, 0.5
      %v3394 = vmul.f32 %v3362, 0.5
      %v3395 = vmul.f32 %v3363, 0.5
      %v3396 = vmul.f32 %v3364, 0.5
      %v3397 = vmul.f32 %v3365, 0.5
      %v3398 = vmul.f32 %v3366, 0.5
      %v3399 = vmul.f32 %v3367, 0.5
      %v3400 = vadd.f32 %v3368, 0.5
      %v3401 = vadd.f32 %v3369, 0.5
      %v3402 = vadd.f32 %v3370, 0.5
      %v3403 = vadd.f32 %v3371, 0.5
      %v3404 = vadd.f32 %v3372, 0.5
      %v3405 = vadd.f32 %v3373, 0.5
      %v3406 = vadd.f32 %v3374, 0.5
      %v3407 = vadd.f32 %v3375, 0.5
      %v3408 = vadd.f32 %v3376, 0.5
      %v3409 = vadd.f32 %v3377, 0.5
      %v3410 = vadd.f32 %v3378, 0.5
      %v3411 = vadd.f32 %v3379, 0.5
      %v3412 = vadd.f32 %v3380, 0.5
      %v3413 = vadd.f32 %v3381, 0.5
      %v3414 = vadd.f32 %v3382, 0.5
      %v3415 = vadd.f32 %v3383, 0.5
      %v3416 = vadd.f32 %v3384, 0.5
      %v3417 = vadd.f32 %v3385, 0.5
      %v3418 = vadd.f32 %v3386, 0.5
      %v3419 = vadd.f32 %v3387, 0.5
      %v3420 = vadd.f32 %v3388, 0.5
      %v3421 = vadd.f32 %v3389, 0.5
      %v3422 = vadd.f32 %v3390, 0.5
      %v3423 = vadd.f32 %v3391, 0.5
      %v3424 = vadd.f32 %v3392, 0.5
      %v3425 = vadd.f32 %v3393, 0.5
      %v3426 = vadd.f32 %v3394, 0.5
      %v3427 = vadd.f32 %v3395, 0.5
      %v3428 = vadd.f32 %v3396, 0.5
      %v3429 = vadd.f32 %v3397, 0.5
      %v3430 = vadd.f32 %v3398, 0.5
      %v3431 = vadd.f32 %v3399, 0.5
      %3433 = vset.pattern.permute.xlu0 0
      %3434 = vperm.xlu0 %3433, %v3400
      %v3435 = vpop.permute.xlu0 %3434
      %3438 = vset.pattern.permute.xlu0 0
      %3439 = vperm.xlu0 %3438, %v3401
      %v3440 = vpop.permute.xlu0 %3439
      %3443 = vset.pattern.permute.xlu0 0
      %3444 = vperm.xlu0 %3443, %v3402
      %v3445 = vpop.permute.xlu0 %3444
      %3448 = vset.pattern.permute.xlu0 0
      %3449 = vperm.xlu0 %3448, %v3403
      %v3450 = vpop.permute.xlu0 %3449
      %3453 = vset.pattern.permute.xlu0 0
      %3454 = vperm.xlu0 %3453, %v3404
      %v3455 = vpop.permute.xlu0 %3454
      %3458 = vset.pattern.permute.xlu0 0
      %3459 = vperm.xlu0 %3458, %v3405
      %v3460 = vpop.permute.xlu0 %3459
      %3463 = vset.pattern.permute.xlu0 0
      %3464 = vperm.xlu0 %3463, %v3406
      %v3465 = vpop.permute.xlu0 %3464
      %3468 = vset.pattern.permute.xlu0 0
      %3469 = vperm.xlu0 %3468, %v3407
      %v3470 = vpop.permute.xlu0 %3469
      %3473 = vset.pattern.permute.xlu0 0
      %3474 = vperm.xlu0 %3473, %v3408
      %v3475 = vpop.permute.xlu0 %3474
      %3478 = vset.pattern.permute.xlu0 0
      %3479 = vperm.xlu0 %3478, %v3409
      %v3480 = vpop.permute.xlu0 %3479
      %3483 = vset.pattern.permute.xlu0 0
      %3484 = vperm.xlu0 %3483, %v3410
      %v3485 = vpop.permute.xlu0 %3484
      %3488 = vset.pattern.permute.xlu0 0
      %3489 = vperm.xlu0 %3488, %v3411
      %v3490 = vpop.permute.xlu0 %3489
      %3493 = vset.pattern.permute.xlu0 0
      %3494 = vperm.xlu0 %3493, %v3412
      %v3495 = vpop.permute.xlu0 %3494
      %3498 = vset.pattern.permute.xlu0 0
      %3499 = vperm.xlu0 %3498, %v3413
      %v3500 = vpop.permute.xlu0 %3499
      %3503 = vset.pattern.permute.xlu0 0
      %3504 = vperm.xlu0 %3503, %v3414
      %v3505 = vpop.permute.xlu0 %3504
      %3508 = vset.pattern.permute.xlu0 0
      %3509 = vperm.xlu0 %3508, %v3415
      %v3510 = vpop.permute.xlu0 %3509
      %3513 = vset.pattern.permute.xlu0 0
      %3514 = vperm.xlu0 %3513, %v3416
      %v3515 = vpop.permute.xlu0 %3514
      %3518 = vset.pattern.permute.xlu0 0
      %3519 = vperm.xlu0 %3518, %v3417
      %v3520 = vpop.permute.xlu0 %3519
      %3523 = vset.pattern.permute.xlu0 0
      %3524 = vperm.xlu0 %3523, %v3418
      %v3525 = vpop.permute.xlu0 %3524
      %3528 = vset.pattern.permute.xlu0 0
      %3529 = vperm.xlu0 %3528, %v3419
      %v3530 = vpop.permute.xlu0 %3529
      %3533 = vset.pattern.permute.xlu0 0
      %3534 = vperm.xlu0 %3533, %v3420
      %v3535 = vpop.permute.xlu0 %3534
      %3538 = vset.pattern.permute.xlu0 0
      %3539 = vperm.xlu0 %3538, %v3421
      %v3540 = vpop.permute.xlu0 %3539
      %3543 = vset.pattern.permute.xlu0 0
      %3544 = vperm.xlu0 %3543, %v3422
      %v3545 = vpop.permute.xlu0 %3544
      %3548 = vset.pattern.permute.xlu0 0
      %3549 = vperm.xlu0 %3548, %v3423
      %v3550 = vpop.permute.xlu0 %3549
      %3553 = vset.pattern.permute.xlu0 0
      %3554 = vperm.xlu0 %3553, %v3424
      %v3555 = vpop.permute.xlu0 %3554
      %3558 = vset.pattern.permute.xlu0 0
      %3559 = vperm.xlu0 %3558, %v3425
      %v3560 = vpop.permute.xlu0 %3559
      %3563 = vset.pattern.permute.xlu0 0
      %3564 = vperm.xlu0 %3563, %v3426
      %v3565 = vpop.permute.xlu0 %3564
      %3568 = vset.pattern.permute.xlu0 0
      %3569 = vperm.xlu0 %3568, %v3427
      %v3570 = vpop.permute.xlu0 %3569
      %3573 = vset.pattern.permute.xlu0 0
      %3574 = vperm.xlu0 %3573, %v3428
      %v3575 = vpop.permute.xlu0 %3574
      %3578 = vset.pattern.permute.xlu0 0
      %3579 = vperm.xlu0 %3578, %v3429
      %v3580 = vpop.permute.xlu0 %3579
      %3583 = vset.pattern.permute.xlu0 0
      %3584 = vperm.xlu0 %3583, %v3430
      %v3585 = vpop.permute.xlu0 %3584
      %3588 = vset.pattern.permute.xlu0 0
      %3589 = vperm.xlu0 %3588, %v3431
      %v3590 = vpop.permute.xlu0 %3589
      %v3592 = vmul.f32 %v233, %v3435
      %v3593 = vmul.f32 %v234, %v3435
      %v3594 = vmul.f32 %v235, %v3440
      %v3595 = vmul.f32 %v236, %v3440
      %v3596 = vmul.f32 %v237, %v3445
      %v3597 = vmul.f32 %v238, %v3445
      %v3598 = vmul.f32 %v239, %v3450
      %v3599 = vmul.f32 %v240, %v3450
      %v3600 = vmul.f32 %v241, %v3455
      %v3601 = vmul.f32 %v242, %v3455
      %v3602 = vmul.f32 %v243, %v3460
      %v3603 = vmul.f32 %v244, %v3460
      %v3604 = vmul.f32 %v245, %v3465
      %v3605 = vmul.f32 %v246, %v3465
      %v3606 = vmul.f32 %v247, %v3470
      %v3607 = vmul.f32 %v248, %v3470
      %v3608 = vmul.f32 %v249, %v3475
      %v3609 = vmul.f32 %v250, %v3475
      %v3610 = vmul.f32 %v251, %v3480
      %v3611 = vmul.f32 %v252, %v3480
      %v3612 = vmul.f32 %v253, %v3485
      %v3613 = vmul.f32 %v254, %v3485
      %v3614 = vmul.f32 %v255, %v3490
      %v3615 = vmul.f32 %v256, %v3490
      %v3616 = vmul.f32 %v257, %v3495
      %v3617 = vmul.f32 %v258, %v3495
      %v3618 = vmul.f32 %v259, %v3500
      %v3619 = vmul.f32 %v260, %v3500
      %v3620 = vmul.f32 %v261, %v3505
      %v3621 = vmul.f32 %v262, %v3505
      %v3622 = vmul.f32 %v263, %v3510
      %v3623 = vmul.f32 %v264, %v3510
      %v3624 = vmul.f32 %v265, %v3515
      %v3625 = vmul.f32 %v266, %v3515
      %v3626 = vmul.f32 %v267, %v3520
      %v3627 = vmul.f32 %v268, %v3520
      %v3628 = vmul.f32 %v269, %v3525
      %v3629 = vmul.f32 %v270, %v3525
      %v3630 = vmul.f32 %v271, %v3530
      %v3631 = vmul.f32 %v272, %v3530
      %v3632 = vmul.f32 %v273, %v3535
      %v3633 = vmul.f32 %v274, %v3535
      %v3634 = vmul.f32 %v275, %v3540
      %v3635 = vmul.f32 %v276, %v3540
      %v3636 = vmul.f32 %v277, %v3545
      %v3637 = vmul.f32 %v278, %v3545
      %v3638 = vmul.f32 %v279, %v3550
      %v3639 = vmul.f32 %v280, %v3550
      %v3640 = vmul.f32 %v281, %v3555
      %v3641 = vmul.f32 %v282, %v3555
      %v3642 = vmul.f32 %v283, %v3560
      %v3643 = vmul.f32 %v284, %v3560
      %v3644 = vmul.f32 %v285, %v3565
      %v3645 = vmul.f32 %v286, %v3565
      %v3646 = vmul.f32 %v287, %v3570
      %v3647 = vmul.f32 %v288, %v3570
      %v3648 = vmul.f32 %v289, %v3575
      %v3649 = vmul.f32 %v290, %v3575
      %v3650 = vmul.f32 %v291, %v3580
      %v3651 = vmul.f32 %v292, %v3580
      %v3652 = vmul.f32 %v293, %v3585
      %v3653 = vmul.f32 %v294, %v3585
      %v3654 = vmul.f32 %v295, %v3590
      %v3655 = vmul.f32 %v296, %v3590
      %3656 = vst [vmem:[%s231] sm:$0xff] %v3592
      %3657 = vst [vmem:[%s231 + $0x8] sm:$0xff] %v3593
      %3658 = vst [vmem:[%s231 + $0x10] sm:$0xff] %v3594
      %3659 = vst [vmem:[%s231 + $0x18] sm:$0xff] %v3595
      %3660 = vst [vmem:[%s231 + $0x20] sm:$0xff] %v3596
      %3661 = vst [vmem:[%s231 + $0x28] sm:$0xff] %v3597
      %3662 = vst [vmem:[%s231 + $0x30] sm:$0xff] %v3598
      %3663 = vst [vmem:[%s231 + $0x38] sm:$0xff] %v3599
      %3664 = vst [vmem:[%s231 + $0x40] sm:$0xff] %v3600
      %3665 = vst [vmem:[%s231 + $0x48] sm:$0xff] %v3601
      %3666 = vst [vmem:[%s231 + $0x50] sm:$0xff] %v3602
      %3667 = vst [vmem:[%s231 + $0x58] sm:$0xff] %v3603
      %3668 = vst [vmem:[%s231 + $0x60] sm:$0xff] %v3604
      %3669 = vst [vmem:[%s231 + $0x68] sm:$0xff] %v3605
      %3670 = vst [vmem:[%s231 + $0x70] sm:$0xff] %v3606
      %3671 = vst [vmem:[%s231 + $0x78] sm:$0xff] %v3607
      %3672 = vst [vmem:[%s231 + $0x80] sm:$0xff] %v3608
      %3673 = vst [vmem:[%s231 + $0x88] sm:$0xff] %v3609
      %3674 = vst [vmem:[%s231 + $0x90] sm:$0xff] %v3610
      %3675 = vst [vmem:[%s231 + $0x98] sm:$0xff] %v3611
      %3676 = vst [vmem:[%s231 + $0xa0] sm:$0xff] %v3612
      %3677 = vst [vmem:[%s231 + $0xa8] sm:$0xff] %v3613
      %3678 = vst [vmem:[%s231 + $0xb0] sm:$0xff] %v3614
      %3679 = vst [vmem:[%s231 + $0xb8] sm:$0xff] %v3615
      %3680 = vst [vmem:[%s231 + $0xc0] sm:$0xff] %v3616
      %3681 = vst [vmem:[%s231 + $0xc8] sm:$0xff] %v3617
      %3682 = vst [vmem:[%s231 + $0xd0] sm:$0xff] %v3618
      %3683 = vst [vmem:[%s231 + $0xd8] sm:$0xff] %v3619
      %3684 = vst [vmem:[%s231 + $0xe0] sm:$0xff] %v3620
      %3685 = vst [vmem:[%s231 + $0xe8] sm:$0xff] %v3621
      %3686 = vst [vmem:[%s231 + $0xf0] sm:$0xff] %v3622
      %3687 = vst [vmem:[%s231 + $0xf8] sm:$0xff] %v3623
      %3688 = vst [vmem:[%s231 + $0x100] sm:$0xff] %v3624
      %3689 = vst [vmem:[%s231 + $0x108] sm:$0xff] %v3625
      %3690 = vst [vmem:[%s231 + $0x110] sm:$0xff] %v3626
      %3691 = vst [vmem:[%s231 + $0x118] sm:$0xff] %v3627
      %3692 = vst [vmem:[%s231 + $0x120] sm:$0xff] %v3628
      %3693 = vst [vmem:[%s231 + $0x128] sm:$0xff] %v3629
      %3694 = vst [vmem:[%s231 + $0x130] sm:$0xff] %v3630
      %3695 = vst [vmem:[%s231 + $0x138] sm:$0xff] %v3631
      %3696 = vst [vmem:[%s231 + $0x140] sm:$0xff] %v3632
      %3697 = vst [vmem:[%s231 + $0x148] sm:$0xff] %v3633
      %3698 = vst [vmem:[%s231 + $0x150] sm:$0xff] %v3634
      %3699 = vst [vmem:[%s231 + $0x158] sm:$0xff] %v3635
      %3700 = vst [vmem:[%s231 + $0x160] sm:$0xff] %v3636
      %3701 = vst [vmem:[%s231 + $0x168] sm:$0xff] %v3637
      %3702 = vst [vmem:[%s231 + $0x170] sm:$0xff] %v3638
      %3703 = vst [vmem:[%s231 + $0x178] sm:$0xff] %v3639
      %3704 = vst [vmem:[%s231 + $0x180] sm:$0xff] %v3640
      %3705 = vst [vmem:[%s231 + $0x188] sm:$0xff] %v3641
      %3706 = vst [vmem:[%s231 + $0x190] sm:$0xff] %v3642
      %3707 = vst [vmem:[%s231 + $0x198] sm:$0xff] %v3643
      %3708 = vst [vmem:[%s231 + $0x1a0] sm:$0xff] %v3644
      %3709 = vst [vmem:[%s231 + $0x1a8] sm:$0xff] %v3645
      %3710 = vst [vmem:[%s231 + $0x1b0] sm:$0xff] %v3646
      %3711 = vst [vmem:[%s231 + $0x1b8] sm:$0xff] %v3647
      %3712 = vst [vmem:[%s231 + $0x1c0] sm:$0xff] %v3648
      %3713 = vst [vmem:[%s231 + $0x1c8] sm:$0xff] %v3649
      %3714 = vst [vmem:[%s231 + $0x1d0] sm:$0xff] %v3650
      %3715 = vst [vmem:[%s231 + $0x1d8] sm:$0xff] %v3651
      %3716 = vst [vmem:[%s231 + $0x1e0] sm:$0xff] %v3652
      %3717 = vst [vmem:[%s231 + $0x1e8] sm:$0xff] %v3653
      %3718 = vst [vmem:[%s231 + $0x1f0] sm:$0xff] %v3654
      %3719 = vst [vmem:[%s231 + $0x1f8] sm:$0xff] %v3655
      %s3720 = scalar_lea.vmem %s224, 512
      %v3721 = vld [vmem:[%s3720] sm:$0xff]
      %v3722 = vld [vmem:[%s3720 + $0x8] sm:$0xff]
      %v3723 = vld [vmem:[%s3720 + $0x10] sm:$0xff]
      %v3724 = vld [vmem:[%s3720 + $0x18] sm:$0xff]
      %v3725 = vld [vmem:[%s3720 + $0x20] sm:$0xff]
      %v3726 = vld [vmem:[%s3720 + $0x28] sm:$0xff]
      %v3727 = vld [vmem:[%s3720 + $0x30] sm:$0xff]
      %v3728 = vld [vmem:[%s3720 + $0x38] sm:$0xff]
      %v3729 = vld [vmem:[%s3720 + $0x40] sm:$0xff]
      %v3730 = vld [vmem:[%s3720 + $0x48] sm:$0xff]
      %v3731 = vld [vmem:[%s3720 + $0x50] sm:$0xff]
      %v3732 = vld [vmem:[%s3720 + $0x58] sm:$0xff]
      %v3733 = vld [vmem:[%s3720 + $0x60] sm:$0xff]
      %v3734 = vld [vmem:[%s3720 + $0x68] sm:$0xff]
      %v3735 = vld [vmem:[%s3720 + $0x70] sm:$0xff]
      %v3736 = vld [vmem:[%s3720 + $0x78] sm:$0xff]
      %v3737 = vld [vmem:[%s3720 + $0x80] sm:$0xff]
      %v3738 = vld [vmem:[%s3720 + $0x88] sm:$0xff]
      %v3739 = vld [vmem:[%s3720 + $0x90] sm:$0xff]
      %v3740 = vld [vmem:[%s3720 + $0x98] sm:$0xff]
      %v3741 = vld [vmem:[%s3720 + $0xa0] sm:$0xff]
      %v3742 = vld [vmem:[%s3720 + $0xa8] sm:$0xff]
      %v3743 = vld [vmem:[%s3720 + $0xb0] sm:$0xff]
      %v3744 = vld [vmem:[%s3720 + $0xb8] sm:$0xff]
      %v3745 = vld [vmem:[%s3720 + $0xc0] sm:$0xff]
      %v3746 = vld [vmem:[%s3720 + $0xc8] sm:$0xff]
      %v3747 = vld [vmem:[%s3720 + $0xd0] sm:$0xff]
      %v3748 = vld [vmem:[%s3720 + $0xd8] sm:$0xff]
      %v3749 = vld [vmem:[%s3720 + $0xe0] sm:$0xff]
      %v3750 = vld [vmem:[%s3720 + $0xe8] sm:$0xff]
      %v3751 = vld [vmem:[%s3720 + $0xf0] sm:$0xff]
      %v3752 = vld [vmem:[%s3720 + $0xf8] sm:$0xff]
      %v3753 = vld [vmem:[%s3720 + $0x100] sm:$0xff]
      %v3754 = vld [vmem:[%s3720 + $0x108] sm:$0xff]
      %v3755 = vld [vmem:[%s3720 + $0x110] sm:$0xff]
      %v3756 = vld [vmem:[%s3720 + $0x118] sm:$0xff]
      %v3757 = vld [vmem:[%s3720 + $0x120] sm:$0xff]
      %v3758 = vld [vmem:[%s3720 + $0x128] sm:$0xff]
      %v3759 = vld [vmem:[%s3720 + $0x130] sm:$0xff]
      %v3760 = vld [vmem:[%s3720 + $0x138] sm:$0xff]
      %v3761 = vld [vmem:[%s3720 + $0x140] sm:$0xff]
      %v3762 = vld [vmem:[%s3720 + $0x148] sm:$0xff]
      %v3763 = vld [vmem:[%s3720 + $0x150] sm:$0xff]
      %v3764 = vld [vmem:[%s3720 + $0x158] sm:$0xff]
      %v3765 = vld [vmem:[%s3720 + $0x160] sm:$0xff]
      %v3766 = vld [vmem:[%s3720 + $0x168] sm:$0xff]
      %v3767 = vld [vmem:[%s3720 + $0x170] sm:$0xff]
      %v3768 = vld [vmem:[%s3720 + $0x178] sm:$0xff]
      %v3769 = vld [vmem:[%s3720 + $0x180] sm:$0xff]
      %v3770 = vld [vmem:[%s3720 + $0x188] sm:$0xff]
      %v3771 = vld [vmem:[%s3720 + $0x190] sm:$0xff]
      %v3772 = vld [vmem:[%s3720 + $0x198] sm:$0xff]
      %v3773 = vld [vmem:[%s3720 + $0x1a0] sm:$0xff]
      %v3774 = vld [vmem:[%s3720 + $0x1a8] sm:$0xff]
      %v3775 = vld [vmem:[%s3720 + $0x1b0] sm:$0xff]
      %v3776 = vld [vmem:[%s3720 + $0x1b8] sm:$0xff]
      %v3777 = vld [vmem:[%s3720 + $0x1c0] sm:$0xff]
      %v3778 = vld [vmem:[%s3720 + $0x1c8] sm:$0xff]
      %v3779 = vld [vmem:[%s3720 + $0x1d0] sm:$0xff]
      %v3780 = vld [vmem:[%s3720 + $0x1d8] sm:$0xff]
      %v3781 = vld [vmem:[%s3720 + $0x1e0] sm:$0xff]
      %v3782 = vld [vmem:[%s3720 + $0x1e8] sm:$0xff]
      %v3783 = vld [vmem:[%s3720 + $0x1f0] sm:$0xff]
      %v3784 = vld [vmem:[%s3720 + $0x1f8] sm:$0xff]
      %v3785 = vadd.f32 %v3721, %v3722
      %3786 = vadd.xlane.f32.xlu0 %v3785
      %v3787 = vpop.xlane.xlu0 %3786
      %v3788 = vadd.f32 %v3723, %v3724
      %3789 = vadd.xlane.f32.xlu0 %v3788
      %v3790 = vpop.xlane.xlu0 %3789
      %v3791 = vadd.f32 %v3725, %v3726
      %3792 = vadd.xlane.f32.xlu0 %v3791
      %v3793 = vpop.xlane.xlu0 %3792
      %v3794 = vadd.f32 %v3727, %v3728
      %3795 = vadd.xlane.f32.xlu0 %v3794
      %v3796 = vpop.xlane.xlu0 %3795
      %v3797 = vadd.f32 %v3729, %v3730
      %3798 = vadd.xlane.f32.xlu0 %v3797
      %v3799 = vpop.xlane.xlu0 %3798
      %v3800 = vadd.f32 %v3731, %v3732
      %3801 = vadd.xlane.f32.xlu0 %v3800
      %v3802 = vpop.xlane.xlu0 %3801
      %v3803 = vadd.f32 %v3733, %v3734
      %3804 = vadd.xlane.f32.xlu0 %v3803
      %v3805 = vpop.xlane.xlu0 %3804
      %v3806 = vadd.f32 %v3735, %v3736
      %3807 = vadd.xlane.f32.xlu0 %v3806
      %v3808 = vpop.xlane.xlu0 %3807
      %v3809 = vadd.f32 %v3737, %v3738
      %3810 = vadd.xlane.f32.xlu0 %v3809
      %v3811 = vpop.xlane.xlu0 %3810
      %v3812 = vadd.f32 %v3739, %v3740
      %3813 = vadd.xlane.f32.xlu0 %v3812
      %v3814 = vpop.xlane.xlu0 %3813
      %v3815 = vadd.f32 %v3741, %v3742
      %3816 = vadd.xlane.f32.xlu0 %v3815
      %v3817 = vpop.xlane.xlu0 %3816
      %v3818 = vadd.f32 %v3743, %v3744
      %3819 = vadd.xlane.f32.xlu0 %v3818
      %v3820 = vpop.xlane.xlu0 %3819
      %v3821 = vadd.f32 %v3745, %v3746
      %3822 = vadd.xlane.f32.xlu0 %v3821
      %v3823 = vpop.xlane.xlu0 %3822
      %v3824 = vadd.f32 %v3747, %v3748
      %3825 = vadd.xlane.f32.xlu0 %v3824
      %v3826 = vpop.xlane.xlu0 %3825
      %v3827 = vadd.f32 %v3749, %v3750
      %3828 = vadd.xlane.f32.xlu0 %v3827
      %v3829 = vpop.xlane.xlu0 %3828
      %v3830 = vadd.f32 %v3751, %v3752
      %3831 = vadd.xlane.f32.xlu0 %v3830
      %v3832 = vpop.xlane.xlu0 %3831
      %v3833 = vadd.f32 %v3753, %v3754
      %3834 = vadd.xlane.f32.xlu0 %v3833
      %v3835 = vpop.xlane.xlu0 %3834
      %v3836 = vadd.f32 %v3755, %v3756
      %3837 = vadd.xlane.f32.xlu0 %v3836
      %v3838 = vpop.xlane.xlu0 %3837
      %v3839 = vadd.f32 %v3757, %v3758
      %3840 = vadd.xlane.f32.xlu0 %v3839
      %v3841 = vpop.xlane.xlu0 %3840
      %v3842 = vadd.f32 %v3759, %v3760
      %3843 = vadd.xlane.f32.xlu0 %v3842
      %v3844 = vpop.xlane.xlu0 %3843
      %v3845 = vadd.f32 %v3761, %v3762
      %3846 = vadd.xlane.f32.xlu0 %v3845
      %v3847 = vpop.xlane.xlu0 %3846
      %v3848 = vadd.f32 %v3763, %v3764
      %3849 = vadd.xlane.f32.xlu0 %v3848
      %v3850 = vpop.xlane.xlu0 %3849
      %v3851 = vadd.f32 %v3765, %v3766
      %3852 = vadd.xlane.f32.xlu0 %v3851
      %v3853 = vpop.xlane.xlu0 %3852
      %v3854 = vadd.f32 %v3767, %v3768
      %3855 = vadd.xlane.f32.xlu0 %v3854
      %v3856 = vpop.xlane.xlu0 %3855
      %v3857 = vadd.f32 %v3769, %v3770
      %3858 = vadd.xlane.f32.xlu0 %v3857
      %v3859 = vpop.xlane.xlu0 %3858
      %v3860 = vadd.f32 %v3771, %v3772
      %3861 = vadd.xlane.f32.xlu0 %v3860
      %v3862 = vpop.xlane.xlu0 %3861
      %v3863 = vadd.f32 %v3773, %v3774
      %3864 = vadd.xlane.f32.xlu0 %v3863
      %v3865 = vpop.xlane.xlu0 %3864
      %v3866 = vadd.f32 %v3775, %v3776
      %3867 = vadd.xlane.f32.xlu0 %v3866
      %v3868 = vpop.xlane.xlu0 %3867
      %v3869 = vadd.f32 %v3777, %v3778
      %3870 = vadd.xlane.f32.xlu0 %v3869
      %v3871 = vpop.xlane.xlu0 %3870
      %v3872 = vadd.f32 %v3779, %v3780
      %3873 = vadd.xlane.f32.xlu0 %v3872
      %v3874 = vpop.xlane.xlu0 %3873
      %v3875 = vadd.f32 %v3781, %v3782
      %3876 = vadd.xlane.f32.xlu0 %v3875
      %v3877 = vpop.xlane.xlu0 %3876
      %v3878 = vadd.f32 %v3783, %v3784
      %3879 = vadd.xlane.f32.xlu0 %v3878
      %v3880 = vpop.xlane.xlu0 %3879
      %v3881 = vmul.f32 %v3787, 0.00390625
      %v3882 = vmul.f32 %v3790, 0.00390625
      %v3883 = vmul.f32 %v3793, 0.00390625
      %v3884 = vmul.f32 %v3796, 0.00390625
      %v3885 = vmul.f32 %v3799, 0.00390625
      %v3886 = vmul.f32 %v3802, 0.00390625
      %v3887 = vmul.f32 %v3805, 0.00390625
      %v3888 = vmul.f32 %v3808, 0.00390625
      %v3889 = vmul.f32 %v3811, 0.00390625
      %v3890 = vmul.f32 %v3814, 0.00390625
      %v3891 = vmul.f32 %v3817, 0.00390625
      %v3892 = vmul.f32 %v3820, 0.00390625
      %v3893 = vmul.f32 %v3823, 0.00390625
      %v3894 = vmul.f32 %v3826, 0.00390625
      %v3895 = vmul.f32 %v3829, 0.00390625
      %v3896 = vmul.f32 %v3832, 0.00390625
      %v3897 = vmul.f32 %v3835, 0.00390625
      %v3898 = vmul.f32 %v3838, 0.00390625
      %v3899 = vmul.f32 %v3841, 0.00390625
      %v3900 = vmul.f32 %v3844, 0.00390625
      %v3901 = vmul.f32 %v3847, 0.00390625
      %v3902 = vmul.f32 %v3850, 0.00390625
      %v3903 = vmul.f32 %v3853, 0.00390625
      %v3904 = vmul.f32 %v3856, 0.00390625
      %v3905 = vmul.f32 %v3859, 0.00390625
      %v3906 = vmul.f32 %v3862, 0.00390625
      %v3907 = vmul.f32 %v3865, 0.00390625
      %v3908 = vmul.f32 %v3868, 0.00390625
      %v3909 = vmul.f32 %v3871, 0.00390625
      %v3910 = vmul.f32 %v3874, 0.00390625
      %v3911 = vmul.f32 %v3877, 0.00390625
      %v3912 = vmul.f32 %v3880, 0.00390625
      %v3913 = vld [vmem:[%s1] sm:$0xff]
      %v3914 = vld [vmem:[%s1 + $0x8] sm:$0xff]
      %v3915 = vld [vmem:[%s1 + $0x10] sm:$0xff]
      %v3916 = vld [vmem:[%s1 + $0x18] sm:$0xff]
      %v3917 = vld [vmem:[%s2] sm:$0xff]
      %v3918 = vld [vmem:[%s2 + $0x8] sm:$0xff]
      %3919 = vmatprep.subr.mxu0 0.0
      %v3920 = vand.u32 %v3881, 4294901760
      %3921 = vmatpush1.msra.mxu0 %v3920
      %3922 = vmatprep.subr.mxu0 0.0
      %v3923 = vand.u32 %v3882, 4294901760
      %3924 = vmatpush1.msra.mxu0 %v3923
      %3925 = vmatprep.subr.mxu0 0.0
      %v3926 = vand.u32 %v3883, 4294901760
      %3927 = vmatpush1.msra.mxu0 %v3926
      %3928 = vmatprep.subr.mxu0 0.0
      %v3929 = vand.u32 %v3884, 4294901760
      %3930 = vmatpush1.msra.mxu0 %v3929
      %3931 = vmatprep.subr.mxu0 0.0
      %v3932 = vand.u32 %v3885, 4294901760
      %3933 = vmatpush1.msra.mxu0 %v3932
      %3934 = vmatprep.subr.mxu0 0.0
      %v3935 = vand.u32 %v3886, 4294901760
      %3936 = vmatpush1.msra.mxu0 %v3935
      %3937 = vmatprep.subr.mxu0 0.0
      %v3938 = vand.u32 %v3887, 4294901760
      %3939 = vmatpush1.msra.mxu0 %v3938
      %3940 = vmatprep.subr.mxu0 0.0
      %v3941 = vand.u32 %v3888, 4294901760
      %3942 = vmatpush1.msra.mxu0 %v3941
      %3943 = vmatprep.subr.mxu0 0.0
      %v3944 = vand.u32 %v3889, 4294901760
      %3945 = vmatpush1.msra.mxu0 %v3944
      %3946 = vmatprep.subr.mxu0 0.0
      %v3947 = vand.u32 %v3890, 4294901760
      %3948 = vmatpush1.msra.mxu0 %v3947
      %3949 = vmatprep.subr.mxu0 0.0
      %v3950 = vand.u32 %v3891, 4294901760
      %3951 = vmatpush1.msra.mxu0 %v3950
      %3952 = vmatprep.subr.mxu0 0.0
      %v3953 = vand.u32 %v3892, 4294901760
      %3954 = vmatpush1.msra.mxu0 %v3953
      %3955 = vmatprep.subr.mxu0 0.0
      %v3956 = vand.u32 %v3893, 4294901760
      %3957 = vmatpush1.msra.mxu0 %v3956
      %3958 = vmatprep.subr.mxu0 0.0
      %v3959 = vand.u32 %v3894, 4294901760
      %3960 = vmatpush1.msra.mxu0 %v3959
      %3961 = vmatprep.subr.mxu0 0.0
      %v3962 = vand.u32 %v3895, 4294901760
      %3963 = vmatpush1.msra.mxu0 %v3962
      %3964 = vmatprep.subr.mxu0 0.0
      %v3965 = vand.u32 %v3896, 4294901760
      %3966 = vmatpush1.msra.mxu0 %v3965
      %3967 = vmatprep.subr.mxu0 0.0
      %v3968 = vand.u32 %v3897, 4294901760
      %3969 = vmatpush1.msra.mxu0 %v3968
      %3970 = vmatprep.subr.mxu0 0.0
      %v3971 = vand.u32 %v3898, 4294901760
      %3972 = vmatpush1.msra.mxu0 %v3971
      %3973 = vmatprep.subr.mxu0 0.0
      %v3974 = vand.u32 %v3899, 4294901760
      %3975 = vmatpush1.msra.mxu0 %v3974
      %3976 = vmatprep.subr.mxu0 0.0
      %v3977 = vand.u32 %v3900, 4294901760
      %3978 = vmatpush1.msra.mxu0 %v3977
      %3979 = vmatprep.subr.mxu0 0.0
      %v3980 = vand.u32 %v3901, 4294901760
      %3981 = vmatpush1.msra.mxu0 %v3980
      %3982 = vmatprep.subr.mxu0 0.0
      %v3983 = vand.u32 %v3902, 4294901760
      %3984 = vmatpush1.msra.mxu0 %v3983
      %3985 = vmatprep.subr.mxu0 0.0
      %v3986 = vand.u32 %v3903, 4294901760
      %3987 = vmatpush1.msra.mxu0 %v3986
      %3988 = vmatprep.subr.mxu0 0.0
      %v3989 = vand.u32 %v3904, 4294901760
      %3990 = vmatpush1.msra.mxu0 %v3989
      %3991 = vmatprep.subr.mxu0 0.0
      %v3992 = vand.u32 %v3905, 4294901760
      %3993 = vmatpush1.msra.mxu0 %v3992
      %3994 = vmatprep.subr.mxu0 0.0
      %v3995 = vand.u32 %v3906, 4294901760
      %3996 = vmatpush1.msra.mxu0 %v3995
      %3997 = vmatprep.subr.mxu0 0.0
      %v3998 = vand.u32 %v3907, 4294901760
      %3999 = vmatpush1.msra.mxu0 %v3998
      %4000 = vmatprep.subr.mxu0 0.0
      %v4001 = vand.u32 %v3908, 4294901760
      %4002 = vmatpush1.msra.mxu0 %v4001
      %4003 = vmatprep.subr.mxu0 0.0
      %v4004 = vand.u32 %v3909, 4294901760
      %4005 = vmatpush1.msra.mxu0 %v4004
      %4006 = vmatprep.subr.mxu0 0.0
      %v4007 = vand.u32 %v3910, 4294901760
      %4008 = vmatpush1.msra.mxu0 %v4007
      %4009 = vmatprep.subr.mxu0 0.0
      %v4010 = vand.u32 %v3911, 4294901760
      %4011 = vmatpush1.msra.mxu0 %v4010
      %4012 = vmatprep.subr.mxu0 0.0
      %v4013 = vand.u32 %v3912, 4294901760
      %4014 = vmatpush1.msra.mxu0 %v4013
      %v4015 = vand.u32 %v3914, 4294901760
      %v4016 = vsub.f32 %v3914, %v4015
      %v4017 = vand.u32 %v4016, 4294901760
      %v4018 = vsub.f32 %v4016, %v4017
      %v4019 = vand.u32 %v4018, 4294901760
      %4020 = vmatprep.mubr.f32.mxu0 %v4019
      %v4021 = vand.u32 %v3913, 4294901760
      %v4022 = vsub.f32 %v3913, %v4021
      %v4023 = vand.u32 %v4022, 4294901760
      %v4024 = vsub.f32 %v4022, %v4023
      %v4025 = vand.u32 %v4024, 4294901760
      %4026 = vmatmul.mubr.f32.gmra.mrb[0].mxu0 %v4025
      %v4027 = vpop.f32.mrb[0].mxu0
      %v4028 = vadd.f32 %v3917, %v4027
      %v4029 = vpop.f32.mrb[0].mxu0
      %v4030 = vand.u32 %v3916, 4294901760
      %v4031 = vsub.f32 %v3916, %v4030
      %v4032 = vand.u32 %v4031, 4294901760
      %v4033 = vsub.f32 %v4031, %v4032
      %v4034 = vand.u32 %v4033, 4294901760
      %4035 = vmatprep.mubr.f32.mxu0 %v4034
      %v4036 = vand.u32 %v3915, 4294901760
      %v4037 = vsub.f32 %v3915, %v4036
      %v4038 = vand.u32 %v4037, 4294901760
      %v4039 = vsub.f32 %v4037, %v4038
      %v4040 = vand.u32 %v4039, 4294901760
      %4041 = vmatmul.mubr.f32.gmra.mrb[0].mxu0 %v4040
      %v4042 = vpop.f32.mrb[0].mxu0
      %v4043 = vadd.f32 %v3918, %v4042
      %v4044 = vpop.f32.mrb[0].mxu0
      %4045 = vdwg.mxu0
      %4046 = vmatprep.subr.mxu0 0.0
      %v4047 = vand.u32 %v3881, 4294901760
      %v4048 = vsub.f32 %v3881, %v4047
      %v4049 = vand.u32 %v4048, 4294901760
      %v4050 = vsub.f32 %v4048, %v4049
      %v4051 = vand.u32 %v4050, 4294901760
      %4052 = vmatpush1.msra.mxu0 %v4051
      %4053 = vmatprep.subr.mxu0 0.0
      %v4054 = vand.u32 %v3882, 4294901760
      %v4055 = vsub.f32 %v3882, %v4054
      %v4056 = vand.u32 %v4055, 4294901760
      %v4057 = vsub.f32 %v4055, %v4056
      %v4058 = vand.u32 %v4057, 4294901760
      %4059 = vmatpush1.msra.mxu0 %v4058
      %4060 = vmatprep.subr.mxu0 0.0
      %v4061 = vand.u32 %v3883, 4294901760
      %v4062 = vsub.f32 %v3883, %v4061
      %v4063 = vand.u32 %v4062, 4294901760
      %v4064 = vsub.f32 %v4062, %v4063
      %v4065 = vand.u32 %v4064, 4294901760
      %4066 = vmatpush1.msra.mxu0 %v4065
      %4067 = vmatprep.subr.mxu0 0.0
      %v4068 = vand.u32 %v3884, 4294901760
      %v4069 = vsub.f32 %v3884, %v4068
      %v4070 = vand.u32 %v4069, 4294901760
      %v4071 = vsub.f32 %v4069, %v4070
      %v4072 = vand.u32 %v4071, 4294901760
      %4073 = vmatpush1.msra.mxu0 %v4072
      %4074 = vmatprep.subr.mxu0 0.0
      %v4075 = vand.u32 %v3885, 4294901760
      %v4076 = vsub.f32 %v3885, %v4075
      %v4077 = vand.u32 %v4076, 4294901760
      %v4078 = vsub.f32 %v4076, %v4077
      %v4079 = vand.u32 %v4078, 4294901760
      %4080 = vmatpush1.msra.mxu0 %v4079
      %4081 = vmatprep.subr.mxu0 0.0
      %v4082 = vand.u32 %v3886, 4294901760
      %v4083 = vsub.f32 %v3886, %v4082
      %v4084 = vand.u32 %v4083, 4294901760
      %v4085 = vsub.f32 %v4083, %v4084
      %v4086 = vand.u32 %v4085, 4294901760
      %4087 = vmatpush1.msra.mxu0 %v4086
      %4088 = vmatprep.subr.mxu0 0.0
      %v4089 = vand.u32 %v3887, 4294901760
      %v4090 = vsub.f32 %v3887, %v4089
      %v4091 = vand.u32 %v4090, 4294901760
      %v4092 = vsub.f32 %v4090, %v4091
      %v4093 = vand.u32 %v4092, 4294901760
      %4094 = vmatpush1.msra.mxu0 %v4093
      %4095 = vmatprep.subr.mxu0 0.0
      %v4096 = vand.u32 %v3888, 4294901760
      %v4097 = vsub.f32 %v3888, %v4096
      %v4098 = vand.u32 %v4097, 4294901760
      %v4099 = vsub.f32 %v4097, %v4098
      %v4100 = vand.u32 %v4099, 4294901760
      %4101 = vmatpush1.msra.mxu0 %v4100
      %4102 = vmatprep.subr.mxu0 0.0
      %v4103 = vand.u32 %v3889, 4294901760
      %v4104 = vsub.f32 %v3889, %v4103
      %v4105 = vand.u32 %v4104, 4294901760
      %v4106 = vsub.f32 %v4104, %v4105
      %v4107 = vand.u32 %v4106, 4294901760
      %4108 = vmatpush1.msra.mxu0 %v4107
      %4109 = vmatprep.subr.mxu0 0.0
      %v4110 = vand.u32 %v3890, 4294901760
      %v4111 = vsub.f32 %v3890, %v4110
      %v4112 = vand.u32 %v4111, 4294901760
      %v4113 = vsub.f32 %v4111, %v4112
      %v4114 = vand.u32 %v4113, 4294901760
      %4115 = vmatpush1.msra.mxu0 %v4114
      %4116 = vmatprep.subr.mxu0 0.0
      %v4117 = vand.u32 %v3891, 4294901760
      %v4118 = vsub.f32 %v3891, %v4117
      %v4119 = vand.u32 %v4118, 4294901760
      %v4120 = vsub.f32 %v4118, %v4119
      %v4121 = vand.u32 %v4120, 4294901760
      %4122 = vmatpush1.msra.mxu0 %v4121
      %4123 = vmatprep.subr.mxu0 0.0
      %v4124 = vand.u32 %v3892, 4294901760
      %v4125 = vsub.f32 %v3892, %v4124
      %v4126 = vand.u32 %v4125, 4294901760
      %v4127 = vsub.f32 %v4125, %v4126
      %v4128 = vand.u32 %v4127, 4294901760
      %4129 = vmatpush1.msra.mxu0 %v4128
      %4130 = vmatprep.subr.mxu0 0.0
      %v4131 = vand.u32 %v3893, 4294901760
      %v4132 = vsub.f32 %v3893, %v4131
      %v4133 = vand.u32 %v4132, 4294901760
      %v4134 = vsub.f32 %v4132, %v4133
      %v4135 = vand.u32 %v4134, 4294901760
      %4136 = vmatpush1.msra.mxu0 %v4135
      %4137 = vmatprep.subr.mxu0 0.0
      %v4138 = vand.u32 %v3894, 4294901760
      %v4139 = vsub.f32 %v3894, %v4138
      %v4140 = vand.u32 %v4139, 4294901760
      %v4141 = vsub.f32 %v4139, %v4140
      %v4142 = vand.u32 %v4141, 4294901760
      %4143 = vmatpush1.msra.mxu0 %v4142
      %4144 = vmatprep.subr.mxu0 0.0
      %v4145 = vand.u32 %v3895, 4294901760
      %v4146 = vsub.f32 %v3895, %v4145
      %v4147 = vand.u32 %v4146, 4294901760
      %v4148 = vsub.f32 %v4146, %v4147
      %v4149 = vand.u32 %v4148, 4294901760
      %4150 = vmatpush1.msra.mxu0 %v4149
      %4151 = vmatprep.subr.mxu0 0.0
      %v4152 = vand.u32 %v3896, 4294901760
      %v4153 = vsub.f32 %v3896, %v4152
      %v4154 = vand.u32 %v4153, 4294901760
      %v4155 = vsub.f32 %v4153, %v4154
      %v4156 = vand.u32 %v4155, 4294901760
      %4157 = vmatpush1.msra.mxu0 %v4156
      %4158 = vmatprep.subr.mxu0 0.0
      %v4159 = vand.u32 %v3897, 4294901760
      %v4160 = vsub.f32 %v3897, %v4159
      %v4161 = vand.u32 %v4160, 4294901760
      %v4162 = vsub.f32 %v4160, %v4161
      %v4163 = vand.u32 %v4162, 4294901760
      %4164 = vmatpush1.msra.mxu0 %v4163
      %4165 = vmatprep.subr.mxu0 0.0
      %v4166 = vand.u32 %v3898, 4294901760
      %v4167 = vsub.f32 %v3898, %v4166
      %v4168 = vand.u32 %v4167, 4294901760
      %v4169 = vsub.f32 %v4167, %v4168
      %v4170 = vand.u32 %v4169, 4294901760
      %4171 = vmatpush1.msra.mxu0 %v4170
      %4172 = vmatprep.subr.mxu0 0.0
      %v4173 = vand.u32 %v3899, 4294901760
      %v4174 = vsub.f32 %v3899, %v4173
      %v4175 = vand.u32 %v4174, 4294901760
      %v4176 = vsub.f32 %v4174, %v4175
      %v4177 = vand.u32 %v4176, 4294901760
      %4178 = vmatpush1.msra.mxu0 %v4177
      %4179 = vmatprep.subr.mxu0 0.0
      %v4180 = vand.u32 %v3900, 4294901760
      %v4181 = vsub.f32 %v3900, %v4180
      %v4182 = vand.u32 %v4181, 4294901760
      %v4183 = vsub.f32 %v4181, %v4182
      %v4184 = vand.u32 %v4183, 4294901760
      %4185 = vmatpush1.msra.mxu0 %v4184
      %4186 = vmatprep.subr.mxu0 0.0
      %v4187 = vand.u32 %v3901, 4294901760
      %v4188 = vsub.f32 %v3901, %v4187
      %v4189 = vand.u32 %v4188, 4294901760
      %v4190 = vsub.f32 %v4188, %v4189
      %v4191 = vand.u32 %v4190, 4294901760
      %4192 = vmatpush1.msra.mxu0 %v4191
      %4193 = vmatprep.subr.mxu0 0.0
      %v4194 = vand.u32 %v3902, 4294901760
      %v4195 = vsub.f32 %v3902, %v4194
      %v4196 = vand.u32 %v4195, 4294901760
      %v4197 = vsub.f32 %v4195, %v4196
      %v4198 = vand.u32 %v4197, 4294901760
      %4199 = vmatpush1.msra.mxu0 %v4198
      %4200 = vmatprep.subr.mxu0 0.0
      %v4201 = vand.u32 %v3903, 4294901760
      %v4202 = vsub.f32 %v3903, %v4201
      %v4203 = vand.u32 %v4202, 4294901760
      %v4204 = vsub.f32 %v4202, %v4203
      %v4205 = vand.u32 %v4204, 4294901760
      %4206 = vmatpush1.msra.mxu0 %v4205
      %4207 = vmatprep.subr.mxu0 0.0
      %v4208 = vand.u32 %v3904, 4294901760
      %v4209 = vsub.f32 %v3904, %v4208
      %v4210 = vand.u32 %v4209, 4294901760
      %v4211 = vsub.f32 %v4209, %v4210
      %v4212 = vand.u32 %v4211, 4294901760
      %4213 = vmatpush1.msra.mxu0 %v4212
      %4214 = vmatprep.subr.mxu0 0.0
      %v4215 = vand.u32 %v3905, 4294901760
      %v4216 = vsub.f32 %v3905, %v4215
      %v4217 = vand.u32 %v4216, 4294901760
      %v4218 = vsub.f32 %v4216, %v4217
      %v4219 = vand.u32 %v4218, 4294901760
      %4220 = vmatpush1.msra.mxu0 %v4219
      %4221 = vmatprep.subr.mxu0 0.0
      %v4222 = vand.u32 %v3906, 4294901760
      %v4223 = vsub.f32 %v3906, %v4222
      %v4224 = vand.u32 %v4223, 4294901760
      %v4225 = vsub.f32 %v4223, %v4224
      %v4226 = vand.u32 %v4225, 4294901760
      %4227 = vmatpush1.msra.mxu0 %v4226
      %4228 = vmatprep.subr.mxu0 0.0
      %v4229 = vand.u32 %v3907, 4294901760
      %v4230 = vsub.f32 %v3907, %v4229
      %v4231 = vand.u32 %v4230, 4294901760
      %v4232 = vsub.f32 %v4230, %v4231
      %v4233 = vand.u32 %v4232, 4294901760
      %4234 = vmatpush1.msra.mxu0 %v4233
      %4235 = vmatprep.subr.mxu0 0.0
      %v4236 = vand.u32 %v3908, 4294901760
      %v4237 = vsub.f32 %v3908, %v4236
      %v4238 = vand.u32 %v4237, 4294901760
      %v4239 = vsub.f32 %v4237, %v4238
      %v4240 = vand.u32 %v4239, 4294901760
      %4241 = vmatpush1.msra.mxu0 %v4240
      %4242 = vmatprep.subr.mxu0 0.0
      %v4243 = vand.u32 %v3909, 4294901760
      %v4244 = vsub.f32 %v3909, %v4243
      %v4245 = vand.u32 %v4244, 4294901760
      %v4246 = vsub.f32 %v4244, %v4245
      %v4247 = vand.u32 %v4246, 4294901760
      %4248 = vmatpush1.msra.mxu0 %v4247
      %4249 = vmatprep.subr.mxu0 0.0
      %v4250 = vand.u32 %v3910, 4294901760
      %v4251 = vsub.f32 %v3910, %v4250
      %v4252 = vand.u32 %v4251, 4294901760
      %v4253 = vsub.f32 %v4251, %v4252
      %v4254 = vand.u32 %v4253, 4294901760
      %4255 = vmatpush1.msra.mxu0 %v4254
      %4256 = vmatprep.subr.mxu0 0.0
      %v4257 = vand.u32 %v3911, 4294901760
      %v4258 = vsub.f32 %v3911, %v4257
      %v4259 = vand.u32 %v4258, 4294901760
      %v4260 = vsub.f32 %v4258, %v4259
      %v4261 = vand.u32 %v4260, 4294901760
      %4262 = vmatpush1.msra.mxu0 %v4261
      %4263 = vmatprep.subr.mxu0 0.0
      %v4264 = vand.u32 %v3912, 4294901760
      %v4265 = vsub.f32 %v3912, %v4264
      %v4266 = vand.u32 %v4265, 4294901760
      %v4267 = vsub.f32 %v4265, %v4266
      %v4268 = vand.u32 %v4267, 4294901760
      %4269 = vmatpush1.msra.mxu0 %v4268
      %v4270 = vand.u32 %v3914, 4294901760
      %4271 = vmatprep.mubr.f32.mxu0 %v4270
      %v4272 = vand.u32 %v3913, 4294901760
      %4273 = vmatmul.mubr.f32.gmra.mrb[0].mxu0 %v4272
      %v4274 = vpop.f32.mrb[0].mxu0
      %v4275 = vadd.f32 %v4028, %v4274
      %v4276 = vpop.f32.mrb[0].mxu0
      %v4277 = vand.u32 %v3916, 4294901760
      %4278 = vmatprep.mubr.f32.mxu0 %v4277
      %v4279 = vand.u32 %v3915, 4294901760
      %4280 = vmatmul.mubr.f32.gmra.mrb[0].mxu0 %v4279
      %v4281 = vpop.f32.mrb[0].mxu0
      %v4282 = vadd.f32 %v4043, %v4281
      %v4283 = vpop.f32.mrb[0].mxu0
      %4284 = vdwg.mxu0
      %4285 = vmatprep.subr.mxu0 0.0
      %v4286 = vand.u32 %v3881, 4294901760
      %v4287 = vsub.f32 %v3881, %v4286
      %4288 = vmatpush1.msra.mxu0 %v4287
      %4289 = vmatprep.subr.mxu0 0.0
      %v4290 = vand.u32 %v3882, 4294901760
      %v4291 = vsub.f32 %v3882, %v4290
      %4292 = vmatpush1.msra.mxu0 %v4291
      %4293 = vmatprep.subr.mxu0 0.0
      %v4294 = vand.u32 %v3883, 4294901760
      %v4295 = vsub.f32 %v3883, %v4294
      %4296 = vmatpush1.msra.mxu0 %v4295
      %4297 = vmatprep.subr.mxu0 0.0
      %v4298 = vand.u32 %v3884, 4294901760
      %v4299 = vsub.f32 %v3884, %v4298
      %4300 = vmatpush1.msra.mxu0 %v4299
      %4301 = vmatprep.subr.mxu0 0.0
      %v4302 = vand.u32 %v3885, 4294901760
      %v4303 = vsub.f32 %v3885, %v4302
      %4304 = vmatpush1.msra.mxu0 %v4303
      %4305 = vmatprep.subr.mxu0 0.0
      %v4306 = vand.u32 %v3886, 4294901760
      %v4307 = vsub.f32 %v3886, %v4306
      %4308 = vmatpush1.msra.mxu0 %v4307
      %4309 = vmatprep.subr.mxu0 0.0
      %v4310 = vand.u32 %v3887, 4294901760
      %v4311 = vsub.f32 %v3887, %v4310
      %4312 = vmatpush1.msra.mxu0 %v4311
      %4313 = vmatprep.subr.mxu0 0.0
      %v4314 = vand.u32 %v3888, 4294901760
      %v4315 = vsub.f32 %v3888, %v4314
      %4316 = vmatpush1.msra.mxu0 %v4315
      %4317 = vmatprep.subr.mxu0 0.0
      %v4318 = vand.u32 %v3889, 4294901760
      %v4319 = vsub.f32 %v3889, %v4318
      %4320 = vmatpush1.msra.mxu0 %v4319
      %4321 = vmatprep.subr.mxu0 0.0
      %v4322 = vand.u32 %v3890, 4294901760
      %v4323 = vsub.f32 %v3890, %v4322
      %4324 = vmatpush1.msra.mxu0 %v4323
      %4325 = vmatprep.subr.mxu0 0.0
      %v4326 = vand.u32 %v3891, 4294901760
      %v4327 = vsub.f32 %v3891, %v4326
      %4328 = vmatpush1.msra.mxu0 %v4327
      %4329 = vmatprep.subr.mxu0 0.0
      %v4330 = vand.u32 %v3892, 4294901760
      %v4331 = vsub.f32 %v3892, %v4330
      %4332 = vmatpush1.msra.mxu0 %v4331
      %4333 = vmatprep.subr.mxu0 0.0
      %v4334 = vand.u32 %v3893, 4294901760
      %v4335 = vsub.f32 %v3893, %v4334
      %4336 = vmatpush1.msra.mxu0 %v4335
      %4337 = vmatprep.subr.mxu0 0.0
      %v4338 = vand.u32 %v3894, 4294901760
      %v4339 = vsub.f32 %v3894, %v4338
      %4340 = vmatpush1.msra.mxu0 %v4339
      %4341 = vmatprep.subr.mxu0 0.0
      %v4342 = vand.u32 %v3895, 4294901760
      %v4343 = vsub.f32 %v3895, %v4342
      %4344 = vmatpush1.msra.mxu0 %v4343
      %4345 = vmatprep.subr.mxu0 0.0
      %v4346 = vand.u32 %v3896, 4294901760
      %v4347 = vsub.f32 %v3896, %v4346
      %4348 = vmatpush1.msra.mxu0 %v4347
      %4349 = vmatprep.subr.mxu0 0.0
      %v4350 = vand.u32 %v3897, 4294901760
      %v4351 = vsub.f32 %v3897, %v4350
      %4352 = vmatpush1.msra.mxu0 %v4351
      %4353 = vmatprep.subr.mxu0 0.0
      %v4354 = vand.u32 %v3898, 4294901760
      %v4355 = vsub.f32 %v3898, %v4354
      %4356 = vmatpush1.msra.mxu0 %v4355
      %4357 = vmatprep.subr.mxu0 0.0
      %v4358 = vand.u32 %v3899, 4294901760
      %v4359 = vsub.f32 %v3899, %v4358
      %4360 = vmatpush1.msra.mxu0 %v4359
      %4361 = vmatprep.subr.mxu0 0.0
      %v4362 = vand.u32 %v3900, 4294901760
      %v4363 = vsub.f32 %v3900, %v4362
      %4364 = vmatpush1.msra.mxu0 %v4363
      %4365 = vmatprep.subr.mxu0 0.0
      %v4366 = vand.u32 %v3901, 4294901760
      %v4367 = vsub.f32 %v3901, %v4366
      %4368 = vmatpush1.msra.mxu0 %v4367
      %4369 = vmatprep.subr.mxu0 0.0
      %v4370 = vand.u32 %v3902, 4294901760
      %v4371 = vsub.f32 %v3902, %v4370
      %4372 = vmatpush1.msra.mxu0 %v4371
      %4373 = vmatprep.subr.mxu0 0.0
      %v4374 = vand.u32 %v3903, 4294901760
      %v4375 = vsub.f32 %v3903, %v4374
      %4376 = vmatpush1.msra.mxu0 %v4375
      %4377 = vmatprep.subr.mxu0 0.0
      %v4378 = vand.u32 %v3904, 4294901760
      %v4379 = vsub.f32 %v3904, %v4378
      %4380 = vmatpush1.msra.mxu0 %v4379
      %4381 = vmatprep.subr.mxu0 0.0
      %v4382 = vand.u32 %v3905, 4294901760
      %v4383 = vsub.f32 %v3905, %v4382
      %4384 = vmatpush1.msra.mxu0 %v4383
      %4385 = vmatprep.subr.mxu0 0.0
      %v4386 = vand.u32 %v3906, 4294901760
      %v4387 = vsub.f32 %v3906, %v4386
      %4388 = vmatpush1.msra.mxu0 %v4387
      %4389 = vmatprep.subr.mxu0 0.0
      %v4390 = vand.u32 %v3907, 4294901760
      %v4391 = vsub.f32 %v3907, %v4390
      %4392 = vmatpush1.msra.mxu0 %v4391
      %4393 = vmatprep.subr.mxu0 0.0
      %v4394 = vand.u32 %v3908, 4294901760
      %v4395 = vsub.f32 %v3908, %v4394
      %4396 = vmatpush1.msra.mxu0 %v4395
      %4397 = vmatprep.subr.mxu0 0.0
      %v4398 = vand.u32 %v3909, 4294901760
      %v4399 = vsub.f32 %v3909, %v4398
      %4400 = vmatpush1.msra.mxu0 %v4399
      %4401 = vmatprep.subr.mxu0 0.0
      %v4402 = vand.u32 %v3910, 4294901760
      %v4403 = vsub.f32 %v3910, %v4402
      %4404 = vmatpush1.msra.mxu0 %v4403
      %4405 = vmatprep.subr.mxu0 0.0
      %v4406 = vand.u32 %v3911, 4294901760
      %v4407 = vsub.f32 %v3911, %v4406
      %4408 = vmatpush1.msra.mxu0 %v4407
      %4409 = vmatprep.subr.mxu0 0.0
      %v4410 = vand.u32 %v3912, 4294901760
      %v4411 = vsub.f32 %v3912, %v4410
      %4412 = vmatpush1.msra.mxu0 %v4411
      %v4413 = vand.u32 %v3914, 4294901760
      %v4414 = vsub.f32 %v3914, %v4413
      %4415 = vmatprep.mubr.f32.mxu0 %v4414
      %v4416 = vand.u32 %v3913, 4294901760
      %v4417 = vsub.f32 %v3913, %v4416
      %4418 = vmatmul.mubr.f32.gmra.mrb[0].mxu0 %v4417
      %v4419 = vpop.f32.mrb[0].mxu0
      %v4420 = vadd.f32 %v4275, %v4419
      %v4421 = vpop.f32.mrb[0].mxu0
      %v4422 = vand.u32 %v3916, 4294901760
      %v4423 = vsub.f32 %v3916, %v4422
      %4424 = vmatprep.mubr.f32.mxu0 %v4423
      %v4425 = vand.u32 %v3915, 4294901760
      %v4426 = vsub.f32 %v3915, %v4425
      %4427 = vmatmul.mubr.f32.gmra.mrb[0].mxu0 %v4426
      %v4428 = vpop.f32.mrb[0].mxu0
      %v4429 = vadd.f32 %v4282, %v4428
      %v4430 = vpop.f32.mrb[0].mxu0
      %4431 = vdwg.mxu0
      %4432 = vmatprep.subr.mxu0 0.0
      %v4433 = vand.u32 %v3881, 4294901760
      %4434 = vmatpush1.msra.mxu0 %v4433
      %4435 = vmatprep.subr.mxu0 0.0
      %v4436 = vand.u32 %v3882, 4294901760
      %4437 = vmatpush1.msra.mxu0 %v4436
      %4438 = vmatprep.subr.mxu0 0.0
      %v4439 = vand.u32 %v3883, 4294901760
      %4440 = vmatpush1.msra.mxu0 %v4439
      %4441 = vmatprep.subr.mxu0 0.0
      %v4442 = vand.u32 %v3884, 4294901760
      %4443 = vmatpush1.msra.mxu0 %v4442
      %4444 = vmatprep.subr.mxu0 0.0
      %v4445 = vand.u32 %v3885, 4294901760
      %4446 = vmatpush1.msra.mxu0 %v4445
      %4447 = vmatprep.subr.mxu0 0.0
      %v4448 = vand.u32 %v3886, 4294901760
      %4449 = vmatpush1.msra.mxu0 %v4448
      %4450 = vmatprep.subr.mxu0 0.0
      %v4451 = vand.u32 %v3887, 4294901760
      %4452 = vmatpush1.msra.mxu0 %v4451
      %4453 = vmatprep.subr.mxu0 0.0
      %v4454 = vand.u32 %v3888, 4294901760
      %4455 = vmatpush1.msra.mxu0 %v4454
      %4456 = vmatprep.subr.mxu0 0.0
      %v4457 = vand.u32 %v3889, 4294901760
      %4458 = vmatpush1.msra.mxu0 %v4457
      %4459 = vmatprep.subr.mxu0 0.0
      %v4460 = vand.u32 %v3890, 4294901760
      %4461 = vmatpush1.msra.mxu0 %v4460
      %4462 = vmatprep.subr.mxu0 0.0
      %v4463 = vand.u32 %v3891, 4294901760
      %4464 = vmatpush1.msra.mxu0 %v4463
      %4465 = vmatprep.subr.mxu0 0.0
      %v4466 = vand.u32 %v3892, 4294901760
      %4467 = vmatpush1.msra.mxu0 %v4466
      %4468 = vmatprep.subr.mxu0 0.0
      %v4469 = vand.u32 %v3893, 4294901760
      %4470 = vmatpush1.msra.mxu0 %v4469
      %4471 = vmatprep.subr.mxu0 0.0
      %v4472 = vand.u32 %v3894, 4294901760
      %4473 = vmatpush1.msra.mxu0 %v4472
      %4474 = vmatprep.subr.mxu0 0.0
      %v4475 = vand.u32 %v3895, 4294901760
      %4476 = vmatpush1.msra.mxu0 %v4475
      %4477 = vmatprep.subr.mxu0 0.0
      %v4478 = vand.u32 %v3896, 4294901760
      %4479 = vmatpush1.msra.mxu0 %v4478
      %4480 = vmatprep.subr.mxu0 0.0
      %v4481 = vand.u32 %v3897, 4294901760
      %4482 = vmatpush1.msra.mxu0 %v4481
      %4483 = vmatprep.subr.mxu0 0.0
      %v4484 = vand.u32 %v3898, 4294901760
      %4485 = vmatpush1.msra.mxu0 %v4484
      %4486 = vmatprep.subr.mxu0 0.0
      %v4487 = vand.u32 %v3899, 4294901760
      %4488 = vmatpush1.msra.mxu0 %v4487
      %4489 = vmatprep.subr.mxu0 0.0
      %v4490 = vand.u32 %v3900, 4294901760
      %4491 = vmatpush1.msra.mxu0 %v4490
      %4492 = vmatprep.subr.mxu0 0.0
      %v4493 = vand.u32 %v3901, 4294901760
      %4494 = vmatpush1.msra.mxu0 %v4493
      %4495 = vmatprep.subr.mxu0 0.0
      %v4496 = vand.u32 %v3902, 4294901760
      %4497 = vmatpush1.msra.mxu0 %v4496
      %4498 = vmatprep.subr.mxu0 0.0
      %v4499 = vand.u32 %v3903, 4294901760
      %4500 = vmatpush1.msra.mxu0 %v4499
      %4501 = vmatprep.subr.mxu0 0.0
      %v4502 = vand.u32 %v3904, 4294901760
      %4503 = vmatpush1.msra.mxu0 %v4502
      %4504 = vmatprep.subr.mxu0 0.0
      %v4505 = vand.u32 %v3905, 4294901760
      %4506 = vmatpush1.msra.mxu0 %v4505
      %4507 = vmatprep.subr.mxu0 0.0
      %v4508 = vand.u32 %v3906, 4294901760
      %4509 = vmatpush1.msra.mxu0 %v4508
      %4510 = vmatprep.subr.mxu0 0.0
      %v4511 = vand.u32 %v3907, 4294901760
      %4512 = vmatpush1.msra.mxu0 %v4511
      %4513 = vmatprep.subr.mxu0 0.0
      %v4514 = vand.u32 %v3908, 4294901760
      %4515 = vmatpush1.msra.mxu0 %v4514
      %4516 = vmatprep.subr.mxu0 0.0
      %v4517 = vand.u32 %v3909, 4294901760
      %4518 = vmatpush1.msra.mxu0 %v4517
      %4519 = vmatprep.subr.mxu0 0.0
      %v4520 = vand.u32 %v3910, 4294901760
      %4521 = vmatpush1.msra.mxu0 %v4520
      %4522 = vmatprep.subr.mxu0 0.0
      %v4523 = vand.u32 %v3911, 4294901760
      %4524 = vmatpush1.msra.mxu0 %v4523
      %4525 = vmatprep.subr.mxu0 0.0
      %v4526 = vand.u32 %v3912, 4294901760
      %4527 = vmatpush1.msra.mxu0 %v4526
      %v4528 = vand.u32 %v3914, 4294901760
      %v4529 = vsub.f32 %v3914, %v4528
      %v4530 = vand.u32 %v4529, 4294901760
      %4531 = vmatprep.mubr.f32.mxu0 %v4530
      %v4532 = vand.u32 %v3913, 4294901760
      %v4533 = vsub.f32 %v3913, %v4532
      %v4534 = vand.u32 %v4533, 4294901760
      %4535 = vmatmul.mubr.f32.gmra.mrb[0].mxu0 %v4534
      %v4536 = vpop.f32.mrb[0].mxu0
      %v4537 = vadd.f32 %v4420, %v4536
      %v4538 = vpop.f32.mrb[0].mxu0
      %v4539 = vand.u32 %v3916, 4294901760
      %v4540 = vsub.f32 %v3916, %v4539
      %v4541 = vand.u32 %v4540, 4294901760
      %4542 = vmatprep.mubr.f32.mxu0 %v4541
      %v4543 = vand.u32 %v3915, 4294901760
      %v4544 = vsub.f32 %v3915, %v4543
      %v4545 = vand.u32 %v4544, 4294901760
      %4546 = vmatmul.mubr.f32.gmra.mrb[0].mxu0 %v4545
      %v4547 = vpop.f32.mrb[0].mxu0
      %v4548 = vadd.f32 %v4429, %v4547
      %v4549 = vpop.f32.mrb[0].mxu0
      %4550 = vdwg.mxu0
      %4551 = vmatprep.subr.mxu0 0.0
      %v4552 = vand.u32 %v3881, 4294901760
      %v4553 = vsub.f32 %v3881, %v4552
      %v4554 = vand.u32 %v4553, 4294901760
      %4555 = vmatpush1.msra.mxu0 %v4554
      %4556 = vmatprep.subr.mxu0 0.0
      %v4557 = vand.u32 %v3882, 4294901760
      %v4558 = vsub.f32 %v3882, %v4557
      %v4559 = vand.u32 %v4558, 4294901760
      %4560 = vmatpush1.msra.mxu0 %v4559
      %4561 = vmatprep.subr.mxu0 0.0
      %v4562 = vand.u32 %v3883, 4294901760
      %v4563 = vsub.f32 %v3883, %v4562
      %v4564 = vand.u32 %v4563, 4294901760
      %4565 = vmatpush1.msra.mxu0 %v4564
      %4566 = vmatprep.subr.mxu0 0.0
      %v4567 = vand.u32 %v3884, 4294901760
      %v4568 = vsub.f32 %v3884, %v4567
      %v4569 = vand.u32 %v4568, 4294901760
      %4570 = vmatpush1.msra.mxu0 %v4569
      %4571 = vmatprep.subr.mxu0 0.0
      %v4572 = vand.u32 %v3885, 4294901760
      %v4573 = vsub.f32 %v3885, %v4572
      %v4574 = vand.u32 %v4573, 4294901760
      %4575 = vmatpush1.msra.mxu0 %v4574
      %4576 = vmatprep.subr.mxu0 0.0
      %v4577 = vand.u32 %v3886, 4294901760
      %v4578 = vsub.f32 %v3886, %v4577
      %v4579 = vand.u32 %v4578, 4294901760
      %4580 = vmatpush1.msra.mxu0 %v4579
      %4581 = vmatprep.subr.mxu0 0.0
      %v4582 = vand.u32 %v3887, 4294901760
      %v4583 = vsub.f32 %v3887, %v4582
      %v4584 = vand.u32 %v4583, 4294901760
      %4585 = vmatpush1.msra.mxu0 %v4584
      %4586 = vmatprep.subr.mxu0 0.0
      %v4587 = vand.u32 %v3888, 4294901760
      %v4588 = vsub.f32 %v3888, %v4587
      %v4589 = vand.u32 %v4588, 4294901760
      %4590 = vmatpush1.msra.mxu0 %v4589
      %4591 = vmatprep.subr.mxu0 0.0
      %v4592 = vand.u32 %v3889, 4294901760
      %v4593 = vsub.f32 %v3889, %v4592
      %v4594 = vand.u32 %v4593, 4294901760
      %4595 = vmatpush1.msra.mxu0 %v4594
      %4596 = vmatprep.subr.mxu0 0.0
      %v4597 = vand.u32 %v3890, 4294901760
      %v4598 = vsub.f32 %v3890, %v4597
      %v4599 = vand.u32 %v4598, 4294901760
      %4600 = vmatpush1.msra.mxu0 %v4599
      %4601 = vmatprep.subr.mxu0 0.0
      %v4602 = vand.u32 %v3891, 4294901760
      %v4603 = vsub.f32 %v3891, %v4602
      %v4604 = vand.u32 %v4603, 4294901760
      %4605 = vmatpush1.msra.mxu0 %v4604
      %4606 = vmatprep.subr.mxu0 0.0
      %v4607 = vand.u32 %v3892, 4294901760
      %v4608 = vsub.f32 %v3892, %v4607
      %v4609 = vand.u32 %v4608, 4294901760
      %4610 = vmatpush1.msra.mxu0 %v4609
      %4611 = vmatprep.subr.mxu0 0.0
      %v4612 = vand.u32 %v3893, 4294901760
      %v4613 = vsub.f32 %v3893, %v4612
      %v4614 = vand.u32 %v4613, 4294901760
      %4615 = vmatpush1.msra.mxu0 %v4614
      %4616 = vmatprep.subr.mxu0 0.0
      %v4617 = vand.u32 %v3894, 4294901760
      %v4618 = vsub.f32 %v3894, %v4617
      %v4619 = vand.u32 %v4618, 4294901760
      %4620 = vmatpush1.msra.mxu0 %v4619
      %4621 = vmatprep.subr.mxu0 0.0
      %v4622 = vand.u32 %v3895, 4294901760
      %v4623 = vsub.f32 %v3895, %v4622
      %v4624 = vand.u32 %v4623, 4294901760
      %4625 = vmatpush1.msra.mxu0 %v4624
      %4626 = vmatprep.subr.mxu0 0.0
      %v4627 = vand.u32 %v3896, 4294901760
      %v4628 = vsub.f32 %v3896, %v4627
      %v4629 = vand.u32 %v4628, 4294901760
      %4630 = vmatpush1.msra.mxu0 %v4629
      %4631 = vmatprep.subr.mxu0 0.0
      %v4632 = vand.u32 %v3897, 4294901760
      %v4633 = vsub.f32 %v3897, %v4632
      %v4634 = vand.u32 %v4633, 4294901760
      %4635 = vmatpush1.msra.mxu0 %v4634
      %4636 = vmatprep.subr.mxu0 0.0
      %v4637 = vand.u32 %v3898, 4294901760
      %v4638 = vsub.f32 %v3898, %v4637
      %v4639 = vand.u32 %v4638, 4294901760
      %4640 = vmatpush1.msra.mxu0 %v4639
      %4641 = vmatprep.subr.mxu0 0.0
      %v4642 = vand.u32 %v3899, 4294901760
      %v4643 = vsub.f32 %v3899, %v4642
      %v4644 = vand.u32 %v4643, 4294901760
      %4645 = vmatpush1.msra.mxu0 %v4644
      %4646 = vmatprep.subr.mxu0 0.0
      %v4647 = vand.u32 %v3900, 4294901760
      %v4648 = vsub.f32 %v3900, %v4647
      %v4649 = vand.u32 %v4648, 4294901760
      %4650 = vmatpush1.msra.mxu0 %v4649
      %4651 = vmatprep.subr.mxu0 0.0
      %v4652 = vand.u32 %v3901, 4294901760
      %v4653 = vsub.f32 %v3901, %v4652
      %v4654 = vand.u32 %v4653, 4294901760
      %4655 = vmatpush1.msra.mxu0 %v4654
      %4656 = vmatprep.subr.mxu0 0.0
      %v4657 = vand.u32 %v3902, 4294901760
      %v4658 = vsub.f32 %v3902, %v4657
      %v4659 = vand.u32 %v4658, 4294901760
      %4660 = vmatpush1.msra.mxu0 %v4659
      %4661 = vmatprep.subr.mxu0 0.0
      %v4662 = vand.u32 %v3903, 4294901760
      %v4663 = vsub.f32 %v3903, %v4662
      %v4664 = vand.u32 %v4663, 4294901760
      %4665 = vmatpush1.msra.mxu0 %v4664
      %4666 = vmatprep.subr.mxu0 0.0
      %v4667 = vand.u32 %v3904, 4294901760
      %v4668 = vsub.f32 %v3904, %v4667
      %v4669 = vand.u32 %v4668, 4294901760
      %4670 = vmatpush1.msra.mxu0 %v4669
      %4671 = vmatprep.subr.mxu0 0.0
      %v4672 = vand.u32 %v3905, 4294901760
      %v4673 = vsub.f32 %v3905, %v4672
      %v4674 = vand.u32 %v4673, 4294901760
      %4675 = vmatpush1.msra.mxu0 %v4674
      %4676 = vmatprep.subr.mxu0 0.0
      %v4677 = vand.u32 %v3906, 4294901760
      %v4678 = vsub.f32 %v3906, %v4677
      %v4679 = vand.u32 %v4678, 4294901760
      %4680 = vmatpush1.msra.mxu0 %v4679
      %4681 = vmatprep.subr.mxu0 0.0
      %v4682 = vand.u32 %v3907, 4294901760
      %v4683 = vsub.f32 %v3907, %v4682
      %v4684 = vand.u32 %v4683, 4294901760
      %4685 = vmatpush1.msra.mxu0 %v4684
      %4686 = vmatprep.subr.mxu0 0.0
      %v4687 = vand.u32 %v3908, 4294901760
      %v4688 = vsub.f32 %v3908, %v4687
      %v4689 = vand.u32 %v4688, 4294901760
      %4690 = vmatpush1.msra.mxu0 %v4689
      %4691 = vmatprep.subr.mxu0 0.0
      %v4692 = vand.u32 %v3909, 4294901760
      %v4693 = vsub.f32 %v3909, %v4692
      %v4694 = vand.u32 %v4693, 4294901760
      %4695 = vmatpush1.msra.mxu0 %v4694
      %4696 = vmatprep.subr.mxu0 0.0
      %v4697 = vand.u32 %v3910, 4294901760
      %v4698 = vsub.f32 %v3910, %v4697
      %v4699 = vand.u32 %v4698, 4294901760
      %4700 = vmatpush1.msra.mxu0 %v4699
      %4701 = vmatprep.subr.mxu0 0.0
      %v4702 = vand.u32 %v3911, 4294901760
      %v4703 = vsub.f32 %v3911, %v4702
      %v4704 = vand.u32 %v4703, 4294901760
      %4705 = vmatpush1.msra.mxu0 %v4704
      %4706 = vmatprep.subr.mxu0 0.0
      %v4707 = vand.u32 %v3912, 4294901760
      %v4708 = vsub.f32 %v3912, %v4707
      %v4709 = vand.u32 %v4708, 4294901760
      %4710 = vmatpush1.msra.mxu0 %v4709
      %v4711 = vand.u32 %v3914, 4294901760
      %4712 = vmatprep.mubr.f32.mxu0 %v4711
      %v4713 = vand.u32 %v3913, 4294901760
      %4714 = vmatmul.mubr.f32.gmra.mrb[0].mxu0 %v4713
      %v4715 = vpop.f32.mrb[0].mxu0
      %v4716 = vadd.f32 %v4537, %v4715
      %v4717 = vpop.f32.mrb[0].mxu0
      %v4718 = vand.u32 %v3916, 4294901760
      %4719 = vmatprep.mubr.f32.mxu0 %v4718
      %v4720 = vand.u32 %v3915, 4294901760
      %4721 = vmatmul.mubr.f32.gmra.mrb[0].mxu0 %v4720
      %v4722 = vpop.f32.mrb[0].mxu0
      %v4723 = vadd.f32 %v4548, %v4722
      %v4724 = vpop.f32.mrb[0].mxu0
      %4725 = vdwg.mxu0
      %4726 = vmatprep.subr.mxu0 0.0
      %v4727 = vand.u32 %v3881, 4294901760
      %4728 = vmatpush1.msra.mxu0 %v4727
      %4729 = vmatprep.subr.mxu0 0.0
      %v4730 = vand.u32 %v3882, 4294901760
      %4731 = vmatpush1.msra.mxu0 %v4730
      %4732 = vmatprep.subr.mxu0 0.0
      %v4733 = vand.u32 %v3883, 4294901760
      %4734 = vmatpush1.msra.mxu0 %v4733
      %4735 = vmatprep.subr.mxu0 0.0
      %v4736 = vand.u32 %v3884, 4294901760
      %4737 = vmatpush1.msra.mxu0 %v4736
      %4738 = vmatprep.subr.mxu0 0.0
      %v4739 = vand.u32 %v3885, 4294901760
      %4740 = vmatpush1.msra.mxu0 %v4739
      %4741 = vmatprep.subr.mxu0 0.0
      %v4742 = vand.u32 %v3886, 4294901760
      %4743 = vmatpush1.msra.mxu0 %v4742
      %4744 = vmatprep.subr.mxu0 0.0
      %v4745 = vand.u32 %v3887, 4294901760
      %4746 = vmatpush1.msra.mxu0 %v4745
      %4747 = vmatprep.subr.mxu0 0.0
      %v4748 = vand.u32 %v3888, 4294901760
      %4749 = vmatpush1.msra.mxu0 %v4748
      %4750 = vmatprep.subr.mxu0 0.0
      %v4751 = vand.u32 %v3889, 4294901760
      %4752 = vmatpush1.msra.mxu0 %v4751
      %4753 = vmatprep.subr.mxu0 0.0
      %v4754 = vand.u32 %v3890, 4294901760
      %4755 = vmatpush1.msra.mxu0 %v4754
      %4756 = vmatprep.subr.mxu0 0.0
      %v4757 = vand.u32 %v3891, 4294901760
      %4758 = vmatpush1.msra.mxu0 %v4757
      %4759 = vmatprep.subr.mxu0 0.0
      %v4760 = vand.u32 %v3892, 4294901760
      %4761 = vmatpush1.msra.mxu0 %v4760
      %4762 = vmatprep.subr.mxu0 0.0
      %v4763 = vand.u32 %v3893, 4294901760
      %4764 = vmatpush1.msra.mxu0 %v4763
      %4765 = vmatprep.subr.mxu0 0.0
      %v4766 = vand.u32 %v3894, 4294901760
      %4767 = vmatpush1.msra.mxu0 %v4766
      %4768 = vmatprep.subr.mxu0 0.0
      %v4769 = vand.u32 %v3895, 4294901760
      %4770 = vmatpush1.msra.mxu0 %v4769
      %4771 = vmatprep.subr.mxu0 0.0
      %v4772 = vand.u32 %v3896, 4294901760
      %4773 = vmatpush1.msra.mxu0 %v4772
      %4774 = vmatprep.subr.mxu0 0.0
      %v4775 = vand.u32 %v3897, 4294901760
      %4776 = vmatpush1.msra.mxu0 %v4775
      %4777 = vmatprep.subr.mxu0 0.0
      %v4778 = vand.u32 %v3898, 4294901760
      %4779 = vmatpush1.msra.mxu0 %v4778
      %4780 = vmatprep.subr.mxu0 0.0
      %v4781 = vand.u32 %v3899, 4294901760
      %4782 = vmatpush1.msra.mxu0 %v4781
      %4783 = vmatprep.subr.mxu0 0.0
      %v4784 = vand.u32 %v3900, 4294901760
      %4785 = vmatpush1.msra.mxu0 %v4784
      %4786 = vmatprep.subr.mxu0 0.0
      %v4787 = vand.u32 %v3901, 4294901760
      %4788 = vmatpush1.msra.mxu0 %v4787
      %4789 = vmatprep.subr.mxu0 0.0
      %v4790 = vand.u32 %v3902, 4294901760
      %4791 = vmatpush1.msra.mxu0 %v4790
      %4792 = vmatprep.subr.mxu0 0.0
      %v4793 = vand.u32 %v3903, 4294901760
      %4794 = vmatpush1.msra.mxu0 %v4793
      %4795 = vmatprep.subr.mxu0 0.0
      %v4796 = vand.u32 %v3904, 4294901760
      %4797 = vmatpush1.msra.mxu0 %v4796
      %4798 = vmatprep.subr.mxu0 0.0
      %v4799 = vand.u32 %v3905, 4294901760
      %4800 = vmatpush1.msra.mxu0 %v4799
      %4801 = vmatprep.subr.mxu0 0.0
      %v4802 = vand.u32 %v3906, 4294901760
      %4803 = vmatpush1.msra.mxu0 %v4802
      %4804 = vmatprep.subr.mxu0 0.0
      %v4805 = vand.u32 %v3907, 4294901760
      %4806 = vmatpush1.msra.mxu0 %v4805
      %4807 = vmatprep.subr.mxu0 0.0
      %v4808 = vand.u32 %v3908, 4294901760
      %4809 = vmatpush1.msra.mxu0 %v4808
      %4810 = vmatprep.subr.mxu0 0.0
      %v4811 = vand.u32 %v3909, 4294901760
      %4812 = vmatpush1.msra.mxu0 %v4811
      %4813 = vmatprep.subr.mxu0 0.0
      %v4814 = vand.u32 %v3910, 4294901760
      %4815 = vmatpush1.msra.mxu0 %v4814
      %4816 = vmatprep.subr.mxu0 0.0
      %v4817 = vand.u32 %v3911, 4294901760
      %4818 = vmatpush1.msra.mxu0 %v4817
      %4819 = vmatprep.subr.mxu0 0.0
      %v4820 = vand.u32 %v3912, 4294901760
      %4821 = vmatpush1.msra.mxu0 %v4820
      %v4822 = vand.u32 %v3914, 4294901760
      %4823 = vmatprep.mubr.f32.mxu0 %v4822
      %v4824 = vand.u32 %v3913, 4294901760
      %4825 = vmatmul.mubr.f32.gmra.mrb[0].mxu0 %v4824
      %v4826 = vpop.f32.mrb[0].mxu0
      %v4827 = vadd.f32 %v4716, %v4826
      %v4828 = vpop.f32.mrb[0].mxu0
      %v4829 = vand.u32 %v3916, 4294901760
      %4830 = vmatprep.mubr.f32.mxu0 %v4829
      %v4831 = vand.u32 %v3915, 4294901760
      %4832 = vmatmul.mubr.f32.gmra.mrb[0].mxu0 %v4831
      %v4833 = vpop.f32.mrb[0].mxu0
      %v4834 = vadd.f32 %v4723, %v4833
      %v4835 = vpop.f32.mrb[0].mxu0
      %4836 = vdwg.mxu0
      %v4837 = vmax.f32 %v4827, 0.0
      %v4838 = vmax.f32 %v4834, 0.0
      %v4839 = vld [vmem:[%s3] sm:$0xff]
      %v4840 = vld [vmem:[%s3 + $0x8] sm:$0xff]
      %v4841 = vld [vmem:[%s3 + $0x10] sm:$0xff]
      %v4842 = vld [vmem:[%s3 + $0x18] sm:$0xff]
      %v4843 = vld [vmem:[%s3 + $0x20] sm:$0xff]
      %v4844 = vld [vmem:[%s3 + $0x28] sm:$0xff]
      %v4845 = vld [vmem:[%s3 + $0x30] sm:$0xff]
      %v4846 = vld [vmem:[%s3 + $0x38] sm:$0xff]
      %v4847 = vld [vmem:[%s3 + $0x40] sm:$0xff]
      %v4848 = vld [vmem:[%s3 + $0x48] sm:$0xff]
      %v4849 = vld [vmem:[%s3 + $0x50] sm:$0xff]
      %v4850 = vld [vmem:[%s3 + $0x58] sm:$0xff]
      %v4851 = vld [vmem:[%s3 + $0x60] sm:$0xff]
      %v4852 = vld [vmem:[%s3 + $0x68] sm:$0xff]
      %v4853 = vld [vmem:[%s3 + $0x70] sm:$0xff]
      %v4854 = vld [vmem:[%s3 + $0x78] sm:$0xff]
      %v4855 = vld [vmem:[%s3 + $0x80] sm:$0xff]
      %v4856 = vld [vmem:[%s3 + $0x88] sm:$0xff]
      %v4857 = vld [vmem:[%s3 + $0x90] sm:$0xff]
      %v4858 = vld [vmem:[%s3 + $0x98] sm:$0xff]
      %v4859 = vld [vmem:[%s3 + $0xa0] sm:$0xff]
      %v4860 = vld [vmem:[%s3 + $0xa8] sm:$0xff]
      %v4861 = vld [vmem:[%s3 + $0xb0] sm:$0xff]
      %v4862 = vld [vmem:[%s3 + $0xb8] sm:$0xff]
      %v4863 = vld [vmem:[%s3 + $0xc0] sm:$0xff]
      %v4864 = vld [vmem:[%s3 + $0xc8] sm:$0xff]
      %v4865 = vld [vmem:[%s3 + $0xd0] sm:$0xff]
      %v4866 = vld [vmem:[%s3 + $0xd8] sm:$0xff]
      %v4867 = vld [vmem:[%s3 + $0xe0] sm:$0xff]
      %v4868 = vld [vmem:[%s3 + $0xe8] sm:$0xff]
      %v4869 = vld [vmem:[%s3 + $0xf0] sm:$0xff]
      %v4870 = vld [vmem:[%s3 + $0xf8] sm:$0xff]
      %v4871 = vld [vmem:[%s4] sm:$0xff]
      %v4872 = vld [vmem:[%s4 + $0x8] sm:$0xff]
      %v4873 = vld [vmem:[%s4 + $0x10] sm:$0xff]
      %v4874 = vld [vmem:[%s4 + $0x18] sm:$0xff]
      %v4875 = vld [vmem:[%s4 + $0x20] sm:$0xff]
      %v4876 = vld [vmem:[%s4 + $0x28] sm:$0xff]
      %v4877 = vld [vmem:[%s4 + $0x30] sm:$0xff]
      %v4878 = vld [vmem:[%s4 + $0x38] sm:$0xff]
      %v4879 = vld [vmem:[%s4 + $0x40] sm:$0xff]
      %v4880 = vld [vmem:[%s4 + $0x48] sm:$0xff]
      %v4881 = vld [vmem:[%s4 + $0x50] sm:$0xff]
      %v4882 = vld [vmem:[%s4 + $0x58] sm:$0xff]
      %v4883 = vld [vmem:[%s4 + $0x60] sm:$0xff]
      %v4884 = vld [vmem:[%s4 + $0x68] sm:$0xff]
      %v4885 = vld [vmem:[%s4 + $0x70] sm:$0xff]
      %v4886 = vld [vmem:[%s4 + $0x78] sm:$0xff]
      %v4887 = vld [vmem:[%s4 + $0x80] sm:$0xff]
      %v4888 = vld [vmem:[%s4 + $0x88] sm:$0xff]
      %v4889 = vld [vmem:[%s4 + $0x90] sm:$0xff]
      %v4890 = vld [vmem:[%s4 + $0x98] sm:$0xff]
      %v4891 = vld [vmem:[%s4 + $0xa0] sm:$0xff]
      %v4892 = vld [vmem:[%s4 + $0xa8] sm:$0xff]
      %v4893 = vld [vmem:[%s4 + $0xb0] sm:$0xff]
      %v4894 = vld [vmem:[%s4 + $0xb8] sm:$0xff]
      %v4895 = vld [vmem:[%s4 + $0xc0] sm:$0xff]
      %v4896 = vld [vmem:[%s4 + $0xc8] sm:$0xff]
      %v4897 = vld [vmem:[%s4 + $0xd0] sm:$0xff]
      %v4898 = vld [vmem:[%s4 + $0xd8] sm:$0xff]
      %v4899 = vld [vmem:[%s4 + $0xe0] sm:$0xff]
      %v4900 = vld [vmem:[%s4 + $0xe8] sm:$0xff]
      %v4901 = vld [vmem:[%s4 + $0xf0] sm:$0xff]
      %v4902 = vld [vmem:[%s4 + $0xf8] sm:$0xff]
      %v4904 = vsel %vm1415, %v4839, 0
      %v4907 = vsel %vm1415, %v4840, 0
      %v4910 = vsel %vm1415, %v4841, 0
      %v4913 = vsel %vm1415, %v4842, 0
      %v4916 = vsel %vm1415, %v4843, 0
      %v4919 = vsel %vm1415, %v4844, 0
      %v4922 = vsel %vm1415, %v4845, 0
      %v4925 = vsel %vm1415, %v4846, 0
      %v4928 = vsel %vm1415, %v4847, 0
      %v4931 = vsel %vm1415, %v4848, 0
      %v4934 = vsel %vm1415, %v4849, 0
      %v4937 = vsel %vm1415, %v4850, 0
      %v4940 = vsel %vm1415, %v4851, 0
      %v4943 = vsel %vm1415, %v4852, 0
      %v4946 = vsel %vm1415, %v4853, 0
      %v4949 = vsel %vm1415, %v4854, 0
      %v4952 = vsel %vm1415, %v4855, 0
      %v4955 = vsel %vm1415, %v4856, 0
      %v4958 = vsel %vm1415, %v4857, 0
      %v4961 = vsel %vm1415, %v4858, 0
      %v4964 = vsel %vm1415, %v4859, 0
      %v4967 = vsel %vm1415, %v4860, 0
      %v4970 = vsel %vm1415, %v4861, 0
      %v4973 = vsel %vm1415, %v4862, 0
      %v4976 = vsel %vm1415, %v4863, 0
      %v4979 = vsel %vm1415, %v4864, 0
      %v4982 = vsel %vm1415, %v4865, 0
      %v4985 = vsel %vm1415, %v4866, 0
      %v4988 = vsel %vm1415, %v4867, 0
      %v4991 = vsel %vm1415, %v4868, 0
      %v4994 = vsel %vm1415, %v4869, 0
      %v4997 = vsel %vm1415, %v4870, 0
      %4999 = vmatprep.subr.mxu0 0.0
      %v5000 = vand.u32 %v4837, 4294901760
      %5001 = vmatpush1.msra.mxu0 %v5000
      %5002 = vmatprep.subr.mxu0 0.0
      %v5003 = vand.u32 %v4838, 4294901760
      %5004 = vmatpush1.msra.mxu0 %v5003
      %5005 = vmatprep.subr.mxu0 0.0
      %5006 = vmatpush1.msra.mxu0 0.0
      %5007 = vmatprep.subr.mxu0 0.0
      %5008 = vmatpush1.msra.mxu0 0.0
      %5009 = vmatprep.subr.mxu0 0.0
      %5010 = vmatpush1.msra.mxu0 0.0
      %5011 = vmatprep.subr.mxu0 0.0
      %5012 = vmatpush1.msra.mxu0 0.0
      %5013 = vmatprep.subr.mxu0 0.0
      %5014 = vmatpush1.msra.mxu0 0.0
      %5015 = vmatprep.subr.mxu0 0.0
      %5016 = vmatpush1.msra.mxu0 0.0
      %5017 = vmatprep.subr.mxu0 0.0
      %5018 = vmatpush1.msra.mxu0 0.0
      %5019 = vmatprep.subr.mxu0 0.0
      %5020 = vmatpush1.msra.mxu0 0.0
      %5021 = vmatprep.subr.mxu0 0.0
      %5022 = vmatpush1.msra.mxu0 0.0
      %5023 = vmatprep.subr.mxu0 0.0
      %5024 = vmatpush1.msra.mxu0 0.0
      %5025 = vmatprep.subr.mxu0 0.0
      %5026 = vmatpush1.msra.mxu0 0.0
      %5027 = vmatprep.subr.mxu0 0.0
      %5028 = vmatpush1.msra.mxu0 0.0
      %5029 = vmatprep.subr.mxu0 0.0
      %5030 = vmatpush1.msra.mxu0 0.0
      %5031 = vmatprep.subr.mxu0 0.0
      %5032 = vmatpush1.msra.mxu0 0.0
      %5033 = vmatprep.subr.mxu0 0.0
      %5034 = vmatpush1.msra.mxu0 0.0
      %5035 = vmatprep.subr.mxu0 0.0
      %5036 = vmatpush1.msra.mxu0 0.0
      %5037 = vmatprep.subr.mxu0 0.0
      %5038 = vmatpush1.msra.mxu0 0.0
      %5039 = vmatprep.subr.mxu0 0.0
      %5040 = vmatpush1.msra.mxu0 0.0
      %5041 = vmatprep.subr.mxu0 0.0
      %5042 = vmatpush1.msra.mxu0 0.0
      %5043 = vmatprep.subr.mxu0 0.0
      %5044 = vmatpush1.msra.mxu0 0.0
      %5045 = vmatprep.subr.mxu0 0.0
      %5046 = vmatpush1.msra.mxu0 0.0
      %5047 = vmatprep.subr.mxu0 0.0
      %5048 = vmatpush1.msra.mxu0 0.0
      %5049 = vmatprep.subr.mxu0 0.0
      %5050 = vmatpush1.msra.mxu0 0.0
      %5051 = vmatprep.subr.mxu0 0.0
      %5052 = vmatpush1.msra.mxu0 0.0
      %5053 = vmatprep.subr.mxu0 0.0
      %5054 = vmatpush1.msra.mxu0 0.0
      %5055 = vmatprep.subr.mxu0 0.0
      %5056 = vmatpush1.msra.mxu0 0.0
      %5057 = vmatprep.subr.mxu0 0.0
      %5058 = vmatpush1.msra.mxu0 0.0
      %5059 = vmatprep.subr.mxu0 0.0
      %5060 = vmatpush1.msra.mxu0 0.0
      %5061 = vmatprep.subr.mxu0 0.0
      %5062 = vmatpush1.msra.mxu0 0.0
      %5063 = vmatprep.subr.mxu0 0.0
      %5064 = vmatpush1.msra.mxu0 0.0
      %5065 = vmatprep.mubr.f32.mxu0 0.0
      %v5066 = vand.u32 %v4904, 4294901760
      %v5067 = vsub.f32 %v4904, %v5066
      %v5068 = vand.u32 %v5067, 4294901760
      %v5069 = vsub.f32 %v5067, %v5068
      %v5070 = vand.u32 %v5069, 4294901760
      %5071 = vmatmul.mubr.f32.gmra.mrb[0].mxu0 %v5070
      %v5072 = vpop.f32.mrb[0].mxu0
      %v5073 = vadd.f32 %v4871, %v5072
      %v5074 = vpop.f32.mrb[0].mxu0
      %5075 = vmatprep.mubr.f32.mxu0 0.0
      %v5076 = vand.u32 %v4907, 4294901760
      %v5077 = vsub.f32 %v4907, %v5076
      %v5078 = vand.u32 %v5077, 4294901760
      %v5079 = vsub.f32 %v5077, %v5078
      %v5080 = vand.u32 %v5079, 4294901760
      %5081 = vmatmul.mubr.f32.gmra.mrb[0].mxu0 %v5080
      %v5082 = vpop.f32.mrb[0].mxu0
      %v5083 = vadd.f32 %v4872, %v5082
      %v5084 = vpop.f32.mrb[0].mxu0
      %5085 = vmatprep.mubr.f32.mxu0 0.0
      %v5086 = vand.u32 %v4910, 4294901760
      %v5087 = vsub.f32 %v4910, %v5086
      %v5088 = vand.u32 %v5087, 4294901760
      %v5089 = vsub.f32 %v5087, %v5088
      %v5090 = vand.u32 %v5089, 4294901760
      %5091 = vmatmul.mubr.f32.gmra.mrb[0].mxu0 %v5090
      %v5092 = vpop.f32.mrb[0].mxu0
      %v5093 = vadd.f32 %v4873, %v5092
      %v5094 = vpop.f32.mrb[0].mxu0
      %5095 = vmatprep.mubr.f32.mxu0 0.0
      %v5096 = vand.u32 %v4913, 4294901760
      %v5097 = vsub.f32 %v4913, %v5096
      %v5098 = vand.u32 %v5097, 4294901760
      %v5099 = vsub.f32 %v5097, %v5098
      %v5100 = vand.u32 %v5099, 4294901760
      %5101 = vmatmul.mubr.f32.gmra.mrb[0].mxu0 %v5100
      %v5102 = vpop.f32.mrb[0].mxu0
      %v5103 = vadd.f32 %v4874, %v5102
      %v5104 = vpop.f32.mrb[0].mxu0
      %5105 = vmatprep.mubr.f32.mxu0 0.0
      %v5106 = vand.u32 %v4916, 4294901760
      %v5107 = vsub.f32 %v4916, %v5106
      %v5108 = vand.u32 %v5107, 4294901760
      %v5109 = vsub.f32 %v5107, %v5108
      %v5110 = vand.u32 %v5109, 4294901760
      %5111 = vmatmul.mubr.f32.gmra.mrb[0].mxu0 %v5110
      %v5112 = vpop.f32.mrb[0].mxu0
      %v5113 = vadd.f32 %v4875, %v5112
      %v5114 = vpop.f32.mrb[0].mxu0
      %5115 = vmatprep.mubr.f32.mxu0 0.0
      %v5116 = vand.u32 %v4919, 4294901760
      %v5117 = vsub.f32 %v4919, %v5116
      %v5118 = vand.u32 %v5117, 4294901760
      %v5119 = vsub.f32 %v5117, %v5118
      %v5120 = vand.u32 %v5119, 4294901760
      %5121 = vmatmul.mubr.f32.gmra.mrb[0].mxu0 %v5120
      %v5122 = vpop.f32.mrb[0].mxu0
      %v5123 = vadd.f32 %v4876, %v5122
      %v5124 = vpop.f32.mrb[0].mxu0
      %5125 = vmatprep.mubr.f32.mxu0 0.0
      %v5126 = vand.u32 %v4922, 4294901760
      %v5127 = vsub.f32 %v4922, %v5126
      %v5128 = vand.u32 %v5127, 4294901760
      %v5129 = vsub.f32 %v5127, %v5128
      %v5130 = vand.u32 %v5129, 4294901760
      %5131 = vmatmul.mubr.f32.gmra.mrb[0].mxu0 %v5130
      %v5132 = vpop.f32.mrb[0].mxu0
      %v5133 = vadd.f32 %v4877, %v5132
      %v5134 = vpop.f32.mrb[0].mxu0
      %5135 = vmatprep.mubr.f32.mxu0 0.0
      %v5136 = vand.u32 %v4925, 4294901760
      %v5137 = vsub.f32 %v4925, %v5136
      %v5138 = vand.u32 %v5137, 4294901760
      %v5139 = vsub.f32 %v5137, %v5138
      %v5140 = vand.u32 %v5139, 4294901760
      %5141 = vmatmul.mubr.f32.gmra.mrb[0].mxu0 %v5140
      %v5142 = vpop.f32.mrb[0].mxu0
      %v5143 = vadd.f32 %v4878, %v5142
      %v5144 = vpop.f32.mrb[0].mxu0
      %5145 = vmatprep.mubr.f32.mxu0 0.0
      %v5146 = vand.u32 %v4928, 4294901760
      %v5147 = vsub.f32 %v4928, %v5146
      %v5148 = vand.u32 %v5147, 4294901760
      %v5149 = vsub.f32 %v5147, %v5148
      %v5150 = vand.u32 %v5149, 4294901760
      %5151 = vmatmul.mubr.f32.gmra.mrb[0].mxu0 %v5150
      %v5152 = vpop.f32.mrb[0].mxu0
      %v5153 = vadd.f32 %v4879, %v5152
      %v5154 = vpop.f32.mrb[0].mxu0
      %5155 = vmatprep.mubr.f32.mxu0 0.0
      %v5156 = vand.u32 %v4931, 4294901760
      %v5157 = vsub.f32 %v4931, %v5156
      %v5158 = vand.u32 %v5157, 4294901760
      %v5159 = vsub.f32 %v5157, %v5158
      %v5160 = vand.u32 %v5159, 4294901760
      %5161 = vmatmul.mubr.f32.gmra.mrb[0].mxu0 %v5160
      %v5162 = vpop.f32.mrb[0].mxu0
      %v5163 = vadd.f32 %v4880, %v5162
      %v5164 = vpop.f32.mrb[0].mxu0
      %5165 = vmatprep.mubr.f32.mxu0 0.0
      %v5166 = vand.u32 %v4934, 4294901760
      %v5167 = vsub.f32 %v4934, %v5166
      %v5168 = vand.u32 %v5167, 4294901760
      %v5169 = vsub.f32 %v5167, %v5168
      %v5170 = vand.u32 %v5169, 4294901760
      %5171 = vmatmul.mubr.f32.gmra.mrb[0].mxu0 %v5170
      %v5172 = vpop.f32.mrb[0].mxu0
      %v5173 = vadd.f32 %v4881, %v5172
      %v5174 = vpop.f32.mrb[0].mxu0
      %5175 = vmatprep.mubr.f32.mxu0 0.0
      %v5176 = vand.u32 %v4937, 4294901760
      %v5177 = vsub.f32 %v4937, %v5176
      %v5178 = vand.u32 %v5177, 4294901760
      %v5179 = vsub.f32 %v5177, %v5178
      %v5180 = vand.u32 %v5179, 4294901760
      %5181 = vmatmul.mubr.f32.gmra.mrb[0].mxu0 %v5180
      %v5182 = vpop.f32.mrb[0].mxu0
      %v5183 = vadd.f32 %v4882, %v5182
      %v5184 = vpop.f32.mrb[0].mxu0
      %5185 = vmatprep.mubr.f32.mxu0 0.0
      %v5186 = vand.u32 %v4940, 4294901760
      %v5187 = vsub.f32 %v4940, %v5186
      %v5188 = vand.u32 %v5187, 4294901760
      %v5189 = vsub.f32 %v5187, %v5188
      %v5190 = vand.u32 %v5189, 4294901760
      %5191 = vmatmul.mubr.f32.gmra.mrb[0].mxu0 %v5190
      %v5192 = vpop.f32.mrb[0].mxu0
      %v5193 = vadd.f32 %v4883, %v5192
      %v5194 = vpop.f32.mrb[0].mxu0
      %5195 = vmatprep.mubr.f32.mxu0 0.0
      %v5196 = vand.u32 %v4943, 4294901760
      %v5197 = vsub.f32 %v4943, %v5196
      %v5198 = vand.u32 %v5197, 4294901760
      %v5199 = vsub.f32 %v5197, %v5198
      %v5200 = vand.u32 %v5199, 4294901760
      %5201 = vmatmul.mubr.f32.gmra.mrb[0].mxu0 %v5200
      %v5202 = vpop.f32.mrb[0].mxu0
      %v5203 = vadd.f32 %v4884, %v5202
      %v5204 = vpop.f32.mrb[0].mxu0
      %5205 = vmatprep.mubr.f32.mxu0 0.0
      %v5206 = vand.u32 %v4946, 4294901760
      %v5207 = vsub.f32 %v4946, %v5206
      %v5208 = vand.u32 %v5207, 4294901760
      %v5209 = vsub.f32 %v5207, %v5208
      %v5210 = vand.u32 %v5209, 4294901760
      %5211 = vmatmul.mubr.f32.gmra.mrb[0].mxu0 %v5210
      %v5212 = vpop.f32.mrb[0].mxu0
      %v5213 = vadd.f32 %v4885, %v5212
      %v5214 = vpop.f32.mrb[0].mxu0
      %5215 = vmatprep.mubr.f32.mxu0 0.0
      %v5216 = vand.u32 %v4949, 4294901760
      %v5217 = vsub.f32 %v4949, %v5216
      %v5218 = vand.u32 %v5217, 4294901760
      %v5219 = vsub.f32 %v5217, %v5218
      %v5220 = vand.u32 %v5219, 4294901760
      %5221 = vmatmul.mubr.f32.gmra.mrb[0].mxu0 %v5220
      %v5222 = vpop.f32.mrb[0].mxu0
      %v5223 = vadd.f32 %v4886, %v5222
      %v5224 = vpop.f32.mrb[0].mxu0
      %5225 = vmatprep.mubr.f32.mxu0 0.0
      %v5226 = vand.u32 %v4952, 4294901760
      %v5227 = vsub.f32 %v4952, %v5226
      %v5228 = vand.u32 %v5227, 4294901760
      %v5229 = vsub.f32 %v5227, %v5228
      %v5230 = vand.u32 %v5229, 4294901760
      %5231 = vmatmul.mubr.f32.gmra.mrb[0].mxu0 %v5230
      %v5232 = vpop.f32.mrb[0].mxu0
      %v5233 = vadd.f32 %v4887, %v5232
      %v5234 = vpop.f32.mrb[0].mxu0
      %5235 = vmatprep.mubr.f32.mxu0 0.0
      %v5236 = vand.u32 %v4955, 4294901760
      %v5237 = vsub.f32 %v4955, %v5236
      %v5238 = vand.u32 %v5237, 4294901760
      %v5239 = vsub.f32 %v5237, %v5238
      %v5240 = vand.u32 %v5239, 4294901760
      %5241 = vmatmul.mubr.f32.gmra.mrb[0].mxu0 %v5240
      %v5242 = vpop.f32.mrb[0].mxu0
      %v5243 = vadd.f32 %v4888, %v5242
      %v5244 = vpop.f32.mrb[0].mxu0
      %5245 = vmatprep.mubr.f32.mxu0 0.0
      %v5246 = vand.u32 %v4958, 4294901760
      %v5247 = vsub.f32 %v4958, %v5246
      %v5248 = vand.u32 %v5247, 4294901760
      %v5249 = vsub.f32 %v5247, %v5248
      %v5250 = vand.u32 %v5249, 4294901760
      %5251 = vmatmul.mubr.f32.gmra.mrb[0].mxu0 %v5250
      %v5252 = vpop.f32.mrb[0].mxu0
      %v5253 = vadd.f32 %v4889, %v5252
      %v5254 = vpop.f32.mrb[0].mxu0
      %5255 = vmatprep.mubr.f32.mxu0 0.0
      %v5256 = vand.u32 %v4961, 4294901760
      %v5257 = vsub.f32 %v4961, %v5256
      %v5258 = vand.u32 %v5257, 4294901760
      %v5259 = vsub.f32 %v5257, %v5258
      %v5260 = vand.u32 %v5259, 4294901760
      %5261 = vmatmul.mubr.f32.gmra.mrb[0].mxu0 %v5260
      %v5262 = vpop.f32.mrb[0].mxu0
      %v5263 = vadd.f32 %v4890, %v5262
      %v5264 = vpop.f32.mrb[0].mxu0
      %5265 = vmatprep.mubr.f32.mxu0 0.0
      %v5266 = vand.u32 %v4964, 4294901760
      %v5267 = vsub.f32 %v4964, %v5266
      %v5268 = vand.u32 %v5267, 4294901760
      %v5269 = vsub.f32 %v5267, %v5268
      %v5270 = vand.u32 %v5269, 4294901760
      %5271 = vmatmul.mubr.f32.gmra.mrb[0].mxu0 %v5270
      %v5272 = vpop.f32.mrb[0].mxu0
      %v5273 = vadd.f32 %v4891, %v5272
      %v5274 = vpop.f32.mrb[0].mxu0
      %5275 = vmatprep.mubr.f32.mxu0 0.0
      %v5276 = vand.u32 %v4967, 4294901760
      %v5277 = vsub.f32 %v4967, %v5276
      %v5278 = vand.u32 %v5277, 4294901760
      %v5279 = vsub.f32 %v5277, %v5278
      %v5280 = vand.u32 %v5279, 4294901760
      %5281 = vmatmul.mubr.f32.gmra.mrb[0].mxu0 %v5280
      %v5282 = vpop.f32.mrb[0].mxu0
      %v5283 = vadd.f32 %v4892, %v5282
      %v5284 = vpop.f32.mrb[0].mxu0
      %5285 = vmatprep.mubr.f32.mxu0 0.0
      %v5286 = vand.u32 %v4970, 4294901760
      %v5287 = vsub.f32 %v4970, %v5286
      %v5288 = vand.u32 %v5287, 4294901760
      %v5289 = vsub.f32 %v5287, %v5288
      %v5290 = vand.u32 %v5289, 4294901760
      %5291 = vmatmul.mubr.f32.gmra.mrb[0].mxu0 %v5290
      %v5292 = vpop.f32.mrb[0].mxu0
      %v5293 = vadd.f32 %v4893, %v5292
      %v5294 = vpop.f32.mrb[0].mxu0
      %5295 = vmatprep.mubr.f32.mxu0 0.0
      %v5296 = vand.u32 %v4973, 4294901760
      %v5297 = vsub.f32 %v4973, %v5296
      %v5298 = vand.u32 %v5297, 4294901760
      %v5299 = vsub.f32 %v5297, %v5298
      %v5300 = vand.u32 %v5299, 4294901760
      %5301 = vmatmul.mubr.f32.gmra.mrb[0].mxu0 %v5300
      %v5302 = vpop.f32.mrb[0].mxu0
      %v5303 = vadd.f32 %v4894, %v5302
      %v5304 = vpop.f32.mrb[0].mxu0
      %5305 = vmatprep.mubr.f32.mxu0 0.0
      %v5306 = vand.u32 %v4976, 4294901760
      %v5307 = vsub.f32 %v4976, %v5306
      %v5308 = vand.u32 %v5307, 4294901760
      %v5309 = vsub.f32 %v5307, %v5308
      %v5310 = vand.u32 %v5309, 4294901760
      %5311 = vmatmul.mubr.f32.gmra.mrb[0].mxu0 %v5310
      %v5312 = vpop.f32.mrb[0].mxu0
      %v5313 = vadd.f32 %v4895, %v5312
      %v5314 = vpop.f32.mrb[0].mxu0
      %5315 = vmatprep.mubr.f32.mxu0 0.0
      %v5316 = vand.u32 %v4979, 4294901760
      %v5317 = vsub.f32 %v4979, %v5316
      %v5318 = vand.u32 %v5317, 4294901760
      %v5319 = vsub.f32 %v5317, %v5318
      %v5320 = vand.u32 %v5319, 4294901760
      %5321 = vmatmul.mubr.f32.gmra.mrb[0].mxu0 %v5320
      %v5322 = vpop.f32.mrb[0].mxu0
      %v5323 = vadd.f32 %v4896, %v5322
      %v5324 = vpop.f32.mrb[0].mxu0
      %5325 = vmatprep.mubr.f32.mxu0 0.0
      %v5326 = vand.u32 %v4982, 4294901760
      %v5327 = vsub.f32 %v4982, %v5326
      %v5328 = vand.u32 %v5327, 4294901760
      %v5329 = vsub.f32 %v5327, %v5328
      %v5330 = vand.u32 %v5329, 4294901760
      %5331 = vmatmul.mubr.f32.gmra.mrb[0].mxu0 %v5330
      %v5332 = vpop.f32.mrb[0].mxu0
      %v5333 = vadd.f32 %v4897, %v5332
      %v5334 = vpop.f32.mrb[0].mxu0
      %5335 = vmatprep.mubr.f32.mxu0 0.0
      %v5336 = vand.u32 %v4985, 4294901760
      %v5337 = vsub.f32 %v4985, %v5336
      %v5338 = vand.u32 %v5337, 4294901760
      %v5339 = vsub.f32 %v5337, %v5338
      %v5340 = vand.u32 %v5339, 4294901760
      %5341 = vmatmul.mubr.f32.gmra.mrb[0].mxu0 %v5340
      %v5342 = vpop.f32.mrb[0].mxu0
      %v5343 = vadd.f32 %v4898, %v5342
      %v5344 = vpop.f32.mrb[0].mxu0
      %5345 = vmatprep.mubr.f32.mxu0 0.0
      %v5346 = vand.u32 %v4988, 4294901760
      %v5347 = vsub.f32 %v4988, %v5346
      %v5348 = vand.u32 %v5347, 4294901760
      %v5349 = vsub.f32 %v5347, %v5348
      %v5350 = vand.u32 %v5349, 4294901760
      %5351 = vmatmul.mubr.f32.gmra.mrb[0].mxu0 %v5350
      %v5352 = vpop.f32.mrb[0].mxu0
      %v5353 = vadd.f32 %v4899, %v5352
      %v5354 = vpop.f32.mrb[0].mxu0
      %5355 = vmatprep.mubr.f32.mxu0 0.0
      %v5356 = vand.u32 %v4991, 4294901760
      %v5357 = vsub.f32 %v4991, %v5356
      %v5358 = vand.u32 %v5357, 4294901760
      %v5359 = vsub.f32 %v5357, %v5358
      %v5360 = vand.u32 %v5359, 4294901760
      %5361 = vmatmul.mubr.f32.gmra.mrb[0].mxu0 %v5360
      %v5362 = vpop.f32.mrb[0].mxu0
      %v5363 = vadd.f32 %v4900, %v5362
      %v5364 = vpop.f32.mrb[0].mxu0
      %5365 = vmatprep.mubr.f32.mxu0 0.0
      %v5366 = vand.u32 %v4994, 4294901760
      %v5367 = vsub.f32 %v4994, %v5366
      %v5368 = vand.u32 %v5367, 4294901760
      %v5369 = vsub.f32 %v5367, %v5368
      %v5370 = vand.u32 %v5369, 4294901760
      %5371 = vmatmul.mubr.f32.gmra.mrb[0].mxu0 %v5370
      %v5372 = vpop.f32.mrb[0].mxu0
      %v5373 = vadd.f32 %v4901, %v5372
      %v5374 = vpop.f32.mrb[0].mxu0
      %5375 = vmatprep.mubr.f32.mxu0 0.0
      %v5376 = vand.u32 %v4997, 4294901760
      %v5377 = vsub.f32 %v4997, %v5376
      %v5378 = vand.u32 %v5377, 4294901760
      %v5379 = vsub.f32 %v5377, %v5378
      %v5380 = vand.u32 %v5379, 4294901760
      %5381 = vmatmul.mubr.f32.gmra.mrb[0].mxu0 %v5380
      %v5382 = vpop.f32.mrb[0].mxu0
      %v5383 = vadd.f32 %v4902, %v5382
      %v5384 = vpop.f32.mrb[0].mxu0
      %5385 = vdwg.mxu0
      %5386 = vmatprep.subr.mxu0 0.0
      %v5387 = vand.u32 %v4837, 4294901760
      %v5388 = vsub.f32 %v4837, %v5387
      %v5389 = vand.u32 %v5388, 4294901760
      %v5390 = vsub.f32 %v5388, %v5389
      %v5391 = vand.u32 %v5390, 4294901760
      %5392 = vmatpush1.msra.mxu0 %v5391
      %5393 = vmatprep.subr.mxu0 0.0
      %v5394 = vand.u32 %v4838, 4294901760
      %v5395 = vsub.f32 %v4838, %v5394
      %v5396 = vand.u32 %v5395, 4294901760
      %v5397 = vsub.f32 %v5395, %v5396
      %v5398 = vand.u32 %v5397, 4294901760
      %5399 = vmatpush1.msra.mxu0 %v5398
      %5400 = vmatprep.subr.mxu0 0.0
      %5401 = vmatpush1.msra.mxu0 0.0
      %5402 = vmatprep.subr.mxu0 0.0
      %5403 = vmatpush1.msra.mxu0 0.0
      %5404 = vmatprep.subr.mxu0 0.0
      %5405 = vmatpush1.msra.mxu0 0.0
      %5406 = vmatprep.subr.mxu0 0.0
      %5407 = vmatpush1.msra.mxu0 0.0
      %5408 = vmatprep.subr.mxu0 0.0
      %5409 = vmatpush1.msra.mxu0 0.0
      %5410 = vmatprep.subr.mxu0 0.0
      %5411 = vmatpush1.msra.mxu0 0.0
      %5412 = vmatprep.subr.mxu0 0.0
      %5413 = vmatpush1.msra.mxu0 0.0
      %5414 = vmatprep.subr.mxu0 0.0
      %5415 = vmatpush1.msra.mxu0 0.0
      %5416 = vmatprep.subr.mxu0 0.0
      %5417 = vmatpush1.msra.mxu0 0.0
      %5418 = vmatprep.subr.mxu0 0.0
      %5419 = vmatpush1.msra.mxu0 0.0
      %5420 = vmatprep.subr.mxu0 0.0
      %5421 = vmatpush1.msra.mxu0 0.0
      %5422 = vmatprep.subr.mxu0 0.0
      %5423 = vmatpush1.msra.mxu0 0.0
      %5424 = vmatprep.subr.mxu0 0.0
      %5425 = vmatpush1.msra.mxu0 0.0
      %5426 = vmatprep.subr.mxu0 0.0
      %5427 = vmatpush1.msra.mxu0 0.0
      %5428 = vmatprep.subr.mxu0 0.0
      %5429 = vmatpush1.msra.mxu0 0.0
      %5430 = vmatprep.subr.mxu0 0.0
      %5431 = vmatpush1.msra.mxu0 0.0
      %5432 = vmatprep.subr.mxu0 0.0
      %5433 = vmatpush1.msra.mxu0 0.0
      %5434 = vmatprep.subr.mxu0 0.0
      %5435 = vmatpush1.msra.mxu0 0.0
      %5436 = vmatprep.subr.mxu0 0.0
      %5437 = vmatpush1.msra.mxu0 0.0
      %5438 = vmatprep.subr.mxu0 0.0
      %5439 = vmatpush1.msra.mxu0 0.0
      %5440 = vmatprep.subr.mxu0 0.0
      %5441 = vmatpush1.msra.mxu0 0.0
      %5442 = vmatprep.subr.mxu0 0.0
      %5443 = vmatpush1.msra.mxu0 0.0
      %5444 = vmatprep.subr.mxu0 0.0
      %5445 = vmatpush1.msra.mxu0 0.0
      %5446 = vmatprep.subr.mxu0 0.0
      %5447 = vmatpush1.msra.mxu0 0.0
      %5448 = vmatprep.subr.mxu0 0.0
      %5449 = vmatpush1.msra.mxu0 0.0
      %5450 = vmatprep.subr.mxu0 0.0
      %5451 = vmatpush1.msra.mxu0 0.0
      %5452 = vmatprep.subr.mxu0 0.0
      %5453 = vmatpush1.msra.mxu0 0.0
      %5454 = vmatprep.subr.mxu0 0.0
      %5455 = vmatpush1.msra.mxu0 0.0
      %5456 = vmatprep.subr.mxu0 0.0
      %5457 = vmatpush1.msra.mxu0 0.0
      %5458 = vmatprep.subr.mxu0 0.0
      %5459 = vmatpush1.msra.mxu0 0.0
      %5460 = vmatprep.mubr.f32.mxu0 0.0
      %v5461 = vand.u32 %v4904, 4294901760
      %5462 = vmatmul.mubr.f32.gmra.mrb[0].mxu0 %v5461
      %v5463 = vpop.f32.mrb[0].mxu0
      %v5464 = vadd.f32 %v5073, %v5463
      %v5465 = vpop.f32.mrb[0].mxu0
      %5466 = vmatprep.mubr.f32.mxu0 0.0
      %v5467 = vand.u32 %v4907, 4294901760
      %5468 = vmatmul.mubr.f32.gmra.mrb[0].mxu0 %v5467
      %v5469 = vpop.f32.mrb[0].mxu0
      %v5470 = vadd.f32 %v5083, %v5469
      %v5471 = vpop.f32.mrb[0].mxu0
      %5472 = vmatprep.mubr.f32.mxu0 0.0
      %v5473 = vand.u32 %v4910, 4294901760
      %5474 = vmatmul.mubr.f32.gmra.mrb[0].mxu0 %v5473
      %v5475 = vpop.f32.mrb[0].mxu0
      %v5476 = vadd.f32 %v5093, %v5475
      %v5477 = vpop.f32.mrb[0].mxu0
      %5478 = vmatprep.mubr.f32.mxu0 0.0
      %v5479 = vand.u32 %v4913, 4294901760
      %5480 = vmatmul.mubr.f32.gmra.mrb[0].mxu0 %v5479
      %v5481 = vpop.f32.mrb[0].mxu0
      %v5482 = vadd.f32 %v5103, %v5481
      %v5483 = vpop.f32.mrb[0].mxu0
      %5484 = vmatprep.mubr.f32.mxu0 0.0
      %v5485 = vand.u32 %v4916, 4294901760
      %5486 = vmatmul.mubr.f32.gmra.mrb[0].mxu0 %v5485
      %v5487 = vpop.f32.mrb[0].mxu0
      %v5488 = vadd.f32 %v5113, %v5487
      %v5489 = vpop.f32.mrb[0].mxu0
      %5490 = vmatprep.mubr.f32.mxu0 0.0
      %v5491 = vand.u32 %v4919, 4294901760
      %5492 = vmatmul.mubr.f32.gmra.mrb[0].mxu0 %v5491
      %v5493 = vpop.f32.mrb[0].mxu0
      %v5494 = vadd.f32 %v5123, %v5493
      %v5495 = vpop.f32.mrb[0].mxu0
      %5496 = vmatprep.mubr.f32.mxu0 0.0
      %v5497 = vand.u32 %v4922, 4294901760
      %5498 = vmatmul.mubr.f32.gmra.mrb[0].mxu0 %v5497
      %v5499 = vpop.f32.mrb[0].mxu0
      %v5500 = vadd.f32 %v5133, %v5499
      %v5501 = vpop.f32.mrb[0].mxu0
      %5502 = vmatprep.mubr.f32.mxu0 0.0
      %v5503 = vand.u32 %v4925, 4294901760
      %5504 = vmatmul.mubr.f32.gmra.mrb[0].mxu0 %v5503
      %v5505 = vpop.f32.mrb[0].mxu0
      %v5506 = vadd.f32 %v5143, %v5505
      %v5507 = vpop.f32.mrb[0].mxu0
      %5508 = vmatprep.mubr.f32.mxu0 0.0
      %v5509 = vand.u32 %v4928, 4294901760
      %5510 = vmatmul.mubr.f32.gmra.mrb[0].mxu0 %v5509
      %v5511 = vpop.f32.mrb[0].mxu0
      %v5512 = vadd.f32 %v5153, %v5511
      %v5513 = vpop.f32.mrb[0].mxu0
      %5514 = vmatprep.mubr.f32.mxu0 0.0
      %v5515 = vand.u32 %v4931, 4294901760
      %5516 = vmatmul.mubr.f32.gmra.mrb[0].mxu0 %v5515
      %v5517 = vpop.f32.mrb[0].mxu0
      %v5518 = vadd.f32 %v5163, %v5517
      %v5519 = vpop.f32.mrb[0].mxu0
      %5520 = vmatprep.mubr.f32.mxu0 0.0
      %v5521 = vand.u32 %v4934, 4294901760
      %5522 = vmatmul.mubr.f32.gmra.mrb[0].mxu0 %v5521
      %v5523 = vpop.f32.mrb[0].mxu0
      %v5524 = vadd.f32 %v5173, %v5523
      %v5525 = vpop.f32.mrb[0].mxu0
      %5526 = vmatprep.mubr.f32.mxu0 0.0
      %v5527 = vand.u32 %v4937, 4294901760
      %5528 = vmatmul.mubr.f32.gmra.mrb[0].mxu0 %v5527
      %v5529 = vpop.f32.mrb[0].mxu0
      %v5530 = vadd.f32 %v5183, %v5529
      %v5531 = vpop.f32.mrb[0].mxu0
      %5532 = vmatprep.mubr.f32.mxu0 0.0
      %v5533 = vand.u32 %v4940, 4294901760
      %5534 = vmatmul.mubr.f32.gmra.mrb[0].mxu0 %v5533
      %v5535 = vpop.f32.mrb[0].mxu0
      %v5536 = vadd.f32 %v5193, %v5535
      %v5537 = vpop.f32.mrb[0].mxu0
      %5538 = vmatprep.mubr.f32.mxu0 0.0
      %v5539 = vand.u32 %v4943, 4294901760
      %5540 = vmatmul.mubr.f32.gmra.mrb[0].mxu0 %v5539
      %v5541 = vpop.f32.mrb[0].mxu0
      %v5542 = vadd.f32 %v5203, %v5541
      %v5543 = vpop.f32.mrb[0].mxu0
      %5544 = vmatprep.mubr.f32.mxu0 0.0
      %v5545 = vand.u32 %v4946, 4294901760
      %5546 = vmatmul.mubr.f32.gmra.mrb[0].mxu0 %v5545
      %v5547 = vpop.f32.mrb[0].mxu0
      %v5548 = vadd.f32 %v5213, %v5547
      %v5549 = vpop.f32.mrb[0].mxu0
      %5550 = vmatprep.mubr.f32.mxu0 0.0
      %v5551 = vand.u32 %v4949, 4294901760
      %5552 = vmatmul.mubr.f32.gmra.mrb[0].mxu0 %v5551
      %v5553 = vpop.f32.mrb[0].mxu0
      %v5554 = vadd.f32 %v5223, %v5553
      %v5555 = vpop.f32.mrb[0].mxu0
      %5556 = vmatprep.mubr.f32.mxu0 0.0
      %v5557 = vand.u32 %v4952, 4294901760
      %5558 = vmatmul.mubr.f32.gmra.mrb[0].mxu0 %v5557
      %v5559 = vpop.f32.mrb[0].mxu0
      %v5560 = vadd.f32 %v5233, %v5559
      %v5561 = vpop.f32.mrb[0].mxu0
      %5562 = vmatprep.mubr.f32.mxu0 0.0
      %v5563 = vand.u32 %v4955, 4294901760
      %5564 = vmatmul.mubr.f32.gmra.mrb[0].mxu0 %v5563
      %v5565 = vpop.f32.mrb[0].mxu0
      %v5566 = vadd.f32 %v5243, %v5565
      %v5567 = vpop.f32.mrb[0].mxu0
      %5568 = vmatprep.mubr.f32.mxu0 0.0
      %v5569 = vand.u32 %v4958, 4294901760
      %5570 = vmatmul.mubr.f32.gmra.mrb[0].mxu0 %v5569
      %v5571 = vpop.f32.mrb[0].mxu0
      %v5572 = vadd.f32 %v5253, %v5571
      %v5573 = vpop.f32.mrb[0].mxu0
      %5574 = vmatprep.mubr.f32.mxu0 0.0
      %v5575 = vand.u32 %v4961, 4294901760
      %5576 = vmatmul.mubr.f32.gmra.mrb[0].mxu0 %v5575
      %v5577 = vpop.f32.mrb[0].mxu0
      %v5578 = vadd.f32 %v5263, %v5577
      %v5579 = vpop.f32.mrb[0].mxu0
      %5580 = vmatprep.mubr.f32.mxu0 0.0
      %v5581 = vand.u32 %v4964, 4294901760
      %5582 = vmatmul.mubr.f32.gmra.mrb[0].mxu0 %v5581
      %v5583 = vpop.f32.mrb[0].mxu0
      %v5584 = vadd.f32 %v5273, %v5583
      %v5585 = vpop.f32.mrb[0].mxu0
      %5586 = vmatprep.mubr.f32.mxu0 0.0
      %v5587 = vand.u32 %v4967, 4294901760
      %5588 = vmatmul.mubr.f32.gmra.mrb[0].mxu0 %v5587
      %v5589 = vpop.f32.mrb[0].mxu0
      %v5590 = vadd.f32 %v5283, %v5589
      %v5591 = vpop.f32.mrb[0].mxu0
      %5592 = vmatprep.mubr.f32.mxu0 0.0
      %v5593 = vand.u32 %v4970, 4294901760
      %5594 = vmatmul.mubr.f32.gmra.mrb[0].mxu0 %v5593
      %v5595 = vpop.f32.mrb[0].mxu0
      %v5596 = vadd.f32 %v5293, %v5595
      %v5597 = vpop.f32.mrb[0].mxu0
      %5598 = vmatprep.mubr.f32.mxu0 0.0
      %v5599 = vand.u32 %v4973, 4294901760
      %5600 = vmatmul.mubr.f32.gmra.mrb[0].mxu0 %v5599
      %v5601 = vpop.f32.mrb[0].mxu0
      %v5602 = vadd.f32 %v5303, %v5601
      %v5603 = vpop.f32.mrb[0].mxu0
      %5604 = vmatprep.mubr.f32.mxu0 0.0
      %v5605 = vand.u32 %v4976, 4294901760
      %5606 = vmatmul.mubr.f32.gmra.mrb[0].mxu0 %v5605
      %v5607 = vpop.f32.mrb[0].mxu0
      %v5608 = vadd.f32 %v5313, %v5607
      %v5609 = vpop.f32.mrb[0].mxu0
      %5610 = vmatprep.mubr.f32.mxu0 0.0
      %v5611 = vand.u32 %v4979, 4294901760
      %5612 = vmatmul.mubr.f32.gmra.mrb[0].mxu0 %v5611
      %v5613 = vpop.f32.mrb[0].mxu0
      %v5614 = vadd.f32 %v5323, %v5613
      %v5615 = vpop.f32.mrb[0].mxu0
      %5616 = vmatprep.mubr.f32.mxu0 0.0
      %v5617 = vand.u32 %v4982, 4294901760
      %5618 = vmatmul.mubr.f32.gmra.mrb[0].mxu0 %v5617
      %v5619 = vpop.f32.mrb[0].mxu0
      %v5620 = vadd.f32 %v5333, %v5619
      %v5621 = vpop.f32.mrb[0].mxu0
      %5622 = vmatprep.mubr.f32.mxu0 0.0
      %v5623 = vand.u32 %v4985, 4294901760
      %5624 = vmatmul.mubr.f32.gmra.mrb[0].mxu0 %v5623
      %v5625 = vpop.f32.mrb[0].mxu0
      %v5626 = vadd.f32 %v5343, %v5625
      %v5627 = vpop.f32.mrb[0].mxu0
      %5628 = vmatprep.mubr.f32.mxu0 0.0
      %v5629 = vand.u32 %v4988, 4294901760
      %5630 = vmatmul.mubr.f32.gmra.mrb[0].mxu0 %v5629
      %v5631 = vpop.f32.mrb[0].mxu0
      %v5632 = vadd.f32 %v5353, %v5631
      %v5633 = vpop.f32.mrb[0].mxu0
      %5634 = vmatprep.mubr.f32.mxu0 0.0
      %v5635 = vand.u32 %v4991, 4294901760
      %5636 = vmatmul.mubr.f32.gmra.mrb[0].mxu0 %v5635
      %v5637 = vpop.f32.mrb[0].mxu0
      %v5638 = vadd.f32 %v5363, %v5637
      %v5639 = vpop.f32.mrb[0].mxu0
      %5640 = vmatprep.mubr.f32.mxu0 0.0
      %v5641 = vand.u32 %v4994, 4294901760
      %5642 = vmatmul.mubr.f32.gmra.mrb[0].mxu0 %v5641
      %v5643 = vpop.f32.mrb[0].mxu0
      %v5644 = vadd.f32 %v5373, %v5643
      %v5645 = vpop.f32.mrb[0].mxu0
      %5646 = vmatprep.mubr.f32.mxu0 0.0
      %v5647 = vand.u32 %v4997, 4294901760
      %5648 = vmatmul.mubr.f32.gmra.mrb[0].mxu0 %v5647
      %v5649 = vpop.f32.mrb[0].mxu0
      %v5650 = vadd.f32 %v5383, %v5649
      %v5651 = vpop.f32.mrb[0].mxu0
      %5652 = vdwg.mxu0
      %5653 = vmatprep.subr.mxu0 0.0
      %v5654 = vand.u32 %v4837, 4294901760
      %v5655 = vsub.f32 %v4837, %v5654
      %5656 = vmatpush1.msra.mxu0 %v5655
      %5657 = vmatprep.subr.mxu0 0.0
      %v5658 = vand.u32 %v4838, 4294901760
      %v5659 = vsub.f32 %v4838, %v5658
      %5660 = vmatpush1.msra.mxu0 %v5659
      %5661 = vmatprep.subr.mxu0 0.0
      %5662 = vmatpush1.msra.mxu0 0.0
      %5663 = vmatprep.subr.mxu0 0.0
      %5664 = vmatpush1.msra.mxu0 0.0
      %5665 = vmatprep.subr.mxu0 0.0
      %5666 = vmatpush1.msra.mxu0 0.0
      %5667 = vmatprep.subr.mxu0 0.0
      %5668 = vmatpush1.msra.mxu0 0.0
      %5669 = vmatprep.subr.mxu0 0.0
      %5670 = vmatpush1.msra.mxu0 0.0
      %5671 = vmatprep.subr.mxu0 0.0
      %5672 = vmatpush1.msra.mxu0 0.0
      %5673 = vmatprep.subr.mxu0 0.0
      %5674 = vmatpush1.msra.mxu0 0.0
      %5675 = vmatprep.subr.mxu0 0.0
      %5676 = vmatpush1.msra.mxu0 0.0
      %5677 = vmatprep.subr.mxu0 0.0
      %5678 = vmatpush1.msra.mxu0 0.0
      %5679 = vmatprep.subr.mxu0 0.0
      %5680 = vmatpush1.msra.mxu0 0.0
      %5681 = vmatprep.subr.mxu0 0.0
      %5682 = vmatpush1.msra.mxu0 0.0
      %5683 = vmatprep.subr.mxu0 0.0
      %5684 = vmatpush1.msra.mxu0 0.0
      %5685 = vmatprep.subr.mxu0 0.0
      %5686 = vmatpush1.msra.mxu0 0.0
      %5687 = vmatprep.subr.mxu0 0.0
      %5688 = vmatpush1.msra.mxu0 0.0
      %5689 = vmatprep.subr.mxu0 0.0
      %5690 = vmatpush1.msra.mxu0 0.0
      %5691 = vmatprep.subr.mxu0 0.0
      %5692 = vmatpush1.msra.mxu0 0.0
      %5693 = vmatprep.subr.mxu0 0.0
      %5694 = vmatpush1.msra.mxu0 0.0
      %5695 = vmatprep.subr.mxu0 0.0
      %5696 = vmatpush1.msra.mxu0 0.0
      %5697 = vmatprep.subr.mxu0 0.0
      %5698 = vmatpush1.msra.mxu0 0.0
      %5699 = vmatprep.subr.mxu0 0.0
      %5700 = vmatpush1.msra.mxu0 0.0
      %5701 = vmatprep.subr.mxu0 0.0
      %5702 = vmatpush1.msra.mxu0 0.0
      %5703 = vmatprep.subr.mxu0 0.0
      %5704 = vmatpush1.msra.mxu0 0.0
      %5705 = vmatprep.subr.mxu0 0.0
      %5706 = vmatpush1.msra.mxu0 0.0
      %5707 = vmatprep.subr.mxu0 0.0
      %5708 = vmatpush1.msra.mxu0 0.0
      %5709 = vmatprep.subr.mxu0 0.0
      %5710 = vmatpush1.msra.mxu0 0.0
      %5711 = vmatprep.subr.mxu0 0.0
      %5712 = vmatpush1.msra.mxu0 0.0
      %5713 = vmatprep.subr.mxu0 0.0
      %5714 = vmatpush1.msra.mxu0 0.0
      %5715 = vmatprep.subr.mxu0 0.0
      %5716 = vmatpush1.msra.mxu0 0.0
      %5717 = vmatprep.subr.mxu0 0.0
      %5718 = vmatpush1.msra.mxu0 0.0
      %5719 = vmatprep.subr.mxu0 0.0
      %5720 = vmatpush1.msra.mxu0 0.0
      %5721 = vmatprep.mubr.f32.mxu0 0.0
      %v5722 = vand.u32 %v4904, 4294901760
      %v5723 = vsub.f32 %v4904, %v5722
      %5724 = vmatmul.mubr.f32.gmra.mrb[0].mxu0 %v5723
      %v5725 = vpop.f32.mrb[0].mxu0
      %v5726 = vadd.f32 %v5464, %v5725
      %v5727 = vpop.f32.mrb[0].mxu0
      %5728 = vmatprep.mubr.f32.mxu0 0.0
      %v5729 = vand.u32 %v4907, 4294901760
      %v5730 = vsub.f32 %v4907, %v5729
      %5731 = vmatmul.mubr.f32.gmra.mrb[0].mxu0 %v5730
      %v5732 = vpop.f32.mrb[0].mxu0
      %v5733 = vadd.f32 %v5470, %v5732
      %v5734 = vpop.f32.mrb[0].mxu0
      %5735 = vmatprep.mubr.f32.mxu0 0.0
      %v5736 = vand.u32 %v4910, 4294901760
      %v5737 = vsub.f32 %v4910, %v5736
      %5738 = vmatmul.mubr.f32.gmra.mrb[0].mxu0 %v5737
      %v5739 = vpop.f32.mrb[0].mxu0
      %v5740 = vadd.f32 %v5476, %v5739
      %v5741 = vpop.f32.mrb[0].mxu0
      %5742 = vmatprep.mubr.f32.mxu0 0.0
      %v5743 = vand.u32 %v4913, 4294901760
      %v5744 = vsub.f32 %v4913, %v5743
      %5745 = vmatmul.mubr.f32.gmra.mrb[0].mxu0 %v5744
      %v5746 = vpop.f32.mrb[0].mxu0
      %v5747 = vadd.f32 %v5482, %v5746
      %v5748 = vpop.f32.mrb[0].mxu0
      %5749 = vmatprep.mubr.f32.mxu0 0.0
      %v5750 = vand.u32 %v4916, 4294901760
      %v5751 = vsub.f32 %v4916, %v5750
      %5752 = vmatmul.mubr.f32.gmra.mrb[0].mxu0 %v5751
      %v5753 = vpop.f32.mrb[0].mxu0
      %v5754 = vadd.f32 %v5488, %v5753
      %v5755 = vpop.f32.mrb[0].mxu0
      %5756 = vmatprep.mubr.f32.mxu0 0.0
      %v5757 = vand.u32 %v4919, 4294901760
      %v5758 = vsub.f32 %v4919, %v5757
      %5759 = vmatmul.mubr.f32.gmra.mrb[0].mxu0 %v5758
      %v5760 = vpop.f32.mrb[0].mxu0
      %v5761 = vadd.f32 %v5494, %v5760
      %v5762 = vpop.f32.mrb[0].mxu0
      %5763 = vmatprep.mubr.f32.mxu0 0.0
      %v5764 = vand.u32 %v4922, 4294901760
      %v5765 = vsub.f32 %v4922, %v5764
      %5766 = vmatmul.mubr.f32.gmra.mrb[0].mxu0 %v5765
      %v5767 = vpop.f32.mrb[0].mxu0
      %v5768 = vadd.f32 %v5500, %v5767
      %v5769 = vpop.f32.mrb[0].mxu0
      %5770 = vmatprep.mubr.f32.mxu0 0.0
      %v5771 = vand.u32 %v4925, 4294901760
      %v5772 = vsub.f32 %v4925, %v5771
      %5773 = vmatmul.mubr.f32.gmra.mrb[0].mxu0 %v5772
      %v5774 = vpop.f32.mrb[0].mxu0
      %v5775 = vadd.f32 %v5506, %v5774
      %v5776 = vpop.f32.mrb[0].mxu0
      %5777 = vmatprep.mubr.f32.mxu0 0.0
      %v5778 = vand.u32 %v4928, 4294901760
      %v5779 = vsub.f32 %v4928, %v5778
      %5780 = vmatmul.mubr.f32.gmra.mrb[0].mxu0 %v5779
      %v5781 = vpop.f32.mrb[0].mxu0
      %v5782 = vadd.f32 %v5512, %v5781
      %v5783 = vpop.f32.mrb[0].mxu0
      %5784 = vmatprep.mubr.f32.mxu0 0.0
      %v5785 = vand.u32 %v4931, 4294901760
      %v5786 = vsub.f32 %v4931, %v5785
      %5787 = vmatmul.mubr.f32.gmra.mrb[0].mxu0 %v5786
      %v5788 = vpop.f32.mrb[0].mxu0
      %v5789 = vadd.f32 %v5518, %v5788
      %v5790 = vpop.f32.mrb[0].mxu0
      %5791 = vmatprep.mubr.f32.mxu0 0.0
      %v5792 = vand.u32 %v4934, 4294901760
      %v5793 = vsub.f32 %v4934, %v5792
      %5794 = vmatmul.mubr.f32.gmra.mrb[0].mxu0 %v5793
      %v5795 = vpop.f32.mrb[0].mxu0
      %v5796 = vadd.f32 %v5524, %v5795
      %v5797 = vpop.f32.mrb[0].mxu0
      %5798 = vmatprep.mubr.f32.mxu0 0.0
      %v5799 = vand.u32 %v4937, 4294901760
      %v5800 = vsub.f32 %v4937, %v5799
      %5801 = vmatmul.mubr.f32.gmra.mrb[0].mxu0 %v5800
      %v5802 = vpop.f32.mrb[0].mxu0
      %v5803 = vadd.f32 %v5530, %v5802
      %v5804 = vpop.f32.mrb[0].mxu0
      %5805 = vmatprep.mubr.f32.mxu0 0.0
      %v5806 = vand.u32 %v4940, 4294901760
      %v5807 = vsub.f32 %v4940, %v5806
      %5808 = vmatmul.mubr.f32.gmra.mrb[0].mxu0 %v5807
      %v5809 = vpop.f32.mrb[0].mxu0
      %v5810 = vadd.f32 %v5536, %v5809
      %v5811 = vpop.f32.mrb[0].mxu0
      %5812 = vmatprep.mubr.f32.mxu0 0.0
      %v5813 = vand.u32 %v4943, 4294901760
      %v5814 = vsub.f32 %v4943, %v5813
      %5815 = vmatmul.mubr.f32.gmra.mrb[0].mxu0 %v5814
      %v5816 = vpop.f32.mrb[0].mxu0
      %v5817 = vadd.f32 %v5542, %v5816
      %v5818 = vpop.f32.mrb[0].mxu0
      %5819 = vmatprep.mubr.f32.mxu0 0.0
      %v5820 = vand.u32 %v4946, 4294901760
      %v5821 = vsub.f32 %v4946, %v5820
      %5822 = vmatmul.mubr.f32.gmra.mrb[0].mxu0 %v5821
      %v5823 = vpop.f32.mrb[0].mxu0
      %v5824 = vadd.f32 %v5548, %v5823
      %v5825 = vpop.f32.mrb[0].mxu0
      %5826 = vmatprep.mubr.f32.mxu0 0.0
      %v5827 = vand.u32 %v4949, 4294901760
      %v5828 = vsub.f32 %v4949, %v5827
      %5829 = vmatmul.mubr.f32.gmra.mrb[0].mxu0 %v5828
      %v5830 = vpop.f32.mrb[0].mxu0
      %v5831 = vadd.f32 %v5554, %v5830
      %v5832 = vpop.f32.mrb[0].mxu0
      %5833 = vmatprep.mubr.f32.mxu0 0.0
      %v5834 = vand.u32 %v4952, 4294901760
      %v5835 = vsub.f32 %v4952, %v5834
      %5836 = vmatmul.mubr.f32.gmra.mrb[0].mxu0 %v5835
      %v5837 = vpop.f32.mrb[0].mxu0
      %v5838 = vadd.f32 %v5560, %v5837
      %v5839 = vpop.f32.mrb[0].mxu0
      %5840 = vmatprep.mubr.f32.mxu0 0.0
      %v5841 = vand.u32 %v4955, 4294901760
      %v5842 = vsub.f32 %v4955, %v5841
      %5843 = vmatmul.mubr.f32.gmra.mrb[0].mxu0 %v5842
      %v5844 = vpop.f32.mrb[0].mxu0
      %v5845 = vadd.f32 %v5566, %v5844
      %v5846 = vpop.f32.mrb[0].mxu0
      %5847 = vmatprep.mubr.f32.mxu0 0.0
      %v5848 = vand.u32 %v4958, 4294901760
      %v5849 = vsub.f32 %v4958, %v5848
      %5850 = vmatmul.mubr.f32.gmra.mrb[0].mxu0 %v5849
      %v5851 = vpop.f32.mrb[0].mxu0
      %v5852 = vadd.f32 %v5572, %v5851
      %v5853 = vpop.f32.mrb[0].mxu0
      %5854 = vmatprep.mubr.f32.mxu0 0.0
      %v5855 = vand.u32 %v4961, 4294901760
      %v5856 = vsub.f32 %v4961, %v5855
      %5857 = vmatmul.mubr.f32.gmra.mrb[0].mxu0 %v5856
      %v5858 = vpop.f32.mrb[0].mxu0
      %v5859 = vadd.f32 %v5578, %v5858
      %v5860 = vpop.f32.mrb[0].mxu0
      %5861 = vmatprep.mubr.f32.mxu0 0.0
      %v5862 = vand.u32 %v4964, 4294901760
      %v5863 = vsub.f32 %v4964, %v5862
      %5864 = vmatmul.mubr.f32.gmra.mrb[0].mxu0 %v5863
      %v5865 = vpop.f32.mrb[0].mxu0
      %v5866 = vadd.f32 %v5584, %v5865
      %v5867 = vpop.f32.mrb[0].mxu0
      %5868 = vmatprep.mubr.f32.mxu0 0.0
      %v5869 = vand.u32 %v4967, 4294901760
      %v5870 = vsub.f32 %v4967, %v5869
      %5871 = vmatmul.mubr.f32.gmra.mrb[0].mxu0 %v5870
      %v5872 = vpop.f32.mrb[0].mxu0
      %v5873 = vadd.f32 %v5590, %v5872
      %v5874 = vpop.f32.mrb[0].mxu0
      %5875 = vmatprep.mubr.f32.mxu0 0.0
      %v5876 = vand.u32 %v4970, 4294901760
      %v5877 = vsub.f32 %v4970, %v5876
      %5878 = vmatmul.mubr.f32.gmra.mrb[0].mxu0 %v5877
      %v5879 = vpop.f32.mrb[0].mxu0
      %v5880 = vadd.f32 %v5596, %v5879
      %v5881 = vpop.f32.mrb[0].mxu0
      %5882 = vmatprep.mubr.f32.mxu0 0.0
      %v5883 = vand.u32 %v4973, 4294901760
      %v5884 = vsub.f32 %v4973, %v5883
      %5885 = vmatmul.mubr.f32.gmra.mrb[0].mxu0 %v5884
      %v5886 = vpop.f32.mrb[0].mxu0
      %v5887 = vadd.f32 %v5602, %v5886
      %v5888 = vpop.f32.mrb[0].mxu0
      %5889 = vmatprep.mubr.f32.mxu0 0.0
      %v5890 = vand.u32 %v4976, 4294901760
      %v5891 = vsub.f32 %v4976, %v5890
      %5892 = vmatmul.mubr.f32.gmra.mrb[0].mxu0 %v5891
      %v5893 = vpop.f32.mrb[0].mxu0
      %v5894 = vadd.f32 %v5608, %v5893
      %v5895 = vpop.f32.mrb[0].mxu0
      %5896 = vmatprep.mubr.f32.mxu0 0.0
      %v5897 = vand.u32 %v4979, 4294901760
      %v5898 = vsub.f32 %v4979, %v5897
      %5899 = vmatmul.mubr.f32.gmra.mrb[0].mxu0 %v5898
      %v5900 = vpop.f32.mrb[0].mxu0
      %v5901 = vadd.f32 %v5614, %v5900
      %v5902 = vpop.f32.mrb[0].mxu0
      %5903 = vmatprep.mubr.f32.mxu0 0.0
      %v5904 = vand.u32 %v4982, 4294901760
      %v5905 = vsub.f32 %v4982, %v5904
      %5906 = vmatmul.mubr.f32.gmra.mrb[0].mxu0 %v5905
      %v5907 = vpop.f32.mrb[0].mxu0
      %v5908 = vadd.f32 %v5620, %v5907
      %v5909 = vpop.f32.mrb[0].mxu0
      %5910 = vmatprep.mubr.f32.mxu0 0.0
      %v5911 = vand.u32 %v4985, 4294901760
      %v5912 = vsub.f32 %v4985, %v5911
      %5913 = vmatmul.mubr.f32.gmra.mrb[0].mxu0 %v5912
      %v5914 = vpop.f32.mrb[0].mxu0
      %v5915 = vadd.f32 %v5626, %v5914
      %v5916 = vpop.f32.mrb[0].mxu0
      %5917 = vmatprep.mubr.f32.mxu0 0.0
      %v5918 = vand.u32 %v4988, 4294901760
      %v5919 = vsub.f32 %v4988, %v5918
      %5920 = vmatmul.mubr.f32.gmra.mrb[0].mxu0 %v5919
      %v5921 = vpop.f32.mrb[0].mxu0
      %v5922 = vadd.f32 %v5632, %v5921
      %v5923 = vpop.f32.mrb[0].mxu0
      %5924 = vmatprep.mubr.f32.mxu0 0.0
      %v5925 = vand.u32 %v4991, 4294901760
      %v5926 = vsub.f32 %v4991, %v5925
      %5927 = vmatmul.mubr.f32.gmra.mrb[0].mxu0 %v5926
      %v5928 = vpop.f32.mrb[0].mxu0
      %v5929 = vadd.f32 %v5638, %v5928
      %v5930 = vpop.f32.mrb[0].mxu0
      %5931 = vmatprep.mubr.f32.mxu0 0.0
      %v5932 = vand.u32 %v4994, 4294901760
      %v5933 = vsub.f32 %v4994, %v5932
      %5934 = vmatmul.mubr.f32.gmra.mrb[0].mxu0 %v5933
      %v5935 = vpop.f32.mrb[0].mxu0
      %v5936 = vadd.f32 %v5644, %v5935
      %v5937 = vpop.f32.mrb[0].mxu0
      %5938 = vmatprep.mubr.f32.mxu0 0.0
      %v5939 = vand.u32 %v4997, 4294901760
      %v5940 = vsub.f32 %v4997, %v5939
      %5941 = vmatmul.mubr.f32.gmra.mrb[0].mxu0 %v5940
      %v5942 = vpop.f32.mrb[0].mxu0
      %v5943 = vadd.f32 %v5650, %v5942
      %v5944 = vpop.f32.mrb[0].mxu0
      %5945 = vdwg.mxu0
      %5946 = vmatprep.subr.mxu0 0.0
      %v5947 = vand.u32 %v4837, 4294901760
      %5948 = vmatpush1.msra.mxu0 %v5947
      %5949 = vmatprep.subr.mxu0 0.0
      %v5950 = vand.u32 %v4838, 4294901760
      %5951 = vmatpush1.msra.mxu0 %v5950
      %5952 = vmatprep.subr.mxu0 0.0
      %5953 = vmatpush1.msra.mxu0 0.0
      %5954 = vmatprep.subr.mxu0 0.0
      %5955 = vmatpush1.msra.mxu0 0.0
      %5956 = vmatprep.subr.mxu0 0.0
      %5957 = vmatpush1.msra.mxu0 0.0
      %5958 = vmatprep.subr.mxu0 0.0
      %5959 = vmatpush1.msra.mxu0 0.0
      %5960 = vmatprep.subr.mxu0 0.0
      %5961 = vmatpush1.msra.mxu0 0.0
      %5962 = vmatprep.subr.mxu0 0.0
      %5963 = vmatpush1.msra.mxu0 0.0
      %5964 = vmatprep.subr.mxu0 0.0
      %5965 = vmatpush1.msra.mxu0 0.0
      %5966 = vmatprep.subr.mxu0 0.0
      %5967 = vmatpush1.msra.mxu0 0.0
      %5968 = vmatprep.subr.mxu0 0.0
      %5969 = vmatpush1.msra.mxu0 0.0
      %5970 = vmatprep.subr.mxu0 0.0
      %5971 = vmatpush1.msra.mxu0 0.0
      %5972 = vmatprep.subr.mxu0 0.0
      %5973 = vmatpush1.msra.mxu0 0.0
      %5974 = vmatprep.subr.mxu0 0.0
      %5975 = vmatpush1.msra.mxu0 0.0
      %5976 = vmatprep.subr.mxu0 0.0
      %5977 = vmatpush1.msra.mxu0 0.0
      %5978 = vmatprep.subr.mxu0 0.0
      %5979 = vmatpush1.msra.mxu0 0.0
      %5980 = vmatprep.subr.mxu0 0.0
      %5981 = vmatpush1.msra.mxu0 0.0
      %5982 = vmatprep.subr.mxu0 0.0
      %5983 = vmatpush1.msra.mxu0 0.0
      %5984 = vmatprep.subr.mxu0 0.0
      %5985 = vmatpush1.msra.mxu0 0.0
      %5986 = vmatprep.subr.mxu0 0.0
      %5987 = vmatpush1.msra.mxu0 0.0
      %5988 = vmatprep.subr.mxu0 0.0
      %5989 = vmatpush1.msra.mxu0 0.0
      %5990 = vmatprep.subr.mxu0 0.0
      %5991 = vmatpush1.msra.mxu0 0.0
      %5992 = vmatprep.subr.mxu0 0.0
      %5993 = vmatpush1.msra.mxu0 0.0
      %5994 = vmatprep.subr.mxu0 0.0
      %5995 = vmatpush1.msra.mxu0 0.0
      %5996 = vmatprep.subr.mxu0 0.0
      %5997 = vmatpush1.msra.mxu0 0.0
      %5998 = vmatprep.subr.mxu0 0.0
      %5999 = vmatpush1.msra.mxu0 0.0
      %6000 = vmatprep.subr.mxu0 0.0
      %6001 = vmatpush1.msra.mxu0 0.0
      %6002 = vmatprep.subr.mxu0 0.0
      %6003 = vmatpush1.msra.mxu0 0.0
      %6004 = vmatprep.subr.mxu0 0.0
      %6005 = vmatpush1.msra.mxu0 0.0
      %6006 = vmatprep.subr.mxu0 0.0
      %6007 = vmatpush1.msra.mxu0 0.0
      %6008 = vmatprep.subr.mxu0 0.0
      %6009 = vmatpush1.msra.mxu0 0.0
      %6010 = vmatprep.subr.mxu0 0.0
      %6011 = vmatpush1.msra.mxu0 0.0
      %6012 = vmatprep.mubr.f32.mxu0 0.0
      %v6013 = vand.u32 %v4904, 4294901760
      %v6014 = vsub.f32 %v4904, %v6013
      %v6015 = vand.u32 %v6014, 4294901760
      %6016 = vmatmul.mubr.f32.gmra.mrb[0].mxu0 %v6015
      %v6017 = vpop.f32.mrb[0].mxu0
      %v6018 = vadd.f32 %v5726, %v6017
      %v6019 = vpop.f32.mrb[0].mxu0
      %6020 = vmatprep.mubr.f32.mxu0 0.0
      %v6021 = vand.u32 %v4907, 4294901760
      %v6022 = vsub.f32 %v4907, %v6021
      %v6023 = vand.u32 %v6022, 4294901760
      %6024 = vmatmul.mubr.f32.gmra.mrb[0].mxu0 %v6023
      %v6025 = vpop.f32.mrb[0].mxu0
      %v6026 = vadd.f32 %v5733, %v6025
      %v6027 = vpop.f32.mrb[0].mxu0
      %6028 = vmatprep.mubr.f32.mxu0 0.0
      %v6029 = vand.u32 %v4910, 4294901760
      %v6030 = vsub.f32 %v4910, %v6029
      %v6031 = vand.u32 %v6030, 4294901760
      %6032 = vmatmul.mubr.f32.gmra.mrb[0].mxu0 %v6031
      %v6033 = vpop.f32.mrb[0].mxu0
      %v6034 = vadd.f32 %v5740, %v6033
      %v6035 = vpop.f32.mrb[0].mxu0
      %6036 = vmatprep.mubr.f32.mxu0 0.0
      %v6037 = vand.u32 %v4913, 4294901760
      %v6038 = vsub.f32 %v4913, %v6037
      %v6039 = vand.u32 %v6038, 4294901760
      %6040 = vmatmul.mubr.f32.gmra.mrb[0].mxu0 %v6039
      %v6041 = vpop.f32.mrb[0].mxu0
      %v6042 = vadd.f32 %v5747, %v6041
      %v6043 = vpop.f32.mrb[0].mxu0
      %6044 = vmatprep.mubr.f32.mxu0 0.0
      %v6045 = vand.u32 %v4916, 4294901760
      %v6046 = vsub.f32 %v4916, %v6045
      %v6047 = vand.u32 %v6046, 4294901760
      %6048 = vmatmul.mubr.f32.gmra.mrb[0].mxu0 %v6047
      %v6049 = vpop.f32.mrb[0].mxu0
      %v6050 = vadd.f32 %v5754, %v6049
      %v6051 = vpop.f32.mrb[0].mxu0
      %6052 = vmatprep.mubr.f32.mxu0 0.0
      %v6053 = vand.u32 %v4919, 4294901760
      %v6054 = vsub.f32 %v4919, %v6053
      %v6055 = vand.u32 %v6054, 4294901760
      %6056 = vmatmul.mubr.f32.gmra.mrb[0].mxu0 %v6055
      %v6057 = vpop.f32.mrb[0].mxu0
      %v6058 = vadd.f32 %v5761, %v6057
      %v6059 = vpop.f32.mrb[0].mxu0
      %6060 = vmatprep.mubr.f32.mxu0 0.0
      %v6061 = vand.u32 %v4922, 4294901760
      %v6062 = vsub.f32 %v4922, %v6061
      %v6063 = vand.u32 %v6062, 4294901760
      %6064 = vmatmul.mubr.f32.gmra.mrb[0].mxu0 %v6063
      %v6065 = vpop.f32.mrb[0].mxu0
      %v6066 = vadd.f32 %v5768, %v6065
      %v6067 = vpop.f32.mrb[0].mxu0
      %6068 = vmatprep.mubr.f32.mxu0 0.0
      %v6069 = vand.u32 %v4925, 4294901760
      %v6070 = vsub.f32 %v4925, %v6069
      %v6071 = vand.u32 %v6070, 4294901760
      %6072 = vmatmul.mubr.f32.gmra.mrb[0].mxu0 %v6071
      %v6073 = vpop.f32.mrb[0].mxu0
      %v6074 = vadd.f32 %v5775, %v6073
      %v6075 = vpop.f32.mrb[0].mxu0
      %6076 = vmatprep.mubr.f32.mxu0 0.0
      %v6077 = vand.u32 %v4928, 4294901760
      %v6078 = vsub.f32 %v4928, %v6077
      %v6079 = vand.u32 %v6078, 4294901760
      %6080 = vmatmul.mubr.f32.gmra.mrb[0].mxu0 %v6079
      %v6081 = vpop.f32.mrb[0].mxu0
      %v6082 = vadd.f32 %v5782, %v6081
      %v6083 = vpop.f32.mrb[0].mxu0
      %6084 = vmatprep.mubr.f32.mxu0 0.0
      %v6085 = vand.u32 %v4931, 4294901760
      %v6086 = vsub.f32 %v4931, %v6085
      %v6087 = vand.u32 %v6086, 4294901760
      %6088 = vmatmul.mubr.f32.gmra.mrb[0].mxu0 %v6087
      %v6089 = vpop.f32.mrb[0].mxu0
      %v6090 = vadd.f32 %v5789, %v6089
      %v6091 = vpop.f32.mrb[0].mxu0
      %6092 = vmatprep.mubr.f32.mxu0 0.0
      %v6093 = vand.u32 %v4934, 4294901760
      %v6094 = vsub.f32 %v4934, %v6093
      %v6095 = vand.u32 %v6094, 4294901760
      %6096 = vmatmul.mubr.f32.gmra.mrb[0].mxu0 %v6095
      %v6097 = vpop.f32.mrb[0].mxu0
      %v6098 = vadd.f32 %v5796, %v6097
      %v6099 = vpop.f32.mrb[0].mxu0
      %6100 = vmatprep.mubr.f32.mxu0 0.0
      %v6101 = vand.u32 %v4937, 4294901760
      %v6102 = vsub.f32 %v4937, %v6101
      %v6103 = vand.u32 %v6102, 4294901760
      %6104 = vmatmul.mubr.f32.gmra.mrb[0].mxu0 %v6103
      %v6105 = vpop.f32.mrb[0].mxu0
      %v6106 = vadd.f32 %v5803, %v6105
      %v6107 = vpop.f32.mrb[0].mxu0
      %6108 = vmatprep.mubr.f32.mxu0 0.0
      %v6109 = vand.u32 %v4940, 4294901760
      %v6110 = vsub.f32 %v4940, %v6109
      %v6111 = vand.u32 %v6110, 4294901760
      %6112 = vmatmul.mubr.f32.gmra.mrb[0].mxu0 %v6111
      %v6113 = vpop.f32.mrb[0].mxu0
      %v6114 = vadd.f32 %v5810, %v6113
      %v6115 = vpop.f32.mrb[0].mxu0
      %6116 = vmatprep.mubr.f32.mxu0 0.0
      %v6117 = vand.u32 %v4943, 4294901760
      %v6118 = vsub.f32 %v4943, %v6117
      %v6119 = vand.u32 %v6118, 4294901760
      %6120 = vmatmul.mubr.f32.gmra.mrb[0].mxu0 %v6119
      %v6121 = vpop.f32.mrb[0].mxu0
      %v6122 = vadd.f32 %v5817, %v6121
      %v6123 = vpop.f32.mrb[0].mxu0
      %6124 = vmatprep.mubr.f32.mxu0 0.0
      %v6125 = vand.u32 %v4946, 4294901760
      %v6126 = vsub.f32 %v4946, %v6125
      %v6127 = vand.u32 %v6126, 4294901760
      %6128 = vmatmul.mubr.f32.gmra.mrb[0].mxu0 %v6127
      %v6129 = vpop.f32.mrb[0].mxu0
      %v6130 = vadd.f32 %v5824, %v6129
      %v6131 = vpop.f32.mrb[0].mxu0
      %6132 = vmatprep.mubr.f32.mxu0 0.0
      %v6133 = vand.u32 %v4949, 4294901760
      %v6134 = vsub.f32 %v4949, %v6133
      %v6135 = vand.u32 %v6134, 4294901760
      %6136 = vmatmul.mubr.f32.gmra.mrb[0].mxu0 %v6135
      %v6137 = vpop.f32.mrb[0].mxu0
      %v6138 = vadd.f32 %v5831, %v6137
      %v6139 = vpop.f32.mrb[0].mxu0
      %6140 = vmatprep.mubr.f32.mxu0 0.0
      %v6141 = vand.u32 %v4952, 4294901760
      %v6142 = vsub.f32 %v4952, %v6141
      %v6143 = vand.u32 %v6142, 4294901760
      %6144 = vmatmul.mubr.f32.gmra.mrb[0].mxu0 %v6143
      %v6145 = vpop.f32.mrb[0].mxu0
      %v6146 = vadd.f32 %v5838, %v6145
      %v6147 = vpop.f32.mrb[0].mxu0
      %6148 = vmatprep.mubr.f32.mxu0 0.0
      %v6149 = vand.u32 %v4955, 4294901760
      %v6150 = vsub.f32 %v4955, %v6149
      %v6151 = vand.u32 %v6150, 4294901760
      %6152 = vmatmul.mubr.f32.gmra.mrb[0].mxu0 %v6151
      %v6153 = vpop.f32.mrb[0].mxu0
      %v6154 = vadd.f32 %v5845, %v6153
      %v6155 = vpop.f32.mrb[0].mxu0
      %6156 = vmatprep.mubr.f32.mxu0 0.0
      %v6157 = vand.u32 %v4958, 4294901760
      %v6158 = vsub.f32 %v4958, %v6157
      %v6159 = vand.u32 %v6158, 4294901760
      %6160 = vmatmul.mubr.f32.gmra.mrb[0].mxu0 %v6159
      %v6161 = vpop.f32.mrb[0].mxu0
      %v6162 = vadd.f32 %v5852, %v6161
      %v6163 = vpop.f32.mrb[0].mxu0
      %6164 = vmatprep.mubr.f32.mxu0 0.0
      %v6165 = vand.u32 %v4961, 4294901760
      %v6166 = vsub.f32 %v4961, %v6165
      %v6167 = vand.u32 %v6166, 4294901760
      %6168 = vmatmul.mubr.f32.gmra.mrb[0].mxu0 %v6167
      %v6169 = vpop.f32.mrb[0].mxu0
      %v6170 = vadd.f32 %v5859, %v6169
      %v6171 = vpop.f32.mrb[0].mxu0
      %6172 = vmatprep.mubr.f32.mxu0 0.0
      %v6173 = vand.u32 %v4964, 4294901760
      %v6174 = vsub.f32 %v4964, %v6173
      %v6175 = vand.u32 %v6174, 4294901760
      %6176 = vmatmul.mubr.f32.gmra.mrb[0].mxu0 %v6175
      %v6177 = vpop.f32.mrb[0].mxu0
      %v6178 = vadd.f32 %v5866, %v6177
      %v6179 = vpop.f32.mrb[0].mxu0
      %6180 = vmatprep.mubr.f32.mxu0 0.0
      %v6181 = vand.u32 %v4967, 4294901760
      %v6182 = vsub.f32 %v4967, %v6181
      %v6183 = vand.u32 %v6182, 4294901760
      %6184 = vmatmul.mubr.f32.gmra.mrb[0].mxu0 %v6183
      %v6185 = vpop.f32.mrb[0].mxu0
      %v6186 = vadd.f32 %v5873, %v6185
      %v6187 = vpop.f32.mrb[0].mxu0
      %6188 = vmatprep.mubr.f32.mxu0 0.0
      %v6189 = vand.u32 %v4970, 4294901760
      %v6190 = vsub.f32 %v4970, %v6189
      %v6191 = vand.u32 %v6190, 4294901760
      %6192 = vmatmul.mubr.f32.gmra.mrb[0].mxu0 %v6191
      %v6193 = vpop.f32.mrb[0].mxu0
      %v6194 = vadd.f32 %v5880, %v6193
      %v6195 = vpop.f32.mrb[0].mxu0
      %6196 = vmatprep.mubr.f32.mxu0 0.0
      %v6197 = vand.u32 %v4973, 4294901760
      %v6198 = vsub.f32 %v4973, %v6197
      %v6199 = vand.u32 %v6198, 4294901760
      %6200 = vmatmul.mubr.f32.gmra.mrb[0].mxu0 %v6199
      %v6201 = vpop.f32.mrb[0].mxu0
      %v6202 = vadd.f32 %v5887, %v6201
      %v6203 = vpop.f32.mrb[0].mxu0
      %6204 = vmatprep.mubr.f32.mxu0 0.0
      %v6205 = vand.u32 %v4976, 4294901760
      %v6206 = vsub.f32 %v4976, %v6205
      %v6207 = vand.u32 %v6206, 4294901760
      %6208 = vmatmul.mubr.f32.gmra.mrb[0].mxu0 %v6207
      %v6209 = vpop.f32.mrb[0].mxu0
      %v6210 = vadd.f32 %v5894, %v6209
      %v6211 = vpop.f32.mrb[0].mxu0
      %6212 = vmatprep.mubr.f32.mxu0 0.0
      %v6213 = vand.u32 %v4979, 4294901760
      %v6214 = vsub.f32 %v4979, %v6213
      %v6215 = vand.u32 %v6214, 4294901760
      %6216 = vmatmul.mubr.f32.gmra.mrb[0].mxu0 %v6215
      %v6217 = vpop.f32.mrb[0].mxu0
      %v6218 = vadd.f32 %v5901, %v6217
      %v6219 = vpop.f32.mrb[0].mxu0
      %6220 = vmatprep.mubr.f32.mxu0 0.0
      %v6221 = vand.u32 %v4982, 4294901760
      %v6222 = vsub.f32 %v4982, %v6221
      %v6223 = vand.u32 %v6222, 4294901760
      %6224 = vmatmul.mubr.f32.gmra.mrb[0].mxu0 %v6223
      %v6225 = vpop.f32.mrb[0].mxu0
      %v6226 = vadd.f32 %v5908, %v6225
      %v6227 = vpop.f32.mrb[0].mxu0
      %6228 = vmatprep.mubr.f32.mxu0 0.0
      %v6229 = vand.u32 %v4985, 4294901760
      %v6230 = vsub.f32 %v4985, %v6229
      %v6231 = vand.u32 %v6230, 4294901760
      %6232 = vmatmul.mubr.f32.gmra.mrb[0].mxu0 %v6231
      %v6233 = vpop.f32.mrb[0].mxu0
      %v6234 = vadd.f32 %v5915, %v6233
      %v6235 = vpop.f32.mrb[0].mxu0
      %6236 = vmatprep.mubr.f32.mxu0 0.0
      %v6237 = vand.u32 %v4988, 4294901760
      %v6238 = vsub.f32 %v4988, %v6237
      %v6239 = vand.u32 %v6238, 4294901760
      %6240 = vmatmul.mubr.f32.gmra.mrb[0].mxu0 %v6239
      %v6241 = vpop.f32.mrb[0].mxu0
      %v6242 = vadd.f32 %v5922, %v6241
      %v6243 = vpop.f32.mrb[0].mxu0
      %6244 = vmatprep.mubr.f32.mxu0 0.0
      %v6245 = vand.u32 %v4991, 4294901760
      %v6246 = vsub.f32 %v4991, %v6245
      %v6247 = vand.u32 %v6246, 4294901760
      %6248 = vmatmul.mubr.f32.gmra.mrb[0].mxu0 %v6247
      %v6249 = vpop.f32.mrb[0].mxu0
      %v6250 = vadd.f32 %v5929, %v6249
      %v6251 = vpop.f32.mrb[0].mxu0
      %6252 = vmatprep.mubr.f32.mxu0 0.0
      %v6253 = vand.u32 %v4994, 4294901760
      %v6254 = vsub.f32 %v4994, %v6253
      %v6255 = vand.u32 %v6254, 4294901760
      %6256 = vmatmul.mubr.f32.gmra.mrb[0].mxu0 %v6255
      %v6257 = vpop.f32.mrb[0].mxu0
      %v6258 = vadd.f32 %v5936, %v6257
      %v6259 = vpop.f32.mrb[0].mxu0
      %6260 = vmatprep.mubr.f32.mxu0 0.0
      %v6261 = vand.u32 %v4997, 4294901760
      %v6262 = vsub.f32 %v4997, %v6261
      %v6263 = vand.u32 %v6262, 4294901760
      %6264 = vmatmul.mubr.f32.gmra.mrb[0].mxu0 %v6263
      %v6265 = vpop.f32.mrb[0].mxu0
      %v6266 = vadd.f32 %v5943, %v6265
      %v6267 = vpop.f32.mrb[0].mxu0
      %6268 = vdwg.mxu0
      %6269 = vmatprep.subr.mxu0 0.0
      %v6270 = vand.u32 %v4837, 4294901760
      %v6271 = vsub.f32 %v4837, %v6270
      %v6272 = vand.u32 %v6271, 4294901760
      %6273 = vmatpush1.msra.mxu0 %v6272
      %6274 = vmatprep.subr.mxu0 0.0
      %v6275 = vand.u32 %v4838, 4294901760
      %v6276 = vsub.f32 %v4838, %v6275
      %v6277 = vand.u32 %v6276, 4294901760
      %6278 = vmatpush1.msra.mxu0 %v6277
      %6279 = vmatprep.subr.mxu0 0.0
      %6280 = vmatpush1.msra.mxu0 0.0
      %6281 = vmatprep.subr.mxu0 0.0
      %6282 = vmatpush1.msra.mxu0 0.0
      %6283 = vmatprep.subr.mxu0 0.0
      %6284 = vmatpush1.msra.mxu0 0.0
      %6285 = vmatprep.subr.mxu0 0.0
      %6286 = vmatpush1.msra.mxu0 0.0
      %6287 = vmatprep.subr.mxu0 0.0
      %6288 = vmatpush1.msra.mxu0 0.0
      %6289 = vmatprep.subr.mxu0 0.0
      %6290 = vmatpush1.msra.mxu0 0.0
      %6291 = vmatprep.subr.mxu0 0.0
      %6292 = vmatpush1.msra.mxu0 0.0
      %6293 = vmatprep.subr.mxu0 0.0
      %6294 = vmatpush1.msra.mxu0 0.0
      %6295 = vmatprep.subr.mxu0 0.0
      %6296 = vmatpush1.msra.mxu0 0.0
      %6297 = vmatprep.subr.mxu0 0.0
      %6298 = vmatpush1.msra.mxu0 0.0
      %6299 = vmatprep.subr.mxu0 0.0
      %6300 = vmatpush1.msra.mxu0 0.0
      %6301 = vmatprep.subr.mxu0 0.0
      %6302 = vmatpush1.msra.mxu0 0.0
      %6303 = vmatprep.subr.mxu0 0.0
      %6304 = vmatpush1.msra.mxu0 0.0
      %6305 = vmatprep.subr.mxu0 0.0
      %6306 = vmatpush1.msra.mxu0 0.0
      %6307 = vmatprep.subr.mxu0 0.0
      %6308 = vmatpush1.msra.mxu0 0.0
      %6309 = vmatprep.subr.mxu0 0.0
      %6310 = vmatpush1.msra.mxu0 0.0
      %6311 = vmatprep.subr.mxu0 0.0
      %6312 = vmatpush1.msra.mxu0 0.0
      %6313 = vmatprep.subr.mxu0 0.0
      %6314 = vmatpush1.msra.mxu0 0.0
      %6315 = vmatprep.subr.mxu0 0.0
      %6316 = vmatpush1.msra.mxu0 0.0
      %6317 = vmatprep.subr.mxu0 0.0
      %6318 = vmatpush1.msra.mxu0 0.0
      %6319 = vmatprep.subr.mxu0 0.0
      %6320 = vmatpush1.msra.mxu0 0.0
      %6321 = vmatprep.subr.mxu0 0.0
      %6322 = vmatpush1.msra.mxu0 0.0
      %6323 = vmatprep.subr.mxu0 0.0
      %6324 = vmatpush1.msra.mxu0 0.0
      %6325 = vmatprep.subr.mxu0 0.0
      %6326 = vmatpush1.msra.mxu0 0.0
      %6327 = vmatprep.subr.mxu0 0.0
      %6328 = vmatpush1.msra.mxu0 0.0
      %6329 = vmatprep.subr.mxu0 0.0
      %6330 = vmatpush1.msra.mxu0 0.0
      %6331 = vmatprep.subr.mxu0 0.0
      %6332 = vmatpush1.msra.mxu0 0.0
      %6333 = vmatprep.subr.mxu0 0.0
      %6334 = vmatpush1.msra.mxu0 0.0
      %6335 = vmatprep.subr.mxu0 0.0
      %6336 = vmatpush1.msra.mxu0 0.0
      %6337 = vmatprep.subr.mxu0 0.0
      %6338 = vmatpush1.msra.mxu0 0.0
      %6339 = vmatprep.mubr.f32.mxu0 0.0
      %v6340 = vand.u32 %v4904, 4294901760
      %6341 = vmatmul.mubr.f32.gmra.mrb[0].mxu0 %v6340
      %v6342 = vpop.f32.mrb[0].mxu0
      %v6343 = vadd.f32 %v6018, %v6342
      %v6344 = vpop.f32.mrb[0].mxu0
      %6345 = vmatprep.mubr.f32.mxu0 0.0
      %v6346 = vand.u32 %v4907, 4294901760
      %6347 = vmatmul.mubr.f32.gmra.mrb[0].mxu0 %v6346
      %v6348 = vpop.f32.mrb[0].mxu0
      %v6349 = vadd.f32 %v6026, %v6348
      %v6350 = vpop.f32.mrb[0].mxu0
      %6351 = vmatprep.mubr.f32.mxu0 0.0
      %v6352 = vand.u32 %v4910, 4294901760
      %6353 = vmatmul.mubr.f32.gmra.mrb[0].mxu0 %v6352
      %v6354 = vpop.f32.mrb[0].mxu0
      %v6355 = vadd.f32 %v6034, %v6354
      %v6356 = vpop.f32.mrb[0].mxu0
      %6357 = vmatprep.mubr.f32.mxu0 0.0
      %v6358 = vand.u32 %v4913, 4294901760
      %6359 = vmatmul.mubr.f32.gmra.mrb[0].mxu0 %v6358
      %v6360 = vpop.f32.mrb[0].mxu0
      %v6361 = vadd.f32 %v6042, %v6360
      %v6362 = vpop.f32.mrb[0].mxu0
      %6363 = vmatprep.mubr.f32.mxu0 0.0
      %v6364 = vand.u32 %v4916, 4294901760
      %6365 = vmatmul.mubr.f32.gmra.mrb[0].mxu0 %v6364
      %v6366 = vpop.f32.mrb[0].mxu0
      %v6367 = vadd.f32 %v6050, %v6366
      %v6368 = vpop.f32.mrb[0].mxu0
      %6369 = vmatprep.mubr.f32.mxu0 0.0
      %v6370 = vand.u32 %v4919, 4294901760
      %6371 = vmatmul.mubr.f32.gmra.mrb[0].mxu0 %v6370
      %v6372 = vpop.f32.mrb[0].mxu0
      %v6373 = vadd.f32 %v6058, %v6372
      %v6374 = vpop.f32.mrb[0].mxu0
      %6375 = vmatprep.mubr.f32.mxu0 0.0
      %v6376 = vand.u32 %v4922, 4294901760
      %6377 = vmatmul.mubr.f32.gmra.mrb[0].mxu0 %v6376
      %v6378 = vpop.f32.mrb[0].mxu0
      %v6379 = vadd.f32 %v6066, %v6378
      %v6380 = vpop.f32.mrb[0].mxu0
      %6381 = vmatprep.mubr.f32.mxu0 0.0
      %v6382 = vand.u32 %v4925, 4294901760
      %6383 = vmatmul.mubr.f32.gmra.mrb[0].mxu0 %v6382
      %v6384 = vpop.f32.mrb[0].mxu0
      %v6385 = vadd.f32 %v6074, %v6384
      %v6386 = vpop.f32.mrb[0].mxu0
      %6387 = vmatprep.mubr.f32.mxu0 0.0
      %v6388 = vand.u32 %v4928, 4294901760
      %6389 = vmatmul.mubr.f32.gmra.mrb[0].mxu0 %v6388
      %v6390 = vpop.f32.mrb[0].mxu0
      %v6391 = vadd.f32 %v6082, %v6390
      %v6392 = vpop.f32.mrb[0].mxu0
      %6393 = vmatprep.mubr.f32.mxu0 0.0
      %v6394 = vand.u32 %v4931, 4294901760
      %6395 = vmatmul.mubr.f32.gmra.mrb[0].mxu0 %v6394
      %v6396 = vpop.f32.mrb[0].mxu0
      %v6397 = vadd.f32 %v6090, %v6396
      %v6398 = vpop.f32.mrb[0].mxu0
      %6399 = vmatprep.mubr.f32.mxu0 0.0
      %v6400 = vand.u32 %v4934, 4294901760
      %6401 = vmatmul.mubr.f32.gmra.mrb[0].mxu0 %v6400
      %v6402 = vpop.f32.mrb[0].mxu0
      %v6403 = vadd.f32 %v6098, %v6402
      %v6404 = vpop.f32.mrb[0].mxu0
      %6405 = vmatprep.mubr.f32.mxu0 0.0
      %v6406 = vand.u32 %v4937, 4294901760
      %6407 = vmatmul.mubr.f32.gmra.mrb[0].mxu0 %v6406
      %v6408 = vpop.f32.mrb[0].mxu0
      %v6409 = vadd.f32 %v6106, %v6408
      %v6410 = vpop.f32.mrb[0].mxu0
      %6411 = vmatprep.mubr.f32.mxu0 0.0
      %v6412 = vand.u32 %v4940, 4294901760
      %6413 = vmatmul.mubr.f32.gmra.mrb[0].mxu0 %v6412
      %v6414 = vpop.f32.mrb[0].mxu0
      %v6415 = vadd.f32 %v6114, %v6414
      %v6416 = vpop.f32.mrb[0].mxu0
      %6417 = vmatprep.mubr.f32.mxu0 0.0
      %v6418 = vand.u32 %v4943, 4294901760
      %6419 = vmatmul.mubr.f32.gmra.mrb[0].mxu0 %v6418
      %v6420 = vpop.f32.mrb[0].mxu0
      %v6421 = vadd.f32 %v6122, %v6420
      %v6422 = vpop.f32.mrb[0].mxu0
      %6423 = vmatprep.mubr.f32.mxu0 0.0
      %v6424 = vand.u32 %v4946, 4294901760
      %6425 = vmatmul.mubr.f32.gmra.mrb[0].mxu0 %v6424
      %v6426 = vpop.f32.mrb[0].mxu0
      %v6427 = vadd.f32 %v6130, %v6426
      %v6428 = vpop.f32.mrb[0].mxu0
      %6429 = vmatprep.mubr.f32.mxu0 0.0
      %v6430 = vand.u32 %v4949, 4294901760
      %6431 = vmatmul.mubr.f32.gmra.mrb[0].mxu0 %v6430
      %v6432 = vpop.f32.mrb[0].mxu0
      %v6433 = vadd.f32 %v6138, %v6432
      %v6434 = vpop.f32.mrb[0].mxu0
      %6435 = vmatprep.mubr.f32.mxu0 0.0
      %v6436 = vand.u32 %v4952, 4294901760
      %6437 = vmatmul.mubr.f32.gmra.mrb[0].mxu0 %v6436
      %v6438 = vpop.f32.mrb[0].mxu0
      %v6439 = vadd.f32 %v6146, %v6438
      %v6440 = vpop.f32.mrb[0].mxu0
      %6441 = vmatprep.mubr.f32.mxu0 0.0
      %v6442 = vand.u32 %v4955, 4294901760
      %6443 = vmatmul.mubr.f32.gmra.mrb[0].mxu0 %v6442
      %v6444 = vpop.f32.mrb[0].mxu0
      %v6445 = vadd.f32 %v6154, %v6444
      %v6446 = vpop.f32.mrb[0].mxu0
      %6447 = vmatprep.mubr.f32.mxu0 0.0
      %v6448 = vand.u32 %v4958, 4294901760
      %6449 = vmatmul.mubr.f32.gmra.mrb[0].mxu0 %v6448
      %v6450 = vpop.f32.mrb[0].mxu0
      %v6451 = vadd.f32 %v6162, %v6450
      %v6452 = vpop.f32.mrb[0].mxu0
      %6453 = vmatprep.mubr.f32.mxu0 0.0
      %v6454 = vand.u32 %v4961, 4294901760
      %6455 = vmatmul.mubr.f32.gmra.mrb[0].mxu0 %v6454
      %v6456 = vpop.f32.mrb[0].mxu0
      %v6457 = vadd.f32 %v6170, %v6456
      %v6458 = vpop.f32.mrb[0].mxu0
      %6459 = vmatprep.mubr.f32.mxu0 0.0
      %v6460 = vand.u32 %v4964, 4294901760
      %6461 = vmatmul.mubr.f32.gmra.mrb[0].mxu0 %v6460
      %v6462 = vpop.f32.mrb[0].mxu0
      %v6463 = vadd.f32 %v6178, %v6462
      %v6464 = vpop.f32.mrb[0].mxu0
      %6465 = vmatprep.mubr.f32.mxu0 0.0
      %v6466 = vand.u32 %v4967, 4294901760
      %6467 = vmatmul.mubr.f32.gmra.mrb[0].mxu0 %v6466
      %v6468 = vpop.f32.mrb[0].mxu0
      %v6469 = vadd.f32 %v6186, %v6468
      %v6470 = vpop.f32.mrb[0].mxu0
      %6471 = vmatprep.mubr.f32.mxu0 0.0
      %v6472 = vand.u32 %v4970, 4294901760
      %6473 = vmatmul.mubr.f32.gmra.mrb[0].mxu0 %v6472
      %v6474 = vpop.f32.mrb[0].mxu0
      %v6475 = vadd.f32 %v6194, %v6474
      %v6476 = vpop.f32.mrb[0].mxu0
      %6477 = vmatprep.mubr.f32.mxu0 0.0
      %v6478 = vand.u32 %v4973, 4294901760
      %6479 = vmatmul.mubr.f32.gmra.mrb[0].mxu0 %v6478
      %v6480 = vpop.f32.mrb[0].mxu0
      %v6481 = vadd.f32 %v6202, %v6480
      %v6482 = vpop.f32.mrb[0].mxu0
      %6483 = vmatprep.mubr.f32.mxu0 0.0
      %v6484 = vand.u32 %v4976, 4294901760
      %6485 = vmatmul.mubr.f32.gmra.mrb[0].mxu0 %v6484
      %v6486 = vpop.f32.mrb[0].mxu0
      %v6487 = vadd.f32 %v6210, %v6486
      %v6488 = vpop.f32.mrb[0].mxu0
      %6489 = vmatprep.mubr.f32.mxu0 0.0
      %v6490 = vand.u32 %v4979, 4294901760
      %6491 = vmatmul.mubr.f32.gmra.mrb[0].mxu0 %v6490
      %v6492 = vpop.f32.mrb[0].mxu0
      %v6493 = vadd.f32 %v6218, %v6492
      %v6494 = vpop.f32.mrb[0].mxu0
      %6495 = vmatprep.mubr.f32.mxu0 0.0
      %v6496 = vand.u32 %v4982, 4294901760
      %6497 = vmatmul.mubr.f32.gmra.mrb[0].mxu0 %v6496
      %v6498 = vpop.f32.mrb[0].mxu0
      %v6499 = vadd.f32 %v6226, %v6498
      %v6500 = vpop.f32.mrb[0].mxu0
      %6501 = vmatprep.mubr.f32.mxu0 0.0
      %v6502 = vand.u32 %v4985, 4294901760
      %6503 = vmatmul.mubr.f32.gmra.mrb[0].mxu0 %v6502
      %v6504 = vpop.f32.mrb[0].mxu0
      %v6505 = vadd.f32 %v6234, %v6504
      %v6506 = vpop.f32.mrb[0].mxu0
      %6507 = vmatprep.mubr.f32.mxu0 0.0
      %v6508 = vand.u32 %v4988, 4294901760
      %6509 = vmatmul.mubr.f32.gmra.mrb[0].mxu0 %v6508
      %v6510 = vpop.f32.mrb[0].mxu0
      %v6511 = vadd.f32 %v6242, %v6510
      %v6512 = vpop.f32.mrb[0].mxu0
      %6513 = vmatprep.mubr.f32.mxu0 0.0
      %v6514 = vand.u32 %v4991, 4294901760
      %6515 = vmatmul.mubr.f32.gmra.mrb[0].mxu0 %v6514
      %v6516 = vpop.f32.mrb[0].mxu0
      %v6517 = vadd.f32 %v6250, %v6516
      %v6518 = vpop.f32.mrb[0].mxu0
      %6519 = vmatprep.mubr.f32.mxu0 0.0
      %v6520 = vand.u32 %v4994, 4294901760
      %6521 = vmatmul.mubr.f32.gmra.mrb[0].mxu0 %v6520
      %v6522 = vpop.f32.mrb[0].mxu0
      %v6523 = vadd.f32 %v6258, %v6522
      %v6524 = vpop.f32.mrb[0].mxu0
      %6525 = vmatprep.mubr.f32.mxu0 0.0
      %v6526 = vand.u32 %v4997, 4294901760
      %6527 = vmatmul.mubr.f32.gmra.mrb[0].mxu0 %v6526
      %v6528 = vpop.f32.mrb[0].mxu0
      %v6529 = vadd.f32 %v6266, %v6528
      %v6530 = vpop.f32.mrb[0].mxu0
      %6531 = vdwg.mxu0
      %6532 = vmatprep.subr.mxu0 0.0
      %v6533 = vand.u32 %v4837, 4294901760
      %6534 = vmatpush1.msra.mxu0 %v6533
      %6535 = vmatprep.subr.mxu0 0.0
      %v6536 = vand.u32 %v4838, 4294901760
      %6537 = vmatpush1.msra.mxu0 %v6536
      %6538 = vmatprep.subr.mxu0 0.0
      %6539 = vmatpush1.msra.mxu0 0.0
      %6540 = vmatprep.subr.mxu0 0.0
      %6541 = vmatpush1.msra.mxu0 0.0
      %6542 = vmatprep.subr.mxu0 0.0
      %6543 = vmatpush1.msra.mxu0 0.0
      %6544 = vmatprep.subr.mxu0 0.0
      %6545 = vmatpush1.msra.mxu0 0.0
      %6546 = vmatprep.subr.mxu0 0.0
      %6547 = vmatpush1.msra.mxu0 0.0
      %6548 = vmatprep.subr.mxu0 0.0
      %6549 = vmatpush1.msra.mxu0 0.0
      %6550 = vmatprep.subr.mxu0 0.0
      %6551 = vmatpush1.msra.mxu0 0.0
      %6552 = vmatprep.subr.mxu0 0.0
      %6553 = vmatpush1.msra.mxu0 0.0
      %6554 = vmatprep.subr.mxu0 0.0
      %6555 = vmatpush1.msra.mxu0 0.0
      %6556 = vmatprep.subr.mxu0 0.0
      %6557 = vmatpush1.msra.mxu0 0.0
      %6558 = vmatprep.subr.mxu0 0.0
      %6559 = vmatpush1.msra.mxu0 0.0
      %6560 = vmatprep.subr.mxu0 0.0
      %6561 = vmatpush1.msra.mxu0 0.0
      %6562 = vmatprep.subr.mxu0 0.0
      %6563 = vmatpush1.msra.mxu0 0.0
      %6564 = vmatprep.subr.mxu0 0.0
      %6565 = vmatpush1.msra.mxu0 0.0
      %6566 = vmatprep.subr.mxu0 0.0
      %6567 = vmatpush1.msra.mxu0 0.0
      %6568 = vmatprep.subr.mxu0 0.0
      %6569 = vmatpush1.msra.mxu0 0.0
      %6570 = vmatprep.subr.mxu0 0.0
      %6571 = vmatpush1.msra.mxu0 0.0
      %6572 = vmatprep.subr.mxu0 0.0
      %6573 = vmatpush1.msra.mxu0 0.0
      %6574 = vmatprep.subr.mxu0 0.0
      %6575 = vmatpush1.msra.mxu0 0.0
      %6576 = vmatprep.subr.mxu0 0.0
      %6577 = vmatpush1.msra.mxu0 0.0
      %6578 = vmatprep.subr.mxu0 0.0
      %6579 = vmatpush1.msra.mxu0 0.0
      %6580 = vmatprep.subr.mxu0 0.0
      %6581 = vmatpush1.msra.mxu0 0.0
      %6582 = vmatprep.subr.mxu0 0.0
      %6583 = vmatpush1.msra.mxu0 0.0
      %6584 = vmatprep.subr.mxu0 0.0
      %6585 = vmatpush1.msra.mxu0 0.0
      %6586 = vmatprep.subr.mxu0 0.0
      %6587 = vmatpush1.msra.mxu0 0.0
      %6588 = vmatprep.subr.mxu0 0.0
      %6589 = vmatpush1.msra.mxu0 0.0
      %6590 = vmatprep.subr.mxu0 0.0
      %6591 = vmatpush1.msra.mxu0 0.0
      %6592 = vmatprep.subr.mxu0 0.0
      %6593 = vmatpush1.msra.mxu0 0.0
      %6594 = vmatprep.subr.mxu0 0.0
      %6595 = vmatpush1.msra.mxu0 0.0
      %6596 = vmatprep.subr.mxu0 0.0
      %6597 = vmatpush1.msra.mxu0 0.0
      %6598 = vmatprep.mubr.f32.mxu0 0.0
      %v6599 = vand.u32 %v4904, 4294901760
      %6600 = vmatmul.mubr.f32.gmra.mrb[0].mxu0 %v6599
      %v6601 = vpop.f32.mrb[0].mxu0
      %v6602 = vadd.f32 %v6343, %v6601
      %v6603 = vpop.f32.mrb[0].mxu0
      %6604 = vmatprep.mubr.f32.mxu0 0.0
      %v6605 = vand.u32 %v4907, 4294901760
      %6606 = vmatmul.mubr.f32.gmra.mrb[0].mxu0 %v6605
      %v6607 = vpop.f32.mrb[0].mxu0
      %v6608 = vadd.f32 %v6349, %v6607
      %v6609 = vpop.f32.mrb[0].mxu0
      %6610 = vmatprep.mubr.f32.mxu0 0.0
      %v6611 = vand.u32 %v4910, 4294901760
      %6612 = vmatmul.mubr.f32.gmra.mrb[0].mxu0 %v6611
      %v6613 = vpop.f32.mrb[0].mxu0
      %v6614 = vadd.f32 %v6355, %v6613
      %v6615 = vpop.f32.mrb[0].mxu0
      %6616 = vmatprep.mubr.f32.mxu0 0.0
      %v6617 = vand.u32 %v4913, 4294901760
      %6618 = vmatmul.mubr.f32.gmra.mrb[0].mxu0 %v6617
      %v6619 = vpop.f32.mrb[0].mxu0
      %v6620 = vadd.f32 %v6361, %v6619
      %v6621 = vpop.f32.mrb[0].mxu0
      %6622 = vmatprep.mubr.f32.mxu0 0.0
      %v6623 = vand.u32 %v4916, 4294901760
      %6624 = vmatmul.mubr.f32.gmra.mrb[0].mxu0 %v6623
      %v6625 = vpop.f32.mrb[0].mxu0
      %v6626 = vadd.f32 %v6367, %v6625
      %v6627 = vpop.f32.mrb[0].mxu0
      %6628 = vmatprep.mubr.f32.mxu0 0.0
      %v6629 = vand.u32 %v4919, 4294901760
      %6630 = vmatmul.mubr.f32.gmra.mrb[0].mxu0 %v6629
      %v6631 = vpop.f32.mrb[0].mxu0
      %v6632 = vadd.f32 %v6373, %v6631
      %v6633 = vpop.f32.mrb[0].mxu0
      %6634 = vmatprep.mubr.f32.mxu0 0.0
      %v6635 = vand.u32 %v4922, 4294901760
      %6636 = vmatmul.mubr.f32.gmra.mrb[0].mxu0 %v6635
      %v6637 = vpop.f32.mrb[0].mxu0
      %v6638 = vadd.f32 %v6379, %v6637
      %v6639 = vpop.f32.mrb[0].mxu0
      %6640 = vmatprep.mubr.f32.mxu0 0.0
      %v6641 = vand.u32 %v4925, 4294901760
      %6642 = vmatmul.mubr.f32.gmra.mrb[0].mxu0 %v6641
      %v6643 = vpop.f32.mrb[0].mxu0
      %v6644 = vadd.f32 %v6385, %v6643
      %v6645 = vpop.f32.mrb[0].mxu0
      %6646 = vmatprep.mubr.f32.mxu0 0.0
      %v6647 = vand.u32 %v4928, 4294901760
      %6648 = vmatmul.mubr.f32.gmra.mrb[0].mxu0 %v6647
      %v6649 = vpop.f32.mrb[0].mxu0
      %v6650 = vadd.f32 %v6391, %v6649
      %v6651 = vpop.f32.mrb[0].mxu0
      %6652 = vmatprep.mubr.f32.mxu0 0.0
      %v6653 = vand.u32 %v4931, 4294901760
      %6654 = vmatmul.mubr.f32.gmra.mrb[0].mxu0 %v6653
      %v6655 = vpop.f32.mrb[0].mxu0
      %v6656 = vadd.f32 %v6397, %v6655
      %v6657 = vpop.f32.mrb[0].mxu0
      %6658 = vmatprep.mubr.f32.mxu0 0.0
      %v6659 = vand.u32 %v4934, 4294901760
      %6660 = vmatmul.mubr.f32.gmra.mrb[0].mxu0 %v6659
      %v6661 = vpop.f32.mrb[0].mxu0
      %v6662 = vadd.f32 %v6403, %v6661
      %v6663 = vpop.f32.mrb[0].mxu0
      %6664 = vmatprep.mubr.f32.mxu0 0.0
      %v6665 = vand.u32 %v4937, 4294901760
      %6666 = vmatmul.mubr.f32.gmra.mrb[0].mxu0 %v6665
      %v6667 = vpop.f32.mrb[0].mxu0
      %v6668 = vadd.f32 %v6409, %v6667
      %v6669 = vpop.f32.mrb[0].mxu0
      %6670 = vmatprep.mubr.f32.mxu0 0.0
      %v6671 = vand.u32 %v4940, 4294901760
      %6672 = vmatmul.mubr.f32.gmra.mrb[0].mxu0 %v6671
      %v6673 = vpop.f32.mrb[0].mxu0
      %v6674 = vadd.f32 %v6415, %v6673
      %v6675 = vpop.f32.mrb[0].mxu0
      %6676 = vmatprep.mubr.f32.mxu0 0.0
      %v6677 = vand.u32 %v4943, 4294901760
      %6678 = vmatmul.mubr.f32.gmra.mrb[0].mxu0 %v6677
      %v6679 = vpop.f32.mrb[0].mxu0
      %v6680 = vadd.f32 %v6421, %v6679
      %v6681 = vpop.f32.mrb[0].mxu0
      %6682 = vmatprep.mubr.f32.mxu0 0.0
      %v6683 = vand.u32 %v4946, 4294901760
      %6684 = vmatmul.mubr.f32.gmra.mrb[0].mxu0 %v6683
      %v6685 = vpop.f32.mrb[0].mxu0
      %v6686 = vadd.f32 %v6427, %v6685
      %v6687 = vpop.f32.mrb[0].mxu0
      %6688 = vmatprep.mubr.f32.mxu0 0.0
      %v6689 = vand.u32 %v4949, 4294901760
      %6690 = vmatmul.mubr.f32.gmra.mrb[0].mxu0 %v6689
      %v6691 = vpop.f32.mrb[0].mxu0
      %v6692 = vadd.f32 %v6433, %v6691
      %v6693 = vpop.f32.mrb[0].mxu0
      %6694 = vmatprep.mubr.f32.mxu0 0.0
      %v6695 = vand.u32 %v4952, 4294901760
      %6696 = vmatmul.mubr.f32.gmra.mrb[0].mxu0 %v6695
      %v6697 = vpop.f32.mrb[0].mxu0
      %v6698 = vadd.f32 %v6439, %v6697
      %v6699 = vpop.f32.mrb[0].mxu0
      %6700 = vmatprep.mubr.f32.mxu0 0.0
      %v6701 = vand.u32 %v4955, 4294901760
      %6702 = vmatmul.mubr.f32.gmra.mrb[0].mxu0 %v6701
      %v6703 = vpop.f32.mrb[0].mxu0
      %v6704 = vadd.f32 %v6445, %v6703
      %v6705 = vpop.f32.mrb[0].mxu0
      %6706 = vmatprep.mubr.f32.mxu0 0.0
      %v6707 = vand.u32 %v4958, 4294901760
      %6708 = vmatmul.mubr.f32.gmra.mrb[0].mxu0 %v6707
      %v6709 = vpop.f32.mrb[0].mxu0
      %v6710 = vadd.f32 %v6451, %v6709
      %v6711 = vpop.f32.mrb[0].mxu0
      %6712 = vmatprep.mubr.f32.mxu0 0.0
      %v6713 = vand.u32 %v4961, 4294901760
      %6714 = vmatmul.mubr.f32.gmra.mrb[0].mxu0 %v6713
      %v6715 = vpop.f32.mrb[0].mxu0
      %v6716 = vadd.f32 %v6457, %v6715
      %v6717 = vpop.f32.mrb[0].mxu0
      %6718 = vmatprep.mubr.f32.mxu0 0.0
      %v6719 = vand.u32 %v4964, 4294901760
      %6720 = vmatmul.mubr.f32.gmra.mrb[0].mxu0 %v6719
      %v6721 = vpop.f32.mrb[0].mxu0
      %v6722 = vadd.f32 %v6463, %v6721
      %v6723 = vpop.f32.mrb[0].mxu0
      %6724 = vmatprep.mubr.f32.mxu0 0.0
      %v6725 = vand.u32 %v4967, 4294901760
      %6726 = vmatmul.mubr.f32.gmra.mrb[0].mxu0 %v6725
      %v6727 = vpop.f32.mrb[0].mxu0
      %v6728 = vadd.f32 %v6469, %v6727
      %v6729 = vpop.f32.mrb[0].mxu0
      %6730 = vmatprep.mubr.f32.mxu0 0.0
      %v6731 = vand.u32 %v4970, 4294901760
      %6732 = vmatmul.mubr.f32.gmra.mrb[0].mxu0 %v6731
      %v6733 = vpop.f32.mrb[0].mxu0
      %v6734 = vadd.f32 %v6475, %v6733
      %v6735 = vpop.f32.mrb[0].mxu0
      %6736 = vmatprep.mubr.f32.mxu0 0.0
      %v6737 = vand.u32 %v4973, 4294901760
      %6738 = vmatmul.mubr.f32.gmra.mrb[0].mxu0 %v6737
      %v6739 = vpop.f32.mrb[0].mxu0
      %v6740 = vadd.f32 %v6481, %v6739
      %v6741 = vpop.f32.mrb[0].mxu0
      %6742 = vmatprep.mubr.f32.mxu0 0.0
      %v6743 = vand.u32 %v4976, 4294901760
      %6744 = vmatmul.mubr.f32.gmra.mrb[0].mxu0 %v6743
      %v6745 = vpop.f32.mrb[0].mxu0
      %v6746 = vadd.f32 %v6487, %v6745
      %v6747 = vpop.f32.mrb[0].mxu0
      %6748 = vmatprep.mubr.f32.mxu0 0.0
      %v6749 = vand.u32 %v4979, 4294901760
      %6750 = vmatmul.mubr.f32.gmra.mrb[0].mxu0 %v6749
      %v6751 = vpop.f32.mrb[0].mxu0
      %v6752 = vadd.f32 %v6493, %v6751
      %v6753 = vpop.f32.mrb[0].mxu0
      %6754 = vmatprep.mubr.f32.mxu0 0.0
      %v6755 = vand.u32 %v4982, 4294901760
      %6756 = vmatmul.mubr.f32.gmra.mrb[0].mxu0 %v6755
      %v6757 = vpop.f32.mrb[0].mxu0
      %v6758 = vadd.f32 %v6499, %v6757
      %v6759 = vpop.f32.mrb[0].mxu0
      %6760 = vmatprep.mubr.f32.mxu0 0.0
      %v6761 = vand.u32 %v4985, 4294901760
      %6762 = vmatmul.mubr.f32.gmra.mrb[0].mxu0 %v6761
      %v6763 = vpop.f32.mrb[0].mxu0
      %v6764 = vadd.f32 %v6505, %v6763
      %v6765 = vpop.f32.mrb[0].mxu0
      %6766 = vmatprep.mubr.f32.mxu0 0.0
      %v6767 = vand.u32 %v4988, 4294901760
      %6768 = vmatmul.mubr.f32.gmra.mrb[0].mxu0 %v6767
      %v6769 = vpop.f32.mrb[0].mxu0
      %v6770 = vadd.f32 %v6511, %v6769
      %v6771 = vpop.f32.mrb[0].mxu0
      %6772 = vmatprep.mubr.f32.mxu0 0.0
      %v6773 = vand.u32 %v4991, 4294901760
      %6774 = vmatmul.mubr.f32.gmra.mrb[0].mxu0 %v6773
      %v6775 = vpop.f32.mrb[0].mxu0
      %v6776 = vadd.f32 %v6517, %v6775
      %v6777 = vpop.f32.mrb[0].mxu0
      %6778 = vmatprep.mubr.f32.mxu0 0.0
      %v6779 = vand.u32 %v4994, 4294901760
      %6780 = vmatmul.mubr.f32.gmra.mrb[0].mxu0 %v6779
      %v6781 = vpop.f32.mrb[0].mxu0
      %v6782 = vadd.f32 %v6523, %v6781
      %v6783 = vpop.f32.mrb[0].mxu0
      %6784 = vmatprep.mubr.f32.mxu0 0.0
      %v6785 = vand.u32 %v4997, 4294901760
      %6786 = vmatmul.mubr.f32.gmra.mrb[0].mxu0 %v6785
      %v6787 = vpop.f32.mrb[0].mxu0
      %v6788 = vadd.f32 %v6529, %v6787
      %v6789 = vpop.f32.mrb[0].mxu0
      %6790 = vdwg.mxu0
      %v6791 = vmul.f32 %v6602, 0.5
      %v6792 = vmul.f32 %v6608, 0.5
      %v6793 = vmul.f32 %v6614, 0.5
      %v6794 = vmul.f32 %v6620, 0.5
      %v6795 = vmul.f32 %v6626, 0.5
      %v6796 = vmul.f32 %v6632, 0.5
      %v6797 = vmul.f32 %v6638, 0.5
      %v6798 = vmul.f32 %v6644, 0.5
      %v6799 = vmul.f32 %v6650, 0.5
      %v6800 = vmul.f32 %v6656, 0.5
      %v6801 = vmul.f32 %v6662, 0.5
      %v6802 = vmul.f32 %v6668, 0.5
      %v6803 = vmul.f32 %v6674, 0.5
      %v6804 = vmul.f32 %v6680, 0.5
      %v6805 = vmul.f32 %v6686, 0.5
      %v6806 = vmul.f32 %v6692, 0.5
      %v6807 = vmul.f32 %v6698, 0.5
      %v6808 = vmul.f32 %v6704, 0.5
      %v6809 = vmul.f32 %v6710, 0.5
      %v6810 = vmul.f32 %v6716, 0.5
      %v6811 = vmul.f32 %v6722, 0.5
      %v6812 = vmul.f32 %v6728, 0.5
      %v6813 = vmul.f32 %v6734, 0.5
      %v6814 = vmul.f32 %v6740, 0.5
      %v6815 = vmul.f32 %v6746, 0.5
      %v6816 = vmul.f32 %v6752, 0.5
      %v6817 = vmul.f32 %v6758, 0.5
      %v6818 = vmul.f32 %v6764, 0.5
      %v6819 = vmul.f32 %v6770, 0.5
      %v6820 = vmul.f32 %v6776, 0.5
      %v6821 = vmul.f32 %v6782, 0.5
      %v6822 = vmul.f32 %v6788, 0.5
      %v6823 = vtanh.pop %v6791
      %v6824 = vtanh.pop %v6792
      %v6825 = vtanh.pop %v6793
      %v6826 = vtanh.pop %v6794
      %v6827 = vtanh.pop %v6795
      %v6828 = vtanh.pop %v6796
      %v6829 = vtanh.pop %v6797
      %v6830 = vtanh.pop %v6798
      %v6831 = vtanh.pop %v6799
      %v6832 = vtanh.pop %v6800
      %v6833 = vtanh.pop %v6801
      %v6834 = vtanh.pop %v6802
      %v6835 = vtanh.pop %v6803
      %v6836 = vtanh.pop %v6804
      %v6837 = vtanh.pop %v6805
      %v6838 = vtanh.pop %v6806
      %v6839 = vtanh.pop %v6807
      %v6840 = vtanh.pop %v6808
      %v6841 = vtanh.pop %v6809
      %v6842 = vtanh.pop %v6810
      %v6843 = vtanh.pop %v6811
      %v6844 = vtanh.pop %v6812
      %v6845 = vtanh.pop %v6813
      %v6846 = vtanh.pop %v6814
      %v6847 = vtanh.pop %v6815
      %v6848 = vtanh.pop %v6816
      %v6849 = vtanh.pop %v6817
      %v6850 = vtanh.pop %v6818
      %v6851 = vtanh.pop %v6819
      %v6852 = vtanh.pop %v6820
      %v6853 = vtanh.pop %v6821
      %v6854 = vtanh.pop %v6822
      %v6855 = vmul.f32 %v6823, 0.5
      %v6856 = vmul.f32 %v6824, 0.5
      %v6857 = vmul.f32 %v6825, 0.5
      %v6858 = vmul.f32 %v6826, 0.5
      %v6859 = vmul.f32 %v6827, 0.5
      %v6860 = vmul.f32 %v6828, 0.5
      %v6861 = vmul.f32 %v6829, 0.5
      %v6862 = vmul.f32 %v6830, 0.5
      %v6863 = vmul.f32 %v6831, 0.5
      %v6864 = vmul.f32 %v6832, 0.5
      %v6865 = vmul.f32 %v6833, 0.5
      %v6866 = vmul.f32 %v6834, 0.5
      %v6867 = vmul.f32 %v6835, 0.5
      %v6868 = vmul.f32 %v6836, 0.5
      %v6869 = vmul.f32 %v6837, 0.5
      %v6870 = vmul.f32 %v6838, 0.5
      %v6871 = vmul.f32 %v6839, 0.5
      %v6872 = vmul.f32 %v6840, 0.5
      %v6873 = vmul.f32 %v6841, 0.5
      %v6874 = vmul.f32 %v6842, 0.5
      %v6875 = vmul.f32 %v6843, 0.5
      %v6876 = vmul.f32 %v6844, 0.5
      %v6877 = vmul.f32 %v6845, 0.5
      %v6878 = vmul.f32 %v6846, 0.5
      %v6879 = vmul.f32 %v6847, 0.5
      %v6880 = vmul.f32 %v6848, 0.5
      %v6881 = vmul.f32 %v6849, 0.5
      %v6882 = vmul.f32 %v6850, 0.5
      %v6883 = vmul.f32 %v6851, 0.5
      %v6884 = vmul.f32 %v6852, 0.5
      %v6885 = vmul.f32 %v6853, 0.5
      %v6886 = vmul.f32 %v6854, 0.5
      %v6887 = vadd.f32 %v6855, 0.5
      %v6888 = vadd.f32 %v6856, 0.5
      %v6889 = vadd.f32 %v6857, 0.5
      %v6890 = vadd.f32 %v6858, 0.5
      %v6891 = vadd.f32 %v6859, 0.5
      %v6892 = vadd.f32 %v6860, 0.5
      %v6893 = vadd.f32 %v6861, 0.5
      %v6894 = vadd.f32 %v6862, 0.5
      %v6895 = vadd.f32 %v6863, 0.5
      %v6896 = vadd.f32 %v6864, 0.5
      %v6897 = vadd.f32 %v6865, 0.5
      %v6898 = vadd.f32 %v6866, 0.5
      %v6899 = vadd.f32 %v6867, 0.5
      %v6900 = vadd.f32 %v6868, 0.5
      %v6901 = vadd.f32 %v6869, 0.5
      %v6902 = vadd.f32 %v6870, 0.5
      %v6903 = vadd.f32 %v6871, 0.5
      %v6904 = vadd.f32 %v6872, 0.5
      %v6905 = vadd.f32 %v6873, 0.5
      %v6906 = vadd.f32 %v6874, 0.5
      %v6907 = vadd.f32 %v6875, 0.5
      %v6908 = vadd.f32 %v6876, 0.5
      %v6909 = vadd.f32 %v6877, 0.5
      %v6910 = vadd.f32 %v6878, 0.5
      %v6911 = vadd.f32 %v6879, 0.5
      %v6912 = vadd.f32 %v6880, 0.5
      %v6913 = vadd.f32 %v6881, 0.5
      %v6914 = vadd.f32 %v6882, 0.5
      %v6915 = vadd.f32 %v6883, 0.5
      %v6916 = vadd.f32 %v6884, 0.5
      %v6917 = vadd.f32 %v6885, 0.5
      %v6918 = vadd.f32 %v6886, 0.5
      %6920 = vset.pattern.permute.xlu0 0
      %6921 = vperm.xlu0 %6920, %v6887
      %v6922 = vpop.permute.xlu0 %6921
      %6925 = vset.pattern.permute.xlu0 0
      %6926 = vperm.xlu0 %6925, %v6888
      %v6927 = vpop.permute.xlu0 %6926
      %6930 = vset.pattern.permute.xlu0 0
      %6931 = vperm.xlu0 %6930, %v6889
      %v6932 = vpop.permute.xlu0 %6931
      %6935 = vset.pattern.permute.xlu0 0
      %6936 = vperm.xlu0 %6935, %v6890
      %v6937 = vpop.permute.xlu0 %6936
      %6940 = vset.pattern.permute.xlu0 0
      %6941 = vperm.xlu0 %6940, %v6891
      %v6942 = vpop.permute.xlu0 %6941
      %6945 = vset.pattern.permute.xlu0 0
      %6946 = vperm.xlu0 %6945, %v6892
      %v6947 = vpop.permute.xlu0 %6946
      %6950 = vset.pattern.permute.xlu0 0
      %6951 = vperm.xlu0 %6950, %v6893
      %v6952 = vpop.permute.xlu0 %6951
      %6955 = vset.pattern.permute.xlu0 0
      %6956 = vperm.xlu0 %6955, %v6894
      %v6957 = vpop.permute.xlu0 %6956
      %6960 = vset.pattern.permute.xlu0 0
      %6961 = vperm.xlu0 %6960, %v6895
      %v6962 = vpop.permute.xlu0 %6961
      %6965 = vset.pattern.permute.xlu0 0
      %6966 = vperm.xlu0 %6965, %v6896
      %v6967 = vpop.permute.xlu0 %6966
      %6970 = vset.pattern.permute.xlu0 0
      %6971 = vperm.xlu0 %6970, %v6897
      %v6972 = vpop.permute.xlu0 %6971
      %6975 = vset.pattern.permute.xlu0 0
      %6976 = vperm.xlu0 %6975, %v6898
      %v6977 = vpop.permute.xlu0 %6976
      %6980 = vset.pattern.permute.xlu0 0
      %6981 = vperm.xlu0 %6980, %v6899
      %v6982 = vpop.permute.xlu0 %6981
      %6985 = vset.pattern.permute.xlu0 0
      %6986 = vperm.xlu0 %6985, %v6900
      %v6987 = vpop.permute.xlu0 %6986
      %6990 = vset.pattern.permute.xlu0 0
      %6991 = vperm.xlu0 %6990, %v6901
      %v6992 = vpop.permute.xlu0 %6991
      %6995 = vset.pattern.permute.xlu0 0
      %6996 = vperm.xlu0 %6995, %v6902
      %v6997 = vpop.permute.xlu0 %6996
      %7000 = vset.pattern.permute.xlu0 0
      %7001 = vperm.xlu0 %7000, %v6903
      %v7002 = vpop.permute.xlu0 %7001
      %7005 = vset.pattern.permute.xlu0 0
      %7006 = vperm.xlu0 %7005, %v6904
      %v7007 = vpop.permute.xlu0 %7006
      %7010 = vset.pattern.permute.xlu0 0
      %7011 = vperm.xlu0 %7010, %v6905
      %v7012 = vpop.permute.xlu0 %7011
      %7015 = vset.pattern.permute.xlu0 0
      %7016 = vperm.xlu0 %7015, %v6906
      %v7017 = vpop.permute.xlu0 %7016
      %7020 = vset.pattern.permute.xlu0 0
      %7021 = vperm.xlu0 %7020, %v6907
      %v7022 = vpop.permute.xlu0 %7021
      %7025 = vset.pattern.permute.xlu0 0
      %7026 = vperm.xlu0 %7025, %v6908
      %v7027 = vpop.permute.xlu0 %7026
      %7030 = vset.pattern.permute.xlu0 0
      %7031 = vperm.xlu0 %7030, %v6909
      %v7032 = vpop.permute.xlu0 %7031
      %7035 = vset.pattern.permute.xlu0 0
      %7036 = vperm.xlu0 %7035, %v6910
      %v7037 = vpop.permute.xlu0 %7036
      %7040 = vset.pattern.permute.xlu0 0
      %7041 = vperm.xlu0 %7040, %v6911
      %v7042 = vpop.permute.xlu0 %7041
      %7045 = vset.pattern.permute.xlu0 0
      %7046 = vperm.xlu0 %7045, %v6912
      %v7047 = vpop.permute.xlu0 %7046
      %7050 = vset.pattern.permute.xlu0 0
      %7051 = vperm.xlu0 %7050, %v6913
      %v7052 = vpop.permute.xlu0 %7051
      %7055 = vset.pattern.permute.xlu0 0
      %7056 = vperm.xlu0 %7055, %v6914
      %v7057 = vpop.permute.xlu0 %7056
      %7060 = vset.pattern.permute.xlu0 0
      %7061 = vperm.xlu0 %7060, %v6915
      %v7062 = vpop.permute.xlu0 %7061
      %7065 = vset.pattern.permute.xlu0 0
      %7066 = vperm.xlu0 %7065, %v6916
      %v7067 = vpop.permute.xlu0 %7066
      %7070 = vset.pattern.permute.xlu0 0
      %7071 = vperm.xlu0 %7070, %v6917
      %v7072 = vpop.permute.xlu0 %7071
      %7075 = vset.pattern.permute.xlu0 0
      %7076 = vperm.xlu0 %7075, %v6918
      %v7077 = vpop.permute.xlu0 %7076
      %v7079 = vmul.f32 %v3721, %v6922
      %v7080 = vmul.f32 %v3722, %v6922
      %v7081 = vmul.f32 %v3723, %v6927
      %v7082 = vmul.f32 %v3724, %v6927
      %v7083 = vmul.f32 %v3725, %v6932
      %v7084 = vmul.f32 %v3726, %v6932
      %v7085 = vmul.f32 %v3727, %v6937
      %v7086 = vmul.f32 %v3728, %v6937
      %v7087 = vmul.f32 %v3729, %v6942
      %v7088 = vmul.f32 %v3730, %v6942
      %v7089 = vmul.f32 %v3731, %v6947
      %v7090 = vmul.f32 %v3732, %v6947
      %v7091 = vmul.f32 %v3733, %v6952
      %v7092 = vmul.f32 %v3734, %v6952
      %v7093 = vmul.f32 %v3735, %v6957
      %v7094 = vmul.f32 %v3736, %v6957
      %v7095 = vmul.f32 %v3737, %v6962
      %v7096 = vmul.f32 %v3738, %v6962
      %v7097 = vmul.f32 %v3739, %v6967
      %v7098 = vmul.f32 %v3740, %v6967
      %v7099 = vmul.f32 %v3741, %v6972
      %v7100 = vmul.f32 %v3742, %v6972
      %v7101 = vmul.f32 %v3743, %v6977
      %v7102 = vmul.f32 %v3744, %v6977
      %v7103 = vmul.f32 %v3745, %v6982
      %v7104 = vmul.f32 %v3746, %v6982
      %v7105 = vmul.f32 %v3747, %v6987
      %v7106 = vmul.f32 %v3748, %v6987
      %v7107 = vmul.f32 %v3749, %v6992
      %v7108 = vmul.f32 %v3750, %v6992
      %v7109 = vmul.f32 %v3751, %v6997
      %v7110 = vmul.f32 %v3752, %v6997
      %v7111 = vmul.f32 %v3753, %v7002
      %v7112 = vmul.f32 %v3754, %v7002
      %v7113 = vmul.f32 %v3755, %v7007
      %v7114 = vmul.f32 %v3756, %v7007
      %v7115 = vmul.f32 %v3757, %v7012
      %v7116 = vmul.f32 %v3758, %v7012
      %v7117 = vmul.f32 %v3759, %v7017
      %v7118 = vmul.f32 %v3760, %v7017
      %v7119 = vmul.f32 %v3761, %v7022
      %v7120 = vmul.f32 %v3762, %v7022
      %v7121 = vmul.f32 %v3763, %v7027
      %v7122 = vmul.f32 %v3764, %v7027
      %v7123 = vmul.f32 %v3765, %v7032
      %v7124 = vmul.f32 %v3766, %v7032
      %v7125 = vmul.f32 %v3767, %v7037
      %v7126 = vmul.f32 %v3768, %v7037
      %v7127 = vmul.f32 %v3769, %v7042
      %v7128 = vmul.f32 %v3770, %v7042
      %v7129 = vmul.f32 %v3771, %v7047
      %v7130 = vmul.f32 %v3772, %v7047
      %v7131 = vmul.f32 %v3773, %v7052
      %v7132 = vmul.f32 %v3774, %v7052
      %v7133 = vmul.f32 %v3775, %v7057
      %v7134 = vmul.f32 %v3776, %v7057
      %v7135 = vmul.f32 %v3777, %v7062
      %v7136 = vmul.f32 %v3778, %v7062
      %v7137 = vmul.f32 %v3779, %v7067
      %v7138 = vmul.f32 %v3780, %v7067
      %v7139 = vmul.f32 %v3781, %v7072
      %v7140 = vmul.f32 %v3782, %v7072
      %v7141 = vmul.f32 %v3783, %v7077
      %v7142 = vmul.f32 %v3784, %v7077
      %s7143 = scalar_lea.vmem %s231, 512
      %7144 = vst [vmem:[%s7143] sm:$0xff] %v7079
      %7145 = vst [vmem:[%s7143 + $0x8] sm:$0xff] %v7080
      %7146 = vst [vmem:[%s7143 + $0x10] sm:$0xff] %v7081
      %7147 = vst [vmem:[%s7143 + $0x18] sm:$0xff] %v7082
      %7148 = vst [vmem:[%s7143 + $0x20] sm:$0xff] %v7083
      %7149 = vst [vmem:[%s7143 + $0x28] sm:$0xff] %v7084
      %7150 = vst [vmem:[%s7143 + $0x30] sm:$0xff] %v7085
      %7151 = vst [vmem:[%s7143 + $0x38] sm:$0xff] %v7086
      %7152 = vst [vmem:[%s7143 + $0x40] sm:$0xff] %v7087
      %7153 = vst [vmem:[%s7143 + $0x48] sm:$0xff] %v7088
      %7154 = vst [vmem:[%s7143 + $0x50] sm:$0xff] %v7089
      %7155 = vst [vmem:[%s7143 + $0x58] sm:$0xff] %v7090
      %7156 = vst [vmem:[%s7143 + $0x60] sm:$0xff] %v7091
      %7157 = vst [vmem:[%s7143 + $0x68] sm:$0xff] %v7092
      %7158 = vst [vmem:[%s7143 + $0x70] sm:$0xff] %v7093
      %7159 = vst [vmem:[%s7143 + $0x78] sm:$0xff] %v7094
      %7160 = vst [vmem:[%s7143 + $0x80] sm:$0xff] %v7095
      %7161 = vst [vmem:[%s7143 + $0x88] sm:$0xff] %v7096
      %7162 = vst [vmem:[%s7143 + $0x90] sm:$0xff] %v7097
      %7163 = vst [vmem:[%s7143 + $0x98] sm:$0xff] %v7098
      %7164 = vst [vmem:[%s7143 + $0xa0] sm:$0xff] %v7099
      %7165 = vst [vmem:[%s7143 + $0xa8] sm:$0xff] %v7100
      %7166 = vst [vmem:[%s7143 + $0xb0] sm:$0xff] %v7101
      %7167 = vst [vmem:[%s7143 + $0xb8] sm:$0xff] %v7102
      %7168 = vst [vmem:[%s7143 + $0xc0] sm:$0xff] %v7103
      %7169 = vst [vmem:[%s7143 + $0xc8] sm:$0xff] %v7104
      %7170 = vst [vmem:[%s7143 + $0xd0] sm:$0xff] %v7105
      %7171 = vst [vmem:[%s7143 + $0xd8] sm:$0xff] %v7106
      %7172 = vst [vmem:[%s7143 + $0xe0] sm:$0xff] %v7107
      %7173 = vst [vmem:[%s7143 + $0xe8] sm:$0xff] %v7108
      %7174 = vst [vmem:[%s7143 + $0xf0] sm:$0xff] %v7109
      %7175 = vst [vmem:[%s7143 + $0xf8] sm:$0xff] %v7110
      %7176 = vst [vmem:[%s7143 + $0x100] sm:$0xff] %v7111
      %7177 = vst [vmem:[%s7143 + $0x108] sm:$0xff] %v7112
      %7178 = vst [vmem:[%s7143 + $0x110] sm:$0xff] %v7113
      %7179 = vst [vmem:[%s7143 + $0x118] sm:$0xff] %v7114
      %7180 = vst [vmem:[%s7143 + $0x120] sm:$0xff] %v7115
      %7181 = vst [vmem:[%s7143 + $0x128] sm:$0xff] %v7116
      %7182 = vst [vmem:[%s7143 + $0x130] sm:$0xff] %v7117
      %7183 = vst [vmem:[%s7143 + $0x138] sm:$0xff] %v7118
      %7184 = vst [vmem:[%s7143 + $0x140] sm:$0xff] %v7119
      %7185 = vst [vmem:[%s7143 + $0x148] sm:$0xff] %v7120
      %7186 = vst [vmem:[%s7143 + $0x150] sm:$0xff] %v7121
      %7187 = vst [vmem:[%s7143 + $0x158] sm:$0xff] %v7122
      %7188 = vst [vmem:[%s7143 + $0x160] sm:$0xff] %v7123
      %7189 = vst [vmem:[%s7143 + $0x168] sm:$0xff] %v7124
      %7190 = vst [vmem:[%s7143 + $0x170] sm:$0xff] %v7125
      %7191 = vst [vmem:[%s7143 + $0x178] sm:$0xff] %v7126
      %7192 = vst [vmem:[%s7143 + $0x180] sm:$0xff] %v7127
      %7193 = vst [vmem:[%s7143 + $0x188] sm:$0xff] %v7128
      %7194 = vst [vmem:[%s7143 + $0x190] sm:$0xff] %v7129
      %7195 = vst [vmem:[%s7143 + $0x198] sm:$0xff] %v7130
      %7196 = vst [vmem:[%s7143 + $0x1a0] sm:$0xff] %v7131
      %7197 = vst [vmem:[%s7143 + $0x1a8] sm:$0xff] %v7132
      %7198 = vst [vmem:[%s7143 + $0x1b0] sm:$0xff] %v7133
      %7199 = vst [vmem:[%s7143 + $0x1b8] sm:$0xff] %v7134
      %7200 = vst [vmem:[%s7143 + $0x1c0] sm:$0xff] %v7135
      %7201 = vst [vmem:[%s7143 + $0x1c8] sm:$0xff] %v7136
      %7202 = vst [vmem:[%s7143 + $0x1d0] sm:$0xff] %v7137
      %7203 = vst [vmem:[%s7143 + $0x1d8] sm:$0xff] %v7138
      %7204 = vst [vmem:[%s7143 + $0x1e0] sm:$0xff] %v7139
      %7205 = vst [vmem:[%s7143 + $0x1e8] sm:$0xff] %v7140
      %7206 = vst [vmem:[%s7143 + $0x1f0] sm:$0xff] %v7141
      %7207 = vst [vmem:[%s7143 + $0x1f8] sm:$0xff] %v7142
      %s7208 = smul.u32 2, %s16
      %p7209 = scmp.lt.s32.totalorder %s7208, 7
      %s7210 = scalar_select %p7209, %s7208, 7
      %s7211 = smul.addr %s7210, 64
      %s7212 = smul.addr %s7211, 8
      %s7213 = scalar_lea.vmem %s5, %s7212
      // Predicated region
      $region41: #{_lambda_.1} parent=39 // pred_check
        %p7214 = pneg %p144
      $region42: #{_lambda_.1} parent=39 // pred_check_branch
        %7216 = sbr.rel (%p7214) target = $region44
      $region43: #{_lambda_.1} parent=39 // pred_region
        %s7217 = smul.u32 2, %s16
      $region44: #{_lambda_.1} parent=39 // pred_fallthru
        _
    $region40: #{_lambda_.1} parent=5 // pred_fallthru
      _
    %p7218 = scmp.le.s32.totalorder 2, %s11
    // Predicated region
    $region45: #{_lambda_.1} parent=5 // pred_check
      %p7219 = pneg %p7218
    $region46: #{_lambda_.1} parent=5 // pred_check_branch
      %7221 = sbr.rel (%p7219) target = $region48
    $region47: #{_lambda_.1} parent=5 // pred_region
      %s7222 = ssub.s32 %s11, 2
      // Predicated region
      $region49: #{_lambda_.1} parent=47 // pred_check
        %p7223 = pneg %p150
      $region50: #{_lambda_.1} parent=47 // pred_check_branch
        %7225 = sbr.rel (%p7223) target = $region52
      $region51: #{_lambda_.1} parent=47 // pred_region
        %s7226 = smul.u32 2, %s17
        %p7227 = scmp.lt.s32.totalorder %s7226, 7
        %s7228 = scalar_select %p7227, %s7226, 7
        %s7229 = smul.addr %s7228, 64
        %s7230 = smul.addr %s7229, 8
        %s7231 = scalar_lea.vmem %s5, %s7230
      $region52: #{_lambda_.1} parent=47 // pred_fallthru
        _
    $region48: #{_lambda_.1} parent=5 // pred_fallthru
      _
  $region6: #{_lambda_.1} parent=0 // loop_footer
    %s15 = sadd.s32 1, %s11
  $region7: #{_lambda_.1} parent=0 // loop_footer_branch
    %10 = sbr.rel target = $region3
  $region8: #{_lambda_.1} parent=0 // loop_exit
    _

</llo_original>
